<compile_context>
chip_gen: v7x
topology: tpu7x:2x2x1
jax: 0.10.0
libtpu: 0.0.40
codegen_flags: <defaults>
</compile_context>

<pallas_src>
import jax
import jax.numpy as jnp
from jax import lax
from jax.experimental import pallas as pl
from jax.experimental.pallas import tpu as pltpu  # noqa: F401  (imported per convention)

# ------------------------- config (small synthetic CLIP) -------------------------
DTYPE     = jnp.float32
WIDTH     = 32          # transformer width (shared by visual & text towers)
HEADS     = 4
HEAD_DIM  = WIDTH // HEADS
V_LAYERS  = 2           # visual transformer depth
T_LAYERS  = 2           # text transformer depth
EMBED_DIM = 16          # joint embedding dim
PATCH     = 8
IMG       = 16
IMG_CH    = 3
CTX       = 8           # text context length
N_PATCHES = (IMG // PATCH) ** 2
T_IMG     = N_PATCHES + 1          # real visual sequence length (5)
T_PAD     = 8                      # padded to one sublane tile
OUT_LANES = 128                    # lane-dense padded output slab width

_BLOCK_KEYS = ("ln1_g", "ln1_b", "in_w", "in_b", "out_w", "out_b",
               "ln2_g", "ln2_b", "fc_w", "fc_b", "proj_w", "proj_b")
_NBK = len(_BLOCK_KEYS)


# ------------------------- in-kernel helpers (traced only inside the kernel) ------
def _layernorm(x, g, b):
    x = x.astype(jnp.float32)
    mu = jnp.mean(x, axis=-1, keepdims=True)
    var = jnp.mean((x - mu) ** 2, axis=-1, keepdims=True)
    return (x - mu) * lax.rsqrt(var + 1e-5) * g + b


def _linear(x, w, b):
    return jnp.dot(x, w, preferred_element_type=jnp.float32) + b


def _quick_gelu(y):                      # CLIP QuickGELU: x * sigmoid(1.702 x)
    return y * jax.nn.sigmoid(1.702 * y)


def _softmax_rows(s):
    m = jnp.max(s, axis=-1, keepdims=True)
    p = jnp.exp(s - m)
    denom = jnp.sum(p, axis=-1, keepdims=True)
    return p * pl.reciprocal(denom, approx=True)     # EUP reciprocal


def _mha(x2d, n_batch, seq, in_w, in_b, out_w, out_b, mask_add):
    # x2d: (B*seq, WIDTH).  Batch handled by the batched dot_general; only a
    # short static loop over HEADS remains (lane slices + one concat per layer).
    qkv = _linear(x2d, in_w, in_b)                       # (B*seq, 3*WIDTH)
    qkv3 = qkv.reshape(n_batch, seq, 3 * WIDTH)          # leading-dim split (safe)
    scale = 1.0 / (HEAD_DIM ** 0.5)
    heads = []
    for h in range(HEADS):
        c = h * HEAD_DIM
        q = qkv3[:, :, c:c + HEAD_DIM] * scale                             # (B,seq,HD)
        k = qkv3[:, :, WIDTH + c:WIDTH + c + HEAD_DIM]
        v = qkv3[:, :, 2 * WIDTH + c:2 * WIDTH + c + HEAD_DIM]
        s = jnp.einsum('bqd,bkd->bqk', q, k,
                       preferred_element_type=jnp.float32)                 # (B,seq,seq)
        s = s + mask_add                                                    # broadcast
        p = _softmax_rows(s)
        heads.append(jnp.einsum('bqk,bkd->bqd', p, v,
                                preferred_element_type=jnp.float32))       # (B,seq,HD)
    o = jnp.concatenate(heads, axis=-1)                  # (B, seq, WIDTH)
    o2d = o.reshape(n_batch * seq, WIDTH)                # leading-dim merge (safe)
    return _linear(o2d, out_w, out_b)


def _residual_block(x2d, n_batch, seq, blk, l, mask_add):
    # NOTE: layer loops are static Python (2 layers); switch to lax.fori_loop
    # with dynamic blk_ref[l] indexing if depth grows to real CLIP sizes.
    (ln1_g, ln1_b, in_w, in_b, out_w, out_b,
     ln2_g, ln2_b, fc_w, fc_b, pw, pb) = blk
    h = _layernorm(x2d, ln1_g[l], ln1_b[l])
    x2d = x2d + _mha(h, n_batch, seq, in_w[l], in_b[l], out_w[l], out_b[l], mask_add)
    h = _layernorm(x2d, ln2_g[l], ln2_b[l])
    h = _quick_gelu(_linear(h, fc_w[l], fc_b[l]))
    h = _linear(h, pw[l], pb[l])
    return x2d + h


def _l2norm_pad(feat):
    # feat (B, EMBED_DIM) -> L2 normalized, padded to a lane-dense (B, OUT_LANES) slab.
    # No epsilon, matching PyTorch x / x.norm() semantics.
    nrm = feat * lax.rsqrt(jnp.sum(feat * feat, axis=-1, keepdims=True))
    pad = jnp.zeros((feat.shape[0], OUT_LANES - feat.shape[1]), jnp.float32)
    return jnp.concatenate([nrm, pad], axis=-1)


# ------------------------------- fused kernel --------------------------------------
def _clip_kernel(*refs):
    (patches_ref, conv_w_ref, cls_ref, vpos_ref, vln_pre_g, vln_pre_b) = refs[0:6]
    v_blk = refs[6:6 + _NBK]
    vln_post_g, vln_post_b, vproj_ref = refs[6 + _NBK:9 + _NBK]
    base = 9 + _NBK
    prompts_ref, tpos_ref = refs[base:base + 2]
    t_blk = refs[base + 2:base + 2 + _NBK]
    tln_g, tln_b, tproj_ref, sel_ref = refs[base + 2 + _NBK:base + 6 + _NBK]
    img_out_ref, txt_out_ref = refs[-2], refs[-1]

    # ------------------------------ visual tower ------------------------------
    b_img = patches_ref.shape[0] // N_PATCHES
    # conv1 (kernel=stride=PATCH, no bias) == matmul on unfolded patches
    emb = jnp.dot(patches_ref[...], conv_w_ref[...],
                  preferred_element_type=jnp.float32)                  # (B*NP, W)
    emb3 = emb.reshape(b_img, N_PATCHES, WIDTH)                        # (B, NP, W)
    cls3 = jnp.broadcast_to(cls_ref[...].reshape(1, 1, WIDTH),
                            (b_img, 1, WIDTH))                         # (B, 1, W)
    pad3 = jnp.zeros((b_img, T_PAD - T_IMG, WIDTH), jnp.float32)       # (B, 3, W)
    x3 = jnp.concatenate([cls3, emb3, pad3], axis=1) + vpos_ref[...]   # (B, T_PAD, W)
    x = x3.reshape(b_img * T_PAD, WIDTH)
    x = _layernorm(x, vln_pre_g[...], vln_pre_b[...])

    # pad-key mask: keys >= T_IMG contribute nothing (pad query rows are discarded)
    vcol = lax.broadcasted_iota(jnp.int32, (T_PAD, T_PAD), 1)
    vmask = jnp.where(vcol < T_IMG, 0.0, -1e30).astype(jnp.float32)

    for l in range(V_LAYERS):
        x = _residual_block(x, b_img, T_PAD, v_blk, l, vmask)

    cls_tok = x.reshape(b_img, T_PAD, WIDTH)[:, 0, :]                  # (B, W)
    cls_tok = _layernorm(cls_tok, vln_post_g[...], vln_post_b[...])
    img_feat = jnp.dot(cls_tok, vproj_ref[...], preferred_element_type=jnp.float32)
    img_out_ref[...] = _l2norm_pad(img_feat).astype(img_out_ref.dtype)

    # ------------------------------- text tower -------------------------------
    b_txt = prompts_ref.shape[0]
    t3 = prompts_ref[...] + tpos_ref[...]                              # (B, CTX, W)
    t = t3.reshape(b_txt * CTX, WIDTH)

    # causal mask, built once (hoisted out of the per-layer loop)
    row = lax.broadcasted_iota(jnp.int32, (CTX, CTX), 0)
    col = lax.broadcasted_iota(jnp.int32, (CTX, CTX), 1)
    tmask = jnp.where(col <= row, 0.0, -1e30).astype(jnp.float32)

    for l in range(T_LAYERS):
        t = _residual_block(t, b_txt, CTX, t_blk, l, tmask)

    t = _layernorm(t, tln_g[...], tln_b[...])
    # EOT gather as one small matmul: (B, B*CTX) one-hot @ (B*CTX, W)
    sel = jnp.dot(sel_ref[...], t, preferred_element_type=jnp.float32)  # (B, W)
    txt_feat = jnp.dot(sel, tproj_ref[...], preferred_element_type=jnp.float32)
    txt_out_ref[...] = _l2norm_pad(txt_feat).astype(txt_out_ref.dtype)


# ------------------------------- wrapper / glue -------------------------------------
def _get_block(blk, key):
    if key in ("in_w", "in_b", "out_w", "out_b"):
        return blk["attn"][key]
    return blk[key]


def _stack_blocks(blocks):
    return [jnp.stack([_get_block(b, k) for b in blocks], axis=0) for k in _BLOCK_KEYS]


def custom_clip_forward(image, prompt, tokenized_prompts, params):
    vis, txt = params["visual"], params["text"]

    # --- glue: unfold image into patches (matches conv1 kernel=stride=PATCH) ---
    B_img, C, H, W = image.shape
    gh, gw = H // PATCH, W // PATCH
    patches = image.reshape(B_img, C, gh, PATCH, gw, PATCH)
    patches = patches.transpose(0, 2, 4, 1, 3, 5).reshape(B_img * gh * gw,
                                                          C * PATCH * PATCH)
    conv_w = vis["conv1_w"].reshape(WIDTH, C * PATCH * PATCH).T        # (C*P*P, WIDTH)

    # visual positional embedding padded to the 8-token (sublane-aligned) sequence
    vpos_pad = jnp.concatenate(
        [vis["pos_emb"], jnp.zeros((T_PAD - T_IMG, WIDTH), DTYPE)], axis=0)

    # --- glue: EOT selection matrix (argmax over token ids -> one-hot rows) ---
    B_txt = prompt.shape[0]
    prompts3d = prompt.astype(DTYPE)                                   # (B, CTX, W)
    eot = jnp.argmax(tokenized_prompts, axis=-1)
    sel_mat = jax.nn.one_hot(jnp.arange(B_txt) * CTX + eot,
                             B_txt * CTX, dtype=DTYPE)                 # (B, B*CTX)

    v_stacks = _stack_blocks(vis["blocks"])
    t_stacks = _stack_blocks(txt["blocks"])

    args = [patches, conv_w, vis["class_emb"], vpos_pad,
            vis["ln_pre_g"], vis["ln_pre_b"], *v_stacks,
            vis["ln_post_g"], vis["ln_post_b"], vis["proj"],
            prompts3d, txt["pos_emb"], *t_stacks,
            txt["ln_final_g"], txt["ln_final_b"], txt["text_proj"], sel_mat]

    # Single invocation (grid=()): both towers in one body, whole-array operands
    # resident in VMEM (total footprint << 1 MiB), two lane-dense 128-wide outputs.
    img_out, txt_out = pl.pallas_call(
        _clip_kernel,
        out_shape=(jax.ShapeDtypeStruct((B_img, OUT_LANES), DTYPE),
                   jax.ShapeDtypeStruct((B_txt, OUT_LANES), DTYPE)),
    )(*args)

    image_features = img_out[:, :EMBED_DIM]
    text_features = txt_out[:, :EMBED_DIM]
    return image_features, text_features


# ------------------------------ deterministic init ---------------------------------
def _nrm(key, shape, scale=0.02):
    return (scale * jax.random.normal(key, shape)).astype(DTYPE)


def init_block_params(key, width):
    ks = jax.random.split(key, 4)
    return dict(
        ln1_g=jnp.ones((1, width), DTYPE), ln1_b=jnp.zeros((1, width), DTYPE),
        ln2_g=jnp.ones((1, width), DTYPE), ln2_b=jnp.zeros((1, width), DTYPE),
        attn=dict(
            in_w=_nrm(ks[0], (width, 3 * width)), in_b=jnp.zeros((1, 3 * width), DTYPE),
            out_w=_nrm(ks[1], (width, width)), out_b=jnp.zeros((1, width), DTYPE)),
        fc_w=_nrm(ks[2], (width, 4 * width)), fc_b=jnp.zeros((1, 4 * width), DTYPE),
        proj_w=_nrm(ks[3], (4 * width, width)), proj_b=jnp.zeros((1, width), DTYPE),
    )


def init_params(key):
    kv, kt, _ = jax.random.split(key, 3)
    kv_blocks = jax.random.split(kv, V_LAYERS + 4)
    kt_blocks = jax.random.split(kt, T_LAYERS + 3)
    visual = dict(
        conv1_w=_nrm(kv_blocks[0], (WIDTH, IMG_CH, PATCH, PATCH)),
        class_emb=_nrm(kv_blocks[1], (1, WIDTH)),
        pos_emb=_nrm(kv_blocks[2], (T_IMG, WIDTH)),
        ln_pre_g=jnp.ones((1, WIDTH), DTYPE), ln_pre_b=jnp.zeros((1, WIDTH), DTYPE),
        ln_post_g=jnp.ones((1, WIDTH), DTYPE), ln_post_b=jnp.zeros((1, WIDTH), DTYPE),
        proj=_nrm(kv_blocks[3], (WIDTH, EMBED_DIM)),
        blocks=[init_block_params(kv_blocks[4 + i], WIDTH) for i in range(V_LAYERS)],
    )
    text = dict(
        pos_emb=_nrm(kt_blocks[0], (CTX, WIDTH)),
        ln_final_g=jnp.ones((1, WIDTH), DTYPE), ln_final_b=jnp.zeros((1, WIDTH), DTYPE),
        text_proj=_nrm(kt_blocks[1], (WIDTH, EMBED_DIM)),
        blocks=[init_block_params(kt_blocks[2 + i], WIDTH) for i in range(T_LAYERS)],
    )
    # logit_scale exists on the module but is not used in this forward.
    return dict(visual=visual, text=text, logit_scale=jnp.array(4.6052, DTYPE))


# ----------------------------------- main -------------------------------------------
if __name__ == "__main__":
    root = jax.random.PRNGKey(0)
    kp, ki, kpr = jax.random.split(root, 3)
    params = init_params(kp)

    image = jax.random.normal(ki, (2, IMG_CH, IMG, IMG), DTYPE)        # NCHW
    prompt = jax.random.normal(kpr, (2, CTX, WIDTH), DTYPE)            # prompt embeddings
    tokenized_prompts = jnp.array(
        [[1, 5, 3, 2, 9, 0, 0, 0],
         [2, 3, 9, 1, 0, 0, 0, 0]], dtype=jnp.int32)                   # argmax -> EOT index

    fwd = jax.jit(custom_clip_forward)
    img_feat, txt_feat = fwd(image, prompt, tokenized_prompts, params)
    jax.block_until_ready((img_feat, txt_feat))

    assert img_feat.shape == (2, EMBED_DIM) and txt_feat.shape == (2, EMBED_DIM)
    assert bool(jnp.all(jnp.isfinite(img_feat))) and bool(jnp.all(jnp.isfinite(txt_feat)))
    # unit-norm check (L2 normalization semantics of the module)
    assert bool(jnp.allclose(jnp.linalg.norm(img_feat, axis=-1), 1.0, atol=1e-2))
    assert bool(jnp.allclose(jnp.linalg.norm(txt_feat, axis=-1), 1.0, atol=1e-2))
    print("KERNEL_OK")
</pallas_src>

<mosaic_0001>
module attributes {stable_mosaic.version = 11 : i64} {
  func.func @_clip_kernel(%arg0: memref<8x192xf32, #tpu.memory_space<vmem>>, %arg1: memref<192x32xf32, #tpu.memory_space<vmem>>, %arg2: memref<1x32xf32, #tpu.memory_space<vmem>>, %arg3: memref<8x32xf32, #tpu.memory_space<vmem>>, %arg4: memref<1x32xf32, #tpu.memory_space<vmem>>, %arg5: memref<1x32xf32, #tpu.memory_space<vmem>>, %arg6: memref<2x1x32xf32, #tpu.memory_space<vmem>>, %arg7: memref<2x1x32xf32, #tpu.memory_space<vmem>>, %arg8: memref<2x32x96xf32, #tpu.memory_space<vmem>>, %arg9: memref<2x1x96xf32, #tpu.memory_space<vmem>>, %arg10: memref<2x32x32xf32, #tpu.memory_space<vmem>>, %arg11: memref<2x1x32xf32, #tpu.memory_space<vmem>>, %arg12: memref<2x1x32xf32, #tpu.memory_space<vmem>>, %arg13: memref<2x1x32xf32, #tpu.memory_space<vmem>>, %arg14: memref<2x32x128xf32, #tpu.memory_space<vmem>>, %arg15: memref<2x1x128xf32, #tpu.memory_space<vmem>>, %arg16: memref<2x128x32xf32, #tpu.memory_space<vmem>>, %arg17: memref<2x1x32xf32, #tpu.memory_space<vmem>>, %arg18: memref<1x32xf32, #tpu.memory_space<vmem>>, %arg19: memref<1x32xf32, #tpu.memory_space<vmem>>, %arg20: memref<32x16xf32, #tpu.memory_space<vmem>>, %arg21: memref<2x8x32xf32, #tpu.memory_space<vmem>>, %arg22: memref<8x32xf32, #tpu.memory_space<vmem>>, %arg23: memref<2x1x32xf32, #tpu.memory_space<vmem>>, %arg24: memref<2x1x32xf32, #tpu.memory_space<vmem>>, %arg25: memref<2x32x96xf32, #tpu.memory_space<vmem>>, %arg26: memref<2x1x96xf32, #tpu.memory_space<vmem>>, %arg27: memref<2x32x32xf32, #tpu.memory_space<vmem>>, %arg28: memref<2x1x32xf32, #tpu.memory_space<vmem>>, %arg29: memref<2x1x32xf32, #tpu.memory_space<vmem>>, %arg30: memref<2x1x32xf32, #tpu.memory_space<vmem>>, %arg31: memref<2x32x128xf32, #tpu.memory_space<vmem>>, %arg32: memref<2x1x128xf32, #tpu.memory_space<vmem>>, %arg33: memref<2x128x32xf32, #tpu.memory_space<vmem>>, %arg34: memref<2x1x32xf32, #tpu.memory_space<vmem>>, %arg35: memref<1x32xf32, #tpu.memory_space<vmem>>, %arg36: memref<1x32xf32, #tpu.memory_space<vmem>>, %arg37: memref<32x16xf32, #tpu.memory_space<vmem>>, %arg38: memref<2x16xf32, #tpu.memory_space<vmem>>, %arg39: memref<2x128xf32, #tpu.memory_space<vmem>>, %arg40: memref<2x128xf32, #tpu.memory_space<vmem>>) attributes {dimension_semantics = [], scalar_prefetch = 0 : i64, scratch_operands = 0 : i64, tpu.core_type = #tpu.core_type<tc>} {
    %c0 = arith.constant 0 : index
    %c0_0 = arith.constant 0 : index
    %0 = vector.load %arg0[%c0, %c0_0] : memref<8x192xf32, #tpu.memory_space<vmem>>, vector<8x192xf32>
    %c0_1 = arith.constant 0 : index
    %c0_2 = arith.constant 0 : index
    %1 = vector.load %arg1[%c0_1, %c0_2] : memref<192x32xf32, #tpu.memory_space<vmem>>, vector<192x32xf32>
    %cst = arith.constant dense<0.000000e+00> : vector<8x32xf32>
    %2 = tpu.matmul %0, %1, %cst {dimension_numbers = #tpu.dot_dimension_numbers<[1], [0], [0], [1], [0, 0, 1, 1], [], []>} : vector<8x192xf32>, vector<192x32xf32>, vector<8x32xf32> -> vector<8x32xf32>
    %3 = vector.shape_cast %2 : vector<8x32xf32> to vector<2x4x32xf32>
    %c0_3 = arith.constant 0 : index
    %c0_4 = arith.constant 0 : index
    %4 = vector.load %arg2[%c0_3, %c0_4] : memref<1x32xf32, #tpu.memory_space<vmem>>, vector<1x32xf32>
    %5 = vector.shape_cast %4 : vector<1x32xf32> to vector<1x1x32xf32>
    %6 = vector.shape_cast %5 : vector<1x1x32xf32> to vector<1x1x32xf32>
    %7 = vector.broadcast %6 : vector<1x1x32xf32> to vector<2x1x32xf32>
    %cst_5 = arith.constant 0.000000e+00 : f32
    %8 = vector.broadcast %cst_5 : f32 to vector<2x3x32xf32>
    %9 = tpu.concatenate %7, %3, %8 in 1 : vector<2x1x32xf32>, vector<2x4x32xf32>, vector<2x3x32xf32> -> vector<2x8x32xf32>
    %c0_6 = arith.constant 0 : index
    %c0_7 = arith.constant 0 : index
    %10 = vector.load %arg3[%c0_6, %c0_7] : memref<8x32xf32, #tpu.memory_space<vmem>>, vector<8x32xf32>
    %11 = vector.shape_cast %10 : vector<8x32xf32> to vector<1x8x32xf32>
    %12 = vector.broadcast %11 : vector<1x8x32xf32> to vector<2x8x32xf32>
    %13 = arith.addf %9, %12 : vector<2x8x32xf32>
    %14 = vector.shape_cast %13 : vector<2x8x32xf32> to vector<16x32xf32>
    %c0_8 = arith.constant 0 : index
    %c0_9 = arith.constant 0 : index
    %15 = vector.load %arg4[%c0_8, %c0_9] : memref<1x32xf32, #tpu.memory_space<vmem>>, vector<1x32xf32>
    %c0_10 = arith.constant 0 : index
    %c0_11 = arith.constant 0 : index
    %16 = vector.load %arg5[%c0_10, %c0_11] : memref<1x32xf32, #tpu.memory_space<vmem>>, vector<1x32xf32>
    %cst_12 = arith.constant dense<0.000000e+00> : vector<16xf32>
    %17 = vector.multi_reduction <add>, %14, %cst_12 [1] : vector<16x32xf32> to vector<16xf32>
    %18 = vector.shape_cast %17 : vector<16xf32> to vector<16x1xf32>
    %cst_13 = arith.constant 3.200000e+01 : f32
    %19 = vector.broadcast %cst_13 : f32 to vector<16x1xf32>
    %20 = arith.divf %18, %19 : vector<16x1xf32>
    %21 = vector.broadcast %20 : vector<16x1xf32> to vector<16x32xf32>
    %22 = arith.subf %14, %21 : vector<16x32xf32>
    %23 = arith.mulf %22, %22 : vector<16x32xf32>
    %cst_14 = arith.constant dense<0.000000e+00> : vector<16xf32>
    %24 = vector.multi_reduction <add>, %23, %cst_14 [1] : vector<16x32xf32> to vector<16xf32>
    %25 = vector.shape_cast %24 : vector<16xf32> to vector<16x1xf32>
    %cst_15 = arith.constant 3.200000e+01 : f32
    %26 = vector.broadcast %cst_15 : f32 to vector<16x1xf32>
    %27 = arith.divf %25, %26 : vector<16x1xf32>
    %28 = vector.broadcast %20 : vector<16x1xf32> to vector<16x32xf32>
    %29 = arith.subf %14, %28 : vector<16x32xf32>
    %cst_16 = arith.constant 9.99999974E-6 : f32
    %30 = vector.broadcast %cst_16 : f32 to vector<16x1xf32>
    %31 = arith.addf %27, %30 : vector<16x1xf32>
    %32 = math.rsqrt %31 : vector<16x1xf32>
    %33 = vector.broadcast %32 : vector<16x1xf32> to vector<16x32xf32>
    %34 = arith.mulf %29, %33 : vector<16x32xf32>
    %35 = vector.broadcast %15 : vector<1x32xf32> to vector<16x32xf32>
    %36 = arith.mulf %34, %35 : vector<16x32xf32>
    %37 = vector.broadcast %16 : vector<1x32xf32> to vector<16x32xf32>
    %38 = arith.addf %36, %37 : vector<16x32xf32>
    %39 = tpu.iota {dimensions = array<i32: 1>} : vector<8x8xi32>
    %c5_i32 = arith.constant 5 : i32
    %40 = vector.broadcast %c5_i32 : i32 to vector<8x8xi32>
    %41 = arith.cmpi slt, %39, %40 : vector<8x8xi32>
    %cst_17 = arith.constant 0.000000e+00 : f32
    %cst_18 = arith.constant -1.000000e+30 : f32
    %42 = vector.broadcast %cst_17 : f32 to vector<8x8xf32>
    %43 = vector.broadcast %cst_18 : f32 to vector<8x8xf32>
    %44 = arith.select %41, %42, %43 : vector<8x8xi1>, vector<8x8xf32>
    %c0_19 = arith.constant 0 : index
    %c0_20 = arith.constant 0 : index
    %c0_21 = arith.constant 0 : index
    %45 = vector.load %arg6[%c0_19, %c0_20, %c0_21] : memref<2x1x32xf32, #tpu.memory_space<vmem>>, vector<1x1x32xf32>
    %46 = vector.shape_cast %45 : vector<1x1x32xf32> to vector<1x32xf32>
    %c0_22 = arith.constant 0 : index
    %c0_23 = arith.constant 0 : index
    %c0_24 = arith.constant 0 : index
    %47 = vector.load %arg7[%c0_22, %c0_23, %c0_24] : memref<2x1x32xf32, #tpu.memory_space<vmem>>, vector<1x1x32xf32>
    %48 = vector.shape_cast %47 : vector<1x1x32xf32> to vector<1x32xf32>
    %cst_25 = arith.constant dense<0.000000e+00> : vector<16xf32>
    %49 = vector.multi_reduction <add>, %38, %cst_25 [1] : vector<16x32xf32> to vector<16xf32>
    %50 = vector.shape_cast %49 : vector<16xf32> to vector<16x1xf32>
    %cst_26 = arith.constant 3.200000e+01 : f32
    %51 = vector.broadcast %cst_26 : f32 to vector<16x1xf32>
    %52 = arith.divf %50, %51 : vector<16x1xf32>
    %53 = vector.broadcast %52 : vector<16x1xf32> to vector<16x32xf32>
    %54 = arith.subf %38, %53 : vector<16x32xf32>
    %55 = arith.mulf %54, %54 : vector<16x32xf32>
    %cst_27 = arith.constant dense<0.000000e+00> : vector<16xf32>
    %56 = vector.multi_reduction <add>, %55, %cst_27 [1] : vector<16x32xf32> to vector<16xf32>
    %57 = vector.shape_cast %56 : vector<16xf32> to vector<16x1xf32>
    %cst_28 = arith.constant 3.200000e+01 : f32
    %58 = vector.broadcast %cst_28 : f32 to vector<16x1xf32>
    %59 = arith.divf %57, %58 : vector<16x1xf32>
    %60 = vector.broadcast %52 : vector<16x1xf32> to vector<16x32xf32>
    %61 = arith.subf %38, %60 : vector<16x32xf32>
    %cst_29 = arith.constant 9.99999974E-6 : f32
    %62 = vector.broadcast %cst_29 : f32 to vector<16x1xf32>
    %63 = arith.addf %59, %62 : vector<16x1xf32>
    %64 = math.rsqrt %63 : vector<16x1xf32>
    %65 = vector.broadcast %64 : vector<16x1xf32> to vector<16x32xf32>
    %66 = arith.mulf %61, %65 : vector<16x32xf32>
    %67 = vector.broadcast %46 : vector<1x32xf32> to vector<16x32xf32>
    %68 = arith.mulf %66, %67 : vector<16x32xf32>
    %69 = vector.broadcast %48 : vector<1x32xf32> to vector<16x32xf32>
    %70 = arith.addf %68, %69 : vector<16x32xf32>
    %c0_30 = arith.constant 0 : index
    %c0_31 = arith.constant 0 : index
    %c0_32 = arith.constant 0 : index
    %71 = vector.load %arg8[%c0_30, %c0_31, %c0_32] : memref<2x32x96xf32, #tpu.memory_space<vmem>>, vector<1x32x96xf32>
    %72 = vector.shape_cast %71 : vector<1x32x96xf32> to vector<32x96xf32>
    %c0_33 = arith.constant 0 : index
    %c0_34 = arith.constant 0 : index
    %c0_35 = arith.constant 0 : index
    %73 = vector.load %arg9[%c0_33, %c0_34, %c0_35] : memref<2x1x96xf32, #tpu.memory_space<vmem>>, vector<1x1x96xf32>
    %74 = vector.shape_cast %73 : vector<1x1x96xf32> to vector<1x96xf32>
    %c0_36 = arith.constant 0 : index
    %c0_37 = arith.constant 0 : index
    %c0_38 = arith.constant 0 : index
    %75 = vector.load %arg10[%c0_36, %c0_37, %c0_38] : memref<2x32x32xf32, #tpu.memory_space<vmem>>, vector<1x32x32xf32>
    %76 = vector.shape_cast %75 : vector<1x32x32xf32> to vector<32x32xf32>
    %c0_39 = arith.constant 0 : index
    %c0_40 = arith.constant 0 : index
    %c0_41 = arith.constant 0 : index
    %77 = vector.load %arg11[%c0_39, %c0_40, %c0_41] : memref<2x1x32xf32, #tpu.memory_space<vmem>>, vector<1x1x32xf32>
    %78 = vector.shape_cast %77 : vector<1x1x32xf32> to vector<1x32xf32>
    %cst_42 = arith.constant dense<0.000000e+00> : vector<16x96xf32>
    %79 = tpu.matmul %70, %72, %cst_42 {dimension_numbers = #tpu.dot_dimension_numbers<[1], [0], [0], [1], [0, 0, 1, 1], [], []>} : vector<16x32xf32>, vector<32x96xf32>, vector<16x96xf32> -> vector<16x96xf32>
    %80 = vector.broadcast %74 : vector<1x96xf32> to vector<16x96xf32>
    %81 = arith.addf %79, %80 : vector<16x96xf32>
    %82 = vector.shape_cast %81 : vector<16x96xf32> to vector<2x8x96xf32>
    %83 = vector.extract_strided_slice %82 {offsets = [0, 0, 0], sizes = [2, 8, 8], strides = [1, 1, 1]} : vector<2x8x96xf32> to vector<2x8x8xf32>
    %cst_43 = arith.constant 0.353553385 : f32
    %84 = vector.broadcast %cst_43 : f32 to vector<2x8x8xf32>
    %85 = arith.mulf %83, %84 : vector<2x8x8xf32>
    %86 = vector.extract_strided_slice %82 {offsets = [0, 0, 32], sizes = [2, 8, 8], strides = [1, 1, 1]} : vector<2x8x96xf32> to vector<2x8x8xf32>
    %87 = vector.extract_strided_slice %82 {offsets = [0, 0, 64], sizes = [2, 8, 8], strides = [1, 1, 1]} : vector<2x8x96xf32> to vector<2x8x8xf32>
    "tpu.trace_start"() <{level = 10 : i32, message = "bqd,bkd->bqk"}> : () -> ()
    %cst_44 = arith.constant dense<0.000000e+00> : vector<2x8x8xf32>
    %88 = tpu.matmul %85, %86, %cst_44 {dimension_numbers = #tpu.dot_dimension_numbers<[2], [2], [1], [1], [0, 0, 0, 1, 1, 1], [0], [0]>} : vector<2x8x8xf32>, vector<2x8x8xf32>, vector<2x8x8xf32> -> vector<2x8x8xf32>
    "tpu.trace_stop"() : () -> ()
    %89 = vector.shape_cast %44 : vector<8x8xf32> to vector<1x8x8xf32>
    %90 = vector.broadcast %89 : vector<1x8x8xf32> to vector<2x8x8xf32>
    %91 = arith.addf %88, %90 : vector<2x8x8xf32>
    %cst_45 = arith.constant dense<0xFF800000> : vector<2x8xf32>
    %92 = vector.multi_reduction <maximumf>, %91, %cst_45 [2] : vector<2x8x8xf32> to vector<2x8xf32>
    %93 = vector.shape_cast %92 : vector<2x8xf32> to vector<2x8x1xf32>
    %94 = vector.broadcast %93 : vector<2x8x1xf32> to vector<2x8x8xf32>
    %95 = arith.subf %91, %94 : vector<2x8x8xf32>
    %96 = math.exp %95 : vector<2x8x8xf32>
    %cst_46 = arith.constant dense<0.000000e+00> : vector<2x8xf32>
    %97 = vector.multi_reduction <add>, %96, %cst_46 [2] : vector<2x8x8xf32> to vector<2x8xf32>
    %98 = vector.shape_cast %97 : vector<2x8xf32> to vector<2x8x1xf32>
    %99 = tpu.reciprocal %98 {approx = true} : vector<2x8x1xf32> -> vector<2x8x1xf32>
    %100 = vector.broadcast %99 : vector<2x8x1xf32> to vector<2x8x8xf32>
    %101 = arith.mulf %96, %100 : vector<2x8x8xf32>
    "tpu.trace_start"() <{level = 10 : i32, message = "bqk,bkd->bqd"}> : () -> ()
    %cst_47 = arith.constant dense<0.000000e+00> : vector<2x8x8xf32>
    %102 = tpu.matmul %101, %87, %cst_47 {dimension_numbers = #tpu.dot_dimension_numbers<[2], [1], [1], [2], [0, 0, 0, 1, 1, 2], [0], [0]>} : vector<2x8x8xf32>, vector<2x8x8xf32>, vector<2x8x8xf32> -> vector<2x8x8xf32>
    "tpu.trace_stop"() : () -> ()
    %103 = vector.extract_strided_slice %82 {offsets = [0, 0, 8], sizes = [2, 8, 8], strides = [1, 1, 1]} : vector<2x8x96xf32> to vector<2x8x8xf32>
    %cst_48 = arith.constant 0.353553385 : f32
    %104 = vector.broadcast %cst_48 : f32 to vector<2x8x8xf32>
    %105 = arith.mulf %103, %104 : vector<2x8x8xf32>
    %106 = vector.extract_strided_slice %82 {offsets = [0, 0, 40], sizes = [2, 8, 8], strides = [1, 1, 1]} : vector<2x8x96xf32> to vector<2x8x8xf32>
    %107 = vector.extract_strided_slice %82 {offsets = [0, 0, 72], sizes = [2, 8, 8], strides = [1, 1, 1]} : vector<2x8x96xf32> to vector<2x8x8xf32>
    "tpu.trace_start"() <{level = 10 : i32, message = "bqd,bkd->bqk"}> : () -> ()
    %cst_49 = arith.constant dense<0.000000e+00> : vector<2x8x8xf32>
    %108 = tpu.matmul %105, %106, %cst_49 {dimension_numbers = #tpu.dot_dimension_numbers<[2], [2], [1], [1], [0, 0, 0, 1, 1, 1], [0], [0]>} : vector<2x8x8xf32>, vector<2x8x8xf32>, vector<2x8x8xf32> -> vector<2x8x8xf32>
    "tpu.trace_stop"() : () -> ()
    %109 = vector.shape_cast %44 : vector<8x8xf32> to vector<1x8x8xf32>
    %110 = vector.broadcast %109 : vector<1x8x8xf32> to vector<2x8x8xf32>
    %111 = arith.addf %108, %110 : vector<2x8x8xf32>
    %cst_50 = arith.constant dense<0xFF800000> : vector<2x8xf32>
    %112 = vector.multi_reduction <maximumf>, %111, %cst_50 [2] : vector<2x8x8xf32> to vector<2x8xf32>
    %113 = vector.shape_cast %112 : vector<2x8xf32> to vector<2x8x1xf32>
    %114 = vector.broadcast %113 : vector<2x8x1xf32> to vector<2x8x8xf32>
    %115 = arith.subf %111, %114 : vector<2x8x8xf32>
    %116 = math.exp %115 : vector<2x8x8xf32>
    %cst_51 = arith.constant dense<0.000000e+00> : vector<2x8xf32>
    %117 = vector.multi_reduction <add>, %116, %cst_51 [2] : vector<2x8x8xf32> to vector<2x8xf32>
    %118 = vector.shape_cast %117 : vector<2x8xf32> to vector<2x8x1xf32>
    %119 = tpu.reciprocal %118 {approx = true} : vector<2x8x1xf32> -> vector<2x8x1xf32>
    %120 = vector.broadcast %119 : vector<2x8x1xf32> to vector<2x8x8xf32>
    %121 = arith.mulf %116, %120 : vector<2x8x8xf32>
    "tpu.trace_start"() <{level = 10 : i32, message = "bqk,bkd->bqd"}> : () -> ()
    %cst_52 = arith.constant dense<0.000000e+00> : vector<2x8x8xf32>
    %122 = tpu.matmul %121, %107, %cst_52 {dimension_numbers = #tpu.dot_dimension_numbers<[2], [1], [1], [2], [0, 0, 0, 1, 1, 2], [0], [0]>} : vector<2x8x8xf32>, vector<2x8x8xf32>, vector<2x8x8xf32> -> vector<2x8x8xf32>
    "tpu.trace_stop"() : () -> ()
    %123 = vector.extract_strided_slice %82 {offsets = [0, 0, 16], sizes = [2, 8, 8], strides = [1, 1, 1]} : vector<2x8x96xf32> to vector<2x8x8xf32>
    %cst_53 = arith.constant 0.353553385 : f32
    %124 = vector.broadcast %cst_53 : f32 to vector<2x8x8xf32>
    %125 = arith.mulf %123, %124 : vector<2x8x8xf32>
    %126 = vector.extract_strided_slice %82 {offsets = [0, 0, 48], sizes = [2, 8, 8], strides = [1, 1, 1]} : vector<2x8x96xf32> to vector<2x8x8xf32>
    %127 = vector.extract_strided_slice %82 {offsets = [0, 0, 80], sizes = [2, 8, 8], strides = [1, 1, 1]} : vector<2x8x96xf32> to vector<2x8x8xf32>
    "tpu.trace_start"() <{level = 10 : i32, message = "bqd,bkd->bqk"}> : () -> ()
    %cst_54 = arith.constant dense<0.000000e+00> : vector<2x8x8xf32>
    %128 = tpu.matmul %125, %126, %cst_54 {dimension_numbers = #tpu.dot_dimension_numbers<[2], [2], [1], [1], [0, 0, 0, 1, 1, 1], [0], [0]>} : vector<2x8x8xf32>, vector<2x8x8xf32>, vector<2x8x8xf32> -> vector<2x8x8xf32>
    "tpu.trace_stop"() : () -> ()
    %129 = vector.shape_cast %44 : vector<8x8xf32> to vector<1x8x8xf32>
    %130 = vector.broadcast %129 : vector<1x8x8xf32> to vector<2x8x8xf32>
    %131 = arith.addf %128, %130 : vector<2x8x8xf32>
    %cst_55 = arith.constant dense<0xFF800000> : vector<2x8xf32>
    %132 = vector.multi_reduction <maximumf>, %131, %cst_55 [2] : vector<2x8x8xf32> to vector<2x8xf32>
    %133 = vector.shape_cast %132 : vector<2x8xf32> to vector<2x8x1xf32>
    %134 = vector.broadcast %133 : vector<2x8x1xf32> to vector<2x8x8xf32>
    %135 = arith.subf %131, %134 : vector<2x8x8xf32>
    %136 = math.exp %135 : vector<2x8x8xf32>
    %cst_56 = arith.constant dense<0.000000e+00> : vector<2x8xf32>
    %137 = vector.multi_reduction <add>, %136, %cst_56 [2] : vector<2x8x8xf32> to vector<2x8xf32>
    %138 = vector.shape_cast %137 : vector<2x8xf32> to vector<2x8x1xf32>
    %139 = tpu.reciprocal %138 {approx = true} : vector<2x8x1xf32> -> vector<2x8x1xf32>
    %140 = vector.broadcast %139 : vector<2x8x1xf32> to vector<2x8x8xf32>
    %141 = arith.mulf %136, %140 : vector<2x8x8xf32>
    "tpu.trace_start"() <{level = 10 : i32, message = "bqk,bkd->bqd"}> : () -> ()
    %cst_57 = arith.constant dense<0.000000e+00> : vector<2x8x8xf32>
    %142 = tpu.matmul %141, %127, %cst_57 {dimension_numbers = #tpu.dot_dimension_numbers<[2], [1], [1], [2], [0, 0, 0, 1, 1, 2], [0], [0]>} : vector<2x8x8xf32>, vector<2x8x8xf32>, vector<2x8x8xf32> -> vector<2x8x8xf32>
    "tpu.trace_stop"() : () -> ()
    %143 = vector.extract_strided_slice %82 {offsets = [0, 0, 24], sizes = [2, 8, 8], strides = [1, 1, 1]} : vector<2x8x96xf32> to vector<2x8x8xf32>
    %cst_58 = arith.constant 0.353553385 : f32
    %144 = vector.broadcast %cst_58 : f32 to vector<2x8x8xf32>
    %145 = arith.mulf %143, %144 : vector<2x8x8xf32>
    %146 = vector.extract_strided_slice %82 {offsets = [0, 0, 56], sizes = [2, 8, 8], strides = [1, 1, 1]} : vector<2x8x96xf32> to vector<2x8x8xf32>
    %147 = vector.extract_strided_slice %82 {offsets = [0, 0, 88], sizes = [2, 8, 8], strides = [1, 1, 1]} : vector<2x8x96xf32> to vector<2x8x8xf32>
    "tpu.trace_start"() <{level = 10 : i32, message = "bqd,bkd->bqk"}> : () -> ()
    %cst_59 = arith.constant dense<0.000000e+00> : vector<2x8x8xf32>
    %148 = tpu.matmul %145, %146, %cst_59 {dimension_numbers = #tpu.dot_dimension_numbers<[2], [2], [1], [1], [0, 0, 0, 1, 1, 1], [0], [0]>} : vector<2x8x8xf32>, vector<2x8x8xf32>, vector<2x8x8xf32> -> vector<2x8x8xf32>
    "tpu.trace_stop"() : () -> ()
    %149 = vector.shape_cast %44 : vector<8x8xf32> to vector<1x8x8xf32>
    %150 = vector.broadcast %149 : vector<1x8x8xf32> to vector<2x8x8xf32>
    %151 = arith.addf %148, %150 : vector<2x8x8xf32>
    %cst_60 = arith.constant dense<0xFF800000> : vector<2x8xf32>
    %152 = vector.multi_reduction <maximumf>, %151, %cst_60 [2] : vector<2x8x8xf32> to vector<2x8xf32>
    %153 = vector.shape_cast %152 : vector<2x8xf32> to vector<2x8x1xf32>
    %154 = vector.broadcast %153 : vector<2x8x1xf32> to vector<2x8x8xf32>
    %155 = arith.subf %151, %154 : vector<2x8x8xf32>
    %156 = math.exp %155 : vector<2x8x8xf32>
    %cst_61 = arith.constant dense<0.000000e+00> : vector<2x8xf32>
    %157 = vector.multi_reduction <add>, %156, %cst_61 [2] : vector<2x8x8xf32> to vector<2x8xf32>
    %158 = vector.shape_cast %157 : vector<2x8xf32> to vector<2x8x1xf32>
    %159 = tpu.reciprocal %158 {approx = true} : vector<2x8x1xf32> -> vector<2x8x1xf32>
    %160 = vector.broadcast %159 : vector<2x8x1xf32> to vector<2x8x8xf32>
    %161 = arith.mulf %156, %160 : vector<2x8x8xf32>
    "tpu.trace_start"() <{level = 10 : i32, message = "bqk,bkd->bqd"}> : () -> ()
    %cst_62 = arith.constant dense<0.000000e+00> : vector<2x8x8xf32>
    %162 = tpu.matmul %161, %147, %cst_62 {dimension_numbers = #tpu.dot_dimension_numbers<[2], [1], [1], [2], [0, 0, 0, 1, 1, 2], [0], [0]>} : vector<2x8x8xf32>, vector<2x8x8xf32>, vector<2x8x8xf32> -> vector<2x8x8xf32>
    "tpu.trace_stop"() : () -> ()
    %163 = tpu.concatenate %102, %122, %142, %162 in 2 : vector<2x8x8xf32>, vector<2x8x8xf32>, vector<2x8x8xf32>, vector<2x8x8xf32> -> vector<2x8x32xf32>
    %164 = vector.shape_cast %163 : vector<2x8x32xf32> to vector<16x32xf32>
    %cst_63 = arith.constant dense<0.000000e+00> : vector<16x32xf32>
    %165 = tpu.matmul %164, %76, %cst_63 {dimension_numbers = #tpu.dot_dimension_numbers<[1], [0], [0], [1], [0, 0, 1, 1], [], []>} : vector<16x32xf32>, vector<32x32xf32>, vector<16x32xf32> -> vector<16x32xf32>
    %166 = vector.broadcast %78 : vector<1x32xf32> to vector<16x32xf32>
    %167 = arith.addf %165, %166 : vector<16x32xf32>
    %168 = arith.addf %38, %167 : vector<16x32xf32>
    %c0_64 = arith.constant 0 : index
    %c0_65 = arith.constant 0 : index
    %c0_66 = arith.constant 0 : index
    %169 = vector.load %arg12[%c0_64, %c0_65, %c0_66] : memref<2x1x32xf32, #tpu.memory_space<vmem>>, vector<1x1x32xf32>
    %170 = vector.shape_cast %169 : vector<1x1x32xf32> to vector<1x32xf32>
    %c0_67 = arith.constant 0 : index
    %c0_68 = arith.constant 0 : index
    %c0_69 = arith.constant 0 : index
    %171 = vector.load %arg13[%c0_67, %c0_68, %c0_69] : memref<2x1x32xf32, #tpu.memory_space<vmem>>, vector<1x1x32xf32>
    %172 = vector.shape_cast %171 : vector<1x1x32xf32> to vector<1x32xf32>
    %cst_70 = arith.constant dense<0.000000e+00> : vector<16xf32>
    %173 = vector.multi_reduction <add>, %168, %cst_70 [1] : vector<16x32xf32> to vector<16xf32>
    %174 = vector.shape_cast %173 : vector<16xf32> to vector<16x1xf32>
    %cst_71 = arith.constant 3.200000e+01 : f32
    %175 = vector.broadcast %cst_71 : f32 to vector<16x1xf32>
    %176 = arith.divf %174, %175 : vector<16x1xf32>
    %177 = vector.broadcast %176 : vector<16x1xf32> to vector<16x32xf32>
    %178 = arith.subf %168, %177 : vector<16x32xf32>
    %179 = arith.mulf %178, %178 : vector<16x32xf32>
    %cst_72 = arith.constant dense<0.000000e+00> : vector<16xf32>
    %180 = vector.multi_reduction <add>, %179, %cst_72 [1] : vector<16x32xf32> to vector<16xf32>
    %181 = vector.shape_cast %180 : vector<16xf32> to vector<16x1xf32>
    %cst_73 = arith.constant 3.200000e+01 : f32
    %182 = vector.broadcast %cst_73 : f32 to vector<16x1xf32>
    %183 = arith.divf %181, %182 : vector<16x1xf32>
    %184 = vector.broadcast %176 : vector<16x1xf32> to vector<16x32xf32>
    %185 = arith.subf %168, %184 : vector<16x32xf32>
    %cst_74 = arith.constant 9.99999974E-6 : f32
    %186 = vector.broadcast %cst_74 : f32 to vector<16x1xf32>
    %187 = arith.addf %183, %186 : vector<16x1xf32>
    %188 = math.rsqrt %187 : vector<16x1xf32>
    %189 = vector.broadcast %188 : vector<16x1xf32> to vector<16x32xf32>
    %190 = arith.mulf %185, %189 : vector<16x32xf32>
    %191 = vector.broadcast %170 : vector<1x32xf32> to vector<16x32xf32>
    %192 = arith.mulf %190, %191 : vector<16x32xf32>
    %193 = vector.broadcast %172 : vector<1x32xf32> to vector<16x32xf32>
    %194 = arith.addf %192, %193 : vector<16x32xf32>
    %c0_75 = arith.constant 0 : index
    %c0_76 = arith.constant 0 : index
    %c0_77 = arith.constant 0 : index
    %195 = vector.load %arg14[%c0_75, %c0_76, %c0_77] : memref<2x32x128xf32, #tpu.memory_space<vmem>>, vector<1x32x128xf32>
    %196 = vector.shape_cast %195 : vector<1x32x128xf32> to vector<32x128xf32>
    %c0_78 = arith.constant 0 : index
    %c0_79 = arith.constant 0 : index
    %c0_80 = arith.constant 0 : index
    %197 = vector.load %arg15[%c0_78, %c0_79, %c0_80] : memref<2x1x128xf32, #tpu.memory_space<vmem>>, vector<1x1x128xf32>
    %198 = vector.shape_cast %197 : vector<1x1x128xf32> to vector<1x128xf32>
    %cst_81 = arith.constant dense<0.000000e+00> : vector<16x128xf32>
    %199 = tpu.matmul %194, %196, %cst_81 {dimension_numbers = #tpu.dot_dimension_numbers<[1], [0], [0], [1], [0, 0, 1, 1], [], []>} : vector<16x32xf32>, vector<32x128xf32>, vector<16x128xf32> -> vector<16x128xf32>
    %200 = vector.broadcast %198 : vector<1x128xf32> to vector<16x128xf32>
    %201 = arith.addf %199, %200 : vector<16x128xf32>
    %cst_82 = arith.constant 1.702000e+00 : f32
    %202 = vector.broadcast %cst_82 : f32 to vector<16x128xf32>
    %203 = arith.mulf %202, %201 : vector<16x128xf32>
    %204 = arith.negf %203 : vector<16x128xf32>
    %205 = math.exp %204 : vector<16x128xf32>
    %cst_83 = arith.constant 1.000000e+00 : f32
    %206 = vector.broadcast %cst_83 : f32 to vector<16x128xf32>
    %207 = arith.addf %206, %205 : vector<16x128xf32>
    %208 = arith.divf %206, %207 : vector<16x128xf32>
    %209 = arith.mulf %201, %208 : vector<16x128xf32>
    %c0_84 = arith.constant 0 : index
    %c0_85 = arith.constant 0 : index
    %c0_86 = arith.constant 0 : index
    %210 = vector.load %arg16[%c0_84, %c0_85, %c0_86] : memref<2x128x32xf32, #tpu.memory_space<vmem>>, vector<1x128x32xf32>
    %211 = vector.shape_cast %210 : vector<1x128x32xf32> to vector<128x32xf32>
    %c0_87 = arith.constant 0 : index
    %c0_88 = arith.constant 0 : index
    %c0_89 = arith.constant 0 : index
    %212 = vector.load %arg17[%c0_87, %c0_88, %c0_89] : memref<2x1x32xf32, #tpu.memory_space<vmem>>, vector<1x1x32xf32>
    %213 = vector.shape_cast %212 : vector<1x1x32xf32> to vector<1x32xf32>
    %cst_90 = arith.constant dense<0.000000e+00> : vector<16x32xf32>
    %214 = tpu.matmul %209, %211, %cst_90 {dimension_numbers = #tpu.dot_dimension_numbers<[1], [0], [0], [1], [0, 0, 1, 1], [], []>} : vector<16x128xf32>, vector<128x32xf32>, vector<16x32xf32> -> vector<16x32xf32>
    %215 = vector.broadcast %213 : vector<1x32xf32> to vector<16x32xf32>
    %216 = arith.addf %214, %215 : vector<16x32xf32>
    %217 = arith.addf %168, %216 : vector<16x32xf32>
    %c1 = arith.constant 1 : index
    %c0_91 = arith.constant 0 : index
    %c0_92 = arith.constant 0 : index
    %218 = vector.load %arg6[%c1, %c0_91, %c0_92] : memref<2x1x32xf32, #tpu.memory_space<vmem>>, vector<1x1x32xf32>
    %219 = vector.shape_cast %218 : vector<1x1x32xf32> to vector<1x32xf32>
    %c1_93 = arith.constant 1 : index
    %c0_94 = arith.constant 0 : index
    %c0_95 = arith.constant 0 : index
    %220 = vector.load %arg7[%c1_93, %c0_94, %c0_95] : memref<2x1x32xf32, #tpu.memory_space<vmem>>, vector<1x1x32xf32>
    %221 = vector.shape_cast %220 : vector<1x1x32xf32> to vector<1x32xf32>
    %cst_96 = arith.constant dense<0.000000e+00> : vector<16xf32>
    %222 = vector.multi_reduction <add>, %217, %cst_96 [1] : vector<16x32xf32> to vector<16xf32>
    %223 = vector.shape_cast %222 : vector<16xf32> to vector<16x1xf32>
    %cst_97 = arith.constant 3.200000e+01 : f32
    %224 = vector.broadcast %cst_97 : f32 to vector<16x1xf32>
    %225 = arith.divf %223, %224 : vector<16x1xf32>
    %226 = vector.broadcast %225 : vector<16x1xf32> to vector<16x32xf32>
    %227 = arith.subf %217, %226 : vector<16x32xf32>
    %228 = arith.mulf %227, %227 : vector<16x32xf32>
    %cst_98 = arith.constant dense<0.000000e+00> : vector<16xf32>
    %229 = vector.multi_reduction <add>, %228, %cst_98 [1] : vector<16x32xf32> to vector<16xf32>
    %230 = vector.shape_cast %229 : vector<16xf32> to vector<16x1xf32>
    %cst_99 = arith.constant 3.200000e+01 : f32
    %231 = vector.broadcast %cst_99 : f32 to vector<16x1xf32>
    %232 = arith.divf %230, %231 : vector<16x1xf32>
    %233 = vector.broadcast %225 : vector<16x1xf32> to vector<16x32xf32>
    %234 = arith.subf %217, %233 : vector<16x32xf32>
    %cst_100 = arith.constant 9.99999974E-6 : f32
    %235 = vector.broadcast %cst_100 : f32 to vector<16x1xf32>
    %236 = arith.addf %232, %235 : vector<16x1xf32>
    %237 = math.rsqrt %236 : vector<16x1xf32>
    %238 = vector.broadcast %237 : vector<16x1xf32> to vector<16x32xf32>
    %239 = arith.mulf %234, %238 : vector<16x32xf32>
    %240 = vector.broadcast %219 : vector<1x32xf32> to vector<16x32xf32>
    %241 = arith.mulf %239, %240 : vector<16x32xf32>
    %242 = vector.broadcast %221 : vector<1x32xf32> to vector<16x32xf32>
    %243 = arith.addf %241, %242 : vector<16x32xf32>
    %c1_101 = arith.constant 1 : index
    %c0_102 = arith.constant 0 : index
    %c0_103 = arith.constant 0 : index
    %244 = vector.load %arg8[%c1_101, %c0_102, %c0_103] : memref<2x32x96xf32, #tpu.memory_space<vmem>>, vector<1x32x96xf32>
    %245 = vector.shape_cast %244 : vector<1x32x96xf32> to vector<32x96xf32>
    %c1_104 = arith.constant 1 : index
    %c0_105 = arith.constant 0 : index
    %c0_106 = arith.constant 0 : index
    %246 = vector.load %arg9[%c1_104, %c0_105, %c0_106] : memref<2x1x96xf32, #tpu.memory_space<vmem>>, vector<1x1x96xf32>
    %247 = vector.shape_cast %246 : vector<1x1x96xf32> to vector<1x96xf32>
    %c1_107 = arith.constant 1 : index
    %c0_108 = arith.constant 0 : index
    %c0_109 = arith.constant 0 : index
    %248 = vector.load %arg10[%c1_107, %c0_108, %c0_109] : memref<2x32x32xf32, #tpu.memory_space<vmem>>, vector<1x32x32xf32>
    %249 = vector.shape_cast %248 : vector<1x32x32xf32> to vector<32x32xf32>
    %c1_110 = arith.constant 1 : index
    %c0_111 = arith.constant 0 : index
    %c0_112 = arith.constant 0 : index
    %250 = vector.load %arg11[%c1_110, %c0_111, %c0_112] : memref<2x1x32xf32, #tpu.memory_space<vmem>>, vector<1x1x32xf32>
    %251 = vector.shape_cast %250 : vector<1x1x32xf32> to vector<1x32xf32>
    %cst_113 = arith.constant dense<0.000000e+00> : vector<16x96xf32>
    %252 = tpu.matmul %243, %245, %cst_113 {dimension_numbers = #tpu.dot_dimension_numbers<[1], [0], [0], [1], [0, 0, 1, 1], [], []>} : vector<16x32xf32>, vector<32x96xf32>, vector<16x96xf32> -> vector<16x96xf32>
    %253 = vector.broadcast %247 : vector<1x96xf32> to vector<16x96xf32>
    %254 = arith.addf %252, %253 : vector<16x96xf32>
    %255 = vector.shape_cast %254 : vector<16x96xf32> to vector<2x8x96xf32>
    %256 = vector.extract_strided_slice %255 {offsets = [0, 0, 0], sizes = [2, 8, 8], strides = [1, 1, 1]} : vector<2x8x96xf32> to vector<2x8x8xf32>
    %cst_114 = arith.constant 0.353553385 : f32
    %257 = vector.broadcast %cst_114 : f32 to vector<2x8x8xf32>
    %258 = arith.mulf %256, %257 : vector<2x8x8xf32>
    %259 = vector.extract_strided_slice %255 {offsets = [0, 0, 32], sizes = [2, 8, 8], strides = [1, 1, 1]} : vector<2x8x96xf32> to vector<2x8x8xf32>
    %260 = vector.extract_strided_slice %255 {offsets = [0, 0, 64], sizes = [2, 8, 8], strides = [1, 1, 1]} : vector<2x8x96xf32> to vector<2x8x8xf32>
    "tpu.trace_start"() <{level = 10 : i32, message = "bqd,bkd->bqk"}> : () -> ()
    %cst_115 = arith.constant dense<0.000000e+00> : vector<2x8x8xf32>
    %261 = tpu.matmul %258, %259, %cst_115 {dimension_numbers = #tpu.dot_dimension_numbers<[2], [2], [1], [1], [0, 0, 0, 1, 1, 1], [0], [0]>} : vector<2x8x8xf32>, vector<2x8x8xf32>, vector<2x8x8xf32> -> vector<2x8x8xf32>
    "tpu.trace_stop"() : () -> ()
    %262 = vector.shape_cast %44 : vector<8x8xf32> to vector<1x8x8xf32>
    %263 = vector.broadcast %262 : vector<1x8x8xf32> to vector<2x8x8xf32>
    %264 = arith.addf %261, %263 : vector<2x8x8xf32>
    %cst_116 = arith.constant dense<0xFF800000> : vector<2x8xf32>
    %265 = vector.multi_reduction <maximumf>, %264, %cst_116 [2] : vector<2x8x8xf32> to vector<2x8xf32>
    %266 = vector.shape_cast %265 : vector<2x8xf32> to vector<2x8x1xf32>
    %267 = vector.broadcast %266 : vector<2x8x1xf32> to vector<2x8x8xf32>
    %268 = arith.subf %264, %267 : vector<2x8x8xf32>
    %269 = math.exp %268 : vector<2x8x8xf32>
    %cst_117 = arith.constant dense<0.000000e+00> : vector<2x8xf32>
    %270 = vector.multi_reduction <add>, %269, %cst_117 [2] : vector<2x8x8xf32> to vector<2x8xf32>
    %271 = vector.shape_cast %270 : vector<2x8xf32> to vector<2x8x1xf32>
    %272 = tpu.reciprocal %271 {approx = true} : vector<2x8x1xf32> -> vector<2x8x1xf32>
    %273 = vector.broadcast %272 : vector<2x8x1xf32> to vector<2x8x8xf32>
    %274 = arith.mulf %269, %273 : vector<2x8x8xf32>
    "tpu.trace_start"() <{level = 10 : i32, message = "bqk,bkd->bqd"}> : () -> ()
    %cst_118 = arith.constant dense<0.000000e+00> : vector<2x8x8xf32>
    %275 = tpu.matmul %274, %260, %cst_118 {dimension_numbers = #tpu.dot_dimension_numbers<[2], [1], [1], [2], [0, 0, 0, 1, 1, 2], [0], [0]>} : vector<2x8x8xf32>, vector<2x8x8xf32>, vector<2x8x8xf32> -> vector<2x8x8xf32>
    "tpu.trace_stop"() : () -> ()
    %276 = vector.extract_strided_slice %255 {offsets = [0, 0, 8], sizes = [2, 8, 8], strides = [1, 1, 1]} : vector<2x8x96xf32> to vector<2x8x8xf32>
    %cst_119 = arith.constant 0.353553385 : f32
    %277 = vector.broadcast %cst_119 : f32 to vector<2x8x8xf32>
    %278 = arith.mulf %276, %277 : vector<2x8x8xf32>
    %279 = vector.extract_strided_slice %255 {offsets = [0, 0, 40], sizes = [2, 8, 8], strides = [1, 1, 1]} : vector<2x8x96xf32> to vector<2x8x8xf32>
    %280 = vector.extract_strided_slice %255 {offsets = [0, 0, 72], sizes = [2, 8, 8], strides = [1, 1, 1]} : vector<2x8x96xf32> to vector<2x8x8xf32>
    "tpu.trace_start"() <{level = 10 : i32, message = "bqd,bkd->bqk"}> : () -> ()
    %cst_120 = arith.constant dense<0.000000e+00> : vector<2x8x8xf32>
    %281 = tpu.matmul %278, %279, %cst_120 {dimension_numbers = #tpu.dot_dimension_numbers<[2], [2], [1], [1], [0, 0, 0, 1, 1, 1], [0], [0]>} : vector<2x8x8xf32>, vector<2x8x8xf32>, vector<2x8x8xf32> -> vector<2x8x8xf32>
    "tpu.trace_stop"() : () -> ()
    %282 = vector.shape_cast %44 : vector<8x8xf32> to vector<1x8x8xf32>
    %283 = vector.broadcast %282 : vector<1x8x8xf32> to vector<2x8x8xf32>
    %284 = arith.addf %281, %283 : vector<2x8x8xf32>
    %cst_121 = arith.constant dense<0xFF800000> : vector<2x8xf32>
    %285 = vector.multi_reduction <maximumf>, %284, %cst_121 [2] : vector<2x8x8xf32> to vector<2x8xf32>
    %286 = vector.shape_cast %285 : vector<2x8xf32> to vector<2x8x1xf32>
    %287 = vector.broadcast %286 : vector<2x8x1xf32> to vector<2x8x8xf32>
    %288 = arith.subf %284, %287 : vector<2x8x8xf32>
    %289 = math.exp %288 : vector<2x8x8xf32>
    %cst_122 = arith.constant dense<0.000000e+00> : vector<2x8xf32>
    %290 = vector.multi_reduction <add>, %289, %cst_122 [2] : vector<2x8x8xf32> to vector<2x8xf32>
    %291 = vector.shape_cast %290 : vector<2x8xf32> to vector<2x8x1xf32>
    %292 = tpu.reciprocal %291 {approx = true} : vector<2x8x1xf32> -> vector<2x8x1xf32>
    %293 = vector.broadcast %292 : vector<2x8x1xf32> to vector<2x8x8xf32>
    %294 = arith.mulf %289, %293 : vector<2x8x8xf32>
    "tpu.trace_start"() <{level = 10 : i32, message = "bqk,bkd->bqd"}> : () -> ()
    %cst_123 = arith.constant dense<0.000000e+00> : vector<2x8x8xf32>
    %295 = tpu.matmul %294, %280, %cst_123 {dimension_numbers = #tpu.dot_dimension_numbers<[2], [1], [1], [2], [0, 0, 0, 1, 1, 2], [0], [0]>} : vector<2x8x8xf32>, vector<2x8x8xf32>, vector<2x8x8xf32> -> vector<2x8x8xf32>
    "tpu.trace_stop"() : () -> ()
    %296 = vector.extract_strided_slice %255 {offsets = [0, 0, 16], sizes = [2, 8, 8], strides = [1, 1, 1]} : vector<2x8x96xf32> to vector<2x8x8xf32>
    %cst_124 = arith.constant 0.353553385 : f32
    %297 = vector.broadcast %cst_124 : f32 to vector<2x8x8xf32>
    %298 = arith.mulf %296, %297 : vector<2x8x8xf32>
    %299 = vector.extract_strided_slice %255 {offsets = [0, 0, 48], sizes = [2, 8, 8], strides = [1, 1, 1]} : vector<2x8x96xf32> to vector<2x8x8xf32>
    %300 = vector.extract_strided_slice %255 {offsets = [0, 0, 80], sizes = [2, 8, 8], strides = [1, 1, 1]} : vector<2x8x96xf32> to vector<2x8x8xf32>
    "tpu.trace_start"() <{level = 10 : i32, message = "bqd,bkd->bqk"}> : () -> ()
    %cst_125 = arith.constant dense<0.000000e+00> : vector<2x8x8xf32>
    %301 = tpu.matmul %298, %299, %cst_125 {dimension_numbers = #tpu.dot_dimension_numbers<[2], [2], [1], [1], [0, 0, 0, 1, 1, 1], [0], [0]>} : vector<2x8x8xf32>, vector<2x8x8xf32>, vector<2x8x8xf32> -> vector<2x8x8xf32>
    "tpu.trace_stop"() : () -> ()
    %302 = vector.shape_cast %44 : vector<8x8xf32> to vector<1x8x8xf32>
    %303 = vector.broadcast %302 : vector<1x8x8xf32> to vector<2x8x8xf32>
    %304 = arith.addf %301, %303 : vector<2x8x8xf32>
    %cst_126 = arith.constant dense<0xFF800000> : vector<2x8xf32>
    %305 = vector.multi_reduction <maximumf>, %304, %cst_126 [2] : vector<2x8x8xf32> to vector<2x8xf32>
    %306 = vector.shape_cast %305 : vector<2x8xf32> to vector<2x8x1xf32>
    %307 = vector.broadcast %306 : vector<2x8x1xf32> to vector<2x8x8xf32>
    %308 = arith.subf %304, %307 : vector<2x8x8xf32>
    %309 = math.exp %308 : vector<2x8x8xf32>
    %cst_127 = arith.constant dense<0.000000e+00> : vector<2x8xf32>
    %310 = vector.multi_reduction <add>, %309, %cst_127 [2] : vector<2x8x8xf32> to vector<2x8xf32>
    %311 = vector.shape_cast %310 : vector<2x8xf32> to vector<2x8x1xf32>
    %312 = tpu.reciprocal %311 {approx = true} : vector<2x8x1xf32> -> vector<2x8x1xf32>
    %313 = vector.broadcast %312 : vector<2x8x1xf32> to vector<2x8x8xf32>
    %314 = arith.mulf %309, %313 : vector<2x8x8xf32>
    "tpu.trace_start"() <{level = 10 : i32, message = "bqk,bkd->bqd"}> : () -> ()
    %cst_128 = arith.constant dense<0.000000e+00> : vector<2x8x8xf32>
    %315 = tpu.matmul %314, %300, %cst_128 {dimension_numbers = #tpu.dot_dimension_numbers<[2], [1], [1], [2], [0, 0, 0, 1, 1, 2], [0], [0]>} : vector<2x8x8xf32>, vector<2x8x8xf32>, vector<2x8x8xf32> -> vector<2x8x8xf32>
    "tpu.trace_stop"() : () -> ()
    %316 = vector.extract_strided_slice %255 {offsets = [0, 0, 24], sizes = [2, 8, 8], strides = [1, 1, 1]} : vector<2x8x96xf32> to vector<2x8x8xf32>
    %cst_129 = arith.constant 0.353553385 : f32
    %317 = vector.broadcast %cst_129 : f32 to vector<2x8x8xf32>
    %318 = arith.mulf %316, %317 : vector<2x8x8xf32>
    %319 = vector.extract_strided_slice %255 {offsets = [0, 0, 56], sizes = [2, 8, 8], strides = [1, 1, 1]} : vector<2x8x96xf32> to vector<2x8x8xf32>
    %320 = vector.extract_strided_slice %255 {offsets = [0, 0, 88], sizes = [2, 8, 8], strides = [1, 1, 1]} : vector<2x8x96xf32> to vector<2x8x8xf32>
    "tpu.trace_start"() <{level = 10 : i32, message = "bqd,bkd->bqk"}> : () -> ()
    %cst_130 = arith.constant dense<0.000000e+00> : vector<2x8x8xf32>
    %321 = tpu.matmul %318, %319, %cst_130 {dimension_numbers = #tpu.dot_dimension_numbers<[2], [2], [1], [1], [0, 0, 0, 1, 1, 1], [0], [0]>} : vector<2x8x8xf32>, vector<2x8x8xf32>, vector<2x8x8xf32> -> vector<2x8x8xf32>
    "tpu.trace_stop"() : () -> ()
    %322 = vector.shape_cast %44 : vector<8x8xf32> to vector<1x8x8xf32>
    %323 = vector.broadcast %322 : vector<1x8x8xf32> to vector<2x8x8xf32>
    %324 = arith.addf %321, %323 : vector<2x8x8xf32>
    %cst_131 = arith.constant dense<0xFF800000> : vector<2x8xf32>
    %325 = vector.multi_reduction <maximumf>, %324, %cst_131 [2] : vector<2x8x8xf32> to vector<2x8xf32>
    %326 = vector.shape_cast %325 : vector<2x8xf32> to vector<2x8x1xf32>
    %327 = vector.broadcast %326 : vector<2x8x1xf32> to vector<2x8x8xf32>
    %328 = arith.subf %324, %327 : vector<2x8x8xf32>
    %329 = math.exp %328 : vector<2x8x8xf32>
    %cst_132 = arith.constant dense<0.000000e+00> : vector<2x8xf32>
    %330 = vector.multi_reduction <add>, %329, %cst_132 [2] : vector<2x8x8xf32> to vector<2x8xf32>
    %331 = vector.shape_cast %330 : vector<2x8xf32> to vector<2x8x1xf32>
    %332 = tpu.reciprocal %331 {approx = true} : vector<2x8x1xf32> -> vector<2x8x1xf32>
    %333 = vector.broadcast %332 : vector<2x8x1xf32> to vector<2x8x8xf32>
    %334 = arith.mulf %329, %333 : vector<2x8x8xf32>
    "tpu.trace_start"() <{level = 10 : i32, message = "bqk,bkd->bqd"}> : () -> ()
    %cst_133 = arith.constant dense<0.000000e+00> : vector<2x8x8xf32>
    %335 = tpu.matmul %334, %320, %cst_133 {dimension_numbers = #tpu.dot_dimension_numbers<[2], [1], [1], [2], [0, 0, 0, 1, 1, 2], [0], [0]>} : vector<2x8x8xf32>, vector<2x8x8xf32>, vector<2x8x8xf32> -> vector<2x8x8xf32>
    "tpu.trace_stop"() : () -> ()
    %336 = tpu.concatenate %275, %295, %315, %335 in 2 : vector<2x8x8xf32>, vector<2x8x8xf32>, vector<2x8x8xf32>, vector<2x8x8xf32> -> vector<2x8x32xf32>
    %337 = vector.shape_cast %336 : vector<2x8x32xf32> to vector<16x32xf32>
    %cst_134 = arith.constant dense<0.000000e+00> : vector<16x32xf32>
    %338 = tpu.matmul %337, %249, %cst_134 {dimension_numbers = #tpu.dot_dimension_numbers<[1], [0], [0], [1], [0, 0, 1, 1], [], []>} : vector<16x32xf32>, vector<32x32xf32>, vector<16x32xf32> -> vector<16x32xf32>
    %339 = vector.broadcast %251 : vector<1x32xf32> to vector<16x32xf32>
    %340 = arith.addf %338, %339 : vector<16x32xf32>
    %341 = arith.addf %217, %340 : vector<16x32xf32>
    %c1_135 = arith.constant 1 : index
    %c0_136 = arith.constant 0 : index
    %c0_137 = arith.constant 0 : index
    %342 = vector.load %arg12[%c1_135, %c0_136, %c0_137] : memref<2x1x32xf32, #tpu.memory_space<vmem>>, vector<1x1x32xf32>
    %343 = vector.shape_cast %342 : vector<1x1x32xf32> to vector<1x32xf32>
    %c1_138 = arith.constant 1 : index
    %c0_139 = arith.constant 0 : index
    %c0_140 = arith.constant 0 : index
    %344 = vector.load %arg13[%c1_138, %c0_139, %c0_140] : memref<2x1x32xf32, #tpu.memory_space<vmem>>, vector<1x1x32xf32>
    %345 = vector.shape_cast %344 : vector<1x1x32xf32> to vector<1x32xf32>
    %cst_141 = arith.constant dense<0.000000e+00> : vector<16xf32>
    %346 = vector.multi_reduction <add>, %341, %cst_141 [1] : vector<16x32xf32> to vector<16xf32>
    %347 = vector.shape_cast %346 : vector<16xf32> to vector<16x1xf32>
    %cst_142 = arith.constant 3.200000e+01 : f32
    %348 = vector.broadcast %cst_142 : f32 to vector<16x1xf32>
    %349 = arith.divf %347, %348 : vector<16x1xf32>
    %350 = vector.broadcast %349 : vector<16x1xf32> to vector<16x32xf32>
    %351 = arith.subf %341, %350 : vector<16x32xf32>
    %352 = arith.mulf %351, %351 : vector<16x32xf32>
    %cst_143 = arith.constant dense<0.000000e+00> : vector<16xf32>
    %353 = vector.multi_reduction <add>, %352, %cst_143 [1] : vector<16x32xf32> to vector<16xf32>
    %354 = vector.shape_cast %353 : vector<16xf32> to vector<16x1xf32>
    %cst_144 = arith.constant 3.200000e+01 : f32
    %355 = vector.broadcast %cst_144 : f32 to vector<16x1xf32>
    %356 = arith.divf %354, %355 : vector<16x1xf32>
    %357 = vector.broadcast %349 : vector<16x1xf32> to vector<16x32xf32>
    %358 = arith.subf %341, %357 : vector<16x32xf32>
    %cst_145 = arith.constant 9.99999974E-6 : f32
    %359 = vector.broadcast %cst_145 : f32 to vector<16x1xf32>
    %360 = arith.addf %356, %359 : vector<16x1xf32>
    %361 = math.rsqrt %360 : vector<16x1xf32>
    %362 = vector.broadcast %361 : vector<16x1xf32> to vector<16x32xf32>
    %363 = arith.mulf %358, %362 : vector<16x32xf32>
    %364 = vector.broadcast %343 : vector<1x32xf32> to vector<16x32xf32>
    %365 = arith.mulf %363, %364 : vector<16x32xf32>
    %366 = vector.broadcast %345 : vector<1x32xf32> to vector<16x32xf32>
    %367 = arith.addf %365, %366 : vector<16x32xf32>
    %c1_146 = arith.constant 1 : index
    %c0_147 = arith.constant 0 : index
    %c0_148 = arith.constant 0 : index
    %368 = vector.load %arg14[%c1_146, %c0_147, %c0_148] : memref<2x32x128xf32, #tpu.memory_space<vmem>>, vector<1x32x128xf32>
    %369 = vector.shape_cast %368 : vector<1x32x128xf32> to vector<32x128xf32>
    %c1_149 = arith.constant 1 : index
    %c0_150 = arith.constant 0 : index
    %c0_151 = arith.constant 0 : index
    %370 = vector.load %arg15[%c1_149, %c0_150, %c0_151] : memref<2x1x128xf32, #tpu.memory_space<vmem>>, vector<1x1x128xf32>
    %371 = vector.shape_cast %370 : vector<1x1x128xf32> to vector<1x128xf32>
    %cst_152 = arith.constant dense<0.000000e+00> : vector<16x128xf32>
    %372 = tpu.matmul %367, %369, %cst_152 {dimension_numbers = #tpu.dot_dimension_numbers<[1], [0], [0], [1], [0, 0, 1, 1], [], []>} : vector<16x32xf32>, vector<32x128xf32>, vector<16x128xf32> -> vector<16x128xf32>
    %373 = vector.broadcast %371 : vector<1x128xf32> to vector<16x128xf32>
    %374 = arith.addf %372, %373 : vector<16x128xf32>
    %cst_153 = arith.constant 1.702000e+00 : f32
    %375 = vector.broadcast %cst_153 : f32 to vector<16x128xf32>
    %376 = arith.mulf %375, %374 : vector<16x128xf32>
    %377 = arith.negf %376 : vector<16x128xf32>
    %378 = math.exp %377 : vector<16x128xf32>
    %cst_154 = arith.constant 1.000000e+00 : f32
    %379 = vector.broadcast %cst_154 : f32 to vector<16x128xf32>
    %380 = arith.addf %379, %378 : vector<16x128xf32>
    %381 = arith.divf %379, %380 : vector<16x128xf32>
    %382 = arith.mulf %374, %381 : vector<16x128xf32>
    %c1_155 = arith.constant 1 : index
    %c0_156 = arith.constant 0 : index
    %c0_157 = arith.constant 0 : index
    %383 = vector.load %arg16[%c1_155, %c0_156, %c0_157] : memref<2x128x32xf32, #tpu.memory_space<vmem>>, vector<1x128x32xf32>
    %384 = vector.shape_cast %383 : vector<1x128x32xf32> to vector<128x32xf32>
    %c1_158 = arith.constant 1 : index
    %c0_159 = arith.constant 0 : index
    %c0_160 = arith.constant 0 : index
    %385 = vector.load %arg17[%c1_158, %c0_159, %c0_160] : memref<2x1x32xf32, #tpu.memory_space<vmem>>, vector<1x1x32xf32>
    %386 = vector.shape_cast %385 : vector<1x1x32xf32> to vector<1x32xf32>
    %cst_161 = arith.constant dense<0.000000e+00> : vector<16x32xf32>
    %387 = tpu.matmul %382, %384, %cst_161 {dimension_numbers = #tpu.dot_dimension_numbers<[1], [0], [0], [1], [0, 0, 1, 1], [], []>} : vector<16x128xf32>, vector<128x32xf32>, vector<16x32xf32> -> vector<16x32xf32>
    %388 = vector.broadcast %386 : vector<1x32xf32> to vector<16x32xf32>
    %389 = arith.addf %387, %388 : vector<16x32xf32>
    %390 = arith.addf %341, %389 : vector<16x32xf32>
    %391 = vector.shape_cast %390 : vector<16x32xf32> to vector<2x8x32xf32>
    %392 = vector.extract_strided_slice %391 {offsets = [0, 0, 0], sizes = [2, 1, 32], strides = [1, 1, 1]} : vector<2x8x32xf32> to vector<2x1x32xf32>
    %393 = vector.shape_cast %392 : vector<2x1x32xf32> to vector<2x32xf32>
    %c0_162 = arith.constant 0 : index
    %c0_163 = arith.constant 0 : index
    %394 = vector.load %arg18[%c0_162, %c0_163] : memref<1x32xf32, #tpu.memory_space<vmem>>, vector<1x32xf32>
    %c0_164 = arith.constant 0 : index
    %c0_165 = arith.constant 0 : index
    %395 = vector.load %arg19[%c0_164, %c0_165] : memref<1x32xf32, #tpu.memory_space<vmem>>, vector<1x32xf32>
    %cst_166 = arith.constant dense<0.000000e+00> : vector<2xf32>
    %396 = vector.multi_reduction <add>, %393, %cst_166 [1] : vector<2x32xf32> to vector<2xf32>
    %397 = vector.shape_cast %396 : vector<2xf32> to vector<2x1xf32>
    %cst_167 = arith.constant 3.200000e+01 : f32
    %398 = vector.broadcast %cst_167 : f32 to vector<2x1xf32>
    %399 = arith.divf %397, %398 : vector<2x1xf32>
    %400 = vector.broadcast %399 : vector<2x1xf32> to vector<2x32xf32>
    %401 = arith.subf %393, %400 : vector<2x32xf32>
    %402 = arith.mulf %401, %401 : vector<2x32xf32>
    %cst_168 = arith.constant dense<0.000000e+00> : vector<2xf32>
    %403 = vector.multi_reduction <add>, %402, %cst_168 [1] : vector<2x32xf32> to vector<2xf32>
    %404 = vector.shape_cast %403 : vector<2xf32> to vector<2x1xf32>
    %cst_169 = arith.constant 3.200000e+01 : f32
    %405 = vector.broadcast %cst_169 : f32 to vector<2x1xf32>
    %406 = arith.divf %404, %405 : vector<2x1xf32>
    %407 = vector.broadcast %399 : vector<2x1xf32> to vector<2x32xf32>
    %408 = arith.subf %393, %407 : vector<2x32xf32>
    %cst_170 = arith.constant 9.99999974E-6 : f32
    %409 = vector.broadcast %cst_170 : f32 to vector<2x1xf32>
    %410 = arith.addf %406, %409 : vector<2x1xf32>
    %411 = math.rsqrt %410 : vector<2x1xf32>
    %412 = vector.broadcast %411 : vector<2x1xf32> to vector<2x32xf32>
    %413 = arith.mulf %408, %412 : vector<2x32xf32>
    %414 = vector.broadcast %394 : vector<1x32xf32> to vector<2x32xf32>
    %415 = arith.mulf %413, %414 : vector<2x32xf32>
    %416 = vector.broadcast %395 : vector<1x32xf32> to vector<2x32xf32>
    %417 = arith.addf %415, %416 : vector<2x32xf32>
    %c0_171 = arith.constant 0 : index
    %c0_172 = arith.constant 0 : index
    %418 = vector.load %arg20[%c0_171, %c0_172] : memref<32x16xf32, #tpu.memory_space<vmem>>, vector<32x16xf32>
    %cst_173 = arith.constant dense<0.000000e+00> : vector<2x16xf32>
    %419 = tpu.matmul %417, %418, %cst_173 {dimension_numbers = #tpu.dot_dimension_numbers<[1], [0], [0], [1], [0, 0, 1, 1], [], []>} : vector<2x32xf32>, vector<32x16xf32>, vector<2x16xf32> -> vector<2x16xf32>
    %420 = arith.mulf %419, %419 : vector<2x16xf32>
    %cst_174 = arith.constant dense<0.000000e+00> : vector<2xf32>
    %421 = vector.multi_reduction <add>, %420, %cst_174 [1] : vector<2x16xf32> to vector<2xf32>
    %422 = vector.shape_cast %421 : vector<2xf32> to vector<2x1xf32>
    %423 = math.rsqrt %422 : vector<2x1xf32>
    %424 = vector.broadcast %423 : vector<2x1xf32> to vector<2x16xf32>
    %425 = arith.mulf %419, %424 : vector<2x16xf32>
    %cst_175 = arith.constant 0.000000e+00 : f32
    %426 = vector.broadcast %cst_175 : f32 to vector<2x112xf32>
    %427 = tpu.concatenate %425, %426 in 1 : vector<2x16xf32>, vector<2x112xf32> -> vector<2x128xf32>
    %c0_176 = arith.constant 0 : index
    %c0_177 = arith.constant 0 : index
    %428 = vector.load %arg39[%c0_176, %c0_177] : memref<2x128xf32, #tpu.memory_space<vmem>>, vector<2x128xf32>
    tpu.vector_store %arg39[%c0_176, %c0_177], %427 {strides = array<i32>} : memref<2x128xf32, #tpu.memory_space<vmem>>, vector<2x128xf32>,
    %c0_178 = arith.constant 0 : index
    %c0_179 = arith.constant 0 : index
    %c0_180 = arith.constant 0 : index
    %429 = vector.load %arg21[%c0_178, %c0_179, %c0_180] : memref<2x8x32xf32, #tpu.memory_space<vmem>>, vector<2x8x32xf32>
    %c0_181 = arith.constant 0 : index
    %c0_182 = arith.constant 0 : index
    %430 = vector.load %arg22[%c0_181, %c0_182] : memref<8x32xf32, #tpu.memory_space<vmem>>, vector<8x32xf32>
    %431 = vector.shape_cast %430 : vector<8x32xf32> to vector<1x8x32xf32>
    %432 = vector.broadcast %431 : vector<1x8x32xf32> to vector<2x8x32xf32>
    %433 = arith.addf %429, %432 : vector<2x8x32xf32>
    %434 = vector.shape_cast %433 : vector<2x8x32xf32> to vector<16x32xf32>
    %435 = tpu.iota {dimensions = array<i32: 0>} : vector<8x8xi32>
    %436 = tpu.iota {dimensions = array<i32: 1>} : vector<8x8xi32>
    %437 = arith.cmpi sle, %436, %435 : vector<8x8xi32>
    %cst_183 = arith.constant 0.000000e+00 : f32
    %cst_184 = arith.constant -1.000000e+30 : f32
    %438 = vector.broadcast %cst_183 : f32 to vector<8x8xf32>
    %439 = vector.broadcast %cst_184 : f32 to vector<8x8xf32>
    %440 = arith.select %437, %438, %439 : vector<8x8xi1>, vector<8x8xf32>
    %c0_185 = arith.constant 0 : index
    %c0_186 = arith.constant 0 : index
    %c0_187 = arith.constant 0 : index
    %441 = vector.load %arg23[%c0_185, %c0_186, %c0_187] : memref<2x1x32xf32, #tpu.memory_space<vmem>>, vector<1x1x32xf32>
    %442 = vector.shape_cast %441 : vector<1x1x32xf32> to vector<1x32xf32>
    %c0_188 = arith.constant 0 : index
    %c0_189 = arith.constant 0 : index
    %c0_190 = arith.constant 0 : index
    %443 = vector.load %arg24[%c0_188, %c0_189, %c0_190] : memref<2x1x32xf32, #tpu.memory_space<vmem>>, vector<1x1x32xf32>
    %444 = vector.shape_cast %443 : vector<1x1x32xf32> to vector<1x32xf32>
    %cst_191 = arith.constant dense<0.000000e+00> : vector<16xf32>
    %445 = vector.multi_reduction <add>, %434, %cst_191 [1] : vector<16x32xf32> to vector<16xf32>
    %446 = vector.shape_cast %445 : vector<16xf32> to vector<16x1xf32>
    %cst_192 = arith.constant 3.200000e+01 : f32
    %447 = vector.broadcast %cst_192 : f32 to vector<16x1xf32>
    %448 = arith.divf %446, %447 : vector<16x1xf32>
    %449 = vector.broadcast %448 : vector<16x1xf32> to vector<16x32xf32>
    %450 = arith.subf %434, %449 : vector<16x32xf32>
    %451 = arith.mulf %450, %450 : vector<16x32xf32>
    %cst_193 = arith.constant dense<0.000000e+00> : vector<16xf32>
    %452 = vector.multi_reduction <add>, %451, %cst_193 [1] : vector<16x32xf32> to vector<16xf32>
    %453 = vector.shape_cast %452 : vector<16xf32> to vector<16x1xf32>
    %cst_194 = arith.constant 3.200000e+01 : f32
    %454 = vector.broadcast %cst_194 : f32 to vector<16x1xf32>
    %455 = arith.divf %453, %454 : vector<16x1xf32>
    %456 = vector.broadcast %448 : vector<16x1xf32> to vector<16x32xf32>
    %457 = arith.subf %434, %456 : vector<16x32xf32>
    %cst_195 = arith.constant 9.99999974E-6 : f32
    %458 = vector.broadcast %cst_195 : f32 to vector<16x1xf32>
    %459 = arith.addf %455, %458 : vector<16x1xf32>
    %460 = math.rsqrt %459 : vector<16x1xf32>
    %461 = vector.broadcast %460 : vector<16x1xf32> to vector<16x32xf32>
    %462 = arith.mulf %457, %461 : vector<16x32xf32>
    %463 = vector.broadcast %442 : vector<1x32xf32> to vector<16x32xf32>
    %464 = arith.mulf %462, %463 : vector<16x32xf32>
    %465 = vector.broadcast %444 : vector<1x32xf32> to vector<16x32xf32>
    %466 = arith.addf %464, %465 : vector<16x32xf32>
    %c0_196 = arith.constant 0 : index
    %c0_197 = arith.constant 0 : index
    %c0_198 = arith.constant 0 : index
    %467 = vector.load %arg25[%c0_196, %c0_197, %c0_198] : memref<2x32x96xf32, #tpu.memory_space<vmem>>, vector<1x32x96xf32>
    %468 = vector.shape_cast %467 : vector<1x32x96xf32> to vector<32x96xf32>
    %c0_199 = arith.constant 0 : index
    %c0_200 = arith.constant 0 : index
    %c0_201 = arith.constant 0 : index
    %469 = vector.load %arg26[%c0_199, %c0_200, %c0_201] : memref<2x1x96xf32, #tpu.memory_space<vmem>>, vector<1x1x96xf32>
    %470 = vector.shape_cast %469 : vector<1x1x96xf32> to vector<1x96xf32>
    %c0_202 = arith.constant 0 : index
    %c0_203 = arith.constant 0 : index
    %c0_204 = arith.constant 0 : index
    %471 = vector.load %arg27[%c0_202, %c0_203, %c0_204] : memref<2x32x32xf32, #tpu.memory_space<vmem>>, vector<1x32x32xf32>
    %472 = vector.shape_cast %471 : vector<1x32x32xf32> to vector<32x32xf32>
    %c0_205 = arith.constant 0 : index
    %c0_206 = arith.constant 0 : index
    %c0_207 = arith.constant 0 : index
    %473 = vector.load %arg28[%c0_205, %c0_206, %c0_207] : memref<2x1x32xf32, #tpu.memory_space<vmem>>, vector<1x1x32xf32>
    %474 = vector.shape_cast %473 : vector<1x1x32xf32> to vector<1x32xf32>
    %cst_208 = arith.constant dense<0.000000e+00> : vector<16x96xf32>
    %475 = tpu.matmul %466, %468, %cst_208 {dimension_numbers = #tpu.dot_dimension_numbers<[1], [0], [0], [1], [0, 0, 1, 1], [], []>} : vector<16x32xf32>, vector<32x96xf32>, vector<16x96xf32> -> vector<16x96xf32>
    %476 = vector.broadcast %470 : vector<1x96xf32> to vector<16x96xf32>
    %477 = arith.addf %475, %476 : vector<16x96xf32>
    %478 = vector.shape_cast %477 : vector<16x96xf32> to vector<2x8x96xf32>
    %479 = vector.extract_strided_slice %478 {offsets = [0, 0, 0], sizes = [2, 8, 8], strides = [1, 1, 1]} : vector<2x8x96xf32> to vector<2x8x8xf32>
    %cst_209 = arith.constant 0.353553385 : f32
    %480 = vector.broadcast %cst_209 : f32 to vector<2x8x8xf32>
    %481 = arith.mulf %479, %480 : vector<2x8x8xf32>
    %482 = vector.extract_strided_slice %478 {offsets = [0, 0, 32], sizes = [2, 8, 8], strides = [1, 1, 1]} : vector<2x8x96xf32> to vector<2x8x8xf32>
    %483 = vector.extract_strided_slice %478 {offsets = [0, 0, 64], sizes = [2, 8, 8], strides = [1, 1, 1]} : vector<2x8x96xf32> to vector<2x8x8xf32>
    "tpu.trace_start"() <{level = 10 : i32, message = "bqd,bkd->bqk"}> : () -> ()
    %cst_210 = arith.constant dense<0.000000e+00> : vector<2x8x8xf32>
    %484 = tpu.matmul %481, %482, %cst_210 {dimension_numbers = #tpu.dot_dimension_numbers<[2], [2], [1], [1], [0, 0, 0, 1, 1, 1], [0], [0]>} : vector<2x8x8xf32>, vector<2x8x8xf32>, vector<2x8x8xf32> -> vector<2x8x8xf32>
    "tpu.trace_stop"() : () -> ()
    %485 = vector.shape_cast %440 : vector<8x8xf32> to vector<1x8x8xf32>
    %486 = vector.broadcast %485 : vector<1x8x8xf32> to vector<2x8x8xf32>
    %487 = arith.addf %484, %486 : vector<2x8x8xf32>
    %cst_211 = arith.constant dense<0xFF800000> : vector<2x8xf32>
    %488 = vector.multi_reduction <maximumf>, %487, %cst_211 [2] : vector<2x8x8xf32> to vector<2x8xf32>
    %489 = vector.shape_cast %488 : vector<2x8xf32> to vector<2x8x1xf32>
    %490 = vector.broadcast %489 : vector<2x8x1xf32> to vector<2x8x8xf32>
    %491 = arith.subf %487, %490 : vector<2x8x8xf32>
    %492 = math.exp %491 : vector<2x8x8xf32>
    %cst_212 = arith.constant dense<0.000000e+00> : vector<2x8xf32>
    %493 = vector.multi_reduction <add>, %492, %cst_212 [2] : vector<2x8x8xf32> to vector<2x8xf32>
    %494 = vector.shape_cast %493 : vector<2x8xf32> to vector<2x8x1xf32>
    %495 = tpu.reciprocal %494 {approx = true} : vector<2x8x1xf32> -> vector<2x8x1xf32>
    %496 = vector.broadcast %495 : vector<2x8x1xf32> to vector<2x8x8xf32>
    %497 = arith.mulf %492, %496 : vector<2x8x8xf32>
    "tpu.trace_start"() <{level = 10 : i32, message = "bqk,bkd->bqd"}> : () -> ()
    %cst_213 = arith.constant dense<0.000000e+00> : vector<2x8x8xf32>
    %498 = tpu.matmul %497, %483, %cst_213 {dimension_numbers = #tpu.dot_dimension_numbers<[2], [1], [1], [2], [0, 0, 0, 1, 1, 2], [0], [0]>} : vector<2x8x8xf32>, vector<2x8x8xf32>, vector<2x8x8xf32> -> vector<2x8x8xf32>
    "tpu.trace_stop"() : () -> ()
    %499 = vector.extract_strided_slice %478 {offsets = [0, 0, 8], sizes = [2, 8, 8], strides = [1, 1, 1]} : vector<2x8x96xf32> to vector<2x8x8xf32>
    %cst_214 = arith.constant 0.353553385 : f32
    %500 = vector.broadcast %cst_214 : f32 to vector<2x8x8xf32>
    %501 = arith.mulf %499, %500 : vector<2x8x8xf32>
    %502 = vector.extract_strided_slice %478 {offsets = [0, 0, 40], sizes = [2, 8, 8], strides = [1, 1, 1]} : vector<2x8x96xf32> to vector<2x8x8xf32>
    %503 = vector.extract_strided_slice %478 {offsets = [0, 0, 72], sizes = [2, 8, 8], strides = [1, 1, 1]} : vector<2x8x96xf32> to vector<2x8x8xf32>
    "tpu.trace_start"() <{level = 10 : i32, message = "bqd,bkd->bqk"}> : () -> ()
    %cst_215 = arith.constant dense<0.000000e+00> : vector<2x8x8xf32>
    %504 = tpu.matmul %501, %502, %cst_215 {dimension_numbers = #tpu.dot_dimension_numbers<[2], [2], [1], [1], [0, 0, 0, 1, 1, 1], [0], [0]>} : vector<2x8x8xf32>, vector<2x8x8xf32>, vector<2x8x8xf32> -> vector<2x8x8xf32>
    "tpu.trace_stop"() : () -> ()
    %505 = vector.shape_cast %440 : vector<8x8xf32> to vector<1x8x8xf32>
    %506 = vector.broadcast %505 : vector<1x8x8xf32> to vector<2x8x8xf32>
    %507 = arith.addf %504, %506 : vector<2x8x8xf32>
    %cst_216 = arith.constant dense<0xFF800000> : vector<2x8xf32>
    %508 = vector.multi_reduction <maximumf>, %507, %cst_216 [2] : vector<2x8x8xf32> to vector<2x8xf32>
    %509 = vector.shape_cast %508 : vector<2x8xf32> to vector<2x8x1xf32>
    %510 = vector.broadcast %509 : vector<2x8x1xf32> to vector<2x8x8xf32>
    %511 = arith.subf %507, %510 : vector<2x8x8xf32>
    %512 = math.exp %511 : vector<2x8x8xf32>
    %cst_217 = arith.constant dense<0.000000e+00> : vector<2x8xf32>
    %513 = vector.multi_reduction <add>, %512, %cst_217 [2] : vector<2x8x8xf32> to vector<2x8xf32>
    %514 = vector.shape_cast %513 : vector<2x8xf32> to vector<2x8x1xf32>
    %515 = tpu.reciprocal %514 {approx = true} : vector<2x8x1xf32> -> vector<2x8x1xf32>
    %516 = vector.broadcast %515 : vector<2x8x1xf32> to vector<2x8x8xf32>
    %517 = arith.mulf %512, %516 : vector<2x8x8xf32>
    "tpu.trace_start"() <{level = 10 : i32, message = "bqk,bkd->bqd"}> : () -> ()
    %cst_218 = arith.constant dense<0.000000e+00> : vector<2x8x8xf32>
    %518 = tpu.matmul %517, %503, %cst_218 {dimension_numbers = #tpu.dot_dimension_numbers<[2], [1], [1], [2], [0, 0, 0, 1, 1, 2], [0], [0]>} : vector<2x8x8xf32>, vector<2x8x8xf32>, vector<2x8x8xf32> -> vector<2x8x8xf32>
    "tpu.trace_stop"() : () -> ()
    %519 = vector.extract_strided_slice %478 {offsets = [0, 0, 16], sizes = [2, 8, 8], strides = [1, 1, 1]} : vector<2x8x96xf32> to vector<2x8x8xf32>
    %cst_219 = arith.constant 0.353553385 : f32
    %520 = vector.broadcast %cst_219 : f32 to vector<2x8x8xf32>
    %521 = arith.mulf %519, %520 : vector<2x8x8xf32>
    %522 = vector.extract_strided_slice %478 {offsets = [0, 0, 48], sizes = [2, 8, 8], strides = [1, 1, 1]} : vector<2x8x96xf32> to vector<2x8x8xf32>
    %523 = vector.extract_strided_slice %478 {offsets = [0, 0, 80], sizes = [2, 8, 8], strides = [1, 1, 1]} : vector<2x8x96xf32> to vector<2x8x8xf32>
    "tpu.trace_start"() <{level = 10 : i32, message = "bqd,bkd->bqk"}> : () -> ()
    %cst_220 = arith.constant dense<0.000000e+00> : vector<2x8x8xf32>
    %524 = tpu.matmul %521, %522, %cst_220 {dimension_numbers = #tpu.dot_dimension_numbers<[2], [2], [1], [1], [0, 0, 0, 1, 1, 1], [0], [0]>} : vector<2x8x8xf32>, vector<2x8x8xf32>, vector<2x8x8xf32> -> vector<2x8x8xf32>
    "tpu.trace_stop"() : () -> ()
    %525 = vector.shape_cast %440 : vector<8x8xf32> to vector<1x8x8xf32>
    %526 = vector.broadcast %525 : vector<1x8x8xf32> to vector<2x8x8xf32>
    %527 = arith.addf %524, %526 : vector<2x8x8xf32>
    %cst_221 = arith.constant dense<0xFF800000> : vector<2x8xf32>
    %528 = vector.multi_reduction <maximumf>, %527, %cst_221 [2] : vector<2x8x8xf32> to vector<2x8xf32>
    %529 = vector.shape_cast %528 : vector<2x8xf32> to vector<2x8x1xf32>
    %530 = vector.broadcast %529 : vector<2x8x1xf32> to vector<2x8x8xf32>
    %531 = arith.subf %527, %530 : vector<2x8x8xf32>
    %532 = math.exp %531 : vector<2x8x8xf32>
    %cst_222 = arith.constant dense<0.000000e+00> : vector<2x8xf32>
    %533 = vector.multi_reduction <add>, %532, %cst_222 [2] : vector<2x8x8xf32> to vector<2x8xf32>
    %534 = vector.shape_cast %533 : vector<2x8xf32> to vector<2x8x1xf32>
    %535 = tpu.reciprocal %534 {approx = true} : vector<2x8x1xf32> -> vector<2x8x1xf32>
    %536 = vector.broadcast %535 : vector<2x8x1xf32> to vector<2x8x8xf32>
    %537 = arith.mulf %532, %536 : vector<2x8x8xf32>
    "tpu.trace_start"() <{level = 10 : i32, message = "bqk,bkd->bqd"}> : () -> ()
    %cst_223 = arith.constant dense<0.000000e+00> : vector<2x8x8xf32>
    %538 = tpu.matmul %537, %523, %cst_223 {dimension_numbers = #tpu.dot_dimension_numbers<[2], [1], [1], [2], [0, 0, 0, 1, 1, 2], [0], [0]>} : vector<2x8x8xf32>, vector<2x8x8xf32>, vector<2x8x8xf32> -> vector<2x8x8xf32>
    "tpu.trace_stop"() : () -> ()
    %539 = vector.extract_strided_slice %478 {offsets = [0, 0, 24], sizes = [2, 8, 8], strides = [1, 1, 1]} : vector<2x8x96xf32> to vector<2x8x8xf32>
    %cst_224 = arith.constant 0.353553385 : f32
    %540 = vector.broadcast %cst_224 : f32 to vector<2x8x8xf32>
    %541 = arith.mulf %539, %540 : vector<2x8x8xf32>
    %542 = vector.extract_strided_slice %478 {offsets = [0, 0, 56], sizes = [2, 8, 8], strides = [1, 1, 1]} : vector<2x8x96xf32> to vector<2x8x8xf32>
    %543 = vector.extract_strided_slice %478 {offsets = [0, 0, 88], sizes = [2, 8, 8], strides = [1, 1, 1]} : vector<2x8x96xf32> to vector<2x8x8xf32>
    "tpu.trace_start"() <{level = 10 : i32, message = "bqd,bkd->bqk"}> : () -> ()
    %cst_225 = arith.constant dense<0.000000e+00> : vector<2x8x8xf32>
    %544 = tpu.matmul %541, %542, %cst_225 {dimension_numbers = #tpu.dot_dimension_numbers<[2], [2], [1], [1], [0, 0, 0, 1, 1, 1], [0], [0]>} : vector<2x8x8xf32>, vector<2x8x8xf32>, vector<2x8x8xf32> -> vector<2x8x8xf32>
    "tpu.trace_stop"() : () -> ()
    %545 = vector.shape_cast %440 : vector<8x8xf32> to vector<1x8x8xf32>
    %546 = vector.broadcast %545 : vector<1x8x8xf32> to vector<2x8x8xf32>
    %547 = arith.addf %544, %546 : vector<2x8x8xf32>
    %cst_226 = arith.constant dense<0xFF800000> : vector<2x8xf32>
    %548 = vector.multi_reduction <maximumf>, %547, %cst_226 [2] : vector<2x8x8xf32> to vector<2x8xf32>
    %549 = vector.shape_cast %548 : vector<2x8xf32> to vector<2x8x1xf32>
    %550 = vector.broadcast %549 : vector<2x8x1xf32> to vector<2x8x8xf32>
    %551 = arith.subf %547, %550 : vector<2x8x8xf32>
    %552 = math.exp %551 : vector<2x8x8xf32>
    %cst_227 = arith.constant dense<0.000000e+00> : vector<2x8xf32>
    %553 = vector.multi_reduction <add>, %552, %cst_227 [2] : vector<2x8x8xf32> to vector<2x8xf32>
    %554 = vector.shape_cast %553 : vector<2x8xf32> to vector<2x8x1xf32>
    %555 = tpu.reciprocal %554 {approx = true} : vector<2x8x1xf32> -> vector<2x8x1xf32>
    %556 = vector.broadcast %555 : vector<2x8x1xf32> to vector<2x8x8xf32>
    %557 = arith.mulf %552, %556 : vector<2x8x8xf32>
    "tpu.trace_start"() <{level = 10 : i32, message = "bqk,bkd->bqd"}> : () -> ()
    %cst_228 = arith.constant dense<0.000000e+00> : vector<2x8x8xf32>
    %558 = tpu.matmul %557, %543, %cst_228 {dimension_numbers = #tpu.dot_dimension_numbers<[2], [1], [1], [2], [0, 0, 0, 1, 1, 2], [0], [0]>} : vector<2x8x8xf32>, vector<2x8x8xf32>, vector<2x8x8xf32> -> vector<2x8x8xf32>
    "tpu.trace_stop"() : () -> ()
    %559 = tpu.concatenate %498, %518, %538, %558 in 2 : vector<2x8x8xf32>, vector<2x8x8xf32>, vector<2x8x8xf32>, vector<2x8x8xf32> -> vector<2x8x32xf32>
    %560 = vector.shape_cast %559 : vector<2x8x32xf32> to vector<16x32xf32>
    %cst_229 = arith.constant dense<0.000000e+00> : vector<16x32xf32>
    %561 = tpu.matmul %560, %472, %cst_229 {dimension_numbers = #tpu.dot_dimension_numbers<[1], [0], [0], [1], [0, 0, 1, 1], [], []>} : vector<16x32xf32>, vector<32x32xf32>, vector<16x32xf32> -> vector<16x32xf32>
    %562 = vector.broadcast %474 : vector<1x32xf32> to vector<16x32xf32>
    %563 = arith.addf %561, %562 : vector<16x32xf32>
    %564 = arith.addf %434, %563 : vector<16x32xf32>
    %c0_230 = arith.constant 0 : index
    %c0_231 = arith.constant 0 : index
    %c0_232 = arith.constant 0 : index
    %565 = vector.load %arg29[%c0_230, %c0_231, %c0_232] : memref<2x1x32xf32, #tpu.memory_space<vmem>>, vector<1x1x32xf32>
    %566 = vector.shape_cast %565 : vector<1x1x32xf32> to vector<1x32xf32>
    %c0_233 = arith.constant 0 : index
    %c0_234 = arith.constant 0 : index
    %c0_235 = arith.constant 0 : index
    %567 = vector.load %arg30[%c0_233, %c0_234, %c0_235] : memref<2x1x32xf32, #tpu.memory_space<vmem>>, vector<1x1x32xf32>
    %568 = vector.shape_cast %567 : vector<1x1x32xf32> to vector<1x32xf32>
    %cst_236 = arith.constant dense<0.000000e+00> : vector<16xf32>
    %569 = vector.multi_reduction <add>, %564, %cst_236 [1] : vector<16x32xf32> to vector<16xf32>
    %570 = vector.shape_cast %569 : vector<16xf32> to vector<16x1xf32>
    %cst_237 = arith.constant 3.200000e+01 : f32
    %571 = vector.broadcast %cst_237 : f32 to vector<16x1xf32>
    %572 = arith.divf %570, %571 : vector<16x1xf32>
    %573 = vector.broadcast %572 : vector<16x1xf32> to vector<16x32xf32>
    %574 = arith.subf %564, %573 : vector<16x32xf32>
    %575 = arith.mulf %574, %574 : vector<16x32xf32>
    %cst_238 = arith.constant dense<0.000000e+00> : vector<16xf32>
    %576 = vector.multi_reduction <add>, %575, %cst_238 [1] : vector<16x32xf32> to vector<16xf32>
    %577 = vector.shape_cast %576 : vector<16xf32> to vector<16x1xf32>
    %cst_239 = arith.constant 3.200000e+01 : f32
    %578 = vector.broadcast %cst_239 : f32 to vector<16x1xf32>
    %579 = arith.divf %577, %578 : vector<16x1xf32>
    %580 = vector.broadcast %572 : vector<16x1xf32> to vector<16x32xf32>
    %581 = arith.subf %564, %580 : vector<16x32xf32>
    %cst_240 = arith.constant 9.99999974E-6 : f32
    %582 = vector.broadcast %cst_240 : f32 to vector<16x1xf32>
    %583 = arith.addf %579, %582 : vector<16x1xf32>
    %584 = math.rsqrt %583 : vector<16x1xf32>
    %585 = vector.broadcast %584 : vector<16x1xf32> to vector<16x32xf32>
    %586 = arith.mulf %581, %585 : vector<16x32xf32>
    %587 = vector.broadcast %566 : vector<1x32xf32> to vector<16x32xf32>
    %588 = arith.mulf %586, %587 : vector<16x32xf32>
    %589 = vector.broadcast %568 : vector<1x32xf32> to vector<16x32xf32>
    %590 = arith.addf %588, %589 : vector<16x32xf32>
    %c0_241 = arith.constant 0 : index
    %c0_242 = arith.constant 0 : index
    %c0_243 = arith.constant 0 : index
    %591 = vector.load %arg31[%c0_241, %c0_242, %c0_243] : memref<2x32x128xf32, #tpu.memory_space<vmem>>, vector<1x32x128xf32>
    %592 = vector.shape_cast %591 : vector<1x32x128xf32> to vector<32x128xf32>
    %c0_244 = arith.constant 0 : index
    %c0_245 = arith.constant 0 : index
    %c0_246 = arith.constant 0 : index
    %593 = vector.load %arg32[%c0_244, %c0_245, %c0_246] : memref<2x1x128xf32, #tpu.memory_space<vmem>>, vector<1x1x128xf32>
    %594 = vector.shape_cast %593 : vector<1x1x128xf32> to vector<1x128xf32>
    %cst_247 = arith.constant dense<0.000000e+00> : vector<16x128xf32>
    %595 = tpu.matmul %590, %592, %cst_247 {dimension_numbers = #tpu.dot_dimension_numbers<[1], [0], [0], [1], [0, 0, 1, 1], [], []>} : vector<16x32xf32>, vector<32x128xf32>, vector<16x128xf32> -> vector<16x128xf32>
    %596 = vector.broadcast %594 : vector<1x128xf32> to vector<16x128xf32>
    %597 = arith.addf %595, %596 : vector<16x128xf32>
    %cst_248 = arith.constant 1.702000e+00 : f32
    %598 = vector.broadcast %cst_248 : f32 to vector<16x128xf32>
    %599 = arith.mulf %598, %597 : vector<16x128xf32>
    %600 = arith.negf %599 : vector<16x128xf32>
    %601 = math.exp %600 : vector<16x128xf32>
    %cst_249 = arith.constant 1.000000e+00 : f32
    %602 = vector.broadcast %cst_249 : f32 to vector<16x128xf32>
    %603 = arith.addf %602, %601 : vector<16x128xf32>
    %604 = arith.divf %602, %603 : vector<16x128xf32>
    %605 = arith.mulf %597, %604 : vector<16x128xf32>
    %c0_250 = arith.constant 0 : index
    %c0_251 = arith.constant 0 : index
    %c0_252 = arith.constant 0 : index
    %606 = vector.load %arg33[%c0_250, %c0_251, %c0_252] : memref<2x128x32xf32, #tpu.memory_space<vmem>>, vector<1x128x32xf32>
    %607 = vector.shape_cast %606 : vector<1x128x32xf32> to vector<128x32xf32>
    %c0_253 = arith.constant 0 : index
    %c0_254 = arith.constant 0 : index
    %c0_255 = arith.constant 0 : index
    %608 = vector.load %arg34[%c0_253, %c0_254, %c0_255] : memref<2x1x32xf32, #tpu.memory_space<vmem>>, vector<1x1x32xf32>
    %609 = vector.shape_cast %608 : vector<1x1x32xf32> to vector<1x32xf32>
    %cst_256 = arith.constant dense<0.000000e+00> : vector<16x32xf32>
    %610 = tpu.matmul %605, %607, %cst_256 {dimension_numbers = #tpu.dot_dimension_numbers<[1], [0], [0], [1], [0, 0, 1, 1], [], []>} : vector<16x128xf32>, vector<128x32xf32>, vector<16x32xf32> -> vector<16x32xf32>
    %611 = vector.broadcast %609 : vector<1x32xf32> to vector<16x32xf32>
    %612 = arith.addf %610, %611 : vector<16x32xf32>
    %613 = arith.addf %564, %612 : vector<16x32xf32>
    %c1_257 = arith.constant 1 : index
    %c0_258 = arith.constant 0 : index
    %c0_259 = arith.constant 0 : index
    %614 = vector.load %arg23[%c1_257, %c0_258, %c0_259] : memref<2x1x32xf32, #tpu.memory_space<vmem>>, vector<1x1x32xf32>
    %615 = vector.shape_cast %614 : vector<1x1x32xf32> to vector<1x32xf32>
    %c1_260 = arith.constant 1 : index
    %c0_261 = arith.constant 0 : index
    %c0_262 = arith.constant 0 : index
    %616 = vector.load %arg24[%c1_260, %c0_261, %c0_262] : memref<2x1x32xf32, #tpu.memory_space<vmem>>, vector<1x1x32xf32>
    %617 = vector.shape_cast %616 : vector<1x1x32xf32> to vector<1x32xf32>
    %cst_263 = arith.constant dense<0.000000e+00> : vector<16xf32>
    %618 = vector.multi_reduction <add>, %613, %cst_263 [1] : vector<16x32xf32> to vector<16xf32>
    %619 = vector.shape_cast %618 : vector<16xf32> to vector<16x1xf32>
    %cst_264 = arith.constant 3.200000e+01 : f32
    %620 = vector.broadcast %cst_264 : f32 to vector<16x1xf32>
    %621 = arith.divf %619, %620 : vector<16x1xf32>
    %622 = vector.broadcast %621 : vector<16x1xf32> to vector<16x32xf32>
    %623 = arith.subf %613, %622 : vector<16x32xf32>
    %624 = arith.mulf %623, %623 : vector<16x32xf32>
    %cst_265 = arith.constant dense<0.000000e+00> : vector<16xf32>
    %625 = vector.multi_reduction <add>, %624, %cst_265 [1] : vector<16x32xf32> to vector<16xf32>
    %626 = vector.shape_cast %625 : vector<16xf32> to vector<16x1xf32>
    %cst_266 = arith.constant 3.200000e+01 : f32
    %627 = vector.broadcast %cst_266 : f32 to vector<16x1xf32>
    %628 = arith.divf %626, %627 : vector<16x1xf32>
    %629 = vector.broadcast %621 : vector<16x1xf32> to vector<16x32xf32>
    %630 = arith.subf %613, %629 : vector<16x32xf32>
    %cst_267 = arith.constant 9.99999974E-6 : f32
    %631 = vector.broadcast %cst_267 : f32 to vector<16x1xf32>
    %632 = arith.addf %628, %631 : vector<16x1xf32>
    %633 = math.rsqrt %632 : vector<16x1xf32>
    %634 = vector.broadcast %633 : vector<16x1xf32> to vector<16x32xf32>
    %635 = arith.mulf %630, %634 : vector<16x32xf32>
    %636 = vector.broadcast %615 : vector<1x32xf32> to vector<16x32xf32>
    %637 = arith.mulf %635, %636 : vector<16x32xf32>
    %638 = vector.broadcast %617 : vector<1x32xf32> to vector<16x32xf32>
    %639 = arith.addf %637, %638 : vector<16x32xf32>
    %c1_268 = arith.constant 1 : index
    %c0_269 = arith.constant 0 : index
    %c0_270 = arith.constant 0 : index
    %640 = vector.load %arg25[%c1_268, %c0_269, %c0_270] : memref<2x32x96xf32, #tpu.memory_space<vmem>>, vector<1x32x96xf32>
    %641 = vector.shape_cast %640 : vector<1x32x96xf32> to vector<32x96xf32>
    %c1_271 = arith.constant 1 : index
    %c0_272 = arith.constant 0 : index
    %c0_273 = arith.constant 0 : index
    %642 = vector.load %arg26[%c1_271, %c0_272, %c0_273] : memref<2x1x96xf32, #tpu.memory_space<vmem>>, vector<1x1x96xf32>
    %643 = vector.shape_cast %642 : vector<1x1x96xf32> to vector<1x96xf32>
    %c1_274 = arith.constant 1 : index
    %c0_275 = arith.constant 0 : index
    %c0_276 = arith.constant 0 : index
    %644 = vector.load %arg27[%c1_274, %c0_275, %c0_276] : memref<2x32x32xf32, #tpu.memory_space<vmem>>, vector<1x32x32xf32>
    %645 = vector.shape_cast %644 : vector<1x32x32xf32> to vector<32x32xf32>
    %c1_277 = arith.constant 1 : index
    %c0_278 = arith.constant 0 : index
    %c0_279 = arith.constant 0 : index
    %646 = vector.load %arg28[%c1_277, %c0_278, %c0_279] : memref<2x1x32xf32, #tpu.memory_space<vmem>>, vector<1x1x32xf32>
    %647 = vector.shape_cast %646 : vector<1x1x32xf32> to vector<1x32xf32>
    %cst_280 = arith.constant dense<0.000000e+00> : vector<16x96xf32>
    %648 = tpu.matmul %639, %641, %cst_280 {dimension_numbers = #tpu.dot_dimension_numbers<[1], [0], [0], [1], [0, 0, 1, 1], [], []>} : vector<16x32xf32>, vector<32x96xf32>, vector<16x96xf32> -> vector<16x96xf32>
    %649 = vector.broadcast %643 : vector<1x96xf32> to vector<16x96xf32>
    %650 = arith.addf %648, %649 : vector<16x96xf32>
    %651 = vector.shape_cast %650 : vector<16x96xf32> to vector<2x8x96xf32>
    %652 = vector.extract_strided_slice %651 {offsets = [0, 0, 0], sizes = [2, 8, 8], strides = [1, 1, 1]} : vector<2x8x96xf32> to vector<2x8x8xf32>
    %cst_281 = arith.constant 0.353553385 : f32
    %653 = vector.broadcast %cst_281 : f32 to vector<2x8x8xf32>
    %654 = arith.mulf %652, %653 : vector<2x8x8xf32>
    %655 = vector.extract_strided_slice %651 {offsets = [0, 0, 32], sizes = [2, 8, 8], strides = [1, 1, 1]} : vector<2x8x96xf32> to vector<2x8x8xf32>
    %656 = vector.extract_strided_slice %651 {offsets = [0, 0, 64], sizes = [2, 8, 8], strides = [1, 1, 1]} : vector<2x8x96xf32> to vector<2x8x8xf32>
    "tpu.trace_start"() <{level = 10 : i32, message = "bqd,bkd->bqk"}> : () -> ()
    %cst_282 = arith.constant dense<0.000000e+00> : vector<2x8x8xf32>
    %657 = tpu.matmul %654, %655, %cst_282 {dimension_numbers = #tpu.dot_dimension_numbers<[2], [2], [1], [1], [0, 0, 0, 1, 1, 1], [0], [0]>} : vector<2x8x8xf32>, vector<2x8x8xf32>, vector<2x8x8xf32> -> vector<2x8x8xf32>
    "tpu.trace_stop"() : () -> ()
    %658 = vector.shape_cast %440 : vector<8x8xf32> to vector<1x8x8xf32>
    %659 = vector.broadcast %658 : vector<1x8x8xf32> to vector<2x8x8xf32>
    %660 = arith.addf %657, %659 : vector<2x8x8xf32>
    %cst_283 = arith.constant dense<0xFF800000> : vector<2x8xf32>
    %661 = vector.multi_reduction <maximumf>, %660, %cst_283 [2] : vector<2x8x8xf32> to vector<2x8xf32>
    %662 = vector.shape_cast %661 : vector<2x8xf32> to vector<2x8x1xf32>
    %663 = vector.broadcast %662 : vector<2x8x1xf32> to vector<2x8x8xf32>
    %664 = arith.subf %660, %663 : vector<2x8x8xf32>
    %665 = math.exp %664 : vector<2x8x8xf32>
    %cst_284 = arith.constant dense<0.000000e+00> : vector<2x8xf32>
    %666 = vector.multi_reduction <add>, %665, %cst_284 [2] : vector<2x8x8xf32> to vector<2x8xf32>
    %667 = vector.shape_cast %666 : vector<2x8xf32> to vector<2x8x1xf32>
    %668 = tpu.reciprocal %667 {approx = true} : vector<2x8x1xf32> -> vector<2x8x1xf32>
    %669 = vector.broadcast %668 : vector<2x8x1xf32> to vector<2x8x8xf32>
    %670 = arith.mulf %665, %669 : vector<2x8x8xf32>
    "tpu.trace_start"() <{level = 10 : i32, message = "bqk,bkd->bqd"}> : () -> ()
    %cst_285 = arith.constant dense<0.000000e+00> : vector<2x8x8xf32>
    %671 = tpu.matmul %670, %656, %cst_285 {dimension_numbers = #tpu.dot_dimension_numbers<[2], [1], [1], [2], [0, 0, 0, 1, 1, 2], [0], [0]>} : vector<2x8x8xf32>, vector<2x8x8xf32>, vector<2x8x8xf32> -> vector<2x8x8xf32>
    "tpu.trace_stop"() : () -> ()
    %672 = vector.extract_strided_slice %651 {offsets = [0, 0, 8], sizes = [2, 8, 8], strides = [1, 1, 1]} : vector<2x8x96xf32> to vector<2x8x8xf32>
    %cst_286 = arith.constant 0.353553385 : f32
    %673 = vector.broadcast %cst_286 : f32 to vector<2x8x8xf32>
    %674 = arith.mulf %672, %673 : vector<2x8x8xf32>
    %675 = vector.extract_strided_slice %651 {offsets = [0, 0, 40], sizes = [2, 8, 8], strides = [1, 1, 1]} : vector<2x8x96xf32> to vector<2x8x8xf32>
    %676 = vector.extract_strided_slice %651 {offsets = [0, 0, 72], sizes = [2, 8, 8], strides = [1, 1, 1]} : vector<2x8x96xf32> to vector<2x8x8xf32>
    "tpu.trace_start"() <{level = 10 : i32, message = "bqd,bkd->bqk"}> : () -> ()
    %cst_287 = arith.constant dense<0.000000e+00> : vector<2x8x8xf32>
    %677 = tpu.matmul %674, %675, %cst_287 {dimension_numbers = #tpu.dot_dimension_numbers<[2], [2], [1], [1], [0, 0, 0, 1, 1, 1], [0], [0]>} : vector<2x8x8xf32>, vector<2x8x8xf32>, vector<2x8x8xf32> -> vector<2x8x8xf32>
    "tpu.trace_stop"() : () -> ()
    %678 = vector.shape_cast %440 : vector<8x8xf32> to vector<1x8x8xf32>
    %679 = vector.broadcast %678 : vector<1x8x8xf32> to vector<2x8x8xf32>
    %680 = arith.addf %677, %679 : vector<2x8x8xf32>
    %cst_288 = arith.constant dense<0xFF800000> : vector<2x8xf32>
    %681 = vector.multi_reduction <maximumf>, %680, %cst_288 [2] : vector<2x8x8xf32> to vector<2x8xf32>
    %682 = vector.shape_cast %681 : vector<2x8xf32> to vector<2x8x1xf32>
    %683 = vector.broadcast %682 : vector<2x8x1xf32> to vector<2x8x8xf32>
    %684 = arith.subf %680, %683 : vector<2x8x8xf32>
    %685 = math.exp %684 : vector<2x8x8xf32>
    %cst_289 = arith.constant dense<0.000000e+00> : vector<2x8xf32>
    %686 = vector.multi_reduction <add>, %685, %cst_289 [2] : vector<2x8x8xf32> to vector<2x8xf32>
    %687 = vector.shape_cast %686 : vector<2x8xf32> to vector<2x8x1xf32>
    %688 = tpu.reciprocal %687 {approx = true} : vector<2x8x1xf32> -> vector<2x8x1xf32>
    %689 = vector.broadcast %688 : vector<2x8x1xf32> to vector<2x8x8xf32>
    %690 = arith.mulf %685, %689 : vector<2x8x8xf32>
    "tpu.trace_start"() <{level = 10 : i32, message = "bqk,bkd->bqd"}> : () -> ()
    %cst_290 = arith.constant dense<0.000000e+00> : vector<2x8x8xf32>
    %691 = tpu.matmul %690, %676, %cst_290 {dimension_numbers = #tpu.dot_dimension_numbers<[2], [1], [1], [2], [0, 0, 0, 1, 1, 2], [0], [0]>} : vector<2x8x8xf32>, vector<2x8x8xf32>, vector<2x8x8xf32> -> vector<2x8x8xf32>
    "tpu.trace_stop"() : () -> ()
    %692 = vector.extract_strided_slice %651 {offsets = [0, 0, 16], sizes = [2, 8, 8], strides = [1, 1, 1]} : vector<2x8x96xf32> to vector<2x8x8xf32>
    %cst_291 = arith.constant 0.353553385 : f32
    %693 = vector.broadcast %cst_291 : f32 to vector<2x8x8xf32>
    %694 = arith.mulf %692, %693 : vector<2x8x8xf32>
    %695 = vector.extract_strided_slice %651 {offsets = [0, 0, 48], sizes = [2, 8, 8], strides = [1, 1, 1]} : vector<2x8x96xf32> to vector<2x8x8xf32>
    %696 = vector.extract_strided_slice %651 {offsets = [0, 0, 80], sizes = [2, 8, 8], strides = [1, 1, 1]} : vector<2x8x96xf32> to vector<2x8x8xf32>
    "tpu.trace_start"() <{level = 10 : i32, message = "bqd,bkd->bqk"}> : () -> ()
    %cst_292 = arith.constant dense<0.000000e+00> : vector<2x8x8xf32>
    %697 = tpu.matmul %694, %695, %cst_292 {dimension_numbers = #tpu.dot_dimension_numbers<[2], [2], [1], [1], [0, 0, 0, 1, 1, 1], [0], [0]>} : vector<2x8x8xf32>, vector<2x8x8xf32>, vector<2x8x8xf32> -> vector<2x8x8xf32>
    "tpu.trace_stop"() : () -> ()
    %698 = vector.shape_cast %440 : vector<8x8xf32> to vector<1x8x8xf32>
    %699 = vector.broadcast %698 : vector<1x8x8xf32> to vector<2x8x8xf32>
    %700 = arith.addf %697, %699 : vector<2x8x8xf32>
    %cst_293 = arith.constant dense<0xFF800000> : vector<2x8xf32>
    %701 = vector.multi_reduction <maximumf>, %700, %cst_293 [2] : vector<2x8x8xf32> to vector<2x8xf32>
    %702 = vector.shape_cast %701 : vector<2x8xf32> to vector<2x8x1xf32>
    %703 = vector.broadcast %702 : vector<2x8x1xf32> to vector<2x8x8xf32>
    %704 = arith.subf %700, %703 : vector<2x8x8xf32>
    %705 = math.exp %704 : vector<2x8x8xf32>
    %cst_294 = arith.constant dense<0.000000e+00> : vector<2x8xf32>
    %706 = vector.multi_reduction <add>, %705, %cst_294 [2] : vector<2x8x8xf32> to vector<2x8xf32>
    %707 = vector.shape_cast %706 : vector<2x8xf32> to vector<2x8x1xf32>
    %708 = tpu.reciprocal %707 {approx = true} : vector<2x8x1xf32> -> vector<2x8x1xf32>
    %709 = vector.broadcast %708 : vector<2x8x1xf32> to vector<2x8x8xf32>
    %710 = arith.mulf %705, %709 : vector<2x8x8xf32>
    "tpu.trace_start"() <{level = 10 : i32, message = "bqk,bkd->bqd"}> : () -> ()
    %cst_295 = arith.constant dense<0.000000e+00> : vector<2x8x8xf32>
    %711 = tpu.matmul %710, %696, %cst_295 {dimension_numbers = #tpu.dot_dimension_numbers<[2], [1], [1], [2], [0, 0, 0, 1, 1, 2], [0], [0]>} : vector<2x8x8xf32>, vector<2x8x8xf32>, vector<2x8x8xf32> -> vector<2x8x8xf32>
    "tpu.trace_stop"() : () -> ()
    %712 = vector.extract_strided_slice %651 {offsets = [0, 0, 24], sizes = [2, 8, 8], strides = [1, 1, 1]} : vector<2x8x96xf32> to vector<2x8x8xf32>
    %cst_296 = arith.constant 0.353553385 : f32
    %713 = vector.broadcast %cst_296 : f32 to vector<2x8x8xf32>
    %714 = arith.mulf %712, %713 : vector<2x8x8xf32>
    %715 = vector.extract_strided_slice %651 {offsets = [0, 0, 56], sizes = [2, 8, 8], strides = [1, 1, 1]} : vector<2x8x96xf32> to vector<2x8x8xf32>
    %716 = vector.extract_strided_slice %651 {offsets = [0, 0, 88], sizes = [2, 8, 8], strides = [1, 1, 1]} : vector<2x8x96xf32> to vector<2x8x8xf32>
    "tpu.trace_start"() <{level = 10 : i32, message = "bqd,bkd->bqk"}> : () -> ()
    %cst_297 = arith.constant dense<0.000000e+00> : vector<2x8x8xf32>
    %717 = tpu.matmul %714, %715, %cst_297 {dimension_numbers = #tpu.dot_dimension_numbers<[2], [2], [1], [1], [0, 0, 0, 1, 1, 1], [0], [0]>} : vector<2x8x8xf32>, vector<2x8x8xf32>, vector<2x8x8xf32> -> vector<2x8x8xf32>
    "tpu.trace_stop"() : () -> ()
    %718 = vector.shape_cast %440 : vector<8x8xf32> to vector<1x8x8xf32>
    %719 = vector.broadcast %718 : vector<1x8x8xf32> to vector<2x8x8xf32>
    %720 = arith.addf %717, %719 : vector<2x8x8xf32>
    %cst_298 = arith.constant dense<0xFF800000> : vector<2x8xf32>
    %721 = vector.multi_reduction <maximumf>, %720, %cst_298 [2] : vector<2x8x8xf32> to vector<2x8xf32>
    %722 = vector.shape_cast %721 : vector<2x8xf32> to vector<2x8x1xf32>
    %723 = vector.broadcast %722 : vector<2x8x1xf32> to vector<2x8x8xf32>
    %724 = arith.subf %720, %723 : vector<2x8x8xf32>
    %725 = math.exp %724 : vector<2x8x8xf32>
    %cst_299 = arith.constant dense<0.000000e+00> : vector<2x8xf32>
    %726 = vector.multi_reduction <add>, %725, %cst_299 [2] : vector<2x8x8xf32> to vector<2x8xf32>
    %727 = vector.shape_cast %726 : vector<2x8xf32> to vector<2x8x1xf32>
    %728 = tpu.reciprocal %727 {approx = true} : vector<2x8x1xf32> -> vector<2x8x1xf32>
    %729 = vector.broadcast %728 : vector<2x8x1xf32> to vector<2x8x8xf32>
    %730 = arith.mulf %725, %729 : vector<2x8x8xf32>
    "tpu.trace_start"() <{level = 10 : i32, message = "bqk,bkd->bqd"}> : () -> ()
    %cst_300 = arith.constant dense<0.000000e+00> : vector<2x8x8xf32>
    %731 = tpu.matmul %730, %716, %cst_300 {dimension_numbers = #tpu.dot_dimension_numbers<[2], [1], [1], [2], [0, 0, 0, 1, 1, 2], [0], [0]>} : vector<2x8x8xf32>, vector<2x8x8xf32>, vector<2x8x8xf32> -> vector<2x8x8xf32>
    "tpu.trace_stop"() : () -> ()
    %732 = tpu.concatenate %671, %691, %711, %731 in 2 : vector<2x8x8xf32>, vector<2x8x8xf32>, vector<2x8x8xf32>, vector<2x8x8xf32> -> vector<2x8x32xf32>
    %733 = vector.shape_cast %732 : vector<2x8x32xf32> to vector<16x32xf32>
    %cst_301 = arith.constant dense<0.000000e+00> : vector<16x32xf32>
    %734 = tpu.matmul %733, %645, %cst_301 {dimension_numbers = #tpu.dot_dimension_numbers<[1], [0], [0], [1], [0, 0, 1, 1], [], []>} : vector<16x32xf32>, vector<32x32xf32>, vector<16x32xf32> -> vector<16x32xf32>
    %735 = vector.broadcast %647 : vector<1x32xf32> to vector<16x32xf32>
    %736 = arith.addf %734, %735 : vector<16x32xf32>
    %737 = arith.addf %613, %736 : vector<16x32xf32>
    %c1_302 = arith.constant 1 : index
    %c0_303 = arith.constant 0 : index
    %c0_304 = arith.constant 0 : index
    %738 = vector.load %arg29[%c1_302, %c0_303, %c0_304] : memref<2x1x32xf32, #tpu.memory_space<vmem>>, vector<1x1x32xf32>
    %739 = vector.shape_cast %738 : vector<1x1x32xf32> to vector<1x32xf32>
    %c1_305 = arith.constant 1 : index
    %c0_306 = arith.constant 0 : index
    %c0_307 = arith.constant 0 : index
    %740 = vector.load %arg30[%c1_305, %c0_306, %c0_307] : memref<2x1x32xf32, #tpu.memory_space<vmem>>, vector<1x1x32xf32>
    %741 = vector.shape_cast %740 : vector<1x1x32xf32> to vector<1x32xf32>
    %cst_308 = arith.constant dense<0.000000e+00> : vector<16xf32>
    %742 = vector.multi_reduction <add>, %737, %cst_308 [1] : vector<16x32xf32> to vector<16xf32>
    %743 = vector.shape_cast %742 : vector<16xf32> to vector<16x1xf32>
    %cst_309 = arith.constant 3.200000e+01 : f32
    %744 = vector.broadcast %cst_309 : f32 to vector<16x1xf32>
    %745 = arith.divf %743, %744 : vector<16x1xf32>
    %746 = vector.broadcast %745 : vector<16x1xf32> to vector<16x32xf32>
    %747 = arith.subf %737, %746 : vector<16x32xf32>
    %748 = arith.mulf %747, %747 : vector<16x32xf32>
    %cst_310 = arith.constant dense<0.000000e+00> : vector<16xf32>
    %749 = vector.multi_reduction <add>, %748, %cst_310 [1] : vector<16x32xf32> to vector<16xf32>
    %750 = vector.shape_cast %749 : vector<16xf32> to vector<16x1xf32>
    %cst_311 = arith.constant 3.200000e+01 : f32
    %751 = vector.broadcast %cst_311 : f32 to vector<16x1xf32>
    %752 = arith.divf %750, %751 : vector<16x1xf32>
    %753 = vector.broadcast %745 : vector<16x1xf32> to vector<16x32xf32>
    %754 = arith.subf %737, %753 : vector<16x32xf32>
    %cst_312 = arith.constant 9.99999974E-6 : f32
    %755 = vector.broadcast %cst_312 : f32 to vector<16x1xf32>
    %756 = arith.addf %752, %755 : vector<16x1xf32>
    %757 = math.rsqrt %756 : vector<16x1xf32>
    %758 = vector.broadcast %757 : vector<16x1xf32> to vector<16x32xf32>
    %759 = arith.mulf %754, %758 : vector<16x32xf32>
    %760 = vector.broadcast %739 : vector<1x32xf32> to vector<16x32xf32>
    %761 = arith.mulf %759, %760 : vector<16x32xf32>
    %762 = vector.broadcast %741 : vector<1x32xf32> to vector<16x32xf32>
    %763 = arith.addf %761, %762 : vector<16x32xf32>
    %c1_313 = arith.constant 1 : index
    %c0_314 = arith.constant 0 : index
    %c0_315 = arith.constant 0 : index
    %764 = vector.load %arg31[%c1_313, %c0_314, %c0_315] : memref<2x32x128xf32, #tpu.memory_space<vmem>>, vector<1x32x128xf32>
    %765 = vector.shape_cast %764 : vector<1x32x128xf32> to vector<32x128xf32>
    %c1_316 = arith.constant 1 : index
    %c0_317 = arith.constant 0 : index
    %c0_318 = arith.constant 0 : index
    %766 = vector.load %arg32[%c1_316, %c0_317, %c0_318] : memref<2x1x128xf32, #tpu.memory_space<vmem>>, vector<1x1x128xf32>
    %767 = vector.shape_cast %766 : vector<1x1x128xf32> to vector<1x128xf32>
    %cst_319 = arith.constant dense<0.000000e+00> : vector<16x128xf32>
    %768 = tpu.matmul %763, %765, %cst_319 {dimension_numbers = #tpu.dot_dimension_numbers<[1], [0], [0], [1], [0, 0, 1, 1], [], []>} : vector<16x32xf32>, vector<32x128xf32>, vector<16x128xf32> -> vector<16x128xf32>
    %769 = vector.broadcast %767 : vector<1x128xf32> to vector<16x128xf32>
    %770 = arith.addf %768, %769 : vector<16x128xf32>
    %cst_320 = arith.constant 1.702000e+00 : f32
    %771 = vector.broadcast %cst_320 : f32 to vector<16x128xf32>
    %772 = arith.mulf %771, %770 : vector<16x128xf32>
    %773 = arith.negf %772 : vector<16x128xf32>
    %774 = math.exp %773 : vector<16x128xf32>
    %cst_321 = arith.constant 1.000000e+00 : f32
    %775 = vector.broadcast %cst_321 : f32 to vector<16x128xf32>
    %776 = arith.addf %775, %774 : vector<16x128xf32>
    %777 = arith.divf %775, %776 : vector<16x128xf32>
    %778 = arith.mulf %770, %777 : vector<16x128xf32>
    %c1_322 = arith.constant 1 : index
    %c0_323 = arith.constant 0 : index
    %c0_324 = arith.constant 0 : index
    %779 = vector.load %arg33[%c1_322, %c0_323, %c0_324] : memref<2x128x32xf32, #tpu.memory_space<vmem>>, vector<1x128x32xf32>
    %780 = vector.shape_cast %779 : vector<1x128x32xf32> to vector<128x32xf32>
    %c1_325 = arith.constant 1 : index
    %c0_326 = arith.constant 0 : index
    %c0_327 = arith.constant 0 : index
    %781 = vector.load %arg34[%c1_325, %c0_326, %c0_327] : memref<2x1x32xf32, #tpu.memory_space<vmem>>, vector<1x1x32xf32>
    %782 = vector.shape_cast %781 : vector<1x1x32xf32> to vector<1x32xf32>
    %cst_328 = arith.constant dense<0.000000e+00> : vector<16x32xf32>
    %783 = tpu.matmul %778, %780, %cst_328 {dimension_numbers = #tpu.dot_dimension_numbers<[1], [0], [0], [1], [0, 0, 1, 1], [], []>} : vector<16x128xf32>, vector<128x32xf32>, vector<16x32xf32> -> vector<16x32xf32>
    %784 = vector.broadcast %782 : vector<1x32xf32> to vector<16x32xf32>
    %785 = arith.addf %783, %784 : vector<16x32xf32>
    %786 = arith.addf %737, %785 : vector<16x32xf32>
    %c0_329 = arith.constant 0 : index
    %c0_330 = arith.constant 0 : index
    %787 = vector.load %arg35[%c0_329, %c0_330] : memref<1x32xf32, #tpu.memory_space<vmem>>, vector<1x32xf32>
    %c0_331 = arith.constant 0 : index
    %c0_332 = arith.constant 0 : index
    %788 = vector.load %arg36[%c0_331, %c0_332] : memref<1x32xf32, #tpu.memory_space<vmem>>, vector<1x32xf32>
    %cst_333 = arith.constant dense<0.000000e+00> : vector<16xf32>
    %789 = vector.multi_reduction <add>, %786, %cst_333 [1] : vector<16x32xf32> to vector<16xf32>
    %790 = vector.shape_cast %789 : vector<16xf32> to vector<16x1xf32>
    %cst_334 = arith.constant 3.200000e+01 : f32
    %791 = vector.broadcast %cst_334 : f32 to vector<16x1xf32>
    %792 = arith.divf %790, %791 : vector<16x1xf32>
    %793 = vector.broadcast %792 : vector<16x1xf32> to vector<16x32xf32>
    %794 = arith.subf %786, %793 : vector<16x32xf32>
    %795 = arith.mulf %794, %794 : vector<16x32xf32>
    %cst_335 = arith.constant dense<0.000000e+00> : vector<16xf32>
    %796 = vector.multi_reduction <add>, %795, %cst_335 [1] : vector<16x32xf32> to vector<16xf32>
    %797 = vector.shape_cast %796 : vector<16xf32> to vector<16x1xf32>
    %cst_336 = arith.constant 3.200000e+01 : f32
    %798 = vector.broadcast %cst_336 : f32 to vector<16x1xf32>
    %799 = arith.divf %797, %798 : vector<16x1xf32>
    %800 = vector.broadcast %792 : vector<16x1xf32> to vector<16x32xf32>
    %801 = arith.subf %786, %800 : vector<16x32xf32>
    %cst_337 = arith.constant 9.99999974E-6 : f32
    %802 = vector.broadcast %cst_337 : f32 to vector<16x1xf32>
    %803 = arith.addf %799, %802 : vector<16x1xf32>
    %804 = math.rsqrt %803 : vector<16x1xf32>
    %805 = vector.broadcast %804 : vector<16x1xf32> to vector<16x32xf32>
    %806 = arith.mulf %801, %805 : vector<16x32xf32>
    %807 = vector.broadcast %787 : vector<1x32xf32> to vector<16x32xf32>
    %808 = arith.mulf %806, %807 : vector<16x32xf32>
    %809 = vector.broadcast %788 : vector<1x32xf32> to vector<16x32xf32>
    %810 = arith.addf %808, %809 : vector<16x32xf32>
    %c0_338 = arith.constant 0 : index
    %c0_339 = arith.constant 0 : index
    %811 = vector.load %arg38[%c0_338, %c0_339] : memref<2x16xf32, #tpu.memory_space<vmem>>, vector<2x16xf32>
    %cst_340 = arith.constant dense<0.000000e+00> : vector<2x32xf32>
    %812 = tpu.matmul %811, %810, %cst_340 {dimension_numbers = #tpu.dot_dimension_numbers<[1], [0], [0], [1], [0, 0, 1, 1], [], []>} : vector<2x16xf32>, vector<16x32xf32>, vector<2x32xf32> -> vector<2x32xf32>
    %c0_341 = arith.constant 0 : index
    %c0_342 = arith.constant 0 : index
    %813 = vector.load %arg37[%c0_341, %c0_342] : memref<32x16xf32, #tpu.memory_space<vmem>>, vector<32x16xf32>
    %cst_343 = arith.constant dense<0.000000e+00> : vector<2x16xf32>
    %814 = tpu.matmul %812, %813, %cst_343 {dimension_numbers = #tpu.dot_dimension_numbers<[1], [0], [0], [1], [0, 0, 1, 1], [], []>} : vector<2x32xf32>, vector<32x16xf32>, vector<2x16xf32> -> vector<2x16xf32>
    %815 = arith.mulf %814, %814 : vector<2x16xf32>
    %cst_344 = arith.constant dense<0.000000e+00> : vector<2xf32>
    %816 = vector.multi_reduction <add>, %815, %cst_344 [1] : vector<2x16xf32> to vector<2xf32>
    %817 = vector.shape_cast %816 : vector<2xf32> to vector<2x1xf32>
    %818 = math.rsqrt %817 : vector<2x1xf32>
    %819 = vector.broadcast %818 : vector<2x1xf32> to vector<2x16xf32>
    %820 = arith.mulf %814, %819 : vector<2x16xf32>
    %cst_345 = arith.constant 0.000000e+00 : f32
    %821 = vector.broadcast %cst_345 : f32 to vector<2x112xf32>
    %822 = tpu.concatenate %820, %821 in 1 : vector<2x16xf32>, vector<2x112xf32> -> vector<2x128xf32>
    %c0_346 = arith.constant 0 : index
    %c0_347 = arith.constant 0 : index
    %823 = vector.load %arg40[%c0_346, %c0_347] : memref<2x128xf32, #tpu.memory_space<vmem>>, vector<2x128xf32>
    tpu.vector_store %arg40[%c0_346, %c0_347], %822 {strides = array<i32>} : memref<2x128xf32, #tpu.memory_space<vmem>>, vector<2x128xf32>,
    return
  }
}

</mosaic_0001>

<llo_original>
// kernel: custom_clip_forward.1
$region0: #{custom_clip_forward.1}
  #allocation0 [shape = 'u32[]', space=smem, size = 0x4, offset = 0x4, fixed_abs, tag = 'smem constant byte address 0x4 - core index']
  #allocation1 [shape = 'u32[144,128]{1,0:T(1,128)}', space=vmem, size = 0x12000, scoped, tag = 'internal scratch']
  %s0 = inlined_call_operand.smem [shape: u32[41], index: -1, kind: input, shape index: {}]
  %s1 = sld [smem:[%s0]]
  %s2 = scalar_lea.smem %s0, 1
  %s3 = sld [smem:[%s2]]
  %s4 = scalar_lea.smem %s0, 2
  %s5 = sld [smem:[%s4]]
  %s6 = scalar_lea.smem %s0, 3
  %s7 = sld [smem:[%s6]]
  %s8 = scalar_lea.smem %s0, 4
  %s9 = sld [smem:[%s8]]
  %s10 = scalar_lea.smem %s0, 5
  %s11 = sld [smem:[%s10]]
  %s12 = scalar_lea.smem %s0, 6
  %s13 = sld [smem:[%s12]]
  %s14 = scalar_lea.smem %s0, 7
  %s15 = sld [smem:[%s14]]
  %s16 = scalar_lea.smem %s0, 8
  %s17 = sld [smem:[%s16]]
  %s18 = scalar_lea.smem %s0, 9
  %s19 = sld [smem:[%s18]]
  %s20 = scalar_lea.smem %s0, 10
  %s21 = sld [smem:[%s20]]
  %s22 = scalar_lea.smem %s0, 11
  %s23 = sld [smem:[%s22]]
  %s24 = scalar_lea.smem %s0, 12
  %s25 = sld [smem:[%s24]]
  %s26 = scalar_lea.smem %s0, 13
  %s27 = sld [smem:[%s26]]
  %s28 = scalar_lea.smem %s0, 14
  %s29 = sld [smem:[%s28]]
  %s30 = scalar_lea.smem %s0, 15
  %s31 = sld [smem:[%s30]]
  %s32 = scalar_lea.smem %s0, 16
  %s33 = sld [smem:[%s32]]
  %s34 = scalar_lea.smem %s0, 17
  %s35 = sld [smem:[%s34]]
  %s36 = scalar_lea.smem %s0, 18
  %s37 = sld [smem:[%s36]]
  %s38 = scalar_lea.smem %s0, 19
  %s39 = sld [smem:[%s38]]
  %s40 = scalar_lea.smem %s0, 20
  %s41 = sld [smem:[%s40]]
  %s42 = scalar_lea.smem %s0, 21
  %s43 = sld [smem:[%s42]]
  %s44 = scalar_lea.smem %s0, 22
  %s45 = sld [smem:[%s44]]
  %s46 = scalar_lea.smem %s0, 23
  %s47 = sld [smem:[%s46]]
  %s48 = scalar_lea.smem %s0, 24
  %s49 = sld [smem:[%s48]]
  %s50 = scalar_lea.smem %s0, 25
  %s51 = sld [smem:[%s50]]
  %s52 = scalar_lea.smem %s0, 26
  %s53 = sld [smem:[%s52]]
  %s54 = scalar_lea.smem %s0, 27
  %s55 = sld [smem:[%s54]]
  %s56 = scalar_lea.smem %s0, 28
  %s57 = sld [smem:[%s56]]
  %s58 = scalar_lea.smem %s0, 29
  %s59 = sld [smem:[%s58]]
  %s60 = scalar_lea.smem %s0, 30
  %s61 = sld [smem:[%s60]]
  %s62 = scalar_lea.smem %s0, 31
  %s63 = sld [smem:[%s62]]
  %s64 = scalar_lea.smem %s0, 32
  %s65 = sld [smem:[%s64]]
  %s66 = scalar_lea.smem %s0, 33
  %s67 = sld [smem:[%s66]]
  %s68 = scalar_lea.smem %s0, 34
  %s69 = sld [smem:[%s68]]
  %s70 = scalar_lea.smem %s0, 35
  %s71 = sld [smem:[%s70]]
  %s72 = scalar_lea.smem %s0, 36
  %s73 = sld [smem:[%s72]]
  %s74 = scalar_lea.smem %s0, 37
  %s75 = sld [smem:[%s74]]
  %s76 = scalar_lea.smem %s0, 38
  %s77 = sld [smem:[%s76]]
  %s78 = scalar_lea.smem %s0, 39
  %s79 = sld [smem:[%s78]]
  %s80 = scalar_lea.smem %s0, 40
  %s81 = sld [smem:[%s80]]
  %82 = xla_tuple %s79, %s81
  %s83 = sld [smem:[#allocation0]]
  $region174: #{custom_clip_forward.1} parent=0
    _
  %s85 = ssub.s32 1, %s83
  %s86 = scalar_select 0, %s85, %s83
  $region1: #{custom_clip_forward.1} parent=0
    #allocation2 [shape = 'u8[1024]{0}', space=vmem, size = 0x400, scoped, tag = 'output window, operand 0, single buffered']
    #allocation3 [shape = 's32[1]{0}', space=sflag, size = 0x4, scoped, tag = 'scoped memory for custom_clip_forward.1']
    #allocation4 [shape = 'u8[1024]{0}', space=vmem, size = 0x400, scoped, tag = 'output window, operand 1, single buffered']
    #allocation5 [shape = 's32[1]{0}', space=sflag, size = 0x4, scoped, tag = 'scoped memory for custom_clip_forward.1']
    %87 = vsyncpa [#allocation3], 0
    %88 = vsyncpa [#allocation5], 0
    // Predicated region
    $region2: #{custom_clip_forward.1} parent=1 // pred_check
      _
    $region3: #{custom_clip_forward.1} parent=1 // pred_check_branch
      %90 = sbr.rel (0) target = $region5
    $region4: #{custom_clip_forward.1} parent=1 // pred_region
      _
    $region5: #{custom_clip_forward.1} parent=1 // pred_fallthru
      _
    // Predicated region
    $region6: #{custom_clip_forward.1} parent=1 // pred_check
      _
    $region7: #{custom_clip_forward.1} parent=1 // pred_check_branch
      %92 = sbr.rel (0) target = $region9
    $region8: #{custom_clip_forward.1} parent=1 // pred_region
      _
    $region9: #{custom_clip_forward.1} parent=1 // pred_fallthru
      _
    // Predicated region
    $region10: #{custom_clip_forward.1} parent=1 // pred_check
      _
    $region11: #{custom_clip_forward.1} parent=1 // pred_check_branch
      %94 = sbr.rel (0) target = $region13
    $region12: #{custom_clip_forward.1} parent=1 // pred_region
      _
    $region13: #{custom_clip_forward.1} parent=1 // pred_fallthru
      _
    // Predicated region
    $region14: #{custom_clip_forward.1} parent=1 // pred_check
      _
    $region15: #{custom_clip_forward.1} parent=1 // pred_check_branch
      %96 = sbr.rel (0) target = $region17
    $region16: #{custom_clip_forward.1} parent=1 // pred_region
      _
    $region17: #{custom_clip_forward.1} parent=1 // pred_fallthru
      _
    // Predicated region
    $region18: #{custom_clip_forward.1} parent=1 // pred_check
      _
    $region19: #{custom_clip_forward.1} parent=1 // pred_check_branch
      %98 = sbr.rel (0) target = $region21
    $region20: #{custom_clip_forward.1} parent=1 // pred_region
      _
    $region21: #{custom_clip_forward.1} parent=1 // pred_fallthru
      _
    // Predicated region
    $region22: #{custom_clip_forward.1} parent=1 // pred_check
      _
    $region23: #{custom_clip_forward.1} parent=1 // pred_check_branch
      %100 = sbr.rel (0) target = $region25
    $region24: #{custom_clip_forward.1} parent=1 // pred_region
      _
    $region25: #{custom_clip_forward.1} parent=1 // pred_fallthru
      _
    // Predicated region
    $region26: #{custom_clip_forward.1} parent=1 // pred_check
      _
    $region27: #{custom_clip_forward.1} parent=1 // pred_check_branch
      %102 = sbr.rel (0) target = $region29
    $region28: #{custom_clip_forward.1} parent=1 // pred_region
      _
    $region29: #{custom_clip_forward.1} parent=1 // pred_fallthru
      _
    // Predicated region
    $region30: #{custom_clip_forward.1} parent=1 // pred_check
      _
    $region31: #{custom_clip_forward.1} parent=1 // pred_check_branch
      %104 = sbr.rel (0) target = $region33
    $region32: #{custom_clip_forward.1} parent=1 // pred_region
      _
    $region33: #{custom_clip_forward.1} parent=1 // pred_fallthru
      _
    // Predicated region
    $region34: #{custom_clip_forward.1} parent=1 // pred_check
      _
    $region35: #{custom_clip_forward.1} parent=1 // pred_check_branch
      %106 = sbr.rel (0) target = $region37
    $region36: #{custom_clip_forward.1} parent=1 // pred_region
      _
    $region37: #{custom_clip_forward.1} parent=1 // pred_fallthru
      _
    // Predicated region
    $region38: #{custom_clip_forward.1} parent=1 // pred_check
      _
    $region39: #{custom_clip_forward.1} parent=1 // pred_check_branch
      %108 = sbr.rel (0) target = $region41
    $region40: #{custom_clip_forward.1} parent=1 // pred_region
      _
    $region41: #{custom_clip_forward.1} parent=1 // pred_fallthru
      _
    // Predicated region
    $region42: #{custom_clip_forward.1} parent=1 // pred_check
      _
    $region43: #{custom_clip_forward.1} parent=1 // pred_check_branch
      %110 = sbr.rel (0) target = $region45
    $region44: #{custom_clip_forward.1} parent=1 // pred_region
      _
    $region45: #{custom_clip_forward.1} parent=1 // pred_fallthru
      _
    // Predicated region
    $region46: #{custom_clip_forward.1} parent=1 // pred_check
      _
    $region47: #{custom_clip_forward.1} parent=1 // pred_check_branch
      %112 = sbr.rel (0) target = $region49
    $region48: #{custom_clip_forward.1} parent=1 // pred_region
      _
    $region49: #{custom_clip_forward.1} parent=1 // pred_fallthru
      _
    // Predicated region
    $region50: #{custom_clip_forward.1} parent=1 // pred_check
      _
    $region51: #{custom_clip_forward.1} parent=1 // pred_check_branch
      %114 = sbr.rel (0) target = $region53
    $region52: #{custom_clip_forward.1} parent=1 // pred_region
      _
    $region53: #{custom_clip_forward.1} parent=1 // pred_fallthru
      _
    // Predicated region
    $region54: #{custom_clip_forward.1} parent=1 // pred_check
      _
    $region55: #{custom_clip_forward.1} parent=1 // pred_check_branch
      %116 = sbr.rel (0) target = $region57
    $region56: #{custom_clip_forward.1} parent=1 // pred_region
      _
    $region57: #{custom_clip_forward.1} parent=1 // pred_fallthru
      _
    // Predicated region
    $region58: #{custom_clip_forward.1} parent=1 // pred_check
      _
    $region59: #{custom_clip_forward.1} parent=1 // pred_check_branch
      %118 = sbr.rel (0) target = $region61
    $region60: #{custom_clip_forward.1} parent=1 // pred_region
      _
    $region61: #{custom_clip_forward.1} parent=1 // pred_fallthru
      _
    // Predicated region
    $region62: #{custom_clip_forward.1} parent=1 // pred_check
      _
    $region63: #{custom_clip_forward.1} parent=1 // pred_check_branch
      %120 = sbr.rel (0) target = $region65
    $region64: #{custom_clip_forward.1} parent=1 // pred_region
      _
    $region65: #{custom_clip_forward.1} parent=1 // pred_fallthru
      _
    // Predicated region
    $region66: #{custom_clip_forward.1} parent=1 // pred_check
      _
    $region67: #{custom_clip_forward.1} parent=1 // pred_check_branch
      %122 = sbr.rel (0) target = $region69
    $region68: #{custom_clip_forward.1} parent=1 // pred_region
      _
    $region69: #{custom_clip_forward.1} parent=1 // pred_fallthru
      _
    // Predicated region
    $region70: #{custom_clip_forward.1} parent=1 // pred_check
      _
    $region71: #{custom_clip_forward.1} parent=1 // pred_check_branch
      %124 = sbr.rel (0) target = $region73
    $region72: #{custom_clip_forward.1} parent=1 // pred_region
      _
    $region73: #{custom_clip_forward.1} parent=1 // pred_fallthru
      _
    // Predicated region
    $region74: #{custom_clip_forward.1} parent=1 // pred_check
      _
    $region75: #{custom_clip_forward.1} parent=1 // pred_check_branch
      %126 = sbr.rel (0) target = $region77
    $region76: #{custom_clip_forward.1} parent=1 // pred_region
      _
    $region77: #{custom_clip_forward.1} parent=1 // pred_fallthru
      _
    // Predicated region
    $region78: #{custom_clip_forward.1} parent=1 // pred_check
      _
    $region79: #{custom_clip_forward.1} parent=1 // pred_check_branch
      %128 = sbr.rel (0) target = $region81
    $region80: #{custom_clip_forward.1} parent=1 // pred_region
      _
    $region81: #{custom_clip_forward.1} parent=1 // pred_fallthru
      _
    // Predicated region
    $region82: #{custom_clip_forward.1} parent=1 // pred_check
      _
    $region83: #{custom_clip_forward.1} parent=1 // pred_check_branch
      %130 = sbr.rel (0) target = $region85
    $region84: #{custom_clip_forward.1} parent=1 // pred_region
      _
    $region85: #{custom_clip_forward.1} parent=1 // pred_fallthru
      _
    // Predicated region
    $region86: #{custom_clip_forward.1} parent=1 // pred_check
      _
    $region87: #{custom_clip_forward.1} parent=1 // pred_check_branch
      %132 = sbr.rel (0) target = $region89
    $region88: #{custom_clip_forward.1} parent=1 // pred_region
      _
    $region89: #{custom_clip_forward.1} parent=1 // pred_fallthru
      _
    // Predicated region
    $region90: #{custom_clip_forward.1} parent=1 // pred_check
      _
    $region91: #{custom_clip_forward.1} parent=1 // pred_check_branch
      %134 = sbr.rel (0) target = $region93
    $region92: #{custom_clip_forward.1} parent=1 // pred_region
      _
    $region93: #{custom_clip_forward.1} parent=1 // pred_fallthru
      _
    // Predicated region
    $region94: #{custom_clip_forward.1} parent=1 // pred_check
      _
    $region95: #{custom_clip_forward.1} parent=1 // pred_check_branch
      %136 = sbr.rel (0) target = $region97
    $region96: #{custom_clip_forward.1} parent=1 // pred_region
      _
    $region97: #{custom_clip_forward.1} parent=1 // pred_fallthru
      _
    // Predicated region
    $region98: #{custom_clip_forward.1} parent=1 // pred_check
      _
    $region99: #{custom_clip_forward.1} parent=1 // pred_check_branch
      %138 = sbr.rel (0) target = $region101
    $region100: #{custom_clip_forward.1} parent=1 // pred_region
      _
    $region101: #{custom_clip_forward.1} parent=1 // pred_fallthru
      _
    // Predicated region
    $region102: #{custom_clip_forward.1} parent=1 // pred_check
      _
    $region103: #{custom_clip_forward.1} parent=1 // pred_check_branch
      %140 = sbr.rel (0) target = $region105
    $region104: #{custom_clip_forward.1} parent=1 // pred_region
      _
    $region105: #{custom_clip_forward.1} parent=1 // pred_fallthru
      _
    // Predicated region
    $region106: #{custom_clip_forward.1} parent=1 // pred_check
      _
    $region107: #{custom_clip_forward.1} parent=1 // pred_check_branch
      %142 = sbr.rel (0) target = $region109
    $region108: #{custom_clip_forward.1} parent=1 // pred_region
      _
    $region109: #{custom_clip_forward.1} parent=1 // pred_fallthru
      _
    // Predicated region
    $region110: #{custom_clip_forward.1} parent=1 // pred_check
      _
    $region111: #{custom_clip_forward.1} parent=1 // pred_check_branch
      %144 = sbr.rel (0) target = $region113
    $region112: #{custom_clip_forward.1} parent=1 // pred_region
      _
    $region113: #{custom_clip_forward.1} parent=1 // pred_fallthru
      _
    // Predicated region
    $region114: #{custom_clip_forward.1} parent=1 // pred_check
      _
    $region115: #{custom_clip_forward.1} parent=1 // pred_check_branch
      %146 = sbr.rel (0) target = $region117
    $region116: #{custom_clip_forward.1} parent=1 // pred_region
      _
    $region117: #{custom_clip_forward.1} parent=1 // pred_fallthru
      _
    // Predicated region
    $region118: #{custom_clip_forward.1} parent=1 // pred_check
      _
    $region119: #{custom_clip_forward.1} parent=1 // pred_check_branch
      %148 = sbr.rel (0) target = $region121
    $region120: #{custom_clip_forward.1} parent=1 // pred_region
      _
    $region121: #{custom_clip_forward.1} parent=1 // pred_fallthru
      _
    // Predicated region
    $region122: #{custom_clip_forward.1} parent=1 // pred_check
      _
    $region123: #{custom_clip_forward.1} parent=1 // pred_check_branch
      %150 = sbr.rel (0) target = $region125
    $region124: #{custom_clip_forward.1} parent=1 // pred_region
      _
    $region125: #{custom_clip_forward.1} parent=1 // pred_fallthru
      _
    // Predicated region
    $region126: #{custom_clip_forward.1} parent=1 // pred_check
      _
    $region127: #{custom_clip_forward.1} parent=1 // pred_check_branch
      %152 = sbr.rel (0) target = $region129
    $region128: #{custom_clip_forward.1} parent=1 // pred_region
      _
    $region129: #{custom_clip_forward.1} parent=1 // pred_fallthru
      _
    // Predicated region
    $region130: #{custom_clip_forward.1} parent=1 // pred_check
      _
    $region131: #{custom_clip_forward.1} parent=1 // pred_check_branch
      %154 = sbr.rel (0) target = $region133
    $region132: #{custom_clip_forward.1} parent=1 // pred_region
      _
    $region133: #{custom_clip_forward.1} parent=1 // pred_fallthru
      _
    // Predicated region
    $region134: #{custom_clip_forward.1} parent=1 // pred_check
      _
    $region135: #{custom_clip_forward.1} parent=1 // pred_check_branch
      %156 = sbr.rel (0) target = $region137
    $region136: #{custom_clip_forward.1} parent=1 // pred_region
      _
    $region137: #{custom_clip_forward.1} parent=1 // pred_fallthru
      _
    // Predicated region
    $region138: #{custom_clip_forward.1} parent=1 // pred_check
      _
    $region139: #{custom_clip_forward.1} parent=1 // pred_check_branch
      %158 = sbr.rel (0) target = $region141
    $region140: #{custom_clip_forward.1} parent=1 // pred_region
      _
    $region141: #{custom_clip_forward.1} parent=1 // pred_fallthru
      _
    // Predicated region
    $region142: #{custom_clip_forward.1} parent=1 // pred_check
      _
    $region143: #{custom_clip_forward.1} parent=1 // pred_check_branch
      %160 = sbr.rel (0) target = $region145
    $region144: #{custom_clip_forward.1} parent=1 // pred_region
      _
    $region145: #{custom_clip_forward.1} parent=1 // pred_fallthru
      _
    // Predicated region
    $region146: #{custom_clip_forward.1} parent=1 // pred_check
      _
    $region147: #{custom_clip_forward.1} parent=1 // pred_check_branch
      %162 = sbr.rel (0) target = $region149
    $region148: #{custom_clip_forward.1} parent=1 // pred_region
      _
    $region149: #{custom_clip_forward.1} parent=1 // pred_fallthru
      _
    // Predicated region
    $region150: #{custom_clip_forward.1} parent=1 // pred_check
      _
    $region151: #{custom_clip_forward.1} parent=1 // pred_check_branch
      %164 = sbr.rel (0) target = $region153
    $region152: #{custom_clip_forward.1} parent=1 // pred_region
      _
    $region153: #{custom_clip_forward.1} parent=1 // pred_fallthru
      _
    // Predicated region
    $region154: #{custom_clip_forward.1} parent=1 // pred_check
      _
    $region155: #{custom_clip_forward.1} parent=1 // pred_check_branch
      %166 = sbr.rel (0) target = $region157
    $region156: #{custom_clip_forward.1} parent=1 // pred_region
      _
    $region157: #{custom_clip_forward.1} parent=1 // pred_fallthru
      _
    %v167 = vld [vmem:[%s1] sm:$0xff]
    %v168 = vld [vmem:[%s1 + $0x8] sm:$0xff]
    %v169 = vld [vmem:[%s3] sm:$0xff]
    %v170 = vld [vmem:[%s3 + $0x8] sm:$0xff]
    %v171 = vld [vmem:[%s3 + $0x10] sm:$0xff]
    %v172 = vld [vmem:[%s3 + $0x18] sm:$0xff]
    %v173 = vld [vmem:[%s3 + $0x20] sm:$0xff]
    %v174 = vld [vmem:[%s3 + $0x28] sm:$0xff]
    %v175 = vld [vmem:[%s3 + $0x30] sm:$0xff]
    %v176 = vld [vmem:[%s3 + $0x38] sm:$0xff]
    %v177 = vld [vmem:[%s3 + $0x40] sm:$0xff]
    %v178 = vld [vmem:[%s3 + $0x48] sm:$0xff]
    %v179 = vld [vmem:[%s3 + $0x50] sm:$0xff]
    %v180 = vld [vmem:[%s3 + $0x58] sm:$0xff]
    %v181 = vld [vmem:[%s3 + $0x60] sm:$0xff]
    %v182 = vld [vmem:[%s3 + $0x68] sm:$0xff]
    %v183 = vld [vmem:[%s3 + $0x70] sm:$0xff]
    %v184 = vld [vmem:[%s3 + $0x78] sm:$0xff]
    %v185 = vld [vmem:[%s3 + $0x80] sm:$0xff]
    %v186 = vld [vmem:[%s3 + $0x88] sm:$0xff]
    %v187 = vld [vmem:[%s3 + $0x90] sm:$0xff]
    %v188 = vld [vmem:[%s3 + $0x98] sm:$0xff]
    %v189 = vld [vmem:[%s3 + $0xa0] sm:$0xff]
    %v190 = vld [vmem:[%s3 + $0xa8] sm:$0xff]
    %v191 = vld [vmem:[%s3 + $0xb0] sm:$0xff]
    %v192 = vld [vmem:[%s3 + $0xb8] sm:$0xff]
    %vm193 = vcmask 523264
    %v195 = vsel %vm193, %v168, 0
    %197 = vmatprep.subr.mxu0 0.0
    %198 = vmatpush1.msra.mxu0 %v169
    %199 = vmatprep.subr.mxu0 0.0
    %200 = vmatpush1.msra.mxu0 %v170
    %201 = vmatprep.subr.mxu0 0.0
    %202 = vmatpush1.msra.mxu0 %v171
    %203 = vmatprep.subr.mxu0 0.0
    %204 = vmatpush1.msra.mxu0 %v172
    %205 = vmatprep.subr.mxu0 0.0
    %206 = vmatpush1.msra.mxu0 %v173
    %207 = vmatprep.subr.mxu0 0.0
    %208 = vmatpush1.msra.mxu0 %v174
    %209 = vmatprep.subr.mxu0 0.0
    %210 = vmatpush1.msra.mxu0 %v175
    %211 = vmatprep.subr.mxu0 0.0
    %212 = vmatpush1.msra.mxu0 %v176
    %213 = vmatprep.subr.mxu0 0.0
    %214 = vmatpush1.msra.mxu0 %v177
    %215 = vmatprep.subr.mxu0 0.0
    %216 = vmatpush1.msra.mxu0 %v178
    %217 = vmatprep.subr.mxu0 0.0
    %218 = vmatpush1.msra.mxu0 %v179
    %219 = vmatprep.subr.mxu0 0.0
    %220 = vmatpush1.msra.mxu0 %v180
    %221 = vmatprep.subr.mxu0 0.0
    %222 = vmatpush1.msra.mxu0 %v181
    %223 = vmatprep.subr.mxu0 0.0
    %224 = vmatpush1.msra.mxu0 %v182
    %225 = vmatprep.subr.mxu0 0.0
    %226 = vmatpush1.msra.mxu0 %v183
    %227 = vmatprep.subr.mxu0 0.0
    %228 = vmatpush1.msra.mxu0 %v184
    %229 = vmatprep.subr.mxu0 0.0
    %230 = vmatpush1.msra.mxu0 %v185
    %231 = vmatprep.subr.mxu0 0.0
    %232 = vmatpush1.msra.mxu0 %v186
    %233 = vmatprep.subr.mxu0 0.0
    %234 = vmatpush1.msra.mxu0 %v187
    %235 = vmatprep.subr.mxu0 0.0
    %236 = vmatpush1.msra.mxu0 %v188
    %237 = vmatprep.subr.mxu0 0.0
    %238 = vmatpush1.msra.mxu0 %v189
    %239 = vmatprep.subr.mxu0 0.0
    %240 = vmatpush1.msra.mxu0 %v190
    %241 = vmatprep.subr.mxu0 0.0
    %242 = vmatpush1.msra.mxu0 %v191
    %243 = vmatprep.subr.mxu0 0.0
    %244 = vmatpush1.msra.mxu0 %v192
    %245 = vmatprep.subr.mxu0 0.0
    %246 = vmatpush1.msra.mxu0 0.0
    %247 = vmatprep.subr.mxu0 0.0
    %248 = vmatpush1.msra.mxu0 0.0
    %249 = vmatprep.subr.mxu0 0.0
    %250 = vmatpush1.msra.mxu0 0.0
    %251 = vmatprep.subr.mxu0 0.0
    %252 = vmatpush1.msra.mxu0 0.0
    %253 = vmatprep.subr.mxu0 0.0
    %254 = vmatpush1.msra.mxu0 0.0
    %255 = vmatprep.subr.mxu0 0.0
    %256 = vmatpush1.msra.mxu0 0.0
    %257 = vmatprep.subr.mxu0 0.0
    %258 = vmatpush1.msra.mxu0 0.0
    %259 = vmatprep.subr.mxu0 0.0
    %260 = vmatpush1.msra.mxu0 0.0
    %261 = vmatprep.mubr.f32.mxu0 %v195
    %262 = vmatmul.mubr.f32.gmra.mrb[0].mxu0 %v167
    %v263 = vpop.f32.mrb[0].mxu0
    %v264 = vadd.f32 0.0, %v263
    %v265 = vpop.f32.mrb[0].mxu0
    %266 = vdwg.mxu0
    %v268 = vcombine.high %v264, %v264
    %v269 = vld [vmem:[%s5] sm:$0x1]
    %v270 = vrot.slane %v264, 7
    %v271 = vrot.slane %v268, 7
    %vm274 = vcmask 1040384
    %v275 = vsel %vm274, %v269, %v270
    %v276 = vsel %vm274, %v269, %v271
    %vm277 = vcmask 1044480
    %v278 = vsel %vm277, %v275, 0.0
    %v279 = vsel %vm277, %v276, 0.0
    %v280 = vld [vmem:[%s7] sm:$0xff]
    %v281 = vadd.f32 %v278, %v280
    %v282 = vadd.f32 %v279, %v280
    %v283 = vld [vmem:[%s9] sm:$0x1]
    %v284 = vld [vmem:[%s11] sm:$0x1]
    %vm285 = vcmask 261120
    %v286 = vsel %vm285, %v281, 0.0
    %287 = vadd.xlane.f32.xlu0 %v286
    %v288 = vpop.xlane.xlu0 %287
    %v289 = vsel %vm285, %v282, 0.0
    %290 = vadd.xlane.f32.xlu0 %v289
    %v291 = vpop.xlane.xlu0 %290
    %v292 = vrcp.pop 32.0
    %v293 = vmul.f32 %v288, %v292
    %v294 = vmul.f32 %v291, %v292
    %v295 = vsub.f32 %v281, %v293
    %v296 = vsub.f32 %v282, %v294
    %v297 = vmul.f32 %v295, %v295
    %v298 = vmul.f32 %v296, %v296
    %v299 = vsel %vm285, %v297, 0.0
    %300 = vadd.xlane.f32.xlu0 %v299
    %v301 = vpop.xlane.xlu0 %300
    %v302 = vsel %vm285, %v298, 0.0
    %303 = vadd.xlane.f32.xlu0 %v302
    %v304 = vpop.xlane.xlu0 %303
    %v305 = vmul.f32 %v301, %v292
    %v306 = vmul.f32 %v304, %v292
    %v307 = vadd.f32 %v305, 1e-05
    %v308 = vadd.f32 %v306, 1e-05
    %v309 = vrsqrt.pop %v307
    %v310 = vrsqrt.pop %v308
    %v311 = vmul.f32 %v295, %v309
    %v312 = vmul.f32 %v296, %v310
    %v314 = vlaneseq
    %v315 = vshrl.u32 %v314, 7
    %v316 = vsub.s32 0, %v315
    %v317 = vrot.slane %v283, %v316
    %v319 = vmul.f32 %v311, %v317
    %v320 = vmul.f32 %v312, %v317
    %v322 = vlaneseq
    %v323 = vshrl.u32 %v322, 7
    %v324 = vsub.s32 0, %v323
    %v325 = vrot.slane %v284, %v324
    %v327 = vadd.f32 %v319, %v325
    %v328 = vadd.f32 %v320, %v325
    %v329 = vlaneseq
    %v330 = vand.u32 %v329, 127
    %vm331 = vcmp.lt.s32.totalorder %v330, 5
    %v332 = vsel %vm331, 0.0, -1e+30
    %v333 = vld [vmem:[%s13] sm:$0x1]
    %v334 = vld [vmem:[%s15] sm:$0x1]
    %v335 = vsel %vm285, %v327, 0.0
    %336 = vadd.xlane.f32.xlu0 %v335
    %v337 = vpop.xlane.xlu0 %336
    %v338 = vsel %vm285, %v328, 0.0
    %339 = vadd.xlane.f32.xlu0 %v338
    %v340 = vpop.xlane.xlu0 %339
    %v341 = vmul.f32 %v337, %v292
    %v342 = vmul.f32 %v340, %v292
    %v343 = vsub.f32 %v327, %v341
    %v344 = vsub.f32 %v328, %v342
    %v345 = vmul.f32 %v343, %v343
    %v346 = vmul.f32 %v344, %v344
    %v347 = vsel %vm285, %v345, 0.0
    %348 = vadd.xlane.f32.xlu0 %v347
    %v349 = vpop.xlane.xlu0 %348
    %v350 = vsel %vm285, %v346, 0.0
    %351 = vadd.xlane.f32.xlu0 %v350
    %v352 = vpop.xlane.xlu0 %351
    %v353 = vmul.f32 %v349, %v292
    %v354 = vmul.f32 %v352, %v292
    %v355 = vadd.f32 %v353, 1e-05
    %v356 = vadd.f32 %v354, 1e-05
    %v357 = vrsqrt.pop %v355
    %v358 = vrsqrt.pop %v356
    %v359 = vmul.f32 %v343, %v357
    %v360 = vmul.f32 %v344, %v358
    %v362 = vlaneseq
    %v363 = vshrl.u32 %v362, 7
    %v364 = vsub.s32 0, %v363
    %v365 = vrot.slane %v333, %v364
    %v367 = vmul.f32 %v359, %v365
    %v368 = vmul.f32 %v360, %v365
    %v370 = vlaneseq
    %v371 = vshrl.u32 %v370, 7
    %v372 = vsub.s32 0, %v371
    %v373 = vrot.slane %v334, %v372
    %v375 = vadd.f32 %v367, %v373
    %v376 = vadd.f32 %v368, %v373
    %v377 = vld [vmem:[%s17] sm:$0xff]
    %v378 = vld [vmem:[%s17 + $0x8] sm:$0xff]
    %v379 = vld [vmem:[%s17 + $0x10] sm:$0xff]
    %v380 = vld [vmem:[%s17 + $0x18] sm:$0xff]
    %v381 = vld [vmem:[%s19] sm:$0x1]
    %v382 = vld [vmem:[%s21] sm:$0xff]
    %v383 = vld [vmem:[%s21 + $0x8] sm:$0xff]
    %v384 = vld [vmem:[%s21 + $0x10] sm:$0xff]
    %v385 = vld [vmem:[%s21 + $0x18] sm:$0xff]
    %v386 = vld [vmem:[%s23] sm:$0x1]
    %v388 = vlaneseq
    %v389 = vshrl.u32 %v388, 7
    %v390 = vsub.s32 0, %v389
    %v391 = vrot.slane %v381, %v390
    %v394 = vsel %vm285, %v375, 0
    %v397 = vsel %vm285, %v376, 0
    %399 = vmatprep.subr.mxu0 0.0
    %400 = vmatpush1.msra.mxu0 %v377
    %401 = vmatprep.subr.mxu0 0.0
    %402 = vmatpush1.msra.mxu0 %v378
    %403 = vmatprep.subr.mxu0 0.0
    %404 = vmatpush1.msra.mxu0 %v379
    %405 = vmatprep.subr.mxu0 0.0
    %406 = vmatpush1.msra.mxu0 %v380
    %407 = vmatprep.subr.mxu0 0.0
    %408 = vmatpush1.msra.mxu0 0.0
    %409 = vmatprep.subr.mxu0 0.0
    %410 = vmatpush1.msra.mxu0 0.0
    %411 = vmatprep.subr.mxu0 0.0
    %412 = vmatpush1.msra.mxu0 0.0
    %413 = vmatprep.subr.mxu0 0.0
    %414 = vmatpush1.msra.mxu0 0.0
    %415 = vmatprep.subr.mxu0 0.0
    %416 = vmatpush1.msra.mxu0 0.0
    %417 = vmatprep.subr.mxu0 0.0
    %418 = vmatpush1.msra.mxu0 0.0
    %419 = vmatprep.subr.mxu0 0.0
    %420 = vmatpush1.msra.mxu0 0.0
    %421 = vmatprep.subr.mxu0 0.0
    %422 = vmatpush1.msra.mxu0 0.0
    %423 = vmatprep.subr.mxu0 0.0
    %424 = vmatpush1.msra.mxu0 0.0
    %425 = vmatprep.subr.mxu0 0.0
    %426 = vmatpush1.msra.mxu0 0.0
    %427 = vmatprep.subr.mxu0 0.0
    %428 = vmatpush1.msra.mxu0 0.0
    %429 = vmatprep.subr.mxu0 0.0
    %430 = vmatpush1.msra.mxu0 0.0
    %431 = vmatprep.subr.mxu0 0.0
    %432 = vmatpush1.msra.mxu0 0.0
    %433 = vmatprep.subr.mxu0 0.0
    %434 = vmatpush1.msra.mxu0 0.0
    %435 = vmatprep.subr.mxu0 0.0
    %436 = vmatpush1.msra.mxu0 0.0
    %437 = vmatprep.subr.mxu0 0.0
    %438 = vmatpush1.msra.mxu0 0.0
    %439 = vmatprep.subr.mxu0 0.0
    %440 = vmatpush1.msra.mxu0 0.0
    %441 = vmatprep.subr.mxu0 0.0
    %442 = vmatpush1.msra.mxu0 0.0
    %443 = vmatprep.subr.mxu0 0.0
    %444 = vmatpush1.msra.mxu0 0.0
    %445 = vmatprep.subr.mxu0 0.0
    %446 = vmatpush1.msra.mxu0 0.0
    %447 = vmatprep.subr.mxu0 0.0
    %448 = vmatpush1.msra.mxu0 0.0
    %449 = vmatprep.subr.mxu0 0.0
    %450 = vmatpush1.msra.mxu0 0.0
    %451 = vmatprep.subr.mxu0 0.0
    %452 = vmatpush1.msra.mxu0 0.0
    %453 = vmatprep.subr.mxu0 0.0
    %454 = vmatpush1.msra.mxu0 0.0
    %455 = vmatprep.subr.mxu0 0.0
    %456 = vmatpush1.msra.mxu0 0.0
    %457 = vmatprep.subr.mxu0 0.0
    %458 = vmatpush1.msra.mxu0 0.0
    %459 = vmatprep.subr.mxu0 0.0
    %460 = vmatpush1.msra.mxu0 0.0
    %461 = vmatprep.subr.mxu0 0.0
    %462 = vmatpush1.msra.mxu0 0.0
    %463 = vmatprep.mubr.f32.mxu0 0.0
    %464 = vmatmul.mubr.f32.gmra.mrb[0].mxu0 %v394
    %v465 = vpop.f32.mrb[0].mxu0
    %v466 = vadd.f32 %v391, %v465
    %v467 = vpop.f32.mrb[0].mxu0
    %468 = vmatprep.mubr.f32.mxu0 0.0
    %469 = vmatmul.mubr.f32.gmra.mrb[0].mxu0 %v397
    %v470 = vpop.f32.mrb[0].mxu0
    %v471 = vadd.f32 %v391, %v470
    %v472 = vpop.f32.mrb[0].mxu0
    %473 = vdwg.mxu0
    %v474 = vmul.f32 %v466, 0.35355338
    %v475 = vmul.f32 %v471, 0.35355338
    %477 = vrot.lane.b32.xlu0 %v466, 96
    %v478 = vpop.permute.xlu0 %477
    %vm479 = vcmask 64512
    %v481 = vsel %vm479, %v474, 0
    %v483 = vsel %vm479, %v478, 0
    %485 = vmatprep.subr.mxu0 0.0
    %486 = vmatpush1.xpose.msra.mxu0 %v483
    %487 = vmatprep.subr.mxu0 0.0
    %488 = vmatpush1.xpose.msra.mxu0 0.0
    %489 = vmatprep.subr.mxu0 0.0
    %490 = vmatpush1.xpose.msra.mxu0 0.0
    %491 = vmatprep.subr.mxu0 0.0
    %492 = vmatpush1.xpose.msra.mxu0 0.0
    %493 = vmatprep.subr.mxu0 0.0
    %494 = vmatpush1.xpose.msra.mxu0 0.0
    %495 = vmatprep.subr.mxu0 0.0
    %496 = vmatpush1.xpose.msra.mxu0 0.0
    %497 = vmatprep.subr.mxu0 0.0
    %498 = vmatpush1.xpose.msra.mxu0 0.0
    %499 = vmatprep.subr.mxu0 0.0
    %500 = vmatpush1.xpose.msra.mxu0 0.0
    %501 = vmatprep.subr.mxu0 0.0
    %502 = vmatpush1.xpose.msra.mxu0 0.0
    %503 = vmatprep.subr.mxu0 0.0
    %504 = vmatpush1.xpose.msra.mxu0 0.0
    %505 = vmatprep.subr.mxu0 0.0
    %506 = vmatpush1.xpose.msra.mxu0 0.0
    %507 = vmatprep.subr.mxu0 0.0
    %508 = vmatpush1.xpose.msra.mxu0 0.0
    %509 = vmatprep.subr.mxu0 0.0
    %510 = vmatpush1.xpose.msra.mxu0 0.0
    %511 = vmatprep.subr.mxu0 0.0
    %512 = vmatpush1.xpose.msra.mxu0 0.0
    %513 = vmatprep.subr.mxu0 0.0
    %514 = vmatpush1.xpose.msra.mxu0 0.0
    %515 = vmatprep.subr.mxu0 0.0
    %516 = vmatpush1.xpose.msra.mxu0 0.0
    %517 = vmatprep.subr.mxu0 0.0
    %518 = vmatpush1.xpose.msra.mxu0 0.0
    %519 = vmatprep.subr.mxu0 0.0
    %520 = vmatpush1.xpose.msra.mxu0 0.0
    %521 = vmatprep.subr.mxu0 0.0
    %522 = vmatpush1.xpose.msra.mxu0 0.0
    %523 = vmatprep.subr.mxu0 0.0
    %524 = vmatpush1.xpose.msra.mxu0 0.0
    %525 = vmatprep.subr.mxu0 0.0
    %526 = vmatpush1.xpose.msra.mxu0 0.0
    %527 = vmatprep.subr.mxu0 0.0
    %528 = vmatpush1.xpose.msra.mxu0 0.0
    %529 = vmatprep.subr.mxu0 0.0
    %530 = vmatpush1.xpose.msra.mxu0 0.0
    %531 = vmatprep.subr.mxu0 0.0
    %532 = vmatpush1.xpose.msra.mxu0 0.0
    %533 = vmatprep.subr.mxu0 0.0
    %534 = vmatpush1.xpose.msra.mxu0 0.0
    %535 = vmatprep.subr.mxu0 0.0
    %536 = vmatpush1.xpose.msra.mxu0 0.0
    %537 = vmatprep.subr.mxu0 0.0
    %538 = vmatpush1.xpose.msra.mxu0 0.0
    %539 = vmatprep.subr.mxu0 0.0
    %540 = vmatpush1.xpose.msra.mxu0 0.0
    %541 = vmatprep.subr.mxu0 0.0
    %542 = vmatpush1.xpose.msra.mxu0 0.0
    %543 = vmatprep.subr.mxu0 0.0
    %544 = vmatpush1.xpose.msra.mxu0 0.0
    %545 = vmatprep.subr.mxu0 0.0
    %546 = vmatpush1.xpose.msra.mxu0 0.0
    %547 = vmatprep.subr.mxu0 0.0
    %548 = vmatpush1.xpose.msra.mxu0 0.0
    %549 = vmatprep.mubr.f32.mxu0 0.0
    %550 = vmatmul.mubr.f32.gmra.mrb[0].mxu0 %v481
    %v551 = vpop.f32.mrb[0].mxu0
    %v552 = vadd.f32 %v332, %v551
    %v553 = vpop.f32.mrb[0].mxu0
    %554 = vdwg.mxu0
    %556 = vrot.lane.b32.xlu0 %v471, 96
    %v557 = vpop.permute.xlu0 %556
    %v559 = vsel %vm479, %v475, 0
    %v561 = vsel %vm479, %v557, 0
    %563 = vmatprep.subr.mxu0 0.0
    %564 = vmatpush1.xpose.msra.mxu0 %v561
    %565 = vmatprep.subr.mxu0 0.0
    %566 = vmatpush1.xpose.msra.mxu0 0.0
    %567 = vmatprep.subr.mxu0 0.0
    %568 = vmatpush1.xpose.msra.mxu0 0.0
    %569 = vmatprep.subr.mxu0 0.0
    %570 = vmatpush1.xpose.msra.mxu0 0.0
    %571 = vmatprep.subr.mxu0 0.0
    %572 = vmatpush1.xpose.msra.mxu0 0.0
    %573 = vmatprep.subr.mxu0 0.0
    %574 = vmatpush1.xpose.msra.mxu0 0.0
    %575 = vmatprep.subr.mxu0 0.0
    %576 = vmatpush1.xpose.msra.mxu0 0.0
    %577 = vmatprep.subr.mxu0 0.0
    %578 = vmatpush1.xpose.msra.mxu0 0.0
    %579 = vmatprep.subr.mxu0 0.0
    %580 = vmatpush1.xpose.msra.mxu0 0.0
    %581 = vmatprep.subr.mxu0 0.0
    %582 = vmatpush1.xpose.msra.mxu0 0.0
    %583 = vmatprep.subr.mxu0 0.0
    %584 = vmatpush1.xpose.msra.mxu0 0.0
    %585 = vmatprep.subr.mxu0 0.0
    %586 = vmatpush1.xpose.msra.mxu0 0.0
    %587 = vmatprep.subr.mxu0 0.0
    %588 = vmatpush1.xpose.msra.mxu0 0.0
    %589 = vmatprep.subr.mxu0 0.0
    %590 = vmatpush1.xpose.msra.mxu0 0.0
    %591 = vmatprep.subr.mxu0 0.0
    %592 = vmatpush1.xpose.msra.mxu0 0.0
    %593 = vmatprep.subr.mxu0 0.0
    %594 = vmatpush1.xpose.msra.mxu0 0.0
    %595 = vmatprep.subr.mxu0 0.0
    %596 = vmatpush1.xpose.msra.mxu0 0.0
    %597 = vmatprep.subr.mxu0 0.0
    %598 = vmatpush1.xpose.msra.mxu0 0.0
    %599 = vmatprep.subr.mxu0 0.0
    %600 = vmatpush1.xpose.msra.mxu0 0.0
    %601 = vmatprep.subr.mxu0 0.0
    %602 = vmatpush1.xpose.msra.mxu0 0.0
    %603 = vmatprep.subr.mxu0 0.0
    %604 = vmatpush1.xpose.msra.mxu0 0.0
    %605 = vmatprep.subr.mxu0 0.0
    %606 = vmatpush1.xpose.msra.mxu0 0.0
    %607 = vmatprep.subr.mxu0 0.0
    %608 = vmatpush1.xpose.msra.mxu0 0.0
    %609 = vmatprep.subr.mxu0 0.0
    %610 = vmatpush1.xpose.msra.mxu0 0.0
    %611 = vmatprep.subr.mxu0 0.0
    %612 = vmatpush1.xpose.msra.mxu0 0.0
    %613 = vmatprep.subr.mxu0 0.0
    %614 = vmatpush1.xpose.msra.mxu0 0.0
    %615 = vmatprep.subr.mxu0 0.0
    %616 = vmatpush1.xpose.msra.mxu0 0.0
    %617 = vmatprep.subr.mxu0 0.0
    %618 = vmatpush1.xpose.msra.mxu0 0.0
    %619 = vmatprep.subr.mxu0 0.0
    %620 = vmatpush1.xpose.msra.mxu0 0.0
    %621 = vmatprep.subr.mxu0 0.0
    %622 = vmatpush1.xpose.msra.mxu0 0.0
    %623 = vmatprep.subr.mxu0 0.0
    %624 = vmatpush1.xpose.msra.mxu0 0.0
    %625 = vmatprep.subr.mxu0 0.0
    %626 = vmatpush1.xpose.msra.mxu0 0.0
    %627 = vmatprep.mubr.f32.mxu0 0.0
    %628 = vmatmul.mubr.f32.gmra.mrb[0].mxu0 %v559
    %v629 = vpop.f32.mrb[0].mxu0
    %v630 = vadd.f32 %v332, %v629
    %v631 = vpop.f32.mrb[0].mxu0
    %632 = vdwg.mxu0
    %v633 = vsel %vm479, %v552, -inf
    %634 = vmax.xlane.f32.xlu0 %v633
    %v635 = vpop.xlane.xlu0 %634
    %v636 = vsel %vm479, %v630, -inf
    %637 = vmax.xlane.f32.xlu0 %v636
    %v638 = vpop.xlane.xlu0 %637
    %v639 = vsub.f32 %v552, %v635
    %v640 = vsub.f32 %v630, %v638
    %v641 = vmul.f32 %v639, 1.442695
    %v642 = vpow.pop %v641
    %v643 = vmul.f32 %v640, 1.442695
    %v644 = vpow.pop %v643
    %v645 = vsel %vm479, %v642, 0.0
    %646 = vadd.xlane.f32.xlu0 %v645
    %v647 = vpop.xlane.xlu0 %646
    %v648 = vsel %vm479, %v644, 0.0
    %649 = vadd.xlane.f32.xlu0 %v648
    %v650 = vpop.xlane.xlu0 %649
    %v651 = vrcp.pop %v647
    %v652 = vrcp.pop %v650
    %v653 = vmul.f32 %v642, %v651
    %v654 = vmul.f32 %v644, %v652
    %655 = vrot.lane.b32.xlu0 %v466, 64
    %v656 = vpop.permute.xlu0 %655
    %v659 = vsel %vm479, %v653, 0
    %661 = vmatprep.subr.mxu0 0.0
    %662 = vmatpush1.msra.mxu0 %v656
    %663 = vmatprep.subr.mxu0 0.0
    %664 = vmatpush1.msra.mxu0 0.0
    %665 = vmatprep.subr.mxu0 0.0
    %666 = vmatpush1.msra.mxu0 0.0
    %667 = vmatprep.subr.mxu0 0.0
    %668 = vmatpush1.msra.mxu0 0.0
    %669 = vmatprep.subr.mxu0 0.0
    %670 = vmatpush1.msra.mxu0 0.0
    %671 = vmatprep.subr.mxu0 0.0
    %672 = vmatpush1.msra.mxu0 0.0
    %673 = vmatprep.subr.mxu0 0.0
    %674 = vmatpush1.msra.mxu0 0.0
    %675 = vmatprep.subr.mxu0 0.0
    %676 = vmatpush1.msra.mxu0 0.0
    %677 = vmatprep.subr.mxu0 0.0
    %678 = vmatpush1.msra.mxu0 0.0
    %679 = vmatprep.subr.mxu0 0.0
    %680 = vmatpush1.msra.mxu0 0.0
    %681 = vmatprep.subr.mxu0 0.0
    %682 = vmatpush1.msra.mxu0 0.0
    %683 = vmatprep.subr.mxu0 0.0
    %684 = vmatpush1.msra.mxu0 0.0
    %685 = vmatprep.subr.mxu0 0.0
    %686 = vmatpush1.msra.mxu0 0.0
    %687 = vmatprep.subr.mxu0 0.0
    %688 = vmatpush1.msra.mxu0 0.0
    %689 = vmatprep.subr.mxu0 0.0
    %690 = vmatpush1.msra.mxu0 0.0
    %691 = vmatprep.subr.mxu0 0.0
    %692 = vmatpush1.msra.mxu0 0.0
    %693 = vmatprep.subr.mxu0 0.0
    %694 = vmatpush1.msra.mxu0 0.0
    %695 = vmatprep.subr.mxu0 0.0
    %696 = vmatpush1.msra.mxu0 0.0
    %697 = vmatprep.subr.mxu0 0.0
    %698 = vmatpush1.msra.mxu0 0.0
    %699 = vmatprep.subr.mxu0 0.0
    %700 = vmatpush1.msra.mxu0 0.0
    %701 = vmatprep.subr.mxu0 0.0
    %702 = vmatpush1.msra.mxu0 0.0
    %703 = vmatprep.subr.mxu0 0.0
    %704 = vmatpush1.msra.mxu0 0.0
    %705 = vmatprep.subr.mxu0 0.0
    %706 = vmatpush1.msra.mxu0 0.0
    %707 = vmatprep.subr.mxu0 0.0
    %708 = vmatpush1.msra.mxu0 0.0
    %709 = vmatprep.subr.mxu0 0.0
    %710 = vmatpush1.msra.mxu0 0.0
    %711 = vmatprep.subr.mxu0 0.0
    %712 = vmatpush1.msra.mxu0 0.0
    %713 = vmatprep.subr.mxu0 0.0
    %714 = vmatpush1.msra.mxu0 0.0
    %715 = vmatprep.subr.mxu0 0.0
    %716 = vmatpush1.msra.mxu0 0.0
    %717 = vmatprep.subr.mxu0 0.0
    %718 = vmatpush1.msra.mxu0 0.0
    %719 = vmatprep.subr.mxu0 0.0
    %720 = vmatpush1.msra.mxu0 0.0
    %721 = vmatprep.subr.mxu0 0.0
    %722 = vmatpush1.msra.mxu0 0.0
    %723 = vmatprep.subr.mxu0 0.0
    %724 = vmatpush1.msra.mxu0 0.0
    %725 = vmatprep.mubr.f32.mxu0 0.0
    %726 = vmatmul.mubr.f32.gmra.mrb[0].mxu0 %v659
    %v727 = vpop.f32.mrb[0].mxu0
    %v728 = vadd.f32 0.0, %v727
    %v729 = vpop.f32.mrb[0].mxu0
    %730 = vdwg.mxu0
    %731 = vrot.lane.b32.xlu0 %v471, 64
    %v732 = vpop.permute.xlu0 %731
    %v735 = vsel %vm479, %v654, 0
    %737 = vmatprep.subr.mxu0 0.0
    %738 = vmatpush1.msra.mxu0 %v732
    %739 = vmatprep.subr.mxu0 0.0
    %740 = vmatpush1.msra.mxu0 0.0
    %741 = vmatprep.subr.mxu0 0.0
    %742 = vmatpush1.msra.mxu0 0.0
    %743 = vmatprep.subr.mxu0 0.0
    %744 = vmatpush1.msra.mxu0 0.0
    %745 = vmatprep.subr.mxu0 0.0
    %746 = vmatpush1.msra.mxu0 0.0
    %747 = vmatprep.subr.mxu0 0.0
    %748 = vmatpush1.msra.mxu0 0.0
    %749 = vmatprep.subr.mxu0 0.0
    %750 = vmatpush1.msra.mxu0 0.0
    %751 = vmatprep.subr.mxu0 0.0
    %752 = vmatpush1.msra.mxu0 0.0
    %753 = vmatprep.subr.mxu0 0.0
    %754 = vmatpush1.msra.mxu0 0.0
    %755 = vmatprep.subr.mxu0 0.0
    %756 = vmatpush1.msra.mxu0 0.0
    %757 = vmatprep.subr.mxu0 0.0
    %758 = vmatpush1.msra.mxu0 0.0
    %759 = vmatprep.subr.mxu0 0.0
    %760 = vmatpush1.msra.mxu0 0.0
    %761 = vmatprep.subr.mxu0 0.0
    %762 = vmatpush1.msra.mxu0 0.0
    %763 = vmatprep.subr.mxu0 0.0
    %764 = vmatpush1.msra.mxu0 0.0
    %765 = vmatprep.subr.mxu0 0.0
    %766 = vmatpush1.msra.mxu0 0.0
    %767 = vmatprep.subr.mxu0 0.0
    %768 = vmatpush1.msra.mxu0 0.0
    %769 = vmatprep.subr.mxu0 0.0
    %770 = vmatpush1.msra.mxu0 0.0
    %771 = vmatprep.subr.mxu0 0.0
    %772 = vmatpush1.msra.mxu0 0.0
    %773 = vmatprep.subr.mxu0 0.0
    %774 = vmatpush1.msra.mxu0 0.0
    %775 = vmatprep.subr.mxu0 0.0
    %776 = vmatpush1.msra.mxu0 0.0
    %777 = vmatprep.subr.mxu0 0.0
    %778 = vmatpush1.msra.mxu0 0.0
    %779 = vmatprep.subr.mxu0 0.0
    %780 = vmatpush1.msra.mxu0 0.0
    %781 = vmatprep.subr.mxu0 0.0
    %782 = vmatpush1.msra.mxu0 0.0
    %783 = vmatprep.subr.mxu0 0.0
    %784 = vmatpush1.msra.mxu0 0.0
    %785 = vmatprep.subr.mxu0 0.0
    %786 = vmatpush1.msra.mxu0 0.0
    %787 = vmatprep.subr.mxu0 0.0
    %788 = vmatpush1.msra.mxu0 0.0
    %789 = vmatprep.subr.mxu0 0.0
    %790 = vmatpush1.msra.mxu0 0.0
    %791 = vmatprep.subr.mxu0 0.0
    %792 = vmatpush1.msra.mxu0 0.0
    %793 = vmatprep.subr.mxu0 0.0
    %794 = vmatpush1.msra.mxu0 0.0
    %795 = vmatprep.subr.mxu0 0.0
    %796 = vmatpush1.msra.mxu0 0.0
    %797 = vmatprep.subr.mxu0 0.0
    %798 = vmatpush1.msra.mxu0 0.0
    %799 = vmatprep.subr.mxu0 0.0
    %800 = vmatpush1.msra.mxu0 0.0
    %801 = vmatprep.mubr.f32.mxu0 0.0
    %802 = vmatmul.mubr.f32.gmra.mrb[0].mxu0 %v735
    %v803 = vpop.f32.mrb[0].mxu0
    %v804 = vadd.f32 0.0, %v803
    %v805 = vpop.f32.mrb[0].mxu0
    %806 = vdwg.mxu0
    %807 = vrot.lane.b32.xlu0 %v474, 120
    %v808 = vpop.permute.xlu0 %807
    %809 = vrot.lane.b32.xlu0 %v466, 88
    %v810 = vpop.permute.xlu0 %809
    %v811 = vsel %vm479, %v808, 0
    %v813 = vsel %vm479, %v810, 0
    %815 = vmatprep.subr.mxu0 0.0
    %816 = vmatpush1.xpose.msra.mxu0 %v813
    %817 = vmatprep.subr.mxu0 0.0
    %818 = vmatpush1.xpose.msra.mxu0 0.0
    %819 = vmatprep.subr.mxu0 0.0
    %820 = vmatpush1.xpose.msra.mxu0 0.0
    %821 = vmatprep.subr.mxu0 0.0
    %822 = vmatpush1.xpose.msra.mxu0 0.0
    %823 = vmatprep.subr.mxu0 0.0
    %824 = vmatpush1.xpose.msra.mxu0 0.0
    %825 = vmatprep.subr.mxu0 0.0
    %826 = vmatpush1.xpose.msra.mxu0 0.0
    %827 = vmatprep.subr.mxu0 0.0
    %828 = vmatpush1.xpose.msra.mxu0 0.0
    %829 = vmatprep.subr.mxu0 0.0
    %830 = vmatpush1.xpose.msra.mxu0 0.0
    %831 = vmatprep.subr.mxu0 0.0
    %832 = vmatpush1.xpose.msra.mxu0 0.0
    %833 = vmatprep.subr.mxu0 0.0
    %834 = vmatpush1.xpose.msra.mxu0 0.0
    %835 = vmatprep.subr.mxu0 0.0
    %836 = vmatpush1.xpose.msra.mxu0 0.0
    %837 = vmatprep.subr.mxu0 0.0
    %838 = vmatpush1.xpose.msra.mxu0 0.0
    %839 = vmatprep.subr.mxu0 0.0
    %840 = vmatpush1.xpose.msra.mxu0 0.0
    %841 = vmatprep.subr.mxu0 0.0
    %842 = vmatpush1.xpose.msra.mxu0 0.0
    %843 = vmatprep.subr.mxu0 0.0
    %844 = vmatpush1.xpose.msra.mxu0 0.0
    %845 = vmatprep.subr.mxu0 0.0
    %846 = vmatpush1.xpose.msra.mxu0 0.0
    %847 = vmatprep.subr.mxu0 0.0
    %848 = vmatpush1.xpose.msra.mxu0 0.0
    %849 = vmatprep.subr.mxu0 0.0
    %850 = vmatpush1.xpose.msra.mxu0 0.0
    %851 = vmatprep.subr.mxu0 0.0
    %852 = vmatpush1.xpose.msra.mxu0 0.0
    %853 = vmatprep.subr.mxu0 0.0
    %854 = vmatpush1.xpose.msra.mxu0 0.0
    %855 = vmatprep.subr.mxu0 0.0
    %856 = vmatpush1.xpose.msra.mxu0 0.0
    %857 = vmatprep.subr.mxu0 0.0
    %858 = vmatpush1.xpose.msra.mxu0 0.0
    %859 = vmatprep.subr.mxu0 0.0
    %860 = vmatpush1.xpose.msra.mxu0 0.0
    %861 = vmatprep.subr.mxu0 0.0
    %862 = vmatpush1.xpose.msra.mxu0 0.0
    %863 = vmatprep.subr.mxu0 0.0
    %864 = vmatpush1.xpose.msra.mxu0 0.0
    %865 = vmatprep.subr.mxu0 0.0
    %866 = vmatpush1.xpose.msra.mxu0 0.0
    %867 = vmatprep.subr.mxu0 0.0
    %868 = vmatpush1.xpose.msra.mxu0 0.0
    %869 = vmatprep.subr.mxu0 0.0
    %870 = vmatpush1.xpose.msra.mxu0 0.0
    %871 = vmatprep.subr.mxu0 0.0
    %872 = vmatpush1.xpose.msra.mxu0 0.0
    %873 = vmatprep.subr.mxu0 0.0
    %874 = vmatpush1.xpose.msra.mxu0 0.0
    %875 = vmatprep.subr.mxu0 0.0
    %876 = vmatpush1.xpose.msra.mxu0 0.0
    %877 = vmatprep.subr.mxu0 0.0
    %878 = vmatpush1.xpose.msra.mxu0 0.0
    %879 = vmatprep.mubr.f32.mxu0 0.0
    %880 = vmatmul.mubr.f32.gmra.mrb[0].mxu0 %v811
    %v881 = vpop.f32.mrb[0].mxu0
    %v882 = vadd.f32 %v332, %v881
    %v883 = vpop.f32.mrb[0].mxu0
    %884 = vdwg.mxu0
    %885 = vrot.lane.b32.xlu0 %v475, 120
    %v886 = vpop.permute.xlu0 %885
    %887 = vrot.lane.b32.xlu0 %v471, 88
    %v888 = vpop.permute.xlu0 %887
    %v889 = vsel %vm479, %v886, 0
    %v891 = vsel %vm479, %v888, 0
    %893 = vmatprep.subr.mxu0 0.0
    %894 = vmatpush1.xpose.msra.mxu0 %v891
    %895 = vmatprep.subr.mxu0 0.0
    %896 = vmatpush1.xpose.msra.mxu0 0.0
    %897 = vmatprep.subr.mxu0 0.0
    %898 = vmatpush1.xpose.msra.mxu0 0.0
    %899 = vmatprep.subr.mxu0 0.0
    %900 = vmatpush1.xpose.msra.mxu0 0.0
    %901 = vmatprep.subr.mxu0 0.0
    %902 = vmatpush1.xpose.msra.mxu0 0.0
    %903 = vmatprep.subr.mxu0 0.0
    %904 = vmatpush1.xpose.msra.mxu0 0.0
    %905 = vmatprep.subr.mxu0 0.0
    %906 = vmatpush1.xpose.msra.mxu0 0.0
    %907 = vmatprep.subr.mxu0 0.0
    %908 = vmatpush1.xpose.msra.mxu0 0.0
    %909 = vmatprep.subr.mxu0 0.0
    %910 = vmatpush1.xpose.msra.mxu0 0.0
    %911 = vmatprep.subr.mxu0 0.0
    %912 = vmatpush1.xpose.msra.mxu0 0.0
    %913 = vmatprep.subr.mxu0 0.0
    %914 = vmatpush1.xpose.msra.mxu0 0.0
    %915 = vmatprep.subr.mxu0 0.0
    %916 = vmatpush1.xpose.msra.mxu0 0.0
    %917 = vmatprep.subr.mxu0 0.0
    %918 = vmatpush1.xpose.msra.mxu0 0.0
    %919 = vmatprep.subr.mxu0 0.0
    %920 = vmatpush1.xpose.msra.mxu0 0.0
    %921 = vmatprep.subr.mxu0 0.0
    %922 = vmatpush1.xpose.msra.mxu0 0.0
    %923 = vmatprep.subr.mxu0 0.0
    %924 = vmatpush1.xpose.msra.mxu0 0.0
    %925 = vmatprep.subr.mxu0 0.0
    %926 = vmatpush1.xpose.msra.mxu0 0.0
    %927 = vmatprep.subr.mxu0 0.0
    %928 = vmatpush1.xpose.msra.mxu0 0.0
    %929 = vmatprep.subr.mxu0 0.0
    %930 = vmatpush1.xpose.msra.mxu0 0.0
    %931 = vmatprep.subr.mxu0 0.0
    %932 = vmatpush1.xpose.msra.mxu0 0.0
    %933 = vmatprep.subr.mxu0 0.0
    %934 = vmatpush1.xpose.msra.mxu0 0.0
    %935 = vmatprep.subr.mxu0 0.0
    %936 = vmatpush1.xpose.msra.mxu0 0.0
    %937 = vmatprep.subr.mxu0 0.0
    %938 = vmatpush1.xpose.msra.mxu0 0.0
    %939 = vmatprep.subr.mxu0 0.0
    %940 = vmatpush1.xpose.msra.mxu0 0.0
    %941 = vmatprep.subr.mxu0 0.0
    %942 = vmatpush1.xpose.msra.mxu0 0.0
    %943 = vmatprep.subr.mxu0 0.0
    %944 = vmatpush1.xpose.msra.mxu0 0.0
    %945 = vmatprep.subr.mxu0 0.0
    %946 = vmatpush1.xpose.msra.mxu0 0.0
    %947 = vmatprep.subr.mxu0 0.0
    %948 = vmatpush1.xpose.msra.mxu0 0.0
    %949 = vmatprep.subr.mxu0 0.0
    %950 = vmatpush1.xpose.msra.mxu0 0.0
    %951 = vmatprep.subr.mxu0 0.0
    %952 = vmatpush1.xpose.msra.mxu0 0.0
    %953 = vmatprep.subr.mxu0 0.0
    %954 = vmatpush1.xpose.msra.mxu0 0.0
    %955 = vmatprep.subr.mxu0 0.0
    %956 = vmatpush1.xpose.msra.mxu0 0.0
    %957 = vmatprep.mubr.f32.mxu0 0.0
    %958 = vmatmul.mubr.f32.gmra.mrb[0].mxu0 %v889
    %v959 = vpop.f32.mrb[0].mxu0
    %v960 = vadd.f32 %v332, %v959
    %v961 = vpop.f32.mrb[0].mxu0
    %962 = vdwg.mxu0
    %v963 = vsel %vm479, %v882, -inf
    %964 = vmax.xlane.f32.xlu0 %v963
    %v965 = vpop.xlane.xlu0 %964
    %v966 = vsel %vm479, %v960, -inf
    %967 = vmax.xlane.f32.xlu0 %v966
    %v968 = vpop.xlane.xlu0 %967
    %v969 = vsub.f32 %v882, %v965
    %v970 = vsub.f32 %v960, %v968
    %v971 = vmul.f32 %v969, 1.442695
    %v972 = vpow.pop %v971
    %v973 = vmul.f32 %v970, 1.442695
    %v974 = vpow.pop %v973
    %v975 = vsel %vm479, %v972, 0.0
    %976 = vadd.xlane.f32.xlu0 %v975
    %v977 = vpop.xlane.xlu0 %976
    %v978 = vsel %vm479, %v974, 0.0
    %979 = vadd.xlane.f32.xlu0 %v978
    %v980 = vpop.xlane.xlu0 %979
    %v981 = vrcp.pop %v977
    %v982 = vrcp.pop %v980
    %v983 = vmul.f32 %v972, %v981
    %v984 = vmul.f32 %v974, %v982
    %985 = vrot.lane.b32.xlu0 %v466, 56
    %v986 = vpop.permute.xlu0 %985
    %v989 = vsel %vm479, %v983, 0
    %991 = vmatprep.subr.mxu0 0.0
    %992 = vmatpush1.msra.mxu0 %v986
    %993 = vmatprep.subr.mxu0 0.0
    %994 = vmatpush1.msra.mxu0 0.0
    %995 = vmatprep.subr.mxu0 0.0
    %996 = vmatpush1.msra.mxu0 0.0
    %997 = vmatprep.subr.mxu0 0.0
    %998 = vmatpush1.msra.mxu0 0.0
    %999 = vmatprep.subr.mxu0 0.0
    %1000 = vmatpush1.msra.mxu0 0.0
    %1001 = vmatprep.subr.mxu0 0.0
    %1002 = vmatpush1.msra.mxu0 0.0
    %1003 = vmatprep.subr.mxu0 0.0
    %1004 = vmatpush1.msra.mxu0 0.0
    %1005 = vmatprep.subr.mxu0 0.0
    %1006 = vmatpush1.msra.mxu0 0.0
    %1007 = vmatprep.subr.mxu0 0.0
    %1008 = vmatpush1.msra.mxu0 0.0
    %1009 = vmatprep.subr.mxu0 0.0
    %1010 = vmatpush1.msra.mxu0 0.0
    %1011 = vmatprep.subr.mxu0 0.0
    %1012 = vmatpush1.msra.mxu0 0.0
    %1013 = vmatprep.subr.mxu0 0.0
    %1014 = vmatpush1.msra.mxu0 0.0
    %1015 = vmatprep.subr.mxu0 0.0
    %1016 = vmatpush1.msra.mxu0 0.0
    %1017 = vmatprep.subr.mxu0 0.0
    %1018 = vmatpush1.msra.mxu0 0.0
    %1019 = vmatprep.subr.mxu0 0.0
    %1020 = vmatpush1.msra.mxu0 0.0
    %1021 = vmatprep.subr.mxu0 0.0
    %1022 = vmatpush1.msra.mxu0 0.0
    %1023 = vmatprep.subr.mxu0 0.0
    %1024 = vmatpush1.msra.mxu0 0.0
    %1025 = vmatprep.subr.mxu0 0.0
    %1026 = vmatpush1.msra.mxu0 0.0
    %1027 = vmatprep.subr.mxu0 0.0
    %1028 = vmatpush1.msra.mxu0 0.0
    %1029 = vmatprep.subr.mxu0 0.0
    %1030 = vmatpush1.msra.mxu0 0.0
    %1031 = vmatprep.subr.mxu0 0.0
    %1032 = vmatpush1.msra.mxu0 0.0
    %1033 = vmatprep.subr.mxu0 0.0
    %1034 = vmatpush1.msra.mxu0 0.0
    %1035 = vmatprep.subr.mxu0 0.0
    %1036 = vmatpush1.msra.mxu0 0.0
    %1037 = vmatprep.subr.mxu0 0.0
    %1038 = vmatpush1.msra.mxu0 0.0
    %1039 = vmatprep.subr.mxu0 0.0
    %1040 = vmatpush1.msra.mxu0 0.0
    %1041 = vmatprep.subr.mxu0 0.0
    %1042 = vmatpush1.msra.mxu0 0.0
    %1043 = vmatprep.subr.mxu0 0.0
    %1044 = vmatpush1.msra.mxu0 0.0
    %1045 = vmatprep.subr.mxu0 0.0
    %1046 = vmatpush1.msra.mxu0 0.0
    %1047 = vmatprep.subr.mxu0 0.0
    %1048 = vmatpush1.msra.mxu0 0.0
    %1049 = vmatprep.subr.mxu0 0.0
    %1050 = vmatpush1.msra.mxu0 0.0
    %1051 = vmatprep.subr.mxu0 0.0
    %1052 = vmatpush1.msra.mxu0 0.0
    %1053 = vmatprep.subr.mxu0 0.0
    %1054 = vmatpush1.msra.mxu0 0.0
    %1055 = vmatprep.mubr.f32.mxu0 0.0
    %1056 = vmatmul.mubr.f32.gmra.mrb[0].mxu0 %v989
    %v1057 = vpop.f32.mrb[0].mxu0
    %v1058 = vadd.f32 0.0, %v1057
    %v1059 = vpop.f32.mrb[0].mxu0
    %1060 = vdwg.mxu0
    %1061 = vrot.lane.b32.xlu0 %v471, 56
    %v1062 = vpop.permute.xlu0 %1061
    %v1065 = vsel %vm479, %v984, 0
    %1067 = vmatprep.subr.mxu0 0.0
    %1068 = vmatpush1.msra.mxu0 %v1062
    %1069 = vmatprep.subr.mxu0 0.0
    %1070 = vmatpush1.msra.mxu0 0.0
    %1071 = vmatprep.subr.mxu0 0.0
    %1072 = vmatpush1.msra.mxu0 0.0
    %1073 = vmatprep.subr.mxu0 0.0
    %1074 = vmatpush1.msra.mxu0 0.0
    %1075 = vmatprep.subr.mxu0 0.0
    %1076 = vmatpush1.msra.mxu0 0.0
    %1077 = vmatprep.subr.mxu0 0.0
    %1078 = vmatpush1.msra.mxu0 0.0
    %1079 = vmatprep.subr.mxu0 0.0
    %1080 = vmatpush1.msra.mxu0 0.0
    %1081 = vmatprep.subr.mxu0 0.0
    %1082 = vmatpush1.msra.mxu0 0.0
    %1083 = vmatprep.subr.mxu0 0.0
    %1084 = vmatpush1.msra.mxu0 0.0
    %1085 = vmatprep.subr.mxu0 0.0
    %1086 = vmatpush1.msra.mxu0 0.0
    %1087 = vmatprep.subr.mxu0 0.0
    %1088 = vmatpush1.msra.mxu0 0.0
    %1089 = vmatprep.subr.mxu0 0.0
    %1090 = vmatpush1.msra.mxu0 0.0
    %1091 = vmatprep.subr.mxu0 0.0
    %1092 = vmatpush1.msra.mxu0 0.0
    %1093 = vmatprep.subr.mxu0 0.0
    %1094 = vmatpush1.msra.mxu0 0.0
    %1095 = vmatprep.subr.mxu0 0.0
    %1096 = vmatpush1.msra.mxu0 0.0
    %1097 = vmatprep.subr.mxu0 0.0
    %1098 = vmatpush1.msra.mxu0 0.0
    %1099 = vmatprep.subr.mxu0 0.0
    %1100 = vmatpush1.msra.mxu0 0.0
    %1101 = vmatprep.subr.mxu0 0.0
    %1102 = vmatpush1.msra.mxu0 0.0
    %1103 = vmatprep.subr.mxu0 0.0
    %1104 = vmatpush1.msra.mxu0 0.0
    %1105 = vmatprep.subr.mxu0 0.0
    %1106 = vmatpush1.msra.mxu0 0.0
    %1107 = vmatprep.subr.mxu0 0.0
    %1108 = vmatpush1.msra.mxu0 0.0
    %1109 = vmatprep.subr.mxu0 0.0
    %1110 = vmatpush1.msra.mxu0 0.0
    %1111 = vmatprep.subr.mxu0 0.0
    %1112 = vmatpush1.msra.mxu0 0.0
    %1113 = vmatprep.subr.mxu0 0.0
    %1114 = vmatpush1.msra.mxu0 0.0
    %1115 = vmatprep.subr.mxu0 0.0
    %1116 = vmatpush1.msra.mxu0 0.0
    %1117 = vmatprep.subr.mxu0 0.0
    %1118 = vmatpush1.msra.mxu0 0.0
    %1119 = vmatprep.subr.mxu0 0.0
    %1120 = vmatpush1.msra.mxu0 0.0
    %1121 = vmatprep.subr.mxu0 0.0
    %1122 = vmatpush1.msra.mxu0 0.0
    %1123 = vmatprep.subr.mxu0 0.0
    %1124 = vmatpush1.msra.mxu0 0.0
    %1125 = vmatprep.subr.mxu0 0.0
    %1126 = vmatpush1.msra.mxu0 0.0
    %1127 = vmatprep.subr.mxu0 0.0
    %1128 = vmatpush1.msra.mxu0 0.0
    %1129 = vmatprep.subr.mxu0 0.0
    %1130 = vmatpush1.msra.mxu0 0.0
    %1131 = vmatprep.mubr.f32.mxu0 0.0
    %1132 = vmatmul.mubr.f32.gmra.mrb[0].mxu0 %v1065
    %v1133 = vpop.f32.mrb[0].mxu0
    %v1134 = vadd.f32 0.0, %v1133
    %v1135 = vpop.f32.mrb[0].mxu0
    %1136 = vdwg.mxu0
    %1137 = vrot.lane.b32.xlu0 %v474, 112
    %v1138 = vpop.permute.xlu0 %1137
    %1139 = vrot.lane.b32.xlu0 %v466, 80
    %v1140 = vpop.permute.xlu0 %1139
    %v1141 = vsel %vm479, %v1138, 0
    %v1143 = vsel %vm479, %v1140, 0
    %1145 = vmatprep.subr.mxu0 0.0
    %1146 = vmatpush1.xpose.msra.mxu0 %v1143
    %1147 = vmatprep.subr.mxu0 0.0
    %1148 = vmatpush1.xpose.msra.mxu0 0.0
    %1149 = vmatprep.subr.mxu0 0.0
    %1150 = vmatpush1.xpose.msra.mxu0 0.0
    %1151 = vmatprep.subr.mxu0 0.0
    %1152 = vmatpush1.xpose.msra.mxu0 0.0
    %1153 = vmatprep.subr.mxu0 0.0
    %1154 = vmatpush1.xpose.msra.mxu0 0.0
    %1155 = vmatprep.subr.mxu0 0.0
    %1156 = vmatpush1.xpose.msra.mxu0 0.0
    %1157 = vmatprep.subr.mxu0 0.0
    %1158 = vmatpush1.xpose.msra.mxu0 0.0
    %1159 = vmatprep.subr.mxu0 0.0
    %1160 = vmatpush1.xpose.msra.mxu0 0.0
    %1161 = vmatprep.subr.mxu0 0.0
    %1162 = vmatpush1.xpose.msra.mxu0 0.0
    %1163 = vmatprep.subr.mxu0 0.0
    %1164 = vmatpush1.xpose.msra.mxu0 0.0
    %1165 = vmatprep.subr.mxu0 0.0
    %1166 = vmatpush1.xpose.msra.mxu0 0.0
    %1167 = vmatprep.subr.mxu0 0.0
    %1168 = vmatpush1.xpose.msra.mxu0 0.0
    %1169 = vmatprep.subr.mxu0 0.0
    %1170 = vmatpush1.xpose.msra.mxu0 0.0
    %1171 = vmatprep.subr.mxu0 0.0
    %1172 = vmatpush1.xpose.msra.mxu0 0.0
    %1173 = vmatprep.subr.mxu0 0.0
    %1174 = vmatpush1.xpose.msra.mxu0 0.0
    %1175 = vmatprep.subr.mxu0 0.0
    %1176 = vmatpush1.xpose.msra.mxu0 0.0
    %1177 = vmatprep.subr.mxu0 0.0
    %1178 = vmatpush1.xpose.msra.mxu0 0.0
    %1179 = vmatprep.subr.mxu0 0.0
    %1180 = vmatpush1.xpose.msra.mxu0 0.0
    %1181 = vmatprep.subr.mxu0 0.0
    %1182 = vmatpush1.xpose.msra.mxu0 0.0
    %1183 = vmatprep.subr.mxu0 0.0
    %1184 = vmatpush1.xpose.msra.mxu0 0.0
    %1185 = vmatprep.subr.mxu0 0.0
    %1186 = vmatpush1.xpose.msra.mxu0 0.0
    %1187 = vmatprep.subr.mxu0 0.0
    %1188 = vmatpush1.xpose.msra.mxu0 0.0
    %1189 = vmatprep.subr.mxu0 0.0
    %1190 = vmatpush1.xpose.msra.mxu0 0.0
    %1191 = vmatprep.subr.mxu0 0.0
    %1192 = vmatpush1.xpose.msra.mxu0 0.0
    %1193 = vmatprep.subr.mxu0 0.0
    %1194 = vmatpush1.xpose.msra.mxu0 0.0
    %1195 = vmatprep.subr.mxu0 0.0
    %1196 = vmatpush1.xpose.msra.mxu0 0.0
    %1197 = vmatprep.subr.mxu0 0.0
    %1198 = vmatpush1.xpose.msra.mxu0 0.0
    %1199 = vmatprep.subr.mxu0 0.0
    %1200 = vmatpush1.xpose.msra.mxu0 0.0
    %1201 = vmatprep.subr.mxu0 0.0
    %1202 = vmatpush1.xpose.msra.mxu0 0.0
    %1203 = vmatprep.subr.mxu0 0.0
    %1204 = vmatpush1.xpose.msra.mxu0 0.0
    %1205 = vmatprep.subr.mxu0 0.0
    %1206 = vmatpush1.xpose.msra.mxu0 0.0
    %1207 = vmatprep.subr.mxu0 0.0
    %1208 = vmatpush1.xpose.msra.mxu0 0.0
    %1209 = vmatprep.mubr.f32.mxu0 0.0
    %1210 = vmatmul.mubr.f32.gmra.mrb[0].mxu0 %v1141
    %v1211 = vpop.f32.mrb[0].mxu0
    %v1212 = vadd.f32 %v332, %v1211
    %v1213 = vpop.f32.mrb[0].mxu0
    %1214 = vdwg.mxu0
    %1215 = vrot.lane.b32.xlu0 %v475, 112
    %v1216 = vpop.permute.xlu0 %1215
    %1217 = vrot.lane.b32.xlu0 %v471, 80
    %v1218 = vpop.permute.xlu0 %1217
    %v1219 = vsel %vm479, %v1216, 0
    %v1221 = vsel %vm479, %v1218, 0
    %1223 = vmatprep.subr.mxu0 0.0
    %1224 = vmatpush1.xpose.msra.mxu0 %v1221
    %1225 = vmatprep.subr.mxu0 0.0
    %1226 = vmatpush1.xpose.msra.mxu0 0.0
    %1227 = vmatprep.subr.mxu0 0.0
    %1228 = vmatpush1.xpose.msra.mxu0 0.0
    %1229 = vmatprep.subr.mxu0 0.0
    %1230 = vmatpush1.xpose.msra.mxu0 0.0
    %1231 = vmatprep.subr.mxu0 0.0
    %1232 = vmatpush1.xpose.msra.mxu0 0.0
    %1233 = vmatprep.subr.mxu0 0.0
    %1234 = vmatpush1.xpose.msra.mxu0 0.0
    %1235 = vmatprep.subr.mxu0 0.0
    %1236 = vmatpush1.xpose.msra.mxu0 0.0
    %1237 = vmatprep.subr.mxu0 0.0
    %1238 = vmatpush1.xpose.msra.mxu0 0.0
    %1239 = vmatprep.subr.mxu0 0.0
    %1240 = vmatpush1.xpose.msra.mxu0 0.0
    %1241 = vmatprep.subr.mxu0 0.0
    %1242 = vmatpush1.xpose.msra.mxu0 0.0
    %1243 = vmatprep.subr.mxu0 0.0
    %1244 = vmatpush1.xpose.msra.mxu0 0.0
    %1245 = vmatprep.subr.mxu0 0.0
    %1246 = vmatpush1.xpose.msra.mxu0 0.0
    %1247 = vmatprep.subr.mxu0 0.0
    %1248 = vmatpush1.xpose.msra.mxu0 0.0
    %1249 = vmatprep.subr.mxu0 0.0
    %1250 = vmatpush1.xpose.msra.mxu0 0.0
    %1251 = vmatprep.subr.mxu0 0.0
    %1252 = vmatpush1.xpose.msra.mxu0 0.0
    %1253 = vmatprep.subr.mxu0 0.0
    %1254 = vmatpush1.xpose.msra.mxu0 0.0
    %1255 = vmatprep.subr.mxu0 0.0
    %1256 = vmatpush1.xpose.msra.mxu0 0.0
    %1257 = vmatprep.subr.mxu0 0.0
    %1258 = vmatpush1.xpose.msra.mxu0 0.0
    %1259 = vmatprep.subr.mxu0 0.0
    %1260 = vmatpush1.xpose.msra.mxu0 0.0
    %1261 = vmatprep.subr.mxu0 0.0
    %1262 = vmatpush1.xpose.msra.mxu0 0.0
    %1263 = vmatprep.subr.mxu0 0.0
    %1264 = vmatpush1.xpose.msra.mxu0 0.0
    %1265 = vmatprep.subr.mxu0 0.0
    %1266 = vmatpush1.xpose.msra.mxu0 0.0
    %1267 = vmatprep.subr.mxu0 0.0
    %1268 = vmatpush1.xpose.msra.mxu0 0.0
    %1269 = vmatprep.subr.mxu0 0.0
    %1270 = vmatpush1.xpose.msra.mxu0 0.0
    %1271 = vmatprep.subr.mxu0 0.0
    %1272 = vmatpush1.xpose.msra.mxu0 0.0
    %1273 = vmatprep.subr.mxu0 0.0
    %1274 = vmatpush1.xpose.msra.mxu0 0.0
    %1275 = vmatprep.subr.mxu0 0.0
    %1276 = vmatpush1.xpose.msra.mxu0 0.0
    %1277 = vmatprep.subr.mxu0 0.0
    %1278 = vmatpush1.xpose.msra.mxu0 0.0
    %1279 = vmatprep.subr.mxu0 0.0
    %1280 = vmatpush1.xpose.msra.mxu0 0.0
    %1281 = vmatprep.subr.mxu0 0.0
    %1282 = vmatpush1.xpose.msra.mxu0 0.0
    %1283 = vmatprep.subr.mxu0 0.0
    %1284 = vmatpush1.xpose.msra.mxu0 0.0
    %1285 = vmatprep.subr.mxu0 0.0
    %1286 = vmatpush1.xpose.msra.mxu0 0.0
    %1287 = vmatprep.mubr.f32.mxu0 0.0
    %1288 = vmatmul.mubr.f32.gmra.mrb[0].mxu0 %v1219
    %v1289 = vpop.f32.mrb[0].mxu0
    %v1290 = vadd.f32 %v332, %v1289
    %v1291 = vpop.f32.mrb[0].mxu0
    %1292 = vdwg.mxu0
    %v1293 = vsel %vm479, %v1212, -inf
    %1294 = vmax.xlane.f32.xlu0 %v1293
    %v1295 = vpop.xlane.xlu0 %1294
    %v1296 = vsel %vm479, %v1290, -inf
    %1297 = vmax.xlane.f32.xlu0 %v1296
    %v1298 = vpop.xlane.xlu0 %1297
    %v1299 = vsub.f32 %v1212, %v1295
    %v1300 = vsub.f32 %v1290, %v1298
    %v1301 = vmul.f32 %v1299, 1.442695
    %v1302 = vpow.pop %v1301
    %v1303 = vmul.f32 %v1300, 1.442695
    %v1304 = vpow.pop %v1303
    %v1305 = vsel %vm479, %v1302, 0.0
    %1306 = vadd.xlane.f32.xlu0 %v1305
    %v1307 = vpop.xlane.xlu0 %1306
    %v1308 = vsel %vm479, %v1304, 0.0
    %1309 = vadd.xlane.f32.xlu0 %v1308
    %v1310 = vpop.xlane.xlu0 %1309
    %v1311 = vrcp.pop %v1307
    %v1312 = vrcp.pop %v1310
    %v1313 = vmul.f32 %v1302, %v1311
    %v1314 = vmul.f32 %v1304, %v1312
    %1315 = vrot.lane.b32.xlu0 %v466, 48
    %v1316 = vpop.permute.xlu0 %1315
    %v1319 = vsel %vm479, %v1313, 0
    %1321 = vmatprep.subr.mxu0 0.0
    %1322 = vmatpush1.msra.mxu0 %v1316
    %1323 = vmatprep.subr.mxu0 0.0
    %1324 = vmatpush1.msra.mxu0 0.0
    %1325 = vmatprep.subr.mxu0 0.0
    %1326 = vmatpush1.msra.mxu0 0.0
    %1327 = vmatprep.subr.mxu0 0.0
    %1328 = vmatpush1.msra.mxu0 0.0
    %1329 = vmatprep.subr.mxu0 0.0
    %1330 = vmatpush1.msra.mxu0 0.0
    %1331 = vmatprep.subr.mxu0 0.0
    %1332 = vmatpush1.msra.mxu0 0.0
    %1333 = vmatprep.subr.mxu0 0.0
    %1334 = vmatpush1.msra.mxu0 0.0
    %1335 = vmatprep.subr.mxu0 0.0
    %1336 = vmatpush1.msra.mxu0 0.0
    %1337 = vmatprep.subr.mxu0 0.0
    %1338 = vmatpush1.msra.mxu0 0.0
    %1339 = vmatprep.subr.mxu0 0.0
    %1340 = vmatpush1.msra.mxu0 0.0
    %1341 = vmatprep.subr.mxu0 0.0
    %1342 = vmatpush1.msra.mxu0 0.0
    %1343 = vmatprep.subr.mxu0 0.0
    %1344 = vmatpush1.msra.mxu0 0.0
    %1345 = vmatprep.subr.mxu0 0.0
    %1346 = vmatpush1.msra.mxu0 0.0
    %1347 = vmatprep.subr.mxu0 0.0
    %1348 = vmatpush1.msra.mxu0 0.0
    %1349 = vmatprep.subr.mxu0 0.0
    %1350 = vmatpush1.msra.mxu0 0.0
    %1351 = vmatprep.subr.mxu0 0.0
    %1352 = vmatpush1.msra.mxu0 0.0
    %1353 = vmatprep.subr.mxu0 0.0
    %1354 = vmatpush1.msra.mxu0 0.0
    %1355 = vmatprep.subr.mxu0 0.0
    %1356 = vmatpush1.msra.mxu0 0.0
    %1357 = vmatprep.subr.mxu0 0.0
    %1358 = vmatpush1.msra.mxu0 0.0
    %1359 = vmatprep.subr.mxu0 0.0
    %1360 = vmatpush1.msra.mxu0 0.0
    %1361 = vmatprep.subr.mxu0 0.0
    %1362 = vmatpush1.msra.mxu0 0.0
    %1363 = vmatprep.subr.mxu0 0.0
    %1364 = vmatpush1.msra.mxu0 0.0
    %1365 = vmatprep.subr.mxu0 0.0
    %1366 = vmatpush1.msra.mxu0 0.0
    %1367 = vmatprep.subr.mxu0 0.0
    %1368 = vmatpush1.msra.mxu0 0.0
    %1369 = vmatprep.subr.mxu0 0.0
    %1370 = vmatpush1.msra.mxu0 0.0
    %1371 = vmatprep.subr.mxu0 0.0
    %1372 = vmatpush1.msra.mxu0 0.0
    %1373 = vmatprep.subr.mxu0 0.0
    %1374 = vmatpush1.msra.mxu0 0.0
    %1375 = vmatprep.subr.mxu0 0.0
    %1376 = vmatpush1.msra.mxu0 0.0
    %1377 = vmatprep.subr.mxu0 0.0
    %1378 = vmatpush1.msra.mxu0 0.0
    %1379 = vmatprep.subr.mxu0 0.0
    %1380 = vmatpush1.msra.mxu0 0.0
    %1381 = vmatprep.subr.mxu0 0.0
    %1382 = vmatpush1.msra.mxu0 0.0
    %1383 = vmatprep.subr.mxu0 0.0
    %1384 = vmatpush1.msra.mxu0 0.0
    %1385 = vmatprep.mubr.f32.mxu0 0.0
    %1386 = vmatmul.mubr.f32.gmra.mrb[0].mxu0 %v1319
    %v1387 = vpop.f32.mrb[0].mxu0
    %v1388 = vadd.f32 0.0, %v1387
    %v1389 = vpop.f32.mrb[0].mxu0
    %1390 = vdwg.mxu0
    %1391 = vrot.lane.b32.xlu0 %v471, 48
    %v1392 = vpop.permute.xlu0 %1391
    %v1395 = vsel %vm479, %v1314, 0
    %1397 = vmatprep.subr.mxu0 0.0
    %1398 = vmatpush1.msra.mxu0 %v1392
    %1399 = vmatprep.subr.mxu0 0.0
    %1400 = vmatpush1.msra.mxu0 0.0
    %1401 = vmatprep.subr.mxu0 0.0
    %1402 = vmatpush1.msra.mxu0 0.0
    %1403 = vmatprep.subr.mxu0 0.0
    %1404 = vmatpush1.msra.mxu0 0.0
    %1405 = vmatprep.subr.mxu0 0.0
    %1406 = vmatpush1.msra.mxu0 0.0
    %1407 = vmatprep.subr.mxu0 0.0
    %1408 = vmatpush1.msra.mxu0 0.0
    %1409 = vmatprep.subr.mxu0 0.0
    %1410 = vmatpush1.msra.mxu0 0.0
    %1411 = vmatprep.subr.mxu0 0.0
    %1412 = vmatpush1.msra.mxu0 0.0
    %1413 = vmatprep.subr.mxu0 0.0
    %1414 = vmatpush1.msra.mxu0 0.0
    %1415 = vmatprep.subr.mxu0 0.0
    %1416 = vmatpush1.msra.mxu0 0.0
    %1417 = vmatprep.subr.mxu0 0.0
    %1418 = vmatpush1.msra.mxu0 0.0
    %1419 = vmatprep.subr.mxu0 0.0
    %1420 = vmatpush1.msra.mxu0 0.0
    %1421 = vmatprep.subr.mxu0 0.0
    %1422 = vmatpush1.msra.mxu0 0.0
    %1423 = vmatprep.subr.mxu0 0.0
    %1424 = vmatpush1.msra.mxu0 0.0
    %1425 = vmatprep.subr.mxu0 0.0
    %1426 = vmatpush1.msra.mxu0 0.0
    %1427 = vmatprep.subr.mxu0 0.0
    %1428 = vmatpush1.msra.mxu0 0.0
    %1429 = vmatprep.subr.mxu0 0.0
    %1430 = vmatpush1.msra.mxu0 0.0
    %1431 = vmatprep.subr.mxu0 0.0
    %1432 = vmatpush1.msra.mxu0 0.0
    %1433 = vmatprep.subr.mxu0 0.0
    %1434 = vmatpush1.msra.mxu0 0.0
    %1435 = vmatprep.subr.mxu0 0.0
    %1436 = vmatpush1.msra.mxu0 0.0
    %1437 = vmatprep.subr.mxu0 0.0
    %1438 = vmatpush1.msra.mxu0 0.0
    %1439 = vmatprep.subr.mxu0 0.0
    %1440 = vmatpush1.msra.mxu0 0.0
    %1441 = vmatprep.subr.mxu0 0.0
    %1442 = vmatpush1.msra.mxu0 0.0
    %1443 = vmatprep.subr.mxu0 0.0
    %1444 = vmatpush1.msra.mxu0 0.0
    %1445 = vmatprep.subr.mxu0 0.0
    %1446 = vmatpush1.msra.mxu0 0.0
    %1447 = vmatprep.subr.mxu0 0.0
    %1448 = vmatpush1.msra.mxu0 0.0
    %1449 = vmatprep.subr.mxu0 0.0
    %1450 = vmatpush1.msra.mxu0 0.0
    %1451 = vmatprep.subr.mxu0 0.0
    %1452 = vmatpush1.msra.mxu0 0.0
    %1453 = vmatprep.subr.mxu0 0.0
    %1454 = vmatpush1.msra.mxu0 0.0
    %1455 = vmatprep.subr.mxu0 0.0
    %1456 = vmatpush1.msra.mxu0 0.0
    %1457 = vmatprep.subr.mxu0 0.0
    %1458 = vmatpush1.msra.mxu0 0.0
    %1459 = vmatprep.subr.mxu0 0.0
    %1460 = vmatpush1.msra.mxu0 0.0
    %1461 = vmatprep.mubr.f32.mxu0 0.0
    %1462 = vmatmul.mubr.f32.gmra.mrb[0].mxu0 %v1395
    %v1463 = vpop.f32.mrb[0].mxu0
    %v1464 = vadd.f32 0.0, %v1463
    %v1465 = vpop.f32.mrb[0].mxu0
    %1466 = vdwg.mxu0
    %1467 = vrot.lane.b32.xlu0 %v474, 104
    %v1468 = vpop.permute.xlu0 %1467
    %1469 = vrot.lane.b32.xlu0 %v466, 72
    %v1470 = vpop.permute.xlu0 %1469
    %v1471 = vsel %vm479, %v1468, 0
    %v1473 = vsel %vm479, %v1470, 0
    %1475 = vmatprep.subr.mxu0 0.0
    %1476 = vmatpush1.xpose.msra.mxu0 %v1473
    %1477 = vmatprep.subr.mxu0 0.0
    %1478 = vmatpush1.xpose.msra.mxu0 0.0
    %1479 = vmatprep.subr.mxu0 0.0
    %1480 = vmatpush1.xpose.msra.mxu0 0.0
    %1481 = vmatprep.subr.mxu0 0.0
    %1482 = vmatpush1.xpose.msra.mxu0 0.0
    %1483 = vmatprep.subr.mxu0 0.0
    %1484 = vmatpush1.xpose.msra.mxu0 0.0
    %1485 = vmatprep.subr.mxu0 0.0
    %1486 = vmatpush1.xpose.msra.mxu0 0.0
    %1487 = vmatprep.subr.mxu0 0.0
    %1488 = vmatpush1.xpose.msra.mxu0 0.0
    %1489 = vmatprep.subr.mxu0 0.0
    %1490 = vmatpush1.xpose.msra.mxu0 0.0
    %1491 = vmatprep.subr.mxu0 0.0
    %1492 = vmatpush1.xpose.msra.mxu0 0.0
    %1493 = vmatprep.subr.mxu0 0.0
    %1494 = vmatpush1.xpose.msra.mxu0 0.0
    %1495 = vmatprep.subr.mxu0 0.0
    %1496 = vmatpush1.xpose.msra.mxu0 0.0
    %1497 = vmatprep.subr.mxu0 0.0
    %1498 = vmatpush1.xpose.msra.mxu0 0.0
    %1499 = vmatprep.subr.mxu0 0.0
    %1500 = vmatpush1.xpose.msra.mxu0 0.0
    %1501 = vmatprep.subr.mxu0 0.0
    %1502 = vmatpush1.xpose.msra.mxu0 0.0
    %1503 = vmatprep.subr.mxu0 0.0
    %1504 = vmatpush1.xpose.msra.mxu0 0.0
    %1505 = vmatprep.subr.mxu0 0.0
    %1506 = vmatpush1.xpose.msra.mxu0 0.0
    %1507 = vmatprep.subr.mxu0 0.0
    %1508 = vmatpush1.xpose.msra.mxu0 0.0
    %1509 = vmatprep.subr.mxu0 0.0
    %1510 = vmatpush1.xpose.msra.mxu0 0.0
    %1511 = vmatprep.subr.mxu0 0.0
    %1512 = vmatpush1.xpose.msra.mxu0 0.0
    %1513 = vmatprep.subr.mxu0 0.0
    %1514 = vmatpush1.xpose.msra.mxu0 0.0
    %1515 = vmatprep.subr.mxu0 0.0
    %1516 = vmatpush1.xpose.msra.mxu0 0.0
    %1517 = vmatprep.subr.mxu0 0.0
    %1518 = vmatpush1.xpose.msra.mxu0 0.0
    %1519 = vmatprep.subr.mxu0 0.0
    %1520 = vmatpush1.xpose.msra.mxu0 0.0
    %1521 = vmatprep.subr.mxu0 0.0
    %1522 = vmatpush1.xpose.msra.mxu0 0.0
    %1523 = vmatprep.subr.mxu0 0.0
    %1524 = vmatpush1.xpose.msra.mxu0 0.0
    %1525 = vmatprep.subr.mxu0 0.0
    %1526 = vmatpush1.xpose.msra.mxu0 0.0
    %1527 = vmatprep.subr.mxu0 0.0
    %1528 = vmatpush1.xpose.msra.mxu0 0.0
    %1529 = vmatprep.subr.mxu0 0.0
    %1530 = vmatpush1.xpose.msra.mxu0 0.0
    %1531 = vmatprep.subr.mxu0 0.0
    %1532 = vmatpush1.xpose.msra.mxu0 0.0
    %1533 = vmatprep.subr.mxu0 0.0
    %1534 = vmatpush1.xpose.msra.mxu0 0.0
    %1535 = vmatprep.subr.mxu0 0.0
    %1536 = vmatpush1.xpose.msra.mxu0 0.0
    %1537 = vmatprep.subr.mxu0 0.0
    %1538 = vmatpush1.xpose.msra.mxu0 0.0
    %1539 = vmatprep.mubr.f32.mxu0 0.0
    %1540 = vmatmul.mubr.f32.gmra.mrb[0].mxu0 %v1471
    %v1541 = vpop.f32.mrb[0].mxu0
    %v1542 = vadd.f32 %v332, %v1541
    %v1543 = vpop.f32.mrb[0].mxu0
    %1544 = vdwg.mxu0
    %1545 = vrot.lane.b32.xlu0 %v475, 104
    %v1546 = vpop.permute.xlu0 %1545
    %1547 = vrot.lane.b32.xlu0 %v471, 72
    %v1548 = vpop.permute.xlu0 %1547
    %v1549 = vsel %vm479, %v1546, 0
    %v1551 = vsel %vm479, %v1548, 0
    %1553 = vmatprep.subr.mxu0 0.0
    %1554 = vmatpush1.xpose.msra.mxu0 %v1551
    %1555 = vmatprep.subr.mxu0 0.0
    %1556 = vmatpush1.xpose.msra.mxu0 0.0
    %1557 = vmatprep.subr.mxu0 0.0
    %1558 = vmatpush1.xpose.msra.mxu0 0.0
    %1559 = vmatprep.subr.mxu0 0.0
    %1560 = vmatpush1.xpose.msra.mxu0 0.0
    %1561 = vmatprep.subr.mxu0 0.0
    %1562 = vmatpush1.xpose.msra.mxu0 0.0
    %1563 = vmatprep.subr.mxu0 0.0
    %1564 = vmatpush1.xpose.msra.mxu0 0.0
    %1565 = vmatprep.subr.mxu0 0.0
    %1566 = vmatpush1.xpose.msra.mxu0 0.0
    %1567 = vmatprep.subr.mxu0 0.0
    %1568 = vmatpush1.xpose.msra.mxu0 0.0
    %1569 = vmatprep.subr.mxu0 0.0
    %1570 = vmatpush1.xpose.msra.mxu0 0.0
    %1571 = vmatprep.subr.mxu0 0.0
    %1572 = vmatpush1.xpose.msra.mxu0 0.0
    %1573 = vmatprep.subr.mxu0 0.0
    %1574 = vmatpush1.xpose.msra.mxu0 0.0
    %1575 = vmatprep.subr.mxu0 0.0
    %1576 = vmatpush1.xpose.msra.mxu0 0.0
    %1577 = vmatprep.subr.mxu0 0.0
    %1578 = vmatpush1.xpose.msra.mxu0 0.0
    %1579 = vmatprep.subr.mxu0 0.0
    %1580 = vmatpush1.xpose.msra.mxu0 0.0
    %1581 = vmatprep.subr.mxu0 0.0
    %1582 = vmatpush1.xpose.msra.mxu0 0.0
    %1583 = vmatprep.subr.mxu0 0.0
    %1584 = vmatpush1.xpose.msra.mxu0 0.0
    %1585 = vmatprep.subr.mxu0 0.0
    %1586 = vmatpush1.xpose.msra.mxu0 0.0
    %1587 = vmatprep.subr.mxu0 0.0
    %1588 = vmatpush1.xpose.msra.mxu0 0.0
    %1589 = vmatprep.subr.mxu0 0.0
    %1590 = vmatpush1.xpose.msra.mxu0 0.0
    %1591 = vmatprep.subr.mxu0 0.0
    %1592 = vmatpush1.xpose.msra.mxu0 0.0
    %1593 = vmatprep.subr.mxu0 0.0
    %1594 = vmatpush1.xpose.msra.mxu0 0.0
    %1595 = vmatprep.subr.mxu0 0.0
    %1596 = vmatpush1.xpose.msra.mxu0 0.0
    %1597 = vmatprep.subr.mxu0 0.0
    %1598 = vmatpush1.xpose.msra.mxu0 0.0
    %1599 = vmatprep.subr.mxu0 0.0
    %1600 = vmatpush1.xpose.msra.mxu0 0.0
    %1601 = vmatprep.subr.mxu0 0.0
    %1602 = vmatpush1.xpose.msra.mxu0 0.0
    %1603 = vmatprep.subr.mxu0 0.0
    %1604 = vmatpush1.xpose.msra.mxu0 0.0
    %1605 = vmatprep.subr.mxu0 0.0
    %1606 = vmatpush1.xpose.msra.mxu0 0.0
    %1607 = vmatprep.subr.mxu0 0.0
    %1608 = vmatpush1.xpose.msra.mxu0 0.0
    %1609 = vmatprep.subr.mxu0 0.0
    %1610 = vmatpush1.xpose.msra.mxu0 0.0
    %1611 = vmatprep.subr.mxu0 0.0
    %1612 = vmatpush1.xpose.msra.mxu0 0.0
    %1613 = vmatprep.subr.mxu0 0.0
    %1614 = vmatpush1.xpose.msra.mxu0 0.0
    %1615 = vmatprep.subr.mxu0 0.0
    %1616 = vmatpush1.xpose.msra.mxu0 0.0
    %1617 = vmatprep.mubr.f32.mxu0 0.0
    %1618 = vmatmul.mubr.f32.gmra.mrb[0].mxu0 %v1549
    %v1619 = vpop.f32.mrb[0].mxu0
    %v1620 = vadd.f32 %v332, %v1619
    %v1621 = vpop.f32.mrb[0].mxu0
    %1622 = vdwg.mxu0
    %v1623 = vsel %vm479, %v1542, -inf
    %1624 = vmax.xlane.f32.xlu0 %v1623
    %v1625 = vpop.xlane.xlu0 %1624
    %v1626 = vsel %vm479, %v1620, -inf
    %1627 = vmax.xlane.f32.xlu0 %v1626
    %v1628 = vpop.xlane.xlu0 %1627
    %v1629 = vsub.f32 %v1542, %v1625
    %v1630 = vsub.f32 %v1620, %v1628
    %v1631 = vmul.f32 %v1629, 1.442695
    %v1632 = vpow.pop %v1631
    %v1633 = vmul.f32 %v1630, 1.442695
    %v1634 = vpow.pop %v1633
    %v1635 = vsel %vm479, %v1632, 0.0
    %1636 = vadd.xlane.f32.xlu0 %v1635
    %v1637 = vpop.xlane.xlu0 %1636
    %v1638 = vsel %vm479, %v1634, 0.0
    %1639 = vadd.xlane.f32.xlu0 %v1638
    %v1640 = vpop.xlane.xlu0 %1639
    %v1641 = vrcp.pop %v1637
    %v1642 = vrcp.pop %v1640
    %v1643 = vmul.f32 %v1632, %v1641
    %v1644 = vmul.f32 %v1634, %v1642
    %1645 = vrot.lane.b32.xlu0 %v466, 40
    %v1646 = vpop.permute.xlu0 %1645
    %v1649 = vsel %vm479, %v1643, 0
    %1651 = vmatprep.subr.mxu0 0.0
    %1652 = vmatpush1.msra.mxu0 %v1646
    %1653 = vmatprep.subr.mxu0 0.0
    %1654 = vmatpush1.msra.mxu0 0.0
    %1655 = vmatprep.subr.mxu0 0.0
    %1656 = vmatpush1.msra.mxu0 0.0
    %1657 = vmatprep.subr.mxu0 0.0
    %1658 = vmatpush1.msra.mxu0 0.0
    %1659 = vmatprep.subr.mxu0 0.0
    %1660 = vmatpush1.msra.mxu0 0.0
    %1661 = vmatprep.subr.mxu0 0.0
    %1662 = vmatpush1.msra.mxu0 0.0
    %1663 = vmatprep.subr.mxu0 0.0
    %1664 = vmatpush1.msra.mxu0 0.0
    %1665 = vmatprep.subr.mxu0 0.0
    %1666 = vmatpush1.msra.mxu0 0.0
    %1667 = vmatprep.subr.mxu0 0.0
    %1668 = vmatpush1.msra.mxu0 0.0
    %1669 = vmatprep.subr.mxu0 0.0
    %1670 = vmatpush1.msra.mxu0 0.0
    %1671 = vmatprep.subr.mxu0 0.0
    %1672 = vmatpush1.msra.mxu0 0.0
    %1673 = vmatprep.subr.mxu0 0.0
    %1674 = vmatpush1.msra.mxu0 0.0
    %1675 = vmatprep.subr.mxu0 0.0
    %1676 = vmatpush1.msra.mxu0 0.0
    %1677 = vmatprep.subr.mxu0 0.0
    %1678 = vmatpush1.msra.mxu0 0.0
    %1679 = vmatprep.subr.mxu0 0.0
    %1680 = vmatpush1.msra.mxu0 0.0
    %1681 = vmatprep.subr.mxu0 0.0
    %1682 = vmatpush1.msra.mxu0 0.0
    %1683 = vmatprep.subr.mxu0 0.0
    %1684 = vmatpush1.msra.mxu0 0.0
    %1685 = vmatprep.subr.mxu0 0.0
    %1686 = vmatpush1.msra.mxu0 0.0
    %1687 = vmatprep.subr.mxu0 0.0
    %1688 = vmatpush1.msra.mxu0 0.0
    %1689 = vmatprep.subr.mxu0 0.0
    %1690 = vmatpush1.msra.mxu0 0.0
    %1691 = vmatprep.subr.mxu0 0.0
    %1692 = vmatpush1.msra.mxu0 0.0
    %1693 = vmatprep.subr.mxu0 0.0
    %1694 = vmatpush1.msra.mxu0 0.0
    %1695 = vmatprep.subr.mxu0 0.0
    %1696 = vmatpush1.msra.mxu0 0.0
    %1697 = vmatprep.subr.mxu0 0.0
    %1698 = vmatpush1.msra.mxu0 0.0
    %1699 = vmatprep.subr.mxu0 0.0
    %1700 = vmatpush1.msra.mxu0 0.0
    %1701 = vmatprep.subr.mxu0 0.0
    %1702 = vmatpush1.msra.mxu0 0.0
    %1703 = vmatprep.subr.mxu0 0.0
    %1704 = vmatpush1.msra.mxu0 0.0
    %1705 = vmatprep.subr.mxu0 0.0
    %1706 = vmatpush1.msra.mxu0 0.0
    %1707 = vmatprep.subr.mxu0 0.0
    %1708 = vmatpush1.msra.mxu0 0.0
    %1709 = vmatprep.subr.mxu0 0.0
    %1710 = vmatpush1.msra.mxu0 0.0
    %1711 = vmatprep.subr.mxu0 0.0
    %1712 = vmatpush1.msra.mxu0 0.0
    %1713 = vmatprep.subr.mxu0 0.0
    %1714 = vmatpush1.msra.mxu0 0.0
    %1715 = vmatprep.mubr.f32.mxu0 0.0
    %1716 = vmatmul.mubr.f32.gmra.mrb[0].mxu0 %v1649
    %v1717 = vpop.f32.mrb[0].mxu0
    %v1718 = vadd.f32 0.0, %v1717
    %v1719 = vpop.f32.mrb[0].mxu0
    %1720 = vdwg.mxu0
    %1721 = vrot.lane.b32.xlu0 %v471, 40
    %v1722 = vpop.permute.xlu0 %1721
    %v1725 = vsel %vm479, %v1644, 0
    %1727 = vmatprep.subr.mxu0 0.0
    %1728 = vmatpush1.msra.mxu0 %v1722
    %1729 = vmatprep.subr.mxu0 0.0
    %1730 = vmatpush1.msra.mxu0 0.0
    %1731 = vmatprep.subr.mxu0 0.0
    %1732 = vmatpush1.msra.mxu0 0.0
    %1733 = vmatprep.subr.mxu0 0.0
    %1734 = vmatpush1.msra.mxu0 0.0
    %1735 = vmatprep.subr.mxu0 0.0
    %1736 = vmatpush1.msra.mxu0 0.0
    %1737 = vmatprep.subr.mxu0 0.0
    %1738 = vmatpush1.msra.mxu0 0.0
    %1739 = vmatprep.subr.mxu0 0.0
    %1740 = vmatpush1.msra.mxu0 0.0
    %1741 = vmatprep.subr.mxu0 0.0
    %1742 = vmatpush1.msra.mxu0 0.0
    %1743 = vmatprep.subr.mxu0 0.0
    %1744 = vmatpush1.msra.mxu0 0.0
    %1745 = vmatprep.subr.mxu0 0.0
    %1746 = vmatpush1.msra.mxu0 0.0
    %1747 = vmatprep.subr.mxu0 0.0
    %1748 = vmatpush1.msra.mxu0 0.0
    %1749 = vmatprep.subr.mxu0 0.0
    %1750 = vmatpush1.msra.mxu0 0.0
    %1751 = vmatprep.subr.mxu0 0.0
    %1752 = vmatpush1.msra.mxu0 0.0
    %1753 = vmatprep.subr.mxu0 0.0
    %1754 = vmatpush1.msra.mxu0 0.0
    %1755 = vmatprep.subr.mxu0 0.0
    %1756 = vmatpush1.msra.mxu0 0.0
    %1757 = vmatprep.subr.mxu0 0.0
    %1758 = vmatpush1.msra.mxu0 0.0
    %1759 = vmatprep.subr.mxu0 0.0
    %1760 = vmatpush1.msra.mxu0 0.0
    %1761 = vmatprep.subr.mxu0 0.0
    %1762 = vmatpush1.msra.mxu0 0.0
    %1763 = vmatprep.subr.mxu0 0.0
    %1764 = vmatpush1.msra.mxu0 0.0
    %1765 = vmatprep.subr.mxu0 0.0
    %1766 = vmatpush1.msra.mxu0 0.0
    %1767 = vmatprep.subr.mxu0 0.0
    %1768 = vmatpush1.msra.mxu0 0.0
    %1769 = vmatprep.subr.mxu0 0.0
    %1770 = vmatpush1.msra.mxu0 0.0
    %1771 = vmatprep.subr.mxu0 0.0
    %1772 = vmatpush1.msra.mxu0 0.0
    %1773 = vmatprep.subr.mxu0 0.0
    %1774 = vmatpush1.msra.mxu0 0.0
    %1775 = vmatprep.subr.mxu0 0.0
    %1776 = vmatpush1.msra.mxu0 0.0
    %1777 = vmatprep.subr.mxu0 0.0
    %1778 = vmatpush1.msra.mxu0 0.0
    %1779 = vmatprep.subr.mxu0 0.0
    %1780 = vmatpush1.msra.mxu0 0.0
    %1781 = vmatprep.subr.mxu0 0.0
    %1782 = vmatpush1.msra.mxu0 0.0
    %1783 = vmatprep.subr.mxu0 0.0
    %1784 = vmatpush1.msra.mxu0 0.0
    %1785 = vmatprep.subr.mxu0 0.0
    %1786 = vmatpush1.msra.mxu0 0.0
    %1787 = vmatprep.subr.mxu0 0.0
    %1788 = vmatpush1.msra.mxu0 0.0
    %1789 = vmatprep.subr.mxu0 0.0
    %1790 = vmatpush1.msra.mxu0 0.0
    %1791 = vmatprep.mubr.f32.mxu0 0.0
    %1792 = vmatmul.mubr.f32.gmra.mrb[0].mxu0 %v1725
    %v1793 = vpop.f32.mrb[0].mxu0
    %v1794 = vadd.f32 0.0, %v1793
    %v1795 = vpop.f32.mrb[0].mxu0
    %1796 = vdwg.mxu0
    %1799 = vrot.lane.b32.xlu0 %v1058, 8
    %v1800 = vpop.permute.xlu0 %1799
    %1801 = vrot.lane.b32.xlu0 %v1134, 8
    %v1802 = vpop.permute.xlu0 %1801
    %1807 = vrot.lane.b32.xlu0 %v1388, 16
    %v1808 = vpop.permute.xlu0 %1807
    %1809 = vrot.lane.b32.xlu0 %v1464, 16
    %v1810 = vpop.permute.xlu0 %1809
    %1815 = vrot.lane.b32.xlu0 %v1718, 24
    %v1816 = vpop.permute.xlu0 %1815
    %1817 = vrot.lane.b32.xlu0 %v1794, 24
    %v1818 = vpop.permute.xlu0 %1817
    %v1821 = vsel %vm479, %v728, %v1800
    %v1822 = vsel %vm479, %v804, %v1802
    %vm1823 = vcmask 130048
    %v1824 = vsel %vm1823, %v1821, %v1808
    %v1825 = vsel %vm1823, %v1822, %v1810
    %vm1826 = vcmask 195584
    %v1827 = vsel %vm1826, %v1824, %v1816
    %v1828 = vsel %vm1826, %v1825, %v1818
    %v1830 = vlaneseq
    %v1831 = vshrl.u32 %v1830, 7
    %v1832 = vsub.s32 0, %v1831
    %v1833 = vrot.slane %v386, %v1832
    %v1836 = vsel %vm285, %v1827, 0
    %v1839 = vsel %vm285, %v1828, 0
    %1841 = vmatprep.subr.mxu0 0.0
    %1842 = vmatpush1.msra.mxu0 %v382
    %1843 = vmatprep.subr.mxu0 0.0
    %1844 = vmatpush1.msra.mxu0 %v383
    %1845 = vmatprep.subr.mxu0 0.0
    %1846 = vmatpush1.msra.mxu0 %v384
    %1847 = vmatprep.subr.mxu0 0.0
    %1848 = vmatpush1.msra.mxu0 %v385
    %1849 = vmatprep.subr.mxu0 0.0
    %1850 = vmatpush1.msra.mxu0 0.0
    %1851 = vmatprep.subr.mxu0 0.0
    %1852 = vmatpush1.msra.mxu0 0.0
    %1853 = vmatprep.subr.mxu0 0.0
    %1854 = vmatpush1.msra.mxu0 0.0
    %1855 = vmatprep.subr.mxu0 0.0
    %1856 = vmatpush1.msra.mxu0 0.0
    %1857 = vmatprep.subr.mxu0 0.0
    %1858 = vmatpush1.msra.mxu0 0.0
    %1859 = vmatprep.subr.mxu0 0.0
    %1860 = vmatpush1.msra.mxu0 0.0
    %1861 = vmatprep.subr.mxu0 0.0
    %1862 = vmatpush1.msra.mxu0 0.0
    %1863 = vmatprep.subr.mxu0 0.0
    %1864 = vmatpush1.msra.mxu0 0.0
    %1865 = vmatprep.subr.mxu0 0.0
    %1866 = vmatpush1.msra.mxu0 0.0
    %1867 = vmatprep.subr.mxu0 0.0
    %1868 = vmatpush1.msra.mxu0 0.0
    %1869 = vmatprep.subr.mxu0 0.0
    %1870 = vmatpush1.msra.mxu0 0.0
    %1871 = vmatprep.subr.mxu0 0.0
    %1872 = vmatpush1.msra.mxu0 0.0
    %1873 = vmatprep.subr.mxu0 0.0
    %1874 = vmatpush1.msra.mxu0 0.0
    %1875 = vmatprep.subr.mxu0 0.0
    %1876 = vmatpush1.msra.mxu0 0.0
    %1877 = vmatprep.subr.mxu0 0.0
    %1878 = vmatpush1.msra.mxu0 0.0
    %1879 = vmatprep.subr.mxu0 0.0
    %1880 = vmatpush1.msra.mxu0 0.0
    %1881 = vmatprep.subr.mxu0 0.0
    %1882 = vmatpush1.msra.mxu0 0.0
    %1883 = vmatprep.subr.mxu0 0.0
    %1884 = vmatpush1.msra.mxu0 0.0
    %1885 = vmatprep.subr.mxu0 0.0
    %1886 = vmatpush1.msra.mxu0 0.0
    %1887 = vmatprep.subr.mxu0 0.0
    %1888 = vmatpush1.msra.mxu0 0.0
    %1889 = vmatprep.subr.mxu0 0.0
    %1890 = vmatpush1.msra.mxu0 0.0
    %1891 = vmatprep.subr.mxu0 0.0
    %1892 = vmatpush1.msra.mxu0 0.0
    %1893 = vmatprep.subr.mxu0 0.0
    %1894 = vmatpush1.msra.mxu0 0.0
    %1895 = vmatprep.subr.mxu0 0.0
    %1896 = vmatpush1.msra.mxu0 0.0
    %1897 = vmatprep.subr.mxu0 0.0
    %1898 = vmatpush1.msra.mxu0 0.0
    %1899 = vmatprep.subr.mxu0 0.0
    %1900 = vmatpush1.msra.mxu0 0.0
    %1901 = vmatprep.subr.mxu0 0.0
    %1902 = vmatpush1.msra.mxu0 0.0
    %1903 = vmatprep.subr.mxu0 0.0
    %1904 = vmatpush1.msra.mxu0 0.0
    %1905 = vmatprep.mubr.f32.mxu0 0.0
    %1906 = vmatmul.mubr.f32.gmra.mrb[0].mxu0 %v1836
    %v1907 = vpop.f32.mrb[0].mxu0
    %v1908 = vadd.f32 %v1833, %v1907
    %v1909 = vpop.f32.mrb[0].mxu0
    %1910 = vmatprep.mubr.f32.mxu0 0.0
    %1911 = vmatmul.mubr.f32.gmra.mrb[0].mxu0 %v1839
    %v1912 = vpop.f32.mrb[0].mxu0
    %v1913 = vadd.f32 %v1833, %v1912
    %v1914 = vpop.f32.mrb[0].mxu0
    %1915 = vdwg.mxu0
    %v1916 = vadd.f32 %v327, %v1908
    %v1917 = vadd.f32 %v328, %v1913
    %v1918 = vld [vmem:[%s25] sm:$0x1]
    %v1919 = vld [vmem:[%s27] sm:$0x1]
    %v1920 = vsel %vm285, %v1916, 0.0
    %1921 = vadd.xlane.f32.xlu0 %v1920
    %v1922 = vpop.xlane.xlu0 %1921
    %v1923 = vsel %vm285, %v1917, 0.0
    %1924 = vadd.xlane.f32.xlu0 %v1923
    %v1925 = vpop.xlane.xlu0 %1924
    %v1926 = vmul.f32 %v1922, %v292
    %v1927 = vmul.f32 %v1925, %v292
    %v1928 = vsub.f32 %v1916, %v1926
    %v1929 = vsub.f32 %v1917, %v1927
    %v1930 = vmul.f32 %v1928, %v1928
    %v1931 = vmul.f32 %v1929, %v1929
    %v1932 = vsel %vm285, %v1930, 0.0
    %1933 = vadd.xlane.f32.xlu0 %v1932
    %v1934 = vpop.xlane.xlu0 %1933
    %v1935 = vsel %vm285, %v1931, 0.0
    %1936 = vadd.xlane.f32.xlu0 %v1935
    %v1937 = vpop.xlane.xlu0 %1936
    %v1938 = vmul.f32 %v1934, %v292
    %v1939 = vmul.f32 %v1937, %v292
    %v1940 = vadd.f32 %v1938, 1e-05
    %v1941 = vadd.f32 %v1939, 1e-05
    %v1942 = vrsqrt.pop %v1940
    %v1943 = vrsqrt.pop %v1941
    %v1944 = vmul.f32 %v1928, %v1942
    %v1945 = vmul.f32 %v1929, %v1943
    %v1947 = vlaneseq
    %v1948 = vshrl.u32 %v1947, 7
    %v1949 = vsub.s32 0, %v1948
    %v1950 = vrot.slane %v1918, %v1949
    %v1952 = vmul.f32 %v1944, %v1950
    %v1953 = vmul.f32 %v1945, %v1950
    %v1955 = vlaneseq
    %v1956 = vshrl.u32 %v1955, 7
    %v1957 = vsub.s32 0, %v1956
    %v1958 = vrot.slane %v1919, %v1957
    %v1960 = vadd.f32 %v1952, %v1958
    %v1961 = vadd.f32 %v1953, %v1958
    %v1962 = vld [vmem:[%s29] sm:$0xff]
    %v1963 = vld [vmem:[%s29 + $0x8] sm:$0xff]
    %v1964 = vld [vmem:[%s29 + $0x10] sm:$0xff]
    %v1965 = vld [vmem:[%s29 + $0x18] sm:$0xff]
    %v1966 = vld [vmem:[%s31] sm:$0x1]
    %v1968 = vlaneseq
    %v1969 = vshrl.u32 %v1968, 7
    %v1970 = vsub.s32 0, %v1969
    %v1971 = vrot.slane %v1966, %v1970
    %v1974 = vsel %vm285, %v1960, 0
    %v1977 = vsel %vm285, %v1961, 0
    %1979 = vmatprep.subr.mxu0 0.0
    %1980 = vmatpush1.msra.mxu0 %v1962
    %1981 = vmatprep.subr.mxu0 0.0
    %1982 = vmatpush1.msra.mxu0 %v1963
    %1983 = vmatprep.subr.mxu0 0.0
    %1984 = vmatpush1.msra.mxu0 %v1964
    %1985 = vmatprep.subr.mxu0 0.0
    %1986 = vmatpush1.msra.mxu0 %v1965
    %1987 = vmatprep.subr.mxu0 0.0
    %1988 = vmatpush1.msra.mxu0 0.0
    %1989 = vmatprep.subr.mxu0 0.0
    %1990 = vmatpush1.msra.mxu0 0.0
    %1991 = vmatprep.subr.mxu0 0.0
    %1992 = vmatpush1.msra.mxu0 0.0
    %1993 = vmatprep.subr.mxu0 0.0
    %1994 = vmatpush1.msra.mxu0 0.0
    %1995 = vmatprep.subr.mxu0 0.0
    %1996 = vmatpush1.msra.mxu0 0.0
    %1997 = vmatprep.subr.mxu0 0.0
    %1998 = vmatpush1.msra.mxu0 0.0
    %1999 = vmatprep.subr.mxu0 0.0
    %2000 = vmatpush1.msra.mxu0 0.0
    %2001 = vmatprep.subr.mxu0 0.0
    %2002 = vmatpush1.msra.mxu0 0.0
    %2003 = vmatprep.subr.mxu0 0.0
    %2004 = vmatpush1.msra.mxu0 0.0
    %2005 = vmatprep.subr.mxu0 0.0
    %2006 = vmatpush1.msra.mxu0 0.0
    %2007 = vmatprep.subr.mxu0 0.0
    %2008 = vmatpush1.msra.mxu0 0.0
    %2009 = vmatprep.subr.mxu0 0.0
    %2010 = vmatpush1.msra.mxu0 0.0
    %2011 = vmatprep.subr.mxu0 0.0
    %2012 = vmatpush1.msra.mxu0 0.0
    %2013 = vmatprep.subr.mxu0 0.0
    %2014 = vmatpush1.msra.mxu0 0.0
    %2015 = vmatprep.subr.mxu0 0.0
    %2016 = vmatpush1.msra.mxu0 0.0
    %2017 = vmatprep.subr.mxu0 0.0
    %2018 = vmatpush1.msra.mxu0 0.0
    %2019 = vmatprep.subr.mxu0 0.0
    %2020 = vmatpush1.msra.mxu0 0.0
    %2021 = vmatprep.subr.mxu0 0.0
    %2022 = vmatpush1.msra.mxu0 0.0
    %2023 = vmatprep.subr.mxu0 0.0
    %2024 = vmatpush1.msra.mxu0 0.0
    %2025 = vmatprep.subr.mxu0 0.0
    %2026 = vmatpush1.msra.mxu0 0.0
    %2027 = vmatprep.subr.mxu0 0.0
    %2028 = vmatpush1.msra.mxu0 0.0
    %2029 = vmatprep.subr.mxu0 0.0
    %2030 = vmatpush1.msra.mxu0 0.0
    %2031 = vmatprep.subr.mxu0 0.0
    %2032 = vmatpush1.msra.mxu0 0.0
    %2033 = vmatprep.subr.mxu0 0.0
    %2034 = vmatpush1.msra.mxu0 0.0
    %2035 = vmatprep.subr.mxu0 0.0
    %2036 = vmatpush1.msra.mxu0 0.0
    %2037 = vmatprep.subr.mxu0 0.0
    %2038 = vmatpush1.msra.mxu0 0.0
    %2039 = vmatprep.subr.mxu0 0.0
    %2040 = vmatpush1.msra.mxu0 0.0
    %2041 = vmatprep.subr.mxu0 0.0
    %2042 = vmatpush1.msra.mxu0 0.0
    %2043 = vmatprep.mubr.f32.mxu0 0.0
    %2044 = vmatmul.mubr.f32.gmra.mrb[0].mxu0 %v1974
    %v2045 = vpop.f32.mrb[0].mxu0
    %v2046 = vadd.f32 %v1971, %v2045
    %v2047 = vpop.f32.mrb[0].mxu0
    %2048 = vmatprep.mubr.f32.mxu0 0.0
    %2049 = vmatmul.mubr.f32.gmra.mrb[0].mxu0 %v1977
    %v2050 = vpop.f32.mrb[0].mxu0
    %v2051 = vadd.f32 %v1971, %v2050
    %v2052 = vpop.f32.mrb[0].mxu0
    %2053 = vdwg.mxu0
    %v2054 = vmul.f32 %v2046, 1.702
    %v2055 = vmul.f32 %v2051, 1.702
    %v2056 = vxor.u32 %v2054, 2147483648
    %v2057 = vxor.u32 %v2055, 2147483648
    %v2058 = vmul.f32 %v2056, 1.442695
    %v2059 = vpow.pop %v2058
    %v2060 = vmul.f32 %v2057, 1.442695
    %v2061 = vpow.pop %v2060
    %v2062 = vadd.f32 %v2059, 1.0
    %v2063 = vadd.f32 %v2061, 1.0
    %v2064 = vrcp.pop %v2062
    %v2065 = vmul.f32 1.0, %v2064
    %v2066 = vrcp.pop %v2063
    %v2067 = vmul.f32 1.0, %v2066
    %v2068 = vmul.f32 %v2046, %v2065
    %v2069 = vmul.f32 %v2051, %v2067
    %v2070 = vld [vmem:[%s33] sm:$0xff]
    %v2071 = vld [vmem:[%s33 + $0x8] sm:$0xff]
    %v2072 = vld [vmem:[%s33 + $0x10] sm:$0xff]
    %v2073 = vld [vmem:[%s33 + $0x18] sm:$0xff]
    %v2074 = vld [vmem:[%s33 + $0x20] sm:$0xff]
    %v2075 = vld [vmem:[%s33 + $0x28] sm:$0xff]
    %v2076 = vld [vmem:[%s33 + $0x30] sm:$0xff]
    %v2077 = vld [vmem:[%s33 + $0x38] sm:$0xff]
    %v2078 = vld [vmem:[%s33 + $0x40] sm:$0xff]
    %v2079 = vld [vmem:[%s33 + $0x48] sm:$0xff]
    %v2080 = vld [vmem:[%s33 + $0x50] sm:$0xff]
    %v2081 = vld [vmem:[%s33 + $0x58] sm:$0xff]
    %v2082 = vld [vmem:[%s33 + $0x60] sm:$0xff]
    %v2083 = vld [vmem:[%s33 + $0x68] sm:$0xff]
    %v2084 = vld [vmem:[%s33 + $0x70] sm:$0xff]
    %v2085 = vld [vmem:[%s33 + $0x78] sm:$0xff]
    %v2086 = vld [vmem:[%s35] sm:$0x1]
    %v2088 = vlaneseq
    %v2089 = vshrl.u32 %v2088, 7
    %v2090 = vsub.s32 0, %v2089
    %v2091 = vrot.slane %v2086, %v2090
    %2093 = vmatprep.subr.mxu0 0.0
    %2094 = vmatpush1.msra.mxu0 %v2070
    %2095 = vmatprep.subr.mxu0 0.0
    %2096 = vmatpush1.msra.mxu0 %v2071
    %2097 = vmatprep.subr.mxu0 0.0
    %2098 = vmatpush1.msra.mxu0 %v2072
    %2099 = vmatprep.subr.mxu0 0.0
    %2100 = vmatpush1.msra.mxu0 %v2073
    %2101 = vmatprep.subr.mxu0 0.0
    %2102 = vmatpush1.msra.mxu0 %v2074
    %2103 = vmatprep.subr.mxu0 0.0
    %2104 = vmatpush1.msra.mxu0 %v2075
    %2105 = vmatprep.subr.mxu0 0.0
    %2106 = vmatpush1.msra.mxu0 %v2076
    %2107 = vmatprep.subr.mxu0 0.0
    %2108 = vmatpush1.msra.mxu0 %v2077
    %2109 = vmatprep.subr.mxu0 0.0
    %2110 = vmatpush1.msra.mxu0 %v2078
    %2111 = vmatprep.subr.mxu0 0.0
    %2112 = vmatpush1.msra.mxu0 %v2079
    %2113 = vmatprep.subr.mxu0 0.0
    %2114 = vmatpush1.msra.mxu0 %v2080
    %2115 = vmatprep.subr.mxu0 0.0
    %2116 = vmatpush1.msra.mxu0 %v2081
    %2117 = vmatprep.subr.mxu0 0.0
    %2118 = vmatpush1.msra.mxu0 %v2082
    %2119 = vmatprep.subr.mxu0 0.0
    %2120 = vmatpush1.msra.mxu0 %v2083
    %2121 = vmatprep.subr.mxu0 0.0
    %2122 = vmatpush1.msra.mxu0 %v2084
    %2123 = vmatprep.subr.mxu0 0.0
    %2124 = vmatpush1.msra.mxu0 %v2085
    %2125 = vmatprep.subr.mxu0 0.0
    %2126 = vmatpush1.msra.mxu0 0.0
    %2127 = vmatprep.subr.mxu0 0.0
    %2128 = vmatpush1.msra.mxu0 0.0
    %2129 = vmatprep.subr.mxu0 0.0
    %2130 = vmatpush1.msra.mxu0 0.0
    %2131 = vmatprep.subr.mxu0 0.0
    %2132 = vmatpush1.msra.mxu0 0.0
    %2133 = vmatprep.subr.mxu0 0.0
    %2134 = vmatpush1.msra.mxu0 0.0
    %2135 = vmatprep.subr.mxu0 0.0
    %2136 = vmatpush1.msra.mxu0 0.0
    %2137 = vmatprep.subr.mxu0 0.0
    %2138 = vmatpush1.msra.mxu0 0.0
    %2139 = vmatprep.subr.mxu0 0.0
    %2140 = vmatpush1.msra.mxu0 0.0
    %2141 = vmatprep.subr.mxu0 0.0
    %2142 = vmatpush1.msra.mxu0 0.0
    %2143 = vmatprep.subr.mxu0 0.0
    %2144 = vmatpush1.msra.mxu0 0.0
    %2145 = vmatprep.subr.mxu0 0.0
    %2146 = vmatpush1.msra.mxu0 0.0
    %2147 = vmatprep.subr.mxu0 0.0
    %2148 = vmatpush1.msra.mxu0 0.0
    %2149 = vmatprep.subr.mxu0 0.0
    %2150 = vmatpush1.msra.mxu0 0.0
    %2151 = vmatprep.subr.mxu0 0.0
    %2152 = vmatpush1.msra.mxu0 0.0
    %2153 = vmatprep.subr.mxu0 0.0
    %2154 = vmatpush1.msra.mxu0 0.0
    %2155 = vmatprep.subr.mxu0 0.0
    %2156 = vmatpush1.msra.mxu0 0.0
    %2157 = vmatprep.mubr.f32.mxu0 0.0
    %2158 = vmatmul.mubr.f32.gmra.mrb[0].mxu0 %v2068
    %v2159 = vpop.f32.mrb[0].mxu0
    %v2160 = vadd.f32 %v2091, %v2159
    %v2161 = vpop.f32.mrb[0].mxu0
    %2162 = vmatprep.mubr.f32.mxu0 0.0
    %2163 = vmatmul.mubr.f32.gmra.mrb[0].mxu0 %v2069
    %v2164 = vpop.f32.mrb[0].mxu0
    %v2165 = vadd.f32 %v2091, %v2164
    %v2166 = vpop.f32.mrb[0].mxu0
    %2167 = vdwg.mxu0
    %v2168 = vadd.f32 %v1916, %v2160
    %v2169 = vadd.f32 %v1917, %v2165
    %s2170 = scalar_lea.vmem %s13, 1
    %v2171 = vld [vmem:[%s2170] sm:$0x1]
    %s2172 = scalar_lea.vmem %s15, 1
    %v2173 = vld [vmem:[%s2172] sm:$0x1]
    %v2174 = vsel %vm285, %v2168, 0.0
    %2175 = vadd.xlane.f32.xlu0 %v2174
    %v2176 = vpop.xlane.xlu0 %2175
    %v2177 = vsel %vm285, %v2169, 0.0
    %2178 = vadd.xlane.f32.xlu0 %v2177
    %v2179 = vpop.xlane.xlu0 %2178
    %v2180 = vmul.f32 %v2176, %v292
    %v2181 = vmul.f32 %v2179, %v292
    %v2182 = vsub.f32 %v2168, %v2180
    %v2183 = vsub.f32 %v2169, %v2181
    %v2184 = vmul.f32 %v2182, %v2182
    %v2185 = vmul.f32 %v2183, %v2183
    %v2186 = vsel %vm285, %v2184, 0.0
    %2187 = vadd.xlane.f32.xlu0 %v2186
    %v2188 = vpop.xlane.xlu0 %2187
    %v2189 = vsel %vm285, %v2185, 0.0
    %2190 = vadd.xlane.f32.xlu0 %v2189
    %v2191 = vpop.xlane.xlu0 %2190
    %v2192 = vmul.f32 %v2188, %v292
    %v2193 = vmul.f32 %v2191, %v292
    %v2194 = vadd.f32 %v2192, 1e-05
    %v2195 = vadd.f32 %v2193, 1e-05
    %v2196 = vrsqrt.pop %v2194
    %v2197 = vrsqrt.pop %v2195
    %v2198 = vmul.f32 %v2182, %v2196
    %v2199 = vmul.f32 %v2183, %v2197
    %v2201 = vlaneseq
    %v2202 = vshrl.u32 %v2201, 7
    %v2203 = vsub.s32 0, %v2202
    %v2204 = vrot.slane %v2171, %v2203
    %v2206 = vmul.f32 %v2198, %v2204
    %v2207 = vmul.f32 %v2199, %v2204
    %v2209 = vlaneseq
    %v2210 = vshrl.u32 %v2209, 7
    %v2211 = vsub.s32 0, %v2210
    %v2212 = vrot.slane %v2173, %v2211
    %v2214 = vadd.f32 %v2206, %v2212
    %v2215 = vadd.f32 %v2207, %v2212
    %s2216 = scalar_lea.vmem %s17, 32
    %v2217 = vld [vmem:[%s2216] sm:$0xff]
    %v2218 = vld [vmem:[%s2216 + $0x8] sm:$0xff]
    %v2219 = vld [vmem:[%s2216 + $0x10] sm:$0xff]
    %v2220 = vld [vmem:[%s2216 + $0x18] sm:$0xff]
    %s2221 = scalar_lea.vmem %s19, 1
    %v2222 = vld [vmem:[%s2221] sm:$0x1]
    %s2223 = scalar_lea.vmem %s21, 32
    %v2224 = vld [vmem:[%s2223] sm:$0xff]
    %v2225 = vld [vmem:[%s2223 + $0x8] sm:$0xff]
    %v2226 = vld [vmem:[%s2223 + $0x10] sm:$0xff]
    %v2227 = vld [vmem:[%s2223 + $0x18] sm:$0xff]
    %s2228 = scalar_lea.vmem %s23, 1
    %v2229 = vld [vmem:[%s2228] sm:$0x1]
    %v2231 = vlaneseq
    %v2232 = vshrl.u32 %v2231, 7
    %v2233 = vsub.s32 0, %v2232
    %v2234 = vrot.slane %v2222, %v2233
    %v2237 = vsel %vm285, %v2214, 0
    %v2240 = vsel %vm285, %v2215, 0
    %2242 = vmatprep.subr.mxu0 0.0
    %2243 = vmatpush1.msra.mxu0 %v2217
    %2244 = vmatprep.subr.mxu0 0.0
    %2245 = vmatpush1.msra.mxu0 %v2218
    %2246 = vmatprep.subr.mxu0 0.0
    %2247 = vmatpush1.msra.mxu0 %v2219
    %2248 = vmatprep.subr.mxu0 0.0
    %2249 = vmatpush1.msra.mxu0 %v2220
    %2250 = vmatprep.subr.mxu0 0.0
    %2251 = vmatpush1.msra.mxu0 0.0
    %2252 = vmatprep.subr.mxu0 0.0
    %2253 = vmatpush1.msra.mxu0 0.0
    %2254 = vmatprep.subr.mxu0 0.0
    %2255 = vmatpush1.msra.mxu0 0.0
    %2256 = vmatprep.subr.mxu0 0.0
    %2257 = vmatpush1.msra.mxu0 0.0
    %2258 = vmatprep.subr.mxu0 0.0
    %2259 = vmatpush1.msra.mxu0 0.0
    %2260 = vmatprep.subr.mxu0 0.0
    %2261 = vmatpush1.msra.mxu0 0.0
    %2262 = vmatprep.subr.mxu0 0.0
    %2263 = vmatpush1.msra.mxu0 0.0
    %2264 = vmatprep.subr.mxu0 0.0
    %2265 = vmatpush1.msra.mxu0 0.0
    %2266 = vmatprep.subr.mxu0 0.0
    %2267 = vmatpush1.msra.mxu0 0.0
    %2268 = vmatprep.subr.mxu0 0.0
    %2269 = vmatpush1.msra.mxu0 0.0
    %2270 = vmatprep.subr.mxu0 0.0
    %2271 = vmatpush1.msra.mxu0 0.0
    %2272 = vmatprep.subr.mxu0 0.0
    %2273 = vmatpush1.msra.mxu0 0.0
    %2274 = vmatprep.subr.mxu0 0.0
    %2275 = vmatpush1.msra.mxu0 0.0
    %2276 = vmatprep.subr.mxu0 0.0
    %2277 = vmatpush1.msra.mxu0 0.0
    %2278 = vmatprep.subr.mxu0 0.0
    %2279 = vmatpush1.msra.mxu0 0.0
    %2280 = vmatprep.subr.mxu0 0.0
    %2281 = vmatpush1.msra.mxu0 0.0
    %2282 = vmatprep.subr.mxu0 0.0
    %2283 = vmatpush1.msra.mxu0 0.0
    %2284 = vmatprep.subr.mxu0 0.0
    %2285 = vmatpush1.msra.mxu0 0.0
    %2286 = vmatprep.subr.mxu0 0.0
    %2287 = vmatpush1.msra.mxu0 0.0
    %2288 = vmatprep.subr.mxu0 0.0
    %2289 = vmatpush1.msra.mxu0 0.0
    %2290 = vmatprep.subr.mxu0 0.0
    %2291 = vmatpush1.msra.mxu0 0.0
    %2292 = vmatprep.subr.mxu0 0.0
    %2293 = vmatpush1.msra.mxu0 0.0
    %2294 = vmatprep.subr.mxu0 0.0
    %2295 = vmatpush1.msra.mxu0 0.0
    %2296 = vmatprep.subr.mxu0 0.0
    %2297 = vmatpush1.msra.mxu0 0.0
    %2298 = vmatprep.subr.mxu0 0.0
    %2299 = vmatpush1.msra.mxu0 0.0
    %2300 = vmatprep.subr.mxu0 0.0
    %2301 = vmatpush1.msra.mxu0 0.0
    %2302 = vmatprep.subr.mxu0 0.0
    %2303 = vmatpush1.msra.mxu0 0.0
    %2304 = vmatprep.subr.mxu0 0.0
    %2305 = vmatpush1.msra.mxu0 0.0
    %2306 = vmatprep.mubr.f32.mxu0 0.0
    %2307 = vmatmul.mubr.f32.gmra.mrb[0].mxu0 %v2237
    %v2308 = vpop.f32.mrb[0].mxu0
    %v2309 = vadd.f32 %v2234, %v2308
    %v2310 = vpop.f32.mrb[0].mxu0
    %2311 = vmatprep.mubr.f32.mxu0 0.0
    %2312 = vmatmul.mubr.f32.gmra.mrb[0].mxu0 %v2240
    %v2313 = vpop.f32.mrb[0].mxu0
    %v2314 = vadd.f32 %v2234, %v2313
    %v2315 = vpop.f32.mrb[0].mxu0
    %2316 = vdwg.mxu0
    %v2317 = vmul.f32 %v2309, 0.35355338
    %v2318 = vmul.f32 %v2314, 0.35355338
    %2320 = vrot.lane.b32.xlu0 %v2309, 96
    %v2321 = vpop.permute.xlu0 %2320
    %v2323 = vsel %vm479, %v2317, 0
    %v2325 = vsel %vm479, %v2321, 0
    %2327 = vmatprep.subr.mxu0 0.0
    %2328 = vmatpush1.xpose.msra.mxu0 %v2325
    %2329 = vmatprep.subr.mxu0 0.0
    %2330 = vmatpush1.xpose.msra.mxu0 0.0
    %2331 = vmatprep.subr.mxu0 0.0
    %2332 = vmatpush1.xpose.msra.mxu0 0.0
    %2333 = vmatprep.subr.mxu0 0.0
    %2334 = vmatpush1.xpose.msra.mxu0 0.0
    %2335 = vmatprep.subr.mxu0 0.0
    %2336 = vmatpush1.xpose.msra.mxu0 0.0
    %2337 = vmatprep.subr.mxu0 0.0
    %2338 = vmatpush1.xpose.msra.mxu0 0.0
    %2339 = vmatprep.subr.mxu0 0.0
    %2340 = vmatpush1.xpose.msra.mxu0 0.0
    %2341 = vmatprep.subr.mxu0 0.0
    %2342 = vmatpush1.xpose.msra.mxu0 0.0
    %2343 = vmatprep.subr.mxu0 0.0
    %2344 = vmatpush1.xpose.msra.mxu0 0.0
    %2345 = vmatprep.subr.mxu0 0.0
    %2346 = vmatpush1.xpose.msra.mxu0 0.0
    %2347 = vmatprep.subr.mxu0 0.0
    %2348 = vmatpush1.xpose.msra.mxu0 0.0
    %2349 = vmatprep.subr.mxu0 0.0
    %2350 = vmatpush1.xpose.msra.mxu0 0.0
    %2351 = vmatprep.subr.mxu0 0.0
    %2352 = vmatpush1.xpose.msra.mxu0 0.0
    %2353 = vmatprep.subr.mxu0 0.0
    %2354 = vmatpush1.xpose.msra.mxu0 0.0
    %2355 = vmatprep.subr.mxu0 0.0
    %2356 = vmatpush1.xpose.msra.mxu0 0.0
    %2357 = vmatprep.subr.mxu0 0.0
    %2358 = vmatpush1.xpose.msra.mxu0 0.0
    %2359 = vmatprep.subr.mxu0 0.0
    %2360 = vmatpush1.xpose.msra.mxu0 0.0
    %2361 = vmatprep.subr.mxu0 0.0
    %2362 = vmatpush1.xpose.msra.mxu0 0.0
    %2363 = vmatprep.subr.mxu0 0.0
    %2364 = vmatpush1.xpose.msra.mxu0 0.0
    %2365 = vmatprep.subr.mxu0 0.0
    %2366 = vmatpush1.xpose.msra.mxu0 0.0
    %2367 = vmatprep.subr.mxu0 0.0
    %2368 = vmatpush1.xpose.msra.mxu0 0.0
    %2369 = vmatprep.subr.mxu0 0.0
    %2370 = vmatpush1.xpose.msra.mxu0 0.0
    %2371 = vmatprep.subr.mxu0 0.0
    %2372 = vmatpush1.xpose.msra.mxu0 0.0
    %2373 = vmatprep.subr.mxu0 0.0
    %2374 = vmatpush1.xpose.msra.mxu0 0.0
    %2375 = vmatprep.subr.mxu0 0.0
    %2376 = vmatpush1.xpose.msra.mxu0 0.0
    %2377 = vmatprep.subr.mxu0 0.0
    %2378 = vmatpush1.xpose.msra.mxu0 0.0
    %2379 = vmatprep.subr.mxu0 0.0
    %2380 = vmatpush1.xpose.msra.mxu0 0.0
    %2381 = vmatprep.subr.mxu0 0.0
    %2382 = vmatpush1.xpose.msra.mxu0 0.0
    %2383 = vmatprep.subr.mxu0 0.0
    %2384 = vmatpush1.xpose.msra.mxu0 0.0
    %2385 = vmatprep.subr.mxu0 0.0
    %2386 = vmatpush1.xpose.msra.mxu0 0.0
    %2387 = vmatprep.subr.mxu0 0.0
    %2388 = vmatpush1.xpose.msra.mxu0 0.0
    %2389 = vmatprep.subr.mxu0 0.0
    %2390 = vmatpush1.xpose.msra.mxu0 0.0
    %2391 = vmatprep.mubr.f32.mxu0 0.0
    %2392 = vmatmul.mubr.f32.gmra.mrb[0].mxu0 %v2323
    %v2393 = vpop.f32.mrb[0].mxu0
    %v2394 = vadd.f32 %v332, %v2393
    %v2395 = vpop.f32.mrb[0].mxu0
    %2396 = vdwg.mxu0
    %2398 = vrot.lane.b32.xlu0 %v2314, 96
    %v2399 = vpop.permute.xlu0 %2398
    %v2401 = vsel %vm479, %v2318, 0
    %v2403 = vsel %vm479, %v2399, 0
    %2405 = vmatprep.subr.mxu0 0.0
    %2406 = vmatpush1.xpose.msra.mxu0 %v2403
    %2407 = vmatprep.subr.mxu0 0.0
    %2408 = vmatpush1.xpose.msra.mxu0 0.0
    %2409 = vmatprep.subr.mxu0 0.0
    %2410 = vmatpush1.xpose.msra.mxu0 0.0
    %2411 = vmatprep.subr.mxu0 0.0
    %2412 = vmatpush1.xpose.msra.mxu0 0.0
    %2413 = vmatprep.subr.mxu0 0.0
    %2414 = vmatpush1.xpose.msra.mxu0 0.0
    %2415 = vmatprep.subr.mxu0 0.0
    %2416 = vmatpush1.xpose.msra.mxu0 0.0
    %2417 = vmatprep.subr.mxu0 0.0
    %2418 = vmatpush1.xpose.msra.mxu0 0.0
    %2419 = vmatprep.subr.mxu0 0.0
    %2420 = vmatpush1.xpose.msra.mxu0 0.0
    %2421 = vmatprep.subr.mxu0 0.0
    %2422 = vmatpush1.xpose.msra.mxu0 0.0
    %2423 = vmatprep.subr.mxu0 0.0
    %2424 = vmatpush1.xpose.msra.mxu0 0.0
    %2425 = vmatprep.subr.mxu0 0.0
    %2426 = vmatpush1.xpose.msra.mxu0 0.0
    %2427 = vmatprep.subr.mxu0 0.0
    %2428 = vmatpush1.xpose.msra.mxu0 0.0
    %2429 = vmatprep.subr.mxu0 0.0
    %2430 = vmatpush1.xpose.msra.mxu0 0.0
    %2431 = vmatprep.subr.mxu0 0.0
    %2432 = vmatpush1.xpose.msra.mxu0 0.0
    %2433 = vmatprep.subr.mxu0 0.0
    %2434 = vmatpush1.xpose.msra.mxu0 0.0
    %2435 = vmatprep.subr.mxu0 0.0
    %2436 = vmatpush1.xpose.msra.mxu0 0.0
    %2437 = vmatprep.subr.mxu0 0.0
    %2438 = vmatpush1.xpose.msra.mxu0 0.0
    %2439 = vmatprep.subr.mxu0 0.0
    %2440 = vmatpush1.xpose.msra.mxu0 0.0
    %2441 = vmatprep.subr.mxu0 0.0
    %2442 = vmatpush1.xpose.msra.mxu0 0.0
    %2443 = vmatprep.subr.mxu0 0.0
    %2444 = vmatpush1.xpose.msra.mxu0 0.0
    %2445 = vmatprep.subr.mxu0 0.0
    %2446 = vmatpush1.xpose.msra.mxu0 0.0
    %2447 = vmatprep.subr.mxu0 0.0
    %2448 = vmatpush1.xpose.msra.mxu0 0.0
    %2449 = vmatprep.subr.mxu0 0.0
    %2450 = vmatpush1.xpose.msra.mxu0 0.0
    %2451 = vmatprep.subr.mxu0 0.0
    %2452 = vmatpush1.xpose.msra.mxu0 0.0
    %2453 = vmatprep.subr.mxu0 0.0
    %2454 = vmatpush1.xpose.msra.mxu0 0.0
    %2455 = vmatprep.subr.mxu0 0.0
    %2456 = vmatpush1.xpose.msra.mxu0 0.0
    %2457 = vmatprep.subr.mxu0 0.0
    %2458 = vmatpush1.xpose.msra.mxu0 0.0
    %2459 = vmatprep.subr.mxu0 0.0
    %2460 = vmatpush1.xpose.msra.mxu0 0.0
    %2461 = vmatprep.subr.mxu0 0.0
    %2462 = vmatpush1.xpose.msra.mxu0 0.0
    %2463 = vmatprep.subr.mxu0 0.0
    %2464 = vmatpush1.xpose.msra.mxu0 0.0
    %2465 = vmatprep.subr.mxu0 0.0
    %2466 = vmatpush1.xpose.msra.mxu0 0.0
    %2467 = vmatprep.subr.mxu0 0.0
    %2468 = vmatpush1.xpose.msra.mxu0 0.0
    %2469 = vmatprep.mubr.f32.mxu0 0.0
    %2470 = vmatmul.mubr.f32.gmra.mrb[0].mxu0 %v2401
    %v2471 = vpop.f32.mrb[0].mxu0
    %v2472 = vadd.f32 %v332, %v2471
    %v2473 = vpop.f32.mrb[0].mxu0
    %2474 = vdwg.mxu0
    %v2475 = vsel %vm479, %v2394, -inf
    %2476 = vmax.xlane.f32.xlu0 %v2475
    %v2477 = vpop.xlane.xlu0 %2476
    %v2478 = vsel %vm479, %v2472, -inf
    %2479 = vmax.xlane.f32.xlu0 %v2478
    %v2480 = vpop.xlane.xlu0 %2479
    %v2481 = vsub.f32 %v2394, %v2477
    %v2482 = vsub.f32 %v2472, %v2480
    %v2483 = vmul.f32 %v2481, 1.442695
    %v2484 = vpow.pop %v2483
    %v2485 = vmul.f32 %v2482, 1.442695
    %v2486 = vpow.pop %v2485
    %v2487 = vsel %vm479, %v2484, 0.0
    %2488 = vadd.xlane.f32.xlu0 %v2487
    %v2489 = vpop.xlane.xlu0 %2488
    %v2490 = vsel %vm479, %v2486, 0.0
    %2491 = vadd.xlane.f32.xlu0 %v2490
    %v2492 = vpop.xlane.xlu0 %2491
    %v2493 = vrcp.pop %v2489
    %v2494 = vrcp.pop %v2492
    %v2495 = vmul.f32 %v2484, %v2493
    %v2496 = vmul.f32 %v2486, %v2494
    %2497 = vrot.lane.b32.xlu0 %v2309, 64
    %v2498 = vpop.permute.xlu0 %2497
    %v2501 = vsel %vm479, %v2495, 0
    %2503 = vmatprep.subr.mxu0 0.0
    %2504 = vmatpush1.msra.mxu0 %v2498
    %2505 = vmatprep.subr.mxu0 0.0
    %2506 = vmatpush1.msra.mxu0 0.0
    %2507 = vmatprep.subr.mxu0 0.0
    %2508 = vmatpush1.msra.mxu0 0.0
    %2509 = vmatprep.subr.mxu0 0.0
    %2510 = vmatpush1.msra.mxu0 0.0
    %2511 = vmatprep.subr.mxu0 0.0
    %2512 = vmatpush1.msra.mxu0 0.0
    %2513 = vmatprep.subr.mxu0 0.0
    %2514 = vmatpush1.msra.mxu0 0.0
    %2515 = vmatprep.subr.mxu0 0.0
    %2516 = vmatpush1.msra.mxu0 0.0
    %2517 = vmatprep.subr.mxu0 0.0
    %2518 = vmatpush1.msra.mxu0 0.0
    %2519 = vmatprep.subr.mxu0 0.0
    %2520 = vmatpush1.msra.mxu0 0.0
    %2521 = vmatprep.subr.mxu0 0.0
    %2522 = vmatpush1.msra.mxu0 0.0
    %2523 = vmatprep.subr.mxu0 0.0
    %2524 = vmatpush1.msra.mxu0 0.0
    %2525 = vmatprep.subr.mxu0 0.0
    %2526 = vmatpush1.msra.mxu0 0.0
    %2527 = vmatprep.subr.mxu0 0.0
    %2528 = vmatpush1.msra.mxu0 0.0
    %2529 = vmatprep.subr.mxu0 0.0
    %2530 = vmatpush1.msra.mxu0 0.0
    %2531 = vmatprep.subr.mxu0 0.0
    %2532 = vmatpush1.msra.mxu0 0.0
    %2533 = vmatprep.subr.mxu0 0.0
    %2534 = vmatpush1.msra.mxu0 0.0
    %2535 = vmatprep.subr.mxu0 0.0
    %2536 = vmatpush1.msra.mxu0 0.0
    %2537 = vmatprep.subr.mxu0 0.0
    %2538 = vmatpush1.msra.mxu0 0.0
    %2539 = vmatprep.subr.mxu0 0.0
    %2540 = vmatpush1.msra.mxu0 0.0
    %2541 = vmatprep.subr.mxu0 0.0
    %2542 = vmatpush1.msra.mxu0 0.0
    %2543 = vmatprep.subr.mxu0 0.0
    %2544 = vmatpush1.msra.mxu0 0.0
    %2545 = vmatprep.subr.mxu0 0.0
    %2546 = vmatpush1.msra.mxu0 0.0
    %2547 = vmatprep.subr.mxu0 0.0
    %2548 = vmatpush1.msra.mxu0 0.0
    %2549 = vmatprep.subr.mxu0 0.0
    %2550 = vmatpush1.msra.mxu0 0.0
    %2551 = vmatprep.subr.mxu0 0.0
    %2552 = vmatpush1.msra.mxu0 0.0
    %2553 = vmatprep.subr.mxu0 0.0
    %2554 = vmatpush1.msra.mxu0 0.0
    %2555 = vmatprep.subr.mxu0 0.0
    %2556 = vmatpush1.msra.mxu0 0.0
    %2557 = vmatprep.subr.mxu0 0.0
    %2558 = vmatpush1.msra.mxu0 0.0
    %2559 = vmatprep.subr.mxu0 0.0
    %2560 = vmatpush1.msra.mxu0 0.0
    %2561 = vmatprep.subr.mxu0 0.0
    %2562 = vmatpush1.msra.mxu0 0.0
    %2563 = vmatprep.subr.mxu0 0.0
    %2564 = vmatpush1.msra.mxu0 0.0
    %2565 = vmatprep.subr.mxu0 0.0
    %2566 = vmatpush1.msra.mxu0 0.0
    %2567 = vmatprep.mubr.f32.mxu0 0.0
    %2568 = vmatmul.mubr.f32.gmra.mrb[0].mxu0 %v2501
    %v2569 = vpop.f32.mrb[0].mxu0
    %v2570 = vadd.f32 0.0, %v2569
    %v2571 = vpop.f32.mrb[0].mxu0
    %2572 = vdwg.mxu0
    %2573 = vrot.lane.b32.xlu0 %v2314, 64
    %v2574 = vpop.permute.xlu0 %2573
    %v2577 = vsel %vm479, %v2496, 0
    %2579 = vmatprep.subr.mxu0 0.0
    %2580 = vmatpush1.msra.mxu0 %v2574
    %2581 = vmatprep.subr.mxu0 0.0
    %2582 = vmatpush1.msra.mxu0 0.0
    %2583 = vmatprep.subr.mxu0 0.0
    %2584 = vmatpush1.msra.mxu0 0.0
    %2585 = vmatprep.subr.mxu0 0.0
    %2586 = vmatpush1.msra.mxu0 0.0
    %2587 = vmatprep.subr.mxu0 0.0
    %2588 = vmatpush1.msra.mxu0 0.0
    %2589 = vmatprep.subr.mxu0 0.0
    %2590 = vmatpush1.msra.mxu0 0.0
    %2591 = vmatprep.subr.mxu0 0.0
    %2592 = vmatpush1.msra.mxu0 0.0
    %2593 = vmatprep.subr.mxu0 0.0
    %2594 = vmatpush1.msra.mxu0 0.0
    %2595 = vmatprep.subr.mxu0 0.0
    %2596 = vmatpush1.msra.mxu0 0.0
    %2597 = vmatprep.subr.mxu0 0.0
    %2598 = vmatpush1.msra.mxu0 0.0
    %2599 = vmatprep.subr.mxu0 0.0
    %2600 = vmatpush1.msra.mxu0 0.0
    %2601 = vmatprep.subr.mxu0 0.0
    %2602 = vmatpush1.msra.mxu0 0.0
    %2603 = vmatprep.subr.mxu0 0.0
    %2604 = vmatpush1.msra.mxu0 0.0
    %2605 = vmatprep.subr.mxu0 0.0
    %2606 = vmatpush1.msra.mxu0 0.0
    %2607 = vmatprep.subr.mxu0 0.0
    %2608 = vmatpush1.msra.mxu0 0.0
    %2609 = vmatprep.subr.mxu0 0.0
    %2610 = vmatpush1.msra.mxu0 0.0
    %2611 = vmatprep.subr.mxu0 0.0
    %2612 = vmatpush1.msra.mxu0 0.0
    %2613 = vmatprep.subr.mxu0 0.0
    %2614 = vmatpush1.msra.mxu0 0.0
    %2615 = vmatprep.subr.mxu0 0.0
    %2616 = vmatpush1.msra.mxu0 0.0
    %2617 = vmatprep.subr.mxu0 0.0
    %2618 = vmatpush1.msra.mxu0 0.0
    %2619 = vmatprep.subr.mxu0 0.0
    %2620 = vmatpush1.msra.mxu0 0.0
    %2621 = vmatprep.subr.mxu0 0.0
    %2622 = vmatpush1.msra.mxu0 0.0
    %2623 = vmatprep.subr.mxu0 0.0
    %2624 = vmatpush1.msra.mxu0 0.0
    %2625 = vmatprep.subr.mxu0 0.0
    %2626 = vmatpush1.msra.mxu0 0.0
    %2627 = vmatprep.subr.mxu0 0.0
    %2628 = vmatpush1.msra.mxu0 0.0
    %2629 = vmatprep.subr.mxu0 0.0
    %2630 = vmatpush1.msra.mxu0 0.0
    %2631 = vmatprep.subr.mxu0 0.0
    %2632 = vmatpush1.msra.mxu0 0.0
    %2633 = vmatprep.subr.mxu0 0.0
    %2634 = vmatpush1.msra.mxu0 0.0
    %2635 = vmatprep.subr.mxu0 0.0
    %2636 = vmatpush1.msra.mxu0 0.0
    %2637 = vmatprep.subr.mxu0 0.0
    %2638 = vmatpush1.msra.mxu0 0.0
    %2639 = vmatprep.subr.mxu0 0.0
    %2640 = vmatpush1.msra.mxu0 0.0
    %2641 = vmatprep.subr.mxu0 0.0
    %2642 = vmatpush1.msra.mxu0 0.0
    %2643 = vmatprep.mubr.f32.mxu0 0.0
    %2644 = vmatmul.mubr.f32.gmra.mrb[0].mxu0 %v2577
    %v2645 = vpop.f32.mrb[0].mxu0
    %v2646 = vadd.f32 0.0, %v2645
    %v2647 = vpop.f32.mrb[0].mxu0
    %2648 = vdwg.mxu0
    %2649 = vrot.lane.b32.xlu0 %v2317, 120
    %v2650 = vpop.permute.xlu0 %2649
    %2651 = vrot.lane.b32.xlu0 %v2309, 88
    %v2652 = vpop.permute.xlu0 %2651
    %v2653 = vsel %vm479, %v2650, 0
    %v2655 = vsel %vm479, %v2652, 0
    %2657 = vmatprep.subr.mxu0 0.0
    %2658 = vmatpush1.xpose.msra.mxu0 %v2655
    %2659 = vmatprep.subr.mxu0 0.0
    %2660 = vmatpush1.xpose.msra.mxu0 0.0
    %2661 = vmatprep.subr.mxu0 0.0
    %2662 = vmatpush1.xpose.msra.mxu0 0.0
    %2663 = vmatprep.subr.mxu0 0.0
    %2664 = vmatpush1.xpose.msra.mxu0 0.0
    %2665 = vmatprep.subr.mxu0 0.0
    %2666 = vmatpush1.xpose.msra.mxu0 0.0
    %2667 = vmatprep.subr.mxu0 0.0
    %2668 = vmatpush1.xpose.msra.mxu0 0.0
    %2669 = vmatprep.subr.mxu0 0.0
    %2670 = vmatpush1.xpose.msra.mxu0 0.0
    %2671 = vmatprep.subr.mxu0 0.0
    %2672 = vmatpush1.xpose.msra.mxu0 0.0
    %2673 = vmatprep.subr.mxu0 0.0
    %2674 = vmatpush1.xpose.msra.mxu0 0.0
    %2675 = vmatprep.subr.mxu0 0.0
    %2676 = vmatpush1.xpose.msra.mxu0 0.0
    %2677 = vmatprep.subr.mxu0 0.0
    %2678 = vmatpush1.xpose.msra.mxu0 0.0
    %2679 = vmatprep.subr.mxu0 0.0
    %2680 = vmatpush1.xpose.msra.mxu0 0.0
    %2681 = vmatprep.subr.mxu0 0.0
    %2682 = vmatpush1.xpose.msra.mxu0 0.0
    %2683 = vmatprep.subr.mxu0 0.0
    %2684 = vmatpush1.xpose.msra.mxu0 0.0
    %2685 = vmatprep.subr.mxu0 0.0
    %2686 = vmatpush1.xpose.msra.mxu0 0.0
    %2687 = vmatprep.subr.mxu0 0.0
    %2688 = vmatpush1.xpose.msra.mxu0 0.0
    %2689 = vmatprep.subr.mxu0 0.0
    %2690 = vmatpush1.xpose.msra.mxu0 0.0
    %2691 = vmatprep.subr.mxu0 0.0
    %2692 = vmatpush1.xpose.msra.mxu0 0.0
    %2693 = vmatprep.subr.mxu0 0.0
    %2694 = vmatpush1.xpose.msra.mxu0 0.0
    %2695 = vmatprep.subr.mxu0 0.0
    %2696 = vmatpush1.xpose.msra.mxu0 0.0
    %2697 = vmatprep.subr.mxu0 0.0
    %2698 = vmatpush1.xpose.msra.mxu0 0.0
    %2699 = vmatprep.subr.mxu0 0.0
    %2700 = vmatpush1.xpose.msra.mxu0 0.0
    %2701 = vmatprep.subr.mxu0 0.0
    %2702 = vmatpush1.xpose.msra.mxu0 0.0
    %2703 = vmatprep.subr.mxu0 0.0
    %2704 = vmatpush1.xpose.msra.mxu0 0.0
    %2705 = vmatprep.subr.mxu0 0.0
    %2706 = vmatpush1.xpose.msra.mxu0 0.0
    %2707 = vmatprep.subr.mxu0 0.0
    %2708 = vmatpush1.xpose.msra.mxu0 0.0
    %2709 = vmatprep.subr.mxu0 0.0
    %2710 = vmatpush1.xpose.msra.mxu0 0.0
    %2711 = vmatprep.subr.mxu0 0.0
    %2712 = vmatpush1.xpose.msra.mxu0 0.0
    %2713 = vmatprep.subr.mxu0 0.0
    %2714 = vmatpush1.xpose.msra.mxu0 0.0
    %2715 = vmatprep.subr.mxu0 0.0
    %2716 = vmatpush1.xpose.msra.mxu0 0.0
    %2717 = vmatprep.subr.mxu0 0.0
    %2718 = vmatpush1.xpose.msra.mxu0 0.0
    %2719 = vmatprep.subr.mxu0 0.0
    %2720 = vmatpush1.xpose.msra.mxu0 0.0
    %2721 = vmatprep.mubr.f32.mxu0 0.0
    %2722 = vmatmul.mubr.f32.gmra.mrb[0].mxu0 %v2653
    %v2723 = vpop.f32.mrb[0].mxu0
    %v2724 = vadd.f32 %v332, %v2723
    %v2725 = vpop.f32.mrb[0].mxu0
    %2726 = vdwg.mxu0
    %2727 = vrot.lane.b32.xlu0 %v2318, 120
    %v2728 = vpop.permute.xlu0 %2727
    %2729 = vrot.lane.b32.xlu0 %v2314, 88
    %v2730 = vpop.permute.xlu0 %2729
    %v2731 = vsel %vm479, %v2728, 0
    %v2733 = vsel %vm479, %v2730, 0
    %2735 = vmatprep.subr.mxu0 0.0
    %2736 = vmatpush1.xpose.msra.mxu0 %v2733
    %2737 = vmatprep.subr.mxu0 0.0
    %2738 = vmatpush1.xpose.msra.mxu0 0.0
    %2739 = vmatprep.subr.mxu0 0.0
    %2740 = vmatpush1.xpose.msra.mxu0 0.0
    %2741 = vmatprep.subr.mxu0 0.0
    %2742 = vmatpush1.xpose.msra.mxu0 0.0
    %2743 = vmatprep.subr.mxu0 0.0
    %2744 = vmatpush1.xpose.msra.mxu0 0.0
    %2745 = vmatprep.subr.mxu0 0.0
    %2746 = vmatpush1.xpose.msra.mxu0 0.0
    %2747 = vmatprep.subr.mxu0 0.0
    %2748 = vmatpush1.xpose.msra.mxu0 0.0
    %2749 = vmatprep.subr.mxu0 0.0
    %2750 = vmatpush1.xpose.msra.mxu0 0.0
    %2751 = vmatprep.subr.mxu0 0.0
    %2752 = vmatpush1.xpose.msra.mxu0 0.0
    %2753 = vmatprep.subr.mxu0 0.0
    %2754 = vmatpush1.xpose.msra.mxu0 0.0
    %2755 = vmatprep.subr.mxu0 0.0
    %2756 = vmatpush1.xpose.msra.mxu0 0.0
    %2757 = vmatprep.subr.mxu0 0.0
    %2758 = vmatpush1.xpose.msra.mxu0 0.0
    %2759 = vmatprep.subr.mxu0 0.0
    %2760 = vmatpush1.xpose.msra.mxu0 0.0
    %2761 = vmatprep.subr.mxu0 0.0
    %2762 = vmatpush1.xpose.msra.mxu0 0.0
    %2763 = vmatprep.subr.mxu0 0.0
    %2764 = vmatpush1.xpose.msra.mxu0 0.0
    %2765 = vmatprep.subr.mxu0 0.0
    %2766 = vmatpush1.xpose.msra.mxu0 0.0
    %2767 = vmatprep.subr.mxu0 0.0
    %2768 = vmatpush1.xpose.msra.mxu0 0.0
    %2769 = vmatprep.subr.mxu0 0.0
    %2770 = vmatpush1.xpose.msra.mxu0 0.0
    %2771 = vmatprep.subr.mxu0 0.0
    %2772 = vmatpush1.xpose.msra.mxu0 0.0
    %2773 = vmatprep.subr.mxu0 0.0
    %2774 = vmatpush1.xpose.msra.mxu0 0.0
    %2775 = vmatprep.subr.mxu0 0.0
    %2776 = vmatpush1.xpose.msra.mxu0 0.0
    %2777 = vmatprep.subr.mxu0 0.0
    %2778 = vmatpush1.xpose.msra.mxu0 0.0
    %2779 = vmatprep.subr.mxu0 0.0
    %2780 = vmatpush1.xpose.msra.mxu0 0.0
    %2781 = vmatprep.subr.mxu0 0.0
    %2782 = vmatpush1.xpose.msra.mxu0 0.0
    %2783 = vmatprep.subr.mxu0 0.0
    %2784 = vmatpush1.xpose.msra.mxu0 0.0
    %2785 = vmatprep.subr.mxu0 0.0
    %2786 = vmatpush1.xpose.msra.mxu0 0.0
    %2787 = vmatprep.subr.mxu0 0.0
    %2788 = vmatpush1.xpose.msra.mxu0 0.0
    %2789 = vmatprep.subr.mxu0 0.0
    %2790 = vmatpush1.xpose.msra.mxu0 0.0
    %2791 = vmatprep.subr.mxu0 0.0
    %2792 = vmatpush1.xpose.msra.mxu0 0.0
    %2793 = vmatprep.subr.mxu0 0.0
    %2794 = vmatpush1.xpose.msra.mxu0 0.0
    %2795 = vmatprep.subr.mxu0 0.0
    %2796 = vmatpush1.xpose.msra.mxu0 0.0
    %2797 = vmatprep.subr.mxu0 0.0
    %2798 = vmatpush1.xpose.msra.mxu0 0.0
    %2799 = vmatprep.mubr.f32.mxu0 0.0
    %2800 = vmatmul.mubr.f32.gmra.mrb[0].mxu0 %v2731
    %v2801 = vpop.f32.mrb[0].mxu0
    %v2802 = vadd.f32 %v332, %v2801
    %v2803 = vpop.f32.mrb[0].mxu0
    %2804 = vdwg.mxu0
    %v2805 = vsel %vm479, %v2724, -inf
    %2806 = vmax.xlane.f32.xlu0 %v2805
    %v2807 = vpop.xlane.xlu0 %2806
    %v2808 = vsel %vm479, %v2802, -inf
    %2809 = vmax.xlane.f32.xlu0 %v2808
    %v2810 = vpop.xlane.xlu0 %2809
    %v2811 = vsub.f32 %v2724, %v2807
    %v2812 = vsub.f32 %v2802, %v2810
    %v2813 = vmul.f32 %v2811, 1.442695
    %v2814 = vpow.pop %v2813
    %v2815 = vmul.f32 %v2812, 1.442695
    %v2816 = vpow.pop %v2815
    %v2817 = vsel %vm479, %v2814, 0.0
    %2818 = vadd.xlane.f32.xlu0 %v2817
    %v2819 = vpop.xlane.xlu0 %2818
    %v2820 = vsel %vm479, %v2816, 0.0
    %2821 = vadd.xlane.f32.xlu0 %v2820
    %v2822 = vpop.xlane.xlu0 %2821
    %v2823 = vrcp.pop %v2819
    %v2824 = vrcp.pop %v2822
    %v2825 = vmul.f32 %v2814, %v2823
    %v2826 = vmul.f32 %v2816, %v2824
    %2827 = vrot.lane.b32.xlu0 %v2309, 56
    %v2828 = vpop.permute.xlu0 %2827
    %v2831 = vsel %vm479, %v2825, 0
    %2833 = vmatprep.subr.mxu0 0.0
    %2834 = vmatpush1.msra.mxu0 %v2828
    %2835 = vmatprep.subr.mxu0 0.0
    %2836 = vmatpush1.msra.mxu0 0.0
    %2837 = vmatprep.subr.mxu0 0.0
    %2838 = vmatpush1.msra.mxu0 0.0
    %2839 = vmatprep.subr.mxu0 0.0
    %2840 = vmatpush1.msra.mxu0 0.0
    %2841 = vmatprep.subr.mxu0 0.0
    %2842 = vmatpush1.msra.mxu0 0.0
    %2843 = vmatprep.subr.mxu0 0.0
    %2844 = vmatpush1.msra.mxu0 0.0
    %2845 = vmatprep.subr.mxu0 0.0
    %2846 = vmatpush1.msra.mxu0 0.0
    %2847 = vmatprep.subr.mxu0 0.0
    %2848 = vmatpush1.msra.mxu0 0.0
    %2849 = vmatprep.subr.mxu0 0.0
    %2850 = vmatpush1.msra.mxu0 0.0
    %2851 = vmatprep.subr.mxu0 0.0
    %2852 = vmatpush1.msra.mxu0 0.0
    %2853 = vmatprep.subr.mxu0 0.0
    %2854 = vmatpush1.msra.mxu0 0.0
    %2855 = vmatprep.subr.mxu0 0.0
    %2856 = vmatpush1.msra.mxu0 0.0
    %2857 = vmatprep.subr.mxu0 0.0
    %2858 = vmatpush1.msra.mxu0 0.0
    %2859 = vmatprep.subr.mxu0 0.0
    %2860 = vmatpush1.msra.mxu0 0.0
    %2861 = vmatprep.subr.mxu0 0.0
    %2862 = vmatpush1.msra.mxu0 0.0
    %2863 = vmatprep.subr.mxu0 0.0
    %2864 = vmatpush1.msra.mxu0 0.0
    %2865 = vmatprep.subr.mxu0 0.0
    %2866 = vmatpush1.msra.mxu0 0.0
    %2867 = vmatprep.subr.mxu0 0.0
    %2868 = vmatpush1.msra.mxu0 0.0
    %2869 = vmatprep.subr.mxu0 0.0
    %2870 = vmatpush1.msra.mxu0 0.0
    %2871 = vmatprep.subr.mxu0 0.0
    %2872 = vmatpush1.msra.mxu0 0.0
    %2873 = vmatprep.subr.mxu0 0.0
    %2874 = vmatpush1.msra.mxu0 0.0
    %2875 = vmatprep.subr.mxu0 0.0
    %2876 = vmatpush1.msra.mxu0 0.0
    %2877 = vmatprep.subr.mxu0 0.0
    %2878 = vmatpush1.msra.mxu0 0.0
    %2879 = vmatprep.subr.mxu0 0.0
    %2880 = vmatpush1.msra.mxu0 0.0
    %2881 = vmatprep.subr.mxu0 0.0
    %2882 = vmatpush1.msra.mxu0 0.0
    %2883 = vmatprep.subr.mxu0 0.0
    %2884 = vmatpush1.msra.mxu0 0.0
    %2885 = vmatprep.subr.mxu0 0.0
    %2886 = vmatpush1.msra.mxu0 0.0
    %2887 = vmatprep.subr.mxu0 0.0
    %2888 = vmatpush1.msra.mxu0 0.0
    %2889 = vmatprep.subr.mxu0 0.0
    %2890 = vmatpush1.msra.mxu0 0.0
    %2891 = vmatprep.subr.mxu0 0.0
    %2892 = vmatpush1.msra.mxu0 0.0
    %2893 = vmatprep.subr.mxu0 0.0
    %2894 = vmatpush1.msra.mxu0 0.0
    %2895 = vmatprep.subr.mxu0 0.0
    %2896 = vmatpush1.msra.mxu0 0.0
    %2897 = vmatprep.mubr.f32.mxu0 0.0
    %2898 = vmatmul.mubr.f32.gmra.mrb[0].mxu0 %v2831
    %v2899 = vpop.f32.mrb[0].mxu0
    %v2900 = vadd.f32 0.0, %v2899
    %v2901 = vpop.f32.mrb[0].mxu0
    %2902 = vdwg.mxu0
    %2903 = vrot.lane.b32.xlu0 %v2314, 56
    %v2904 = vpop.permute.xlu0 %2903
    %v2907 = vsel %vm479, %v2826, 0
    %2909 = vmatprep.subr.mxu0 0.0
    %2910 = vmatpush1.msra.mxu0 %v2904
    %2911 = vmatprep.subr.mxu0 0.0
    %2912 = vmatpush1.msra.mxu0 0.0
    %2913 = vmatprep.subr.mxu0 0.0
    %2914 = vmatpush1.msra.mxu0 0.0
    %2915 = vmatprep.subr.mxu0 0.0
    %2916 = vmatpush1.msra.mxu0 0.0
    %2917 = vmatprep.subr.mxu0 0.0
    %2918 = vmatpush1.msra.mxu0 0.0
    %2919 = vmatprep.subr.mxu0 0.0
    %2920 = vmatpush1.msra.mxu0 0.0
    %2921 = vmatprep.subr.mxu0 0.0
    %2922 = vmatpush1.msra.mxu0 0.0
    %2923 = vmatprep.subr.mxu0 0.0
    %2924 = vmatpush1.msra.mxu0 0.0
    %2925 = vmatprep.subr.mxu0 0.0
    %2926 = vmatpush1.msra.mxu0 0.0
    %2927 = vmatprep.subr.mxu0 0.0
    %2928 = vmatpush1.msra.mxu0 0.0
    %2929 = vmatprep.subr.mxu0 0.0
    %2930 = vmatpush1.msra.mxu0 0.0
    %2931 = vmatprep.subr.mxu0 0.0
    %2932 = vmatpush1.msra.mxu0 0.0
    %2933 = vmatprep.subr.mxu0 0.0
    %2934 = vmatpush1.msra.mxu0 0.0
    %2935 = vmatprep.subr.mxu0 0.0
    %2936 = vmatpush1.msra.mxu0 0.0
    %2937 = vmatprep.subr.mxu0 0.0
    %2938 = vmatpush1.msra.mxu0 0.0
    %2939 = vmatprep.subr.mxu0 0.0
    %2940 = vmatpush1.msra.mxu0 0.0
    %2941 = vmatprep.subr.mxu0 0.0
    %2942 = vmatpush1.msra.mxu0 0.0
    %2943 = vmatprep.subr.mxu0 0.0
    %2944 = vmatpush1.msra.mxu0 0.0
    %2945 = vmatprep.subr.mxu0 0.0
    %2946 = vmatpush1.msra.mxu0 0.0
    %2947 = vmatprep.subr.mxu0 0.0
    %2948 = vmatpush1.msra.mxu0 0.0
    %2949 = vmatprep.subr.mxu0 0.0
    %2950 = vmatpush1.msra.mxu0 0.0
    %2951 = vmatprep.subr.mxu0 0.0
    %2952 = vmatpush1.msra.mxu0 0.0
    %2953 = vmatprep.subr.mxu0 0.0
    %2954 = vmatpush1.msra.mxu0 0.0
    %2955 = vmatprep.subr.mxu0 0.0
    %2956 = vmatpush1.msra.mxu0 0.0
    %2957 = vmatprep.subr.mxu0 0.0
    %2958 = vmatpush1.msra.mxu0 0.0
    %2959 = vmatprep.subr.mxu0 0.0
    %2960 = vmatpush1.msra.mxu0 0.0
    %2961 = vmatprep.subr.mxu0 0.0
    %2962 = vmatpush1.msra.mxu0 0.0
    %2963 = vmatprep.subr.mxu0 0.0
    %2964 = vmatpush1.msra.mxu0 0.0
    %2965 = vmatprep.subr.mxu0 0.0
    %2966 = vmatpush1.msra.mxu0 0.0
    %2967 = vmatprep.subr.mxu0 0.0
    %2968 = vmatpush1.msra.mxu0 0.0
    %2969 = vmatprep.subr.mxu0 0.0
    %2970 = vmatpush1.msra.mxu0 0.0
    %2971 = vmatprep.subr.mxu0 0.0
    %2972 = vmatpush1.msra.mxu0 0.0
    %2973 = vmatprep.mubr.f32.mxu0 0.0
    %2974 = vmatmul.mubr.f32.gmra.mrb[0].mxu0 %v2907
    %v2975 = vpop.f32.mrb[0].mxu0
    %v2976 = vadd.f32 0.0, %v2975
    %v2977 = vpop.f32.mrb[0].mxu0
    %2978 = vdwg.mxu0
    %2979 = vrot.lane.b32.xlu0 %v2317, 112
    %v2980 = vpop.permute.xlu0 %2979
    %2981 = vrot.lane.b32.xlu0 %v2309, 80
    %v2982 = vpop.permute.xlu0 %2981
    %v2983 = vsel %vm479, %v2980, 0
    %v2985 = vsel %vm479, %v2982, 0
    %2987 = vmatprep.subr.mxu0 0.0
    %2988 = vmatpush1.xpose.msra.mxu0 %v2985
    %2989 = vmatprep.subr.mxu0 0.0
    %2990 = vmatpush1.xpose.msra.mxu0 0.0
    %2991 = vmatprep.subr.mxu0 0.0
    %2992 = vmatpush1.xpose.msra.mxu0 0.0
    %2993 = vmatprep.subr.mxu0 0.0
    %2994 = vmatpush1.xpose.msra.mxu0 0.0
    %2995 = vmatprep.subr.mxu0 0.0
    %2996 = vmatpush1.xpose.msra.mxu0 0.0
    %2997 = vmatprep.subr.mxu0 0.0
    %2998 = vmatpush1.xpose.msra.mxu0 0.0
    %2999 = vmatprep.subr.mxu0 0.0
    %3000 = vmatpush1.xpose.msra.mxu0 0.0
    %3001 = vmatprep.subr.mxu0 0.0
    %3002 = vmatpush1.xpose.msra.mxu0 0.0
    %3003 = vmatprep.subr.mxu0 0.0
    %3004 = vmatpush1.xpose.msra.mxu0 0.0
    %3005 = vmatprep.subr.mxu0 0.0
    %3006 = vmatpush1.xpose.msra.mxu0 0.0
    %3007 = vmatprep.subr.mxu0 0.0
    %3008 = vmatpush1.xpose.msra.mxu0 0.0
    %3009 = vmatprep.subr.mxu0 0.0
    %3010 = vmatpush1.xpose.msra.mxu0 0.0
    %3011 = vmatprep.subr.mxu0 0.0
    %3012 = vmatpush1.xpose.msra.mxu0 0.0
    %3013 = vmatprep.subr.mxu0 0.0
    %3014 = vmatpush1.xpose.msra.mxu0 0.0
    %3015 = vmatprep.subr.mxu0 0.0
    %3016 = vmatpush1.xpose.msra.mxu0 0.0
    %3017 = vmatprep.subr.mxu0 0.0
    %3018 = vmatpush1.xpose.msra.mxu0 0.0
    %3019 = vmatprep.subr.mxu0 0.0
    %3020 = vmatpush1.xpose.msra.mxu0 0.0
    %3021 = vmatprep.subr.mxu0 0.0
    %3022 = vmatpush1.xpose.msra.mxu0 0.0
    %3023 = vmatprep.subr.mxu0 0.0
    %3024 = vmatpush1.xpose.msra.mxu0 0.0
    %3025 = vmatprep.subr.mxu0 0.0
    %3026 = vmatpush1.xpose.msra.mxu0 0.0
    %3027 = vmatprep.subr.mxu0 0.0
    %3028 = vmatpush1.xpose.msra.mxu0 0.0
    %3029 = vmatprep.subr.mxu0 0.0
    %3030 = vmatpush1.xpose.msra.mxu0 0.0
    %3031 = vmatprep.subr.mxu0 0.0
    %3032 = vmatpush1.xpose.msra.mxu0 0.0
    %3033 = vmatprep.subr.mxu0 0.0
    %3034 = vmatpush1.xpose.msra.mxu0 0.0
    %3035 = vmatprep.subr.mxu0 0.0
    %3036 = vmatpush1.xpose.msra.mxu0 0.0
    %3037 = vmatprep.subr.mxu0 0.0
    %3038 = vmatpush1.xpose.msra.mxu0 0.0
    %3039 = vmatprep.subr.mxu0 0.0
    %3040 = vmatpush1.xpose.msra.mxu0 0.0
    %3041 = vmatprep.subr.mxu0 0.0
    %3042 = vmatpush1.xpose.msra.mxu0 0.0
    %3043 = vmatprep.subr.mxu0 0.0
    %3044 = vmatpush1.xpose.msra.mxu0 0.0
    %3045 = vmatprep.subr.mxu0 0.0
    %3046 = vmatpush1.xpose.msra.mxu0 0.0
    %3047 = vmatprep.subr.mxu0 0.0
    %3048 = vmatpush1.xpose.msra.mxu0 0.0
    %3049 = vmatprep.subr.mxu0 0.0
    %3050 = vmatpush1.xpose.msra.mxu0 0.0
    %3051 = vmatprep.mubr.f32.mxu0 0.0
    %3052 = vmatmul.mubr.f32.gmra.mrb[0].mxu0 %v2983
    %v3053 = vpop.f32.mrb[0].mxu0
    %v3054 = vadd.f32 %v332, %v3053
    %v3055 = vpop.f32.mrb[0].mxu0
    %3056 = vdwg.mxu0
    %3057 = vrot.lane.b32.xlu0 %v2318, 112
    %v3058 = vpop.permute.xlu0 %3057
    %3059 = vrot.lane.b32.xlu0 %v2314, 80
    %v3060 = vpop.permute.xlu0 %3059
    %v3061 = vsel %vm479, %v3058, 0
    %v3063 = vsel %vm479, %v3060, 0
    %3065 = vmatprep.subr.mxu0 0.0
    %3066 = vmatpush1.xpose.msra.mxu0 %v3063
    %3067 = vmatprep.subr.mxu0 0.0
    %3068 = vmatpush1.xpose.msra.mxu0 0.0
    %3069 = vmatprep.subr.mxu0 0.0
    %3070 = vmatpush1.xpose.msra.mxu0 0.0
    %3071 = vmatprep.subr.mxu0 0.0
    %3072 = vmatpush1.xpose.msra.mxu0 0.0
    %3073 = vmatprep.subr.mxu0 0.0
    %3074 = vmatpush1.xpose.msra.mxu0 0.0
    %3075 = vmatprep.subr.mxu0 0.0
    %3076 = vmatpush1.xpose.msra.mxu0 0.0
    %3077 = vmatprep.subr.mxu0 0.0
    %3078 = vmatpush1.xpose.msra.mxu0 0.0
    %3079 = vmatprep.subr.mxu0 0.0
    %3080 = vmatpush1.xpose.msra.mxu0 0.0
    %3081 = vmatprep.subr.mxu0 0.0
    %3082 = vmatpush1.xpose.msra.mxu0 0.0
    %3083 = vmatprep.subr.mxu0 0.0
    %3084 = vmatpush1.xpose.msra.mxu0 0.0
    %3085 = vmatprep.subr.mxu0 0.0
    %3086 = vmatpush1.xpose.msra.mxu0 0.0
    %3087 = vmatprep.subr.mxu0 0.0
    %3088 = vmatpush1.xpose.msra.mxu0 0.0
    %3089 = vmatprep.subr.mxu0 0.0
    %3090 = vmatpush1.xpose.msra.mxu0 0.0
    %3091 = vmatprep.subr.mxu0 0.0
    %3092 = vmatpush1.xpose.msra.mxu0 0.0
    %3093 = vmatprep.subr.mxu0 0.0
    %3094 = vmatpush1.xpose.msra.mxu0 0.0
    %3095 = vmatprep.subr.mxu0 0.0
    %3096 = vmatpush1.xpose.msra.mxu0 0.0
    %3097 = vmatprep.subr.mxu0 0.0
    %3098 = vmatpush1.xpose.msra.mxu0 0.0
    %3099 = vmatprep.subr.mxu0 0.0
    %3100 = vmatpush1.xpose.msra.mxu0 0.0
    %3101 = vmatprep.subr.mxu0 0.0
    %3102 = vmatpush1.xpose.msra.mxu0 0.0
    %3103 = vmatprep.subr.mxu0 0.0
    %3104 = vmatpush1.xpose.msra.mxu0 0.0
    %3105 = vmatprep.subr.mxu0 0.0
    %3106 = vmatpush1.xpose.msra.mxu0 0.0
    %3107 = vmatprep.subr.mxu0 0.0
    %3108 = vmatpush1.xpose.msra.mxu0 0.0
    %3109 = vmatprep.subr.mxu0 0.0
    %3110 = vmatpush1.xpose.msra.mxu0 0.0
    %3111 = vmatprep.subr.mxu0 0.0
    %3112 = vmatpush1.xpose.msra.mxu0 0.0
    %3113 = vmatprep.subr.mxu0 0.0
    %3114 = vmatpush1.xpose.msra.mxu0 0.0
    %3115 = vmatprep.subr.mxu0 0.0
    %3116 = vmatpush1.xpose.msra.mxu0 0.0
    %3117 = vmatprep.subr.mxu0 0.0
    %3118 = vmatpush1.xpose.msra.mxu0 0.0
    %3119 = vmatprep.subr.mxu0 0.0
    %3120 = vmatpush1.xpose.msra.mxu0 0.0
    %3121 = vmatprep.subr.mxu0 0.0
    %3122 = vmatpush1.xpose.msra.mxu0 0.0
    %3123 = vmatprep.subr.mxu0 0.0
    %3124 = vmatpush1.xpose.msra.mxu0 0.0
    %3125 = vmatprep.subr.mxu0 0.0
    %3126 = vmatpush1.xpose.msra.mxu0 0.0
    %3127 = vmatprep.subr.mxu0 0.0
    %3128 = vmatpush1.xpose.msra.mxu0 0.0
    %3129 = vmatprep.mubr.f32.mxu0 0.0
    %3130 = vmatmul.mubr.f32.gmra.mrb[0].mxu0 %v3061
    %v3131 = vpop.f32.mrb[0].mxu0
    %v3132 = vadd.f32 %v332, %v3131
    %v3133 = vpop.f32.mrb[0].mxu0
    %3134 = vdwg.mxu0
    %v3135 = vsel %vm479, %v3054, -inf
    %3136 = vmax.xlane.f32.xlu0 %v3135
    %v3137 = vpop.xlane.xlu0 %3136
    %v3138 = vsel %vm479, %v3132, -inf
    %3139 = vmax.xlane.f32.xlu0 %v3138
    %v3140 = vpop.xlane.xlu0 %3139
    %v3141 = vsub.f32 %v3054, %v3137
    %v3142 = vsub.f32 %v3132, %v3140
    %v3143 = vmul.f32 %v3141, 1.442695
    %v3144 = vpow.pop %v3143
    %v3145 = vmul.f32 %v3142, 1.442695
    %v3146 = vpow.pop %v3145
    %v3147 = vsel %vm479, %v3144, 0.0
    %3148 = vadd.xlane.f32.xlu0 %v3147
    %v3149 = vpop.xlane.xlu0 %3148
    %v3150 = vsel %vm479, %v3146, 0.0
    %3151 = vadd.xlane.f32.xlu0 %v3150
    %v3152 = vpop.xlane.xlu0 %3151
    %v3153 = vrcp.pop %v3149
    %v3154 = vrcp.pop %v3152
    %v3155 = vmul.f32 %v3144, %v3153
    %v3156 = vmul.f32 %v3146, %v3154
    %3157 = vrot.lane.b32.xlu0 %v2309, 48
    %v3158 = vpop.permute.xlu0 %3157
    %v3161 = vsel %vm479, %v3155, 0
    %3163 = vmatprep.subr.mxu0 0.0
    %3164 = vmatpush1.msra.mxu0 %v3158
    %3165 = vmatprep.subr.mxu0 0.0
    %3166 = vmatpush1.msra.mxu0 0.0
    %3167 = vmatprep.subr.mxu0 0.0
    %3168 = vmatpush1.msra.mxu0 0.0
    %3169 = vmatprep.subr.mxu0 0.0
    %3170 = vmatpush1.msra.mxu0 0.0
    %3171 = vmatprep.subr.mxu0 0.0
    %3172 = vmatpush1.msra.mxu0 0.0
    %3173 = vmatprep.subr.mxu0 0.0
    %3174 = vmatpush1.msra.mxu0 0.0
    %3175 = vmatprep.subr.mxu0 0.0
    %3176 = vmatpush1.msra.mxu0 0.0
    %3177 = vmatprep.subr.mxu0 0.0
    %3178 = vmatpush1.msra.mxu0 0.0
    %3179 = vmatprep.subr.mxu0 0.0
    %3180 = vmatpush1.msra.mxu0 0.0
    %3181 = vmatprep.subr.mxu0 0.0
    %3182 = vmatpush1.msra.mxu0 0.0
    %3183 = vmatprep.subr.mxu0 0.0
    %3184 = vmatpush1.msra.mxu0 0.0
    %3185 = vmatprep.subr.mxu0 0.0
    %3186 = vmatpush1.msra.mxu0 0.0
    %3187 = vmatprep.subr.mxu0 0.0
    %3188 = vmatpush1.msra.mxu0 0.0
    %3189 = vmatprep.subr.mxu0 0.0
    %3190 = vmatpush1.msra.mxu0 0.0
    %3191 = vmatprep.subr.mxu0 0.0
    %3192 = vmatpush1.msra.mxu0 0.0
    %3193 = vmatprep.subr.mxu0 0.0
    %3194 = vmatpush1.msra.mxu0 0.0
    %3195 = vmatprep.subr.mxu0 0.0
    %3196 = vmatpush1.msra.mxu0 0.0
    %3197 = vmatprep.subr.mxu0 0.0
    %3198 = vmatpush1.msra.mxu0 0.0
    %3199 = vmatprep.subr.mxu0 0.0
    %3200 = vmatpush1.msra.mxu0 0.0
    %3201 = vmatprep.subr.mxu0 0.0
    %3202 = vmatpush1.msra.mxu0 0.0
    %3203 = vmatprep.subr.mxu0 0.0
    %3204 = vmatpush1.msra.mxu0 0.0
    %3205 = vmatprep.subr.mxu0 0.0
    %3206 = vmatpush1.msra.mxu0 0.0
    %3207 = vmatprep.subr.mxu0 0.0
    %3208 = vmatpush1.msra.mxu0 0.0
    %3209 = vmatprep.subr.mxu0 0.0
    %3210 = vmatpush1.msra.mxu0 0.0
    %3211 = vmatprep.subr.mxu0 0.0
    %3212 = vmatpush1.msra.mxu0 0.0
    %3213 = vmatprep.subr.mxu0 0.0
    %3214 = vmatpush1.msra.mxu0 0.0
    %3215 = vmatprep.subr.mxu0 0.0
    %3216 = vmatpush1.msra.mxu0 0.0
    %3217 = vmatprep.subr.mxu0 0.0
    %3218 = vmatpush1.msra.mxu0 0.0
    %3219 = vmatprep.subr.mxu0 0.0
    %3220 = vmatpush1.msra.mxu0 0.0
    %3221 = vmatprep.subr.mxu0 0.0
    %3222 = vmatpush1.msra.mxu0 0.0
    %3223 = vmatprep.subr.mxu0 0.0
    %3224 = vmatpush1.msra.mxu0 0.0
    %3225 = vmatprep.subr.mxu0 0.0
    %3226 = vmatpush1.msra.mxu0 0.0
    %3227 = vmatprep.mubr.f32.mxu0 0.0
    %3228 = vmatmul.mubr.f32.gmra.mrb[0].mxu0 %v3161
    %v3229 = vpop.f32.mrb[0].mxu0
    %v3230 = vadd.f32 0.0, %v3229
    %v3231 = vpop.f32.mrb[0].mxu0
    %3232 = vdwg.mxu0
    %3233 = vrot.lane.b32.xlu0 %v2314, 48
    %v3234 = vpop.permute.xlu0 %3233
    %v3237 = vsel %vm479, %v3156, 0
    %3239 = vmatprep.subr.mxu0 0.0
    %3240 = vmatpush1.msra.mxu0 %v3234
    %3241 = vmatprep.subr.mxu0 0.0
    %3242 = vmatpush1.msra.mxu0 0.0
    %3243 = vmatprep.subr.mxu0 0.0
    %3244 = vmatpush1.msra.mxu0 0.0
    %3245 = vmatprep.subr.mxu0 0.0
    %3246 = vmatpush1.msra.mxu0 0.0
    %3247 = vmatprep.subr.mxu0 0.0
    %3248 = vmatpush1.msra.mxu0 0.0
    %3249 = vmatprep.subr.mxu0 0.0
    %3250 = vmatpush1.msra.mxu0 0.0
    %3251 = vmatprep.subr.mxu0 0.0
    %3252 = vmatpush1.msra.mxu0 0.0
    %3253 = vmatprep.subr.mxu0 0.0
    %3254 = vmatpush1.msra.mxu0 0.0
    %3255 = vmatprep.subr.mxu0 0.0
    %3256 = vmatpush1.msra.mxu0 0.0
    %3257 = vmatprep.subr.mxu0 0.0
    %3258 = vmatpush1.msra.mxu0 0.0
    %3259 = vmatprep.subr.mxu0 0.0
    %3260 = vmatpush1.msra.mxu0 0.0
    %3261 = vmatprep.subr.mxu0 0.0
    %3262 = vmatpush1.msra.mxu0 0.0
    %3263 = vmatprep.subr.mxu0 0.0
    %3264 = vmatpush1.msra.mxu0 0.0
    %3265 = vmatprep.subr.mxu0 0.0
    %3266 = vmatpush1.msra.mxu0 0.0
    %3267 = vmatprep.subr.mxu0 0.0
    %3268 = vmatpush1.msra.mxu0 0.0
    %3269 = vmatprep.subr.mxu0 0.0
    %3270 = vmatpush1.msra.mxu0 0.0
    %3271 = vmatprep.subr.mxu0 0.0
    %3272 = vmatpush1.msra.mxu0 0.0
    %3273 = vmatprep.subr.mxu0 0.0
    %3274 = vmatpush1.msra.mxu0 0.0
    %3275 = vmatprep.subr.mxu0 0.0
    %3276 = vmatpush1.msra.mxu0 0.0
    %3277 = vmatprep.subr.mxu0 0.0
    %3278 = vmatpush1.msra.mxu0 0.0
    %3279 = vmatprep.subr.mxu0 0.0
    %3280 = vmatpush1.msra.mxu0 0.0
    %3281 = vmatprep.subr.mxu0 0.0
    %3282 = vmatpush1.msra.mxu0 0.0
    %3283 = vmatprep.subr.mxu0 0.0
    %3284 = vmatpush1.msra.mxu0 0.0
    %3285 = vmatprep.subr.mxu0 0.0
    %3286 = vmatpush1.msra.mxu0 0.0
    %3287 = vmatprep.subr.mxu0 0.0
    %3288 = vmatpush1.msra.mxu0 0.0
    %3289 = vmatprep.subr.mxu0 0.0
    %3290 = vmatpush1.msra.mxu0 0.0
    %3291 = vmatprep.subr.mxu0 0.0
    %3292 = vmatpush1.msra.mxu0 0.0
    %3293 = vmatprep.subr.mxu0 0.0
    %3294 = vmatpush1.msra.mxu0 0.0
    %3295 = vmatprep.subr.mxu0 0.0
    %3296 = vmatpush1.msra.mxu0 0.0
    %3297 = vmatprep.subr.mxu0 0.0
    %3298 = vmatpush1.msra.mxu0 0.0
    %3299 = vmatprep.subr.mxu0 0.0
    %3300 = vmatpush1.msra.mxu0 0.0
    %3301 = vmatprep.subr.mxu0 0.0
    %3302 = vmatpush1.msra.mxu0 0.0
    %3303 = vmatprep.mubr.f32.mxu0 0.0
    %3304 = vmatmul.mubr.f32.gmra.mrb[0].mxu0 %v3237
    %v3305 = vpop.f32.mrb[0].mxu0
    %v3306 = vadd.f32 0.0, %v3305
    %v3307 = vpop.f32.mrb[0].mxu0
    %3308 = vdwg.mxu0
    %3309 = vrot.lane.b32.xlu0 %v2317, 104
    %v3310 = vpop.permute.xlu0 %3309
    %3311 = vrot.lane.b32.xlu0 %v2309, 72
    %v3312 = vpop.permute.xlu0 %3311
    %v3313 = vsel %vm479, %v3310, 0
    %v3315 = vsel %vm479, %v3312, 0
    %3317 = vmatprep.subr.mxu0 0.0
    %3318 = vmatpush1.xpose.msra.mxu0 %v3315
    %3319 = vmatprep.subr.mxu0 0.0
    %3320 = vmatpush1.xpose.msra.mxu0 0.0
    %3321 = vmatprep.subr.mxu0 0.0
    %3322 = vmatpush1.xpose.msra.mxu0 0.0
    %3323 = vmatprep.subr.mxu0 0.0
    %3324 = vmatpush1.xpose.msra.mxu0 0.0
    %3325 = vmatprep.subr.mxu0 0.0
    %3326 = vmatpush1.xpose.msra.mxu0 0.0
    %3327 = vmatprep.subr.mxu0 0.0
    %3328 = vmatpush1.xpose.msra.mxu0 0.0
    %3329 = vmatprep.subr.mxu0 0.0
    %3330 = vmatpush1.xpose.msra.mxu0 0.0
    %3331 = vmatprep.subr.mxu0 0.0
    %3332 = vmatpush1.xpose.msra.mxu0 0.0
    %3333 = vmatprep.subr.mxu0 0.0
    %3334 = vmatpush1.xpose.msra.mxu0 0.0
    %3335 = vmatprep.subr.mxu0 0.0
    %3336 = vmatpush1.xpose.msra.mxu0 0.0
    %3337 = vmatprep.subr.mxu0 0.0
    %3338 = vmatpush1.xpose.msra.mxu0 0.0
    %3339 = vmatprep.subr.mxu0 0.0
    %3340 = vmatpush1.xpose.msra.mxu0 0.0
    %3341 = vmatprep.subr.mxu0 0.0
    %3342 = vmatpush1.xpose.msra.mxu0 0.0
    %3343 = vmatprep.subr.mxu0 0.0
    %3344 = vmatpush1.xpose.msra.mxu0 0.0
    %3345 = vmatprep.subr.mxu0 0.0
    %3346 = vmatpush1.xpose.msra.mxu0 0.0
    %3347 = vmatprep.subr.mxu0 0.0
    %3348 = vmatpush1.xpose.msra.mxu0 0.0
    %3349 = vmatprep.subr.mxu0 0.0
    %3350 = vmatpush1.xpose.msra.mxu0 0.0
    %3351 = vmatprep.subr.mxu0 0.0
    %3352 = vmatpush1.xpose.msra.mxu0 0.0
    %3353 = vmatprep.subr.mxu0 0.0
    %3354 = vmatpush1.xpose.msra.mxu0 0.0
    %3355 = vmatprep.subr.mxu0 0.0
    %3356 = vmatpush1.xpose.msra.mxu0 0.0
    %3357 = vmatprep.subr.mxu0 0.0
    %3358 = vmatpush1.xpose.msra.mxu0 0.0
    %3359 = vmatprep.subr.mxu0 0.0
    %3360 = vmatpush1.xpose.msra.mxu0 0.0
    %3361 = vmatprep.subr.mxu0 0.0
    %3362 = vmatpush1.xpose.msra.mxu0 0.0
    %3363 = vmatprep.subr.mxu0 0.0
    %3364 = vmatpush1.xpose.msra.mxu0 0.0
    %3365 = vmatprep.subr.mxu0 0.0
    %3366 = vmatpush1.xpose.msra.mxu0 0.0
    %3367 = vmatprep.subr.mxu0 0.0
    %3368 = vmatpush1.xpose.msra.mxu0 0.0
    %3369 = vmatprep.subr.mxu0 0.0
    %3370 = vmatpush1.xpose.msra.mxu0 0.0
    %3371 = vmatprep.subr.mxu0 0.0
    %3372 = vmatpush1.xpose.msra.mxu0 0.0
    %3373 = vmatprep.subr.mxu0 0.0
    %3374 = vmatpush1.xpose.msra.mxu0 0.0
    %3375 = vmatprep.subr.mxu0 0.0
    %3376 = vmatpush1.xpose.msra.mxu0 0.0
    %3377 = vmatprep.subr.mxu0 0.0
    %3378 = vmatpush1.xpose.msra.mxu0 0.0
    %3379 = vmatprep.subr.mxu0 0.0
    %3380 = vmatpush1.xpose.msra.mxu0 0.0
    %3381 = vmatprep.mubr.f32.mxu0 0.0
    %3382 = vmatmul.mubr.f32.gmra.mrb[0].mxu0 %v3313
    %v3383 = vpop.f32.mrb[0].mxu0
    %v3384 = vadd.f32 %v332, %v3383
    %v3385 = vpop.f32.mrb[0].mxu0
    %3386 = vdwg.mxu0
    %3387 = vrot.lane.b32.xlu0 %v2318, 104
    %v3388 = vpop.permute.xlu0 %3387
    %3389 = vrot.lane.b32.xlu0 %v2314, 72
    %v3390 = vpop.permute.xlu0 %3389
    %v3391 = vsel %vm479, %v3388, 0
    %v3393 = vsel %vm479, %v3390, 0
    %3395 = vmatprep.subr.mxu0 0.0
    %3396 = vmatpush1.xpose.msra.mxu0 %v3393
    %3397 = vmatprep.subr.mxu0 0.0
    %3398 = vmatpush1.xpose.msra.mxu0 0.0
    %3399 = vmatprep.subr.mxu0 0.0
    %3400 = vmatpush1.xpose.msra.mxu0 0.0
    %3401 = vmatprep.subr.mxu0 0.0
    %3402 = vmatpush1.xpose.msra.mxu0 0.0
    %3403 = vmatprep.subr.mxu0 0.0
    %3404 = vmatpush1.xpose.msra.mxu0 0.0
    %3405 = vmatprep.subr.mxu0 0.0
    %3406 = vmatpush1.xpose.msra.mxu0 0.0
    %3407 = vmatprep.subr.mxu0 0.0
    %3408 = vmatpush1.xpose.msra.mxu0 0.0
    %3409 = vmatprep.subr.mxu0 0.0
    %3410 = vmatpush1.xpose.msra.mxu0 0.0
    %3411 = vmatprep.subr.mxu0 0.0
    %3412 = vmatpush1.xpose.msra.mxu0 0.0
    %3413 = vmatprep.subr.mxu0 0.0
    %3414 = vmatpush1.xpose.msra.mxu0 0.0
    %3415 = vmatprep.subr.mxu0 0.0
    %3416 = vmatpush1.xpose.msra.mxu0 0.0
    %3417 = vmatprep.subr.mxu0 0.0
    %3418 = vmatpush1.xpose.msra.mxu0 0.0
    %3419 = vmatprep.subr.mxu0 0.0
    %3420 = vmatpush1.xpose.msra.mxu0 0.0
    %3421 = vmatprep.subr.mxu0 0.0
    %3422 = vmatpush1.xpose.msra.mxu0 0.0
    %3423 = vmatprep.subr.mxu0 0.0
    %3424 = vmatpush1.xpose.msra.mxu0 0.0
    %3425 = vmatprep.subr.mxu0 0.0
    %3426 = vmatpush1.xpose.msra.mxu0 0.0
    %3427 = vmatprep.subr.mxu0 0.0
    %3428 = vmatpush1.xpose.msra.mxu0 0.0
    %3429 = vmatprep.subr.mxu0 0.0
    %3430 = vmatpush1.xpose.msra.mxu0 0.0
    %3431 = vmatprep.subr.mxu0 0.0
    %3432 = vmatpush1.xpose.msra.mxu0 0.0
    %3433 = vmatprep.subr.mxu0 0.0
    %3434 = vmatpush1.xpose.msra.mxu0 0.0
    %3435 = vmatprep.subr.mxu0 0.0
    %3436 = vmatpush1.xpose.msra.mxu0 0.0
    %3437 = vmatprep.subr.mxu0 0.0
    %3438 = vmatpush1.xpose.msra.mxu0 0.0
    %3439 = vmatprep.subr.mxu0 0.0
    %3440 = vmatpush1.xpose.msra.mxu0 0.0
    %3441 = vmatprep.subr.mxu0 0.0
    %3442 = vmatpush1.xpose.msra.mxu0 0.0
    %3443 = vmatprep.subr.mxu0 0.0
    %3444 = vmatpush1.xpose.msra.mxu0 0.0
    %3445 = vmatprep.subr.mxu0 0.0
    %3446 = vmatpush1.xpose.msra.mxu0 0.0
    %3447 = vmatprep.subr.mxu0 0.0
    %3448 = vmatpush1.xpose.msra.mxu0 0.0
    %3449 = vmatprep.subr.mxu0 0.0
    %3450 = vmatpush1.xpose.msra.mxu0 0.0
    %3451 = vmatprep.subr.mxu0 0.0
    %3452 = vmatpush1.xpose.msra.mxu0 0.0
    %3453 = vmatprep.subr.mxu0 0.0
    %3454 = vmatpush1.xpose.msra.mxu0 0.0
    %3455 = vmatprep.subr.mxu0 0.0
    %3456 = vmatpush1.xpose.msra.mxu0 0.0
    %3457 = vmatprep.subr.mxu0 0.0
    %3458 = vmatpush1.xpose.msra.mxu0 0.0
    %3459 = vmatprep.mubr.f32.mxu0 0.0
    %3460 = vmatmul.mubr.f32.gmra.mrb[0].mxu0 %v3391
    %v3461 = vpop.f32.mrb[0].mxu0
    %v3462 = vadd.f32 %v332, %v3461
    %v3463 = vpop.f32.mrb[0].mxu0
    %3464 = vdwg.mxu0
    %v3465 = vsel %vm479, %v3384, -inf
    %3466 = vmax.xlane.f32.xlu0 %v3465
    %v3467 = vpop.xlane.xlu0 %3466
    %v3468 = vsel %vm479, %v3462, -inf
    %3469 = vmax.xlane.f32.xlu0 %v3468
    %v3470 = vpop.xlane.xlu0 %3469
    %v3471 = vsub.f32 %v3384, %v3467
    %v3472 = vsub.f32 %v3462, %v3470
    %v3473 = vmul.f32 %v3471, 1.442695
    %v3474 = vpow.pop %v3473
    %v3475 = vmul.f32 %v3472, 1.442695
    %v3476 = vpow.pop %v3475
    %v3477 = vsel %vm479, %v3474, 0.0
    %3478 = vadd.xlane.f32.xlu0 %v3477
    %v3479 = vpop.xlane.xlu0 %3478
    %v3480 = vsel %vm479, %v3476, 0.0
    %3481 = vadd.xlane.f32.xlu0 %v3480
    %v3482 = vpop.xlane.xlu0 %3481
    %v3483 = vrcp.pop %v3479
    %v3484 = vrcp.pop %v3482
    %v3485 = vmul.f32 %v3474, %v3483
    %v3486 = vmul.f32 %v3476, %v3484
    %3487 = vrot.lane.b32.xlu0 %v2309, 40
    %v3488 = vpop.permute.xlu0 %3487
    %v3491 = vsel %vm479, %v3485, 0
    %3493 = vmatprep.subr.mxu0 0.0
    %3494 = vmatpush1.msra.mxu0 %v3488
    %3495 = vmatprep.subr.mxu0 0.0
    %3496 = vmatpush1.msra.mxu0 0.0
    %3497 = vmatprep.subr.mxu0 0.0
    %3498 = vmatpush1.msra.mxu0 0.0
    %3499 = vmatprep.subr.mxu0 0.0
    %3500 = vmatpush1.msra.mxu0 0.0
    %3501 = vmatprep.subr.mxu0 0.0
    %3502 = vmatpush1.msra.mxu0 0.0
    %3503 = vmatprep.subr.mxu0 0.0
    %3504 = vmatpush1.msra.mxu0 0.0
    %3505 = vmatprep.subr.mxu0 0.0
    %3506 = vmatpush1.msra.mxu0 0.0
    %3507 = vmatprep.subr.mxu0 0.0
    %3508 = vmatpush1.msra.mxu0 0.0
    %3509 = vmatprep.subr.mxu0 0.0
    %3510 = vmatpush1.msra.mxu0 0.0
    %3511 = vmatprep.subr.mxu0 0.0
    %3512 = vmatpush1.msra.mxu0 0.0
    %3513 = vmatprep.subr.mxu0 0.0
    %3514 = vmatpush1.msra.mxu0 0.0
    %3515 = vmatprep.subr.mxu0 0.0
    %3516 = vmatpush1.msra.mxu0 0.0
    %3517 = vmatprep.subr.mxu0 0.0
    %3518 = vmatpush1.msra.mxu0 0.0
    %3519 = vmatprep.subr.mxu0 0.0
    %3520 = vmatpush1.msra.mxu0 0.0
    %3521 = vmatprep.subr.mxu0 0.0
    %3522 = vmatpush1.msra.mxu0 0.0
    %3523 = vmatprep.subr.mxu0 0.0
    %3524 = vmatpush1.msra.mxu0 0.0
    %3525 = vmatprep.subr.mxu0 0.0
    %3526 = vmatpush1.msra.mxu0 0.0
    %3527 = vmatprep.subr.mxu0 0.0
    %3528 = vmatpush1.msra.mxu0 0.0
    %3529 = vmatprep.subr.mxu0 0.0
    %3530 = vmatpush1.msra.mxu0 0.0
    %3531 = vmatprep.subr.mxu0 0.0
    %3532 = vmatpush1.msra.mxu0 0.0
    %3533 = vmatprep.subr.mxu0 0.0
    %3534 = vmatpush1.msra.mxu0 0.0
    %3535 = vmatprep.subr.mxu0 0.0
    %3536 = vmatpush1.msra.mxu0 0.0
    %3537 = vmatprep.subr.mxu0 0.0
    %3538 = vmatpush1.msra.mxu0 0.0
    %3539 = vmatprep.subr.mxu0 0.0
    %3540 = vmatpush1.msra.mxu0 0.0
    %3541 = vmatprep.subr.mxu0 0.0
    %3542 = vmatpush1.msra.mxu0 0.0
    %3543 = vmatprep.subr.mxu0 0.0
    %3544 = vmatpush1.msra.mxu0 0.0
    %3545 = vmatprep.subr.mxu0 0.0
    %3546 = vmatpush1.msra.mxu0 0.0
    %3547 = vmatprep.subr.mxu0 0.0
    %3548 = vmatpush1.msra.mxu0 0.0
    %3549 = vmatprep.subr.mxu0 0.0
    %3550 = vmatpush1.msra.mxu0 0.0
    %3551 = vmatprep.subr.mxu0 0.0
    %3552 = vmatpush1.msra.mxu0 0.0
    %3553 = vmatprep.subr.mxu0 0.0
    %3554 = vmatpush1.msra.mxu0 0.0
    %3555 = vmatprep.subr.mxu0 0.0
    %3556 = vmatpush1.msra.mxu0 0.0
    %3557 = vmatprep.mubr.f32.mxu0 0.0
    %3558 = vmatmul.mubr.f32.gmra.mrb[0].mxu0 %v3491
    %v3559 = vpop.f32.mrb[0].mxu0
    %v3560 = vadd.f32 0.0, %v3559
    %v3561 = vpop.f32.mrb[0].mxu0
    %3562 = vdwg.mxu0
    %3563 = vrot.lane.b32.xlu0 %v2314, 40
    %v3564 = vpop.permute.xlu0 %3563
    %v3567 = vsel %vm479, %v3486, 0
    %3569 = vmatprep.subr.mxu0 0.0
    %3570 = vmatpush1.msra.mxu0 %v3564
    %3571 = vmatprep.subr.mxu0 0.0
    %3572 = vmatpush1.msra.mxu0 0.0
    %3573 = vmatprep.subr.mxu0 0.0
    %3574 = vmatpush1.msra.mxu0 0.0
    %3575 = vmatprep.subr.mxu0 0.0
    %3576 = vmatpush1.msra.mxu0 0.0
    %3577 = vmatprep.subr.mxu0 0.0
    %3578 = vmatpush1.msra.mxu0 0.0
    %3579 = vmatprep.subr.mxu0 0.0
    %3580 = vmatpush1.msra.mxu0 0.0
    %3581 = vmatprep.subr.mxu0 0.0
    %3582 = vmatpush1.msra.mxu0 0.0
    %3583 = vmatprep.subr.mxu0 0.0
    %3584 = vmatpush1.msra.mxu0 0.0
    %3585 = vmatprep.subr.mxu0 0.0
    %3586 = vmatpush1.msra.mxu0 0.0
    %3587 = vmatprep.subr.mxu0 0.0
    %3588 = vmatpush1.msra.mxu0 0.0
    %3589 = vmatprep.subr.mxu0 0.0
    %3590 = vmatpush1.msra.mxu0 0.0
    %3591 = vmatprep.subr.mxu0 0.0
    %3592 = vmatpush1.msra.mxu0 0.0
    %3593 = vmatprep.subr.mxu0 0.0
    %3594 = vmatpush1.msra.mxu0 0.0
    %3595 = vmatprep.subr.mxu0 0.0
    %3596 = vmatpush1.msra.mxu0 0.0
    %3597 = vmatprep.subr.mxu0 0.0
    %3598 = vmatpush1.msra.mxu0 0.0
    %3599 = vmatprep.subr.mxu0 0.0
    %3600 = vmatpush1.msra.mxu0 0.0
    %3601 = vmatprep.subr.mxu0 0.0
    %3602 = vmatpush1.msra.mxu0 0.0
    %3603 = vmatprep.subr.mxu0 0.0
    %3604 = vmatpush1.msra.mxu0 0.0
    %3605 = vmatprep.subr.mxu0 0.0
    %3606 = vmatpush1.msra.mxu0 0.0
    %3607 = vmatprep.subr.mxu0 0.0
    %3608 = vmatpush1.msra.mxu0 0.0
    %3609 = vmatprep.subr.mxu0 0.0
    %3610 = vmatpush1.msra.mxu0 0.0
    %3611 = vmatprep.subr.mxu0 0.0
    %3612 = vmatpush1.msra.mxu0 0.0
    %3613 = vmatprep.subr.mxu0 0.0
    %3614 = vmatpush1.msra.mxu0 0.0
    %3615 = vmatprep.subr.mxu0 0.0
    %3616 = vmatpush1.msra.mxu0 0.0
    %3617 = vmatprep.subr.mxu0 0.0
    %3618 = vmatpush1.msra.mxu0 0.0
    %3619 = vmatprep.subr.mxu0 0.0
    %3620 = vmatpush1.msra.mxu0 0.0
    %3621 = vmatprep.subr.mxu0 0.0
    %3622 = vmatpush1.msra.mxu0 0.0
    %3623 = vmatprep.subr.mxu0 0.0
    %3624 = vmatpush1.msra.mxu0 0.0
    %3625 = vmatprep.subr.mxu0 0.0
    %3626 = vmatpush1.msra.mxu0 0.0
    %3627 = vmatprep.subr.mxu0 0.0
    %3628 = vmatpush1.msra.mxu0 0.0
    %3629 = vmatprep.subr.mxu0 0.0
    %3630 = vmatpush1.msra.mxu0 0.0
    %3631 = vmatprep.subr.mxu0 0.0
    %3632 = vmatpush1.msra.mxu0 0.0
    %3633 = vmatprep.mubr.f32.mxu0 0.0
    %3634 = vmatmul.mubr.f32.gmra.mrb[0].mxu0 %v3567
    %v3635 = vpop.f32.mrb[0].mxu0
    %v3636 = vadd.f32 0.0, %v3635
    %v3637 = vpop.f32.mrb[0].mxu0
    %3638 = vdwg.mxu0
    %3641 = vrot.lane.b32.xlu0 %v2900, 8
    %v3642 = vpop.permute.xlu0 %3641
    %3643 = vrot.lane.b32.xlu0 %v2976, 8
    %v3644 = vpop.permute.xlu0 %3643
    %3649 = vrot.lane.b32.xlu0 %v3230, 16
    %v3650 = vpop.permute.xlu0 %3649
    %3651 = vrot.lane.b32.xlu0 %v3306, 16
    %v3652 = vpop.permute.xlu0 %3651
    %3657 = vrot.lane.b32.xlu0 %v3560, 24
    %v3658 = vpop.permute.xlu0 %3657
    %3659 = vrot.lane.b32.xlu0 %v3636, 24
    %v3660 = vpop.permute.xlu0 %3659
    %v3663 = vsel %vm479, %v2570, %v3642
    %v3664 = vsel %vm479, %v2646, %v3644
    %v3665 = vsel %vm1823, %v3663, %v3650
    %v3666 = vsel %vm1823, %v3664, %v3652
    %v3667 = vsel %vm1826, %v3665, %v3658
    %v3668 = vsel %vm1826, %v3666, %v3660
    %v3670 = vlaneseq
    %v3671 = vshrl.u32 %v3670, 7
    %v3672 = vsub.s32 0, %v3671
    %v3673 = vrot.slane %v2229, %v3672
    %v3676 = vsel %vm285, %v3667, 0
    %v3679 = vsel %vm285, %v3668, 0
    %3681 = vmatprep.subr.mxu0 0.0
    %3682 = vmatpush1.msra.mxu0 %v2224
    %3683 = vmatprep.subr.mxu0 0.0
    %3684 = vmatpush1.msra.mxu0 %v2225
    %3685 = vmatprep.subr.mxu0 0.0
    %3686 = vmatpush1.msra.mxu0 %v2226
    %3687 = vmatprep.subr.mxu0 0.0
    %3688 = vmatpush1.msra.mxu0 %v2227
    %3689 = vmatprep.subr.mxu0 0.0
    %3690 = vmatpush1.msra.mxu0 0.0
    %3691 = vmatprep.subr.mxu0 0.0
    %3692 = vmatpush1.msra.mxu0 0.0
    %3693 = vmatprep.subr.mxu0 0.0
    %3694 = vmatpush1.msra.mxu0 0.0
    %3695 = vmatprep.subr.mxu0 0.0
    %3696 = vmatpush1.msra.mxu0 0.0
    %3697 = vmatprep.subr.mxu0 0.0
    %3698 = vmatpush1.msra.mxu0 0.0
    %3699 = vmatprep.subr.mxu0 0.0
    %3700 = vmatpush1.msra.mxu0 0.0
    %3701 = vmatprep.subr.mxu0 0.0
    %3702 = vmatpush1.msra.mxu0 0.0
    %3703 = vmatprep.subr.mxu0 0.0
    %3704 = vmatpush1.msra.mxu0 0.0
    %3705 = vmatprep.subr.mxu0 0.0
    %3706 = vmatpush1.msra.mxu0 0.0
    %3707 = vmatprep.subr.mxu0 0.0
    %3708 = vmatpush1.msra.mxu0 0.0
    %3709 = vmatprep.subr.mxu0 0.0
    %3710 = vmatpush1.msra.mxu0 0.0
    %3711 = vmatprep.subr.mxu0 0.0
    %3712 = vmatpush1.msra.mxu0 0.0
    %3713 = vmatprep.subr.mxu0 0.0
    %3714 = vmatpush1.msra.mxu0 0.0
    %3715 = vmatprep.subr.mxu0 0.0
    %3716 = vmatpush1.msra.mxu0 0.0
    %3717 = vmatprep.subr.mxu0 0.0
    %3718 = vmatpush1.msra.mxu0 0.0
    %3719 = vmatprep.subr.mxu0 0.0
    %3720 = vmatpush1.msra.mxu0 0.0
    %3721 = vmatprep.subr.mxu0 0.0
    %3722 = vmatpush1.msra.mxu0 0.0
    %3723 = vmatprep.subr.mxu0 0.0
    %3724 = vmatpush1.msra.mxu0 0.0
    %3725 = vmatprep.subr.mxu0 0.0
    %3726 = vmatpush1.msra.mxu0 0.0
    %3727 = vmatprep.subr.mxu0 0.0
    %3728 = vmatpush1.msra.mxu0 0.0
    %3729 = vmatprep.subr.mxu0 0.0
    %3730 = vmatpush1.msra.mxu0 0.0
    %3731 = vmatprep.subr.mxu0 0.0
    %3732 = vmatpush1.msra.mxu0 0.0
    %3733 = vmatprep.subr.mxu0 0.0
    %3734 = vmatpush1.msra.mxu0 0.0
    %3735 = vmatprep.subr.mxu0 0.0
    %3736 = vmatpush1.msra.mxu0 0.0
    %3737 = vmatprep.subr.mxu0 0.0
    %3738 = vmatpush1.msra.mxu0 0.0
    %3739 = vmatprep.subr.mxu0 0.0
    %3740 = vmatpush1.msra.mxu0 0.0
    %3741 = vmatprep.subr.mxu0 0.0
    %3742 = vmatpush1.msra.mxu0 0.0
    %3743 = vmatprep.subr.mxu0 0.0
    %3744 = vmatpush1.msra.mxu0 0.0
    %3745 = vmatprep.mubr.f32.mxu0 0.0
    %3746 = vmatmul.mubr.f32.gmra.mrb[0].mxu0 %v3676
    %v3747 = vpop.f32.mrb[0].mxu0
    %v3748 = vadd.f32 %v3673, %v3747
    %v3749 = vpop.f32.mrb[0].mxu0
    %3750 = vmatprep.mubr.f32.mxu0 0.0
    %3751 = vmatmul.mubr.f32.gmra.mrb[0].mxu0 %v3679
    %v3752 = vpop.f32.mrb[0].mxu0
    %v3753 = vadd.f32 %v3673, %v3752
    %v3754 = vpop.f32.mrb[0].mxu0
    %3755 = vdwg.mxu0
    %v3756 = vadd.f32 %v2168, %v3748
    %v3757 = vadd.f32 %v2169, %v3753
    %s3758 = scalar_lea.vmem %s25, 1
    %v3759 = vld [vmem:[%s3758] sm:$0x1]
    %s3760 = scalar_lea.vmem %s27, 1
    %v3761 = vld [vmem:[%s3760] sm:$0x1]
    %v3762 = vsel %vm285, %v3756, 0.0
    %3763 = vadd.xlane.f32.xlu0 %v3762
    %v3764 = vpop.xlane.xlu0 %3763
    %v3765 = vsel %vm285, %v3757, 0.0
    %3766 = vadd.xlane.f32.xlu0 %v3765
    %v3767 = vpop.xlane.xlu0 %3766
    %v3768 = vmul.f32 %v3764, %v292
    %v3769 = vmul.f32 %v3767, %v292
    %v3770 = vsub.f32 %v3756, %v3768
    %v3771 = vsub.f32 %v3757, %v3769
    %v3772 = vmul.f32 %v3770, %v3770
    %v3773 = vmul.f32 %v3771, %v3771
    %v3774 = vsel %vm285, %v3772, 0.0
    %3775 = vadd.xlane.f32.xlu0 %v3774
    %v3776 = vpop.xlane.xlu0 %3775
    %v3777 = vsel %vm285, %v3773, 0.0
    %3778 = vadd.xlane.f32.xlu0 %v3777
    %v3779 = vpop.xlane.xlu0 %3778
    %v3780 = vmul.f32 %v3776, %v292
    %v3781 = vmul.f32 %v3779, %v292
    %v3782 = vadd.f32 %v3780, 1e-05
    %v3783 = vadd.f32 %v3781, 1e-05
    %v3784 = vrsqrt.pop %v3782
    %v3785 = vrsqrt.pop %v3783
    %v3786 = vmul.f32 %v3770, %v3784
    %v3787 = vmul.f32 %v3771, %v3785
    %v3789 = vlaneseq
    %v3790 = vshrl.u32 %v3789, 7
    %v3791 = vsub.s32 0, %v3790
    %v3792 = vrot.slane %v3759, %v3791
    %v3794 = vmul.f32 %v3786, %v3792
    %v3795 = vmul.f32 %v3787, %v3792
    %v3797 = vlaneseq
    %v3798 = vshrl.u32 %v3797, 7
    %v3799 = vsub.s32 0, %v3798
    %v3800 = vrot.slane %v3761, %v3799
    %v3802 = vadd.f32 %v3794, %v3800
    %v3803 = vadd.f32 %v3795, %v3800
    %s3804 = scalar_lea.vmem %s29, 32
    %v3805 = vld [vmem:[%s3804] sm:$0xff]
    %v3806 = vld [vmem:[%s3804 + $0x8] sm:$0xff]
    %v3807 = vld [vmem:[%s3804 + $0x10] sm:$0xff]
    %v3808 = vld [vmem:[%s3804 + $0x18] sm:$0xff]
    %s3809 = scalar_lea.vmem %s31, 1
    %v3810 = vld [vmem:[%s3809] sm:$0x1]
    %v3812 = vlaneseq
    %v3813 = vshrl.u32 %v3812, 7
    %v3814 = vsub.s32 0, %v3813
    %v3815 = vrot.slane %v3810, %v3814
    %v3818 = vsel %vm285, %v3802, 0
    %v3821 = vsel %vm285, %v3803, 0
    %3823 = vmatprep.subr.mxu0 0.0
    %3824 = vmatpush1.msra.mxu0 %v3805
    %3825 = vmatprep.subr.mxu0 0.0
    %3826 = vmatpush1.msra.mxu0 %v3806
    %3827 = vmatprep.subr.mxu0 0.0
    %3828 = vmatpush1.msra.mxu0 %v3807
    %3829 = vmatprep.subr.mxu0 0.0
    %3830 = vmatpush1.msra.mxu0 %v3808
    %3831 = vmatprep.subr.mxu0 0.0
    %3832 = vmatpush1.msra.mxu0 0.0
    %3833 = vmatprep.subr.mxu0 0.0
    %3834 = vmatpush1.msra.mxu0 0.0
    %3835 = vmatprep.subr.mxu0 0.0
    %3836 = vmatpush1.msra.mxu0 0.0
    %3837 = vmatprep.subr.mxu0 0.0
    %3838 = vmatpush1.msra.mxu0 0.0
    %3839 = vmatprep.subr.mxu0 0.0
    %3840 = vmatpush1.msra.mxu0 0.0
    %3841 = vmatprep.subr.mxu0 0.0
    %3842 = vmatpush1.msra.mxu0 0.0
    %3843 = vmatprep.subr.mxu0 0.0
    %3844 = vmatpush1.msra.mxu0 0.0
    %3845 = vmatprep.subr.mxu0 0.0
    %3846 = vmatpush1.msra.mxu0 0.0
    %3847 = vmatprep.subr.mxu0 0.0
    %3848 = vmatpush1.msra.mxu0 0.0
    %3849 = vmatprep.subr.mxu0 0.0
    %3850 = vmatpush1.msra.mxu0 0.0
    %3851 = vmatprep.subr.mxu0 0.0
    %3852 = vmatpush1.msra.mxu0 0.0
    %3853 = vmatprep.subr.mxu0 0.0
    %3854 = vmatpush1.msra.mxu0 0.0
    %3855 = vmatprep.subr.mxu0 0.0
    %3856 = vmatpush1.msra.mxu0 0.0
    %3857 = vmatprep.subr.mxu0 0.0
    %3858 = vmatpush1.msra.mxu0 0.0
    %3859 = vmatprep.subr.mxu0 0.0
    %3860 = vmatpush1.msra.mxu0 0.0
    %3861 = vmatprep.subr.mxu0 0.0
    %3862 = vmatpush1.msra.mxu0 0.0
    %3863 = vmatprep.subr.mxu0 0.0
    %3864 = vmatpush1.msra.mxu0 0.0
    %3865 = vmatprep.subr.mxu0 0.0
    %3866 = vmatpush1.msra.mxu0 0.0
    %3867 = vmatprep.subr.mxu0 0.0
    %3868 = vmatpush1.msra.mxu0 0.0
    %3869 = vmatprep.subr.mxu0 0.0
    %3870 = vmatpush1.msra.mxu0 0.0
    %3871 = vmatprep.subr.mxu0 0.0
    %3872 = vmatpush1.msra.mxu0 0.0
    %3873 = vmatprep.subr.mxu0 0.0
    %3874 = vmatpush1.msra.mxu0 0.0
    %3875 = vmatprep.subr.mxu0 0.0
    %3876 = vmatpush1.msra.mxu0 0.0
    %3877 = vmatprep.subr.mxu0 0.0
    %3878 = vmatpush1.msra.mxu0 0.0
    %3879 = vmatprep.subr.mxu0 0.0
    %3880 = vmatpush1.msra.mxu0 0.0
    %3881 = vmatprep.subr.mxu0 0.0
    %3882 = vmatpush1.msra.mxu0 0.0
    %3883 = vmatprep.subr.mxu0 0.0
    %3884 = vmatpush1.msra.mxu0 0.0
    %3885 = vmatprep.subr.mxu0 0.0
    %3886 = vmatpush1.msra.mxu0 0.0
    %3887 = vmatprep.mubr.f32.mxu0 0.0
    %3888 = vmatmul.mubr.f32.gmra.mrb[0].mxu0 %v3818
    %v3889 = vpop.f32.mrb[0].mxu0
    %v3890 = vadd.f32 %v3815, %v3889
    %v3891 = vpop.f32.mrb[0].mxu0
    %3892 = vmatprep.mubr.f32.mxu0 0.0
    %3893 = vmatmul.mubr.f32.gmra.mrb[0].mxu0 %v3821
    %v3894 = vpop.f32.mrb[0].mxu0
    %v3895 = vadd.f32 %v3815, %v3894
    %v3896 = vpop.f32.mrb[0].mxu0
    %3897 = vdwg.mxu0
    %v3898 = vmul.f32 %v3890, 1.702
    %v3899 = vmul.f32 %v3895, 1.702
    %v3900 = vxor.u32 %v3898, 2147483648
    %v3901 = vxor.u32 %v3899, 2147483648
    %v3902 = vmul.f32 %v3900, 1.442695
    %v3903 = vpow.pop %v3902
    %v3904 = vmul.f32 %v3901, 1.442695
    %v3905 = vpow.pop %v3904
    %v3906 = vadd.f32 %v3903, 1.0
    %v3907 = vadd.f32 %v3905, 1.0
    %v3908 = vrcp.pop %v3906
    %v3909 = vmul.f32 1.0, %v3908
    %v3910 = vrcp.pop %v3907
    %v3911 = vmul.f32 1.0, %v3910
    %v3912 = vmul.f32 %v3890, %v3909
    %v3913 = vmul.f32 %v3895, %v3911
    %s3914 = scalar_lea.vmem %s33, 128
    %v3915 = vld [vmem:[%s3914] sm:$0xff]
    %v3916 = vld [vmem:[%s3914 + $0x8] sm:$0xff]
    %v3917 = vld [vmem:[%s3914 + $0x10] sm:$0xff]
    %v3918 = vld [vmem:[%s3914 + $0x18] sm:$0xff]
    %v3919 = vld [vmem:[%s3914 + $0x20] sm:$0xff]
    %v3920 = vld [vmem:[%s3914 + $0x28] sm:$0xff]
    %v3921 = vld [vmem:[%s3914 + $0x30] sm:$0xff]
    %v3922 = vld [vmem:[%s3914 + $0x38] sm:$0xff]
    %v3923 = vld [vmem:[%s3914 + $0x40] sm:$0xff]
    %v3924 = vld [vmem:[%s3914 + $0x48] sm:$0xff]
    %v3925 = vld [vmem:[%s3914 + $0x50] sm:$0xff]
    %v3926 = vld [vmem:[%s3914 + $0x58] sm:$0xff]
    %v3927 = vld [vmem:[%s3914 + $0x60] sm:$0xff]
    %v3928 = vld [vmem:[%s3914 + $0x68] sm:$0xff]
    %v3929 = vld [vmem:[%s3914 + $0x70] sm:$0xff]
    %v3930 = vld [vmem:[%s3914 + $0x78] sm:$0xff]
    %s3931 = scalar_lea.vmem %s35, 1
    %v3932 = vld [vmem:[%s3931] sm:$0x1]
    %v3934 = vlaneseq
    %v3935 = vshrl.u32 %v3934, 7
    %v3936 = vsub.s32 0, %v3935
    %v3937 = vrot.slane %v3932, %v3936
    %3939 = vmatprep.subr.mxu0 0.0
    %3940 = vmatpush1.msra.mxu0 %v3915
    %3941 = vmatprep.subr.mxu0 0.0
    %3942 = vmatpush1.msra.mxu0 %v3916
    %3943 = vmatprep.subr.mxu0 0.0
    %3944 = vmatpush1.msra.mxu0 %v3917
    %3945 = vmatprep.subr.mxu0 0.0
    %3946 = vmatpush1.msra.mxu0 %v3918
    %3947 = vmatprep.subr.mxu0 0.0
    %3948 = vmatpush1.msra.mxu0 %v3919
    %3949 = vmatprep.subr.mxu0 0.0
    %3950 = vmatpush1.msra.mxu0 %v3920
    %3951 = vmatprep.subr.mxu0 0.0
    %3952 = vmatpush1.msra.mxu0 %v3921
    %3953 = vmatprep.subr.mxu0 0.0
    %3954 = vmatpush1.msra.mxu0 %v3922
    %3955 = vmatprep.subr.mxu0 0.0
    %3956 = vmatpush1.msra.mxu0 %v3923
    %3957 = vmatprep.subr.mxu0 0.0
    %3958 = vmatpush1.msra.mxu0 %v3924
    %3959 = vmatprep.subr.mxu0 0.0
    %3960 = vmatpush1.msra.mxu0 %v3925
    %3961 = vmatprep.subr.mxu0 0.0
    %3962 = vmatpush1.msra.mxu0 %v3926
    %3963 = vmatprep.subr.mxu0 0.0
    %3964 = vmatpush1.msra.mxu0 %v3927
    %3965 = vmatprep.subr.mxu0 0.0
    %3966 = vmatpush1.msra.mxu0 %v3928
    %3967 = vmatprep.subr.mxu0 0.0
    %3968 = vmatpush1.msra.mxu0 %v3929
    %3969 = vmatprep.subr.mxu0 0.0
    %3970 = vmatpush1.msra.mxu0 %v3930
    %3971 = vmatprep.subr.mxu0 0.0
    %3972 = vmatpush1.msra.mxu0 0.0
    %3973 = vmatprep.subr.mxu0 0.0
    %3974 = vmatpush1.msra.mxu0 0.0
    %3975 = vmatprep.subr.mxu0 0.0
    %3976 = vmatpush1.msra.mxu0 0.0
    %3977 = vmatprep.subr.mxu0 0.0
    %3978 = vmatpush1.msra.mxu0 0.0
    %3979 = vmatprep.subr.mxu0 0.0
    %3980 = vmatpush1.msra.mxu0 0.0
    %3981 = vmatprep.subr.mxu0 0.0
    %3982 = vmatpush1.msra.mxu0 0.0
    %3983 = vmatprep.subr.mxu0 0.0
    %3984 = vmatpush1.msra.mxu0 0.0
    %3985 = vmatprep.subr.mxu0 0.0
    %3986 = vmatpush1.msra.mxu0 0.0
    %3987 = vmatprep.subr.mxu0 0.0
    %3988 = vmatpush1.msra.mxu0 0.0
    %3989 = vmatprep.subr.mxu0 0.0
    %3990 = vmatpush1.msra.mxu0 0.0
    %3991 = vmatprep.subr.mxu0 0.0
    %3992 = vmatpush1.msra.mxu0 0.0
    %3993 = vmatprep.subr.mxu0 0.0
    %3994 = vmatpush1.msra.mxu0 0.0
    %3995 = vmatprep.subr.mxu0 0.0
    %3996 = vmatpush1.msra.mxu0 0.0
    %3997 = vmatprep.subr.mxu0 0.0
    %3998 = vmatpush1.msra.mxu0 0.0
    %3999 = vmatprep.subr.mxu0 0.0
    %4000 = vmatpush1.msra.mxu0 0.0
    %4001 = vmatprep.subr.mxu0 0.0
    %4002 = vmatpush1.msra.mxu0 0.0
    %4003 = vmatprep.mubr.f32.mxu0 0.0
    %4004 = vmatmul.mubr.f32.gmra.mrb[0].mxu0 %v3912
    %v4005 = vpop.f32.mrb[0].mxu0
    %v4006 = vadd.f32 %v3937, %v4005
    %v4007 = vpop.f32.mrb[0].mxu0
    %4008 = vmatprep.mubr.f32.mxu0 0.0
    %4009 = vmatmul.mubr.f32.gmra.mrb[0].mxu0 %v3913
    %v4010 = vpop.f32.mrb[0].mxu0
    %v4011 = vadd.f32 %v3937, %v4010
    %v4012 = vpop.f32.mrb[0].mxu0
    %4013 = vdwg.mxu0
    %v4014 = vadd.f32 %v3756, %v4006
    %v4015 = vadd.f32 %v3757, %v4011
    %v4016 = vld [vmem:[%s37] sm:$0x1]
    %v4017 = vld [vmem:[%s39] sm:$0x1]
    %v4020 = vrot.slane %v4015, 7
    %vm4021 = vcmask 1041409
    %v4022 = vsel %vm4021, %v4020, %v4014
    %vm4024 = vcmask 254976
    %v4025 = vsel %vm4024, %v4022, 0.0
    %4026 = vadd.xlane.f32.xlu0 %v4025
    %v4027 = vpop.xlane.xlu0 %4026
    %v4028 = vmul.f32 %v4027, %v292
    %v4030 = vrot.slane %v4028, 1
    %v4033 = vsub.f32 %v4014, %v4028
    %v4034 = vsub.f32 %v4015, %v4030
    %v4035 = vmul.f32 %v4033, %v4033
    %v4036 = vmul.f32 %v4034, %v4034
    %v4039 = vrot.slane %v4036, 7
    %v4040 = vsel %vm4021, %v4039, %v4035
    %v4042 = vsel %vm4024, %v4040, 0.0
    %4043 = vadd.xlane.f32.xlu0 %v4042
    %v4044 = vpop.xlane.xlu0 %4043
    %v4045 = vmul.f32 %v4044, %v292
    %v4046 = vadd.f32 %v4045, 1e-05
    %v4047 = vrsqrt.pop %v4046
    %v4049 = vrot.slane %v4047, 1
    %v4052 = vmul.f32 %v4033, %v4047
    %v4053 = vmul.f32 %v4034, %v4049
    %v4055 = vlaneseq
    %v4056 = vshrl.u32 %v4055, 7
    %v4057 = vsub.s32 0, %v4056
    %v4058 = vrot.slane %v4016, %v4057
    %v4060 = vmul.f32 %v4052, %v4058
    %v4061 = vmul.f32 %v4053, %v4058
    %v4063 = vlaneseq
    %v4064 = vshrl.u32 %v4063, 7
    %v4065 = vsub.s32 0, %v4064
    %v4066 = vrot.slane %v4017, %v4065
    %v4068 = vadd.f32 %v4060, %v4066
    %v4069 = vadd.f32 %v4061, %v4066
    %v4070 = vld [vmem:[%s41] sm:$0xff]
    %v4071 = vld [vmem:[%s41 + $0x8] sm:$0xff]
    %v4072 = vld [vmem:[%s41 + $0x10] sm:$0xff]
    %v4073 = vld [vmem:[%s41 + $0x18] sm:$0xff]
    %v4076 = vrot.slane %v4069, 7
    %v4077 = vsel %vm4021, %v4076, %v4068
    %v4078 = vsel %vm285, %v4077, 0
    %4080 = vmatprep.subr.mxu0 0.0
    %4081 = vmatpush1.msra.mxu0 %v4070
    %4082 = vmatprep.subr.mxu0 0.0
    %4083 = vmatpush1.msra.mxu0 %v4071
    %4084 = vmatprep.subr.mxu0 0.0
    %4085 = vmatpush1.msra.mxu0 %v4072
    %4086 = vmatprep.subr.mxu0 0.0
    %4087 = vmatpush1.msra.mxu0 %v4073
    %4088 = vmatprep.subr.mxu0 0.0
    %4089 = vmatpush1.msra.mxu0 0.0
    %4090 = vmatprep.subr.mxu0 0.0
    %4091 = vmatpush1.msra.mxu0 0.0
    %4092 = vmatprep.subr.mxu0 0.0
    %4093 = vmatpush1.msra.mxu0 0.0
    %4094 = vmatprep.subr.mxu0 0.0
    %4095 = vmatpush1.msra.mxu0 0.0
    %4096 = vmatprep.subr.mxu0 0.0
    %4097 = vmatpush1.msra.mxu0 0.0
    %4098 = vmatprep.subr.mxu0 0.0
    %4099 = vmatpush1.msra.mxu0 0.0
    %4100 = vmatprep.subr.mxu0 0.0
    %4101 = vmatpush1.msra.mxu0 0.0
    %4102 = vmatprep.subr.mxu0 0.0
    %4103 = vmatpush1.msra.mxu0 0.0
    %4104 = vmatprep.subr.mxu0 0.0
    %4105 = vmatpush1.msra.mxu0 0.0
    %4106 = vmatprep.subr.mxu0 0.0
    %4107 = vmatpush1.msra.mxu0 0.0
    %4108 = vmatprep.subr.mxu0 0.0
    %4109 = vmatpush1.msra.mxu0 0.0
    %4110 = vmatprep.subr.mxu0 0.0
    %4111 = vmatpush1.msra.mxu0 0.0
    %4112 = vmatprep.subr.mxu0 0.0
    %4113 = vmatpush1.msra.mxu0 0.0
    %4114 = vmatprep.subr.mxu0 0.0
    %4115 = vmatpush1.msra.mxu0 0.0
    %4116 = vmatprep.subr.mxu0 0.0
    %4117 = vmatpush1.msra.mxu0 0.0
    %4118 = vmatprep.subr.mxu0 0.0
    %4119 = vmatpush1.msra.mxu0 0.0
    %4120 = vmatprep.subr.mxu0 0.0
    %4121 = vmatpush1.msra.mxu0 0.0
    %4122 = vmatprep.subr.mxu0 0.0
    %4123 = vmatpush1.msra.mxu0 0.0
    %4124 = vmatprep.subr.mxu0 0.0
    %4125 = vmatpush1.msra.mxu0 0.0
    %4126 = vmatprep.subr.mxu0 0.0
    %4127 = vmatpush1.msra.mxu0 0.0
    %4128 = vmatprep.subr.mxu0 0.0
    %4129 = vmatpush1.msra.mxu0 0.0
    %4130 = vmatprep.subr.mxu0 0.0
    %4131 = vmatpush1.msra.mxu0 0.0
    %4132 = vmatprep.subr.mxu0 0.0
    %4133 = vmatpush1.msra.mxu0 0.0
    %4134 = vmatprep.subr.mxu0 0.0
    %4135 = vmatpush1.msra.mxu0 0.0
    %4136 = vmatprep.subr.mxu0 0.0
    %4137 = vmatpush1.msra.mxu0 0.0
    %4138 = vmatprep.subr.mxu0 0.0
    %4139 = vmatpush1.msra.mxu0 0.0
    %4140 = vmatprep.subr.mxu0 0.0
    %4141 = vmatpush1.msra.mxu0 0.0
    %4142 = vmatprep.subr.mxu0 0.0
    %4143 = vmatpush1.msra.mxu0 0.0
    %4144 = vmatprep.mubr.f32.mxu0 0.0
    %4145 = vmatmul.mubr.f32.gmra.mrb[0].mxu0 %v4078
    %v4146 = vpop.f32.mrb[0].mxu0
    %v4147 = vadd.f32 0.0, %v4146
    %v4148 = vpop.f32.mrb[0].mxu0
    %4149 = vdwg.mxu0
    %v4150 = vmul.f32 %v4147, %v4147
    %vm4151 = vcmask 123904
    %v4152 = vsel %vm4151, %v4150, 0.0
    %4153 = vadd.xlane.f32.xlu0 %v4152
    %v4154 = vpop.xlane.xlu0 %4153
    %v4155 = vrsqrt.pop %v4154
    %v4156 = vmul.f32 %v4147, %v4155
    %v4157 = vsel %vm1823, %v4156, 0.0
    %4158 = vst [vmem:[#allocation2] sm:$0x3] %v4157
    %v4159 = vld [vmem:[%s43] sm:$0xff]
    %v4160 = vld [vmem:[%s43 + $0x8] sm:$0xff]
    %v4161 = vld [vmem:[%s45] sm:$0xff]
    %v4162 = vadd.f32 %v4159, %v4161
    %v4163 = vadd.f32 %v4160, %v4161
    %v4164 = vlaneseq
    %v4165 = vshrl.u32 %v4164, 7
    %vm4166 = vcmp.le.s32.totalorder %v330, %v4165
    %v4167 = vsel %vm4166, 0.0, -1e+30
    %v4168 = vld [vmem:[%s47] sm:$0x1]
    %v4169 = vld [vmem:[%s49] sm:$0x1]
    %v4170 = vsel %vm285, %v4162, 0.0
    %4171 = vadd.xlane.f32.xlu0 %v4170
    %v4172 = vpop.xlane.xlu0 %4171
    %v4173 = vsel %vm285, %v4163, 0.0
    %4174 = vadd.xlane.f32.xlu0 %v4173
    %v4175 = vpop.xlane.xlu0 %4174
    %v4176 = vmul.f32 %v4172, %v292
    %v4177 = vmul.f32 %v4175, %v292
    %v4178 = vsub.f32 %v4162, %v4176
    %v4179 = vsub.f32 %v4163, %v4177
    %v4180 = vmul.f32 %v4178, %v4178
    %v4181 = vmul.f32 %v4179, %v4179
    %v4182 = vsel %vm285, %v4180, 0.0
    %4183 = vadd.xlane.f32.xlu0 %v4182
    %v4184 = vpop.xlane.xlu0 %4183
    %v4185 = vsel %vm285, %v4181, 0.0
    %4186 = vadd.xlane.f32.xlu0 %v4185
    %v4187 = vpop.xlane.xlu0 %4186
    %v4188 = vmul.f32 %v4184, %v292
    %v4189 = vmul.f32 %v4187, %v292
    %v4190 = vadd.f32 %v4188, 1e-05
    %v4191 = vadd.f32 %v4189, 1e-05
    %v4192 = vrsqrt.pop %v4190
    %v4193 = vrsqrt.pop %v4191
    %v4194 = vmul.f32 %v4178, %v4192
    %v4195 = vmul.f32 %v4179, %v4193
    %v4197 = vlaneseq
    %v4198 = vshrl.u32 %v4197, 7
    %v4199 = vsub.s32 0, %v4198
    %v4200 = vrot.slane %v4168, %v4199
    %v4202 = vmul.f32 %v4194, %v4200
    %v4203 = vmul.f32 %v4195, %v4200
    %v4205 = vlaneseq
    %v4206 = vshrl.u32 %v4205, 7
    %v4207 = vsub.s32 0, %v4206
    %v4208 = vrot.slane %v4169, %v4207
    %v4210 = vadd.f32 %v4202, %v4208
    %v4211 = vadd.f32 %v4203, %v4208
    %v4212 = vld [vmem:[%s51] sm:$0xff]
    %v4213 = vld [vmem:[%s51 + $0x8] sm:$0xff]
    %v4214 = vld [vmem:[%s51 + $0x10] sm:$0xff]
    %v4215 = vld [vmem:[%s51 + $0x18] sm:$0xff]
    %v4216 = vld [vmem:[%s53] sm:$0x1]
    %v4217 = vld [vmem:[%s55] sm:$0xff]
    %v4218 = vld [vmem:[%s55 + $0x8] sm:$0xff]
    %v4219 = vld [vmem:[%s55 + $0x10] sm:$0xff]
    %v4220 = vld [vmem:[%s55 + $0x18] sm:$0xff]
    %v4221 = vld [vmem:[%s57] sm:$0x1]
    %v4223 = vlaneseq
    %v4224 = vshrl.u32 %v4223, 7
    %v4225 = vsub.s32 0, %v4224
    %v4226 = vrot.slane %v4216, %v4225
    %v4229 = vsel %vm285, %v4210, 0
    %v4232 = vsel %vm285, %v4211, 0
    %4234 = vmatprep.subr.mxu0 0.0
    %4235 = vmatpush1.msra.mxu0 %v4212
    %4236 = vmatprep.subr.mxu0 0.0
    %4237 = vmatpush1.msra.mxu0 %v4213
    %4238 = vmatprep.subr.mxu0 0.0
    %4239 = vmatpush1.msra.mxu0 %v4214
    %4240 = vmatprep.subr.mxu0 0.0
    %4241 = vmatpush1.msra.mxu0 %v4215
    %4242 = vmatprep.subr.mxu0 0.0
    %4243 = vmatpush1.msra.mxu0 0.0
    %4244 = vmatprep.subr.mxu0 0.0
    %4245 = vmatpush1.msra.mxu0 0.0
    %4246 = vmatprep.subr.mxu0 0.0
    %4247 = vmatpush1.msra.mxu0 0.0
    %4248 = vmatprep.subr.mxu0 0.0
    %4249 = vmatpush1.msra.mxu0 0.0
    %4250 = vmatprep.subr.mxu0 0.0
    %4251 = vmatpush1.msra.mxu0 0.0
    %4252 = vmatprep.subr.mxu0 0.0
    %4253 = vmatpush1.msra.mxu0 0.0
    %4254 = vmatprep.subr.mxu0 0.0
    %4255 = vmatpush1.msra.mxu0 0.0
    %4256 = vmatprep.subr.mxu0 0.0
    %4257 = vmatpush1.msra.mxu0 0.0
    %4258 = vmatprep.subr.mxu0 0.0
    %4259 = vmatpush1.msra.mxu0 0.0
    %4260 = vmatprep.subr.mxu0 0.0
    %4261 = vmatpush1.msra.mxu0 0.0
    %4262 = vmatprep.subr.mxu0 0.0
    %4263 = vmatpush1.msra.mxu0 0.0
    %4264 = vmatprep.subr.mxu0 0.0
    %4265 = vmatpush1.msra.mxu0 0.0
    %4266 = vmatprep.subr.mxu0 0.0
    %4267 = vmatpush1.msra.mxu0 0.0
    %4268 = vmatprep.subr.mxu0 0.0
    %4269 = vmatpush1.msra.mxu0 0.0
    %4270 = vmatprep.subr.mxu0 0.0
    %4271 = vmatpush1.msra.mxu0 0.0
    %4272 = vmatprep.subr.mxu0 0.0
    %4273 = vmatpush1.msra.mxu0 0.0
    %4274 = vmatprep.subr.mxu0 0.0
    %4275 = vmatpush1.msra.mxu0 0.0
    %4276 = vmatprep.subr.mxu0 0.0
    %4277 = vmatpush1.msra.mxu0 0.0
    %4278 = vmatprep.subr.mxu0 0.0
    %4279 = vmatpush1.msra.mxu0 0.0
    %4280 = vmatprep.subr.mxu0 0.0
    %4281 = vmatpush1.msra.mxu0 0.0
    %4282 = vmatprep.subr.mxu0 0.0
    %4283 = vmatpush1.msra.mxu0 0.0
    %4284 = vmatprep.subr.mxu0 0.0
    %4285 = vmatpush1.msra.mxu0 0.0
    %4286 = vmatprep.subr.mxu0 0.0
    %4287 = vmatpush1.msra.mxu0 0.0
    %4288 = vmatprep.subr.mxu0 0.0
    %4289 = vmatpush1.msra.mxu0 0.0
    %4290 = vmatprep.subr.mxu0 0.0
    %4291 = vmatpush1.msra.mxu0 0.0
    %4292 = vmatprep.subr.mxu0 0.0
    %4293 = vmatpush1.msra.mxu0 0.0
    %4294 = vmatprep.subr.mxu0 0.0
    %4295 = vmatpush1.msra.mxu0 0.0
    %4296 = vmatprep.subr.mxu0 0.0
    %4297 = vmatpush1.msra.mxu0 0.0
    %4298 = vmatprep.mubr.f32.mxu0 0.0
    %4299 = vmatmul.mubr.f32.gmra.mrb[0].mxu0 %v4229
    %v4300 = vpop.f32.mrb[0].mxu0
    %v4301 = vadd.f32 %v4226, %v4300
    %v4302 = vpop.f32.mrb[0].mxu0
    %4303 = vmatprep.mubr.f32.mxu0 0.0
    %4304 = vmatmul.mubr.f32.gmra.mrb[0].mxu0 %v4232
    %v4305 = vpop.f32.mrb[0].mxu0
    %v4306 = vadd.f32 %v4226, %v4305
    %v4307 = vpop.f32.mrb[0].mxu0
    %4308 = vdwg.mxu0
    %v4309 = vmul.f32 %v4301, 0.35355338
    %v4310 = vmul.f32 %v4306, 0.35355338
    %4312 = vrot.lane.b32.xlu0 %v4301, 96
    %v4313 = vpop.permute.xlu0 %4312
    %v4315 = vsel %vm479, %v4309, 0
    %v4317 = vsel %vm479, %v4313, 0
    %4319 = vmatprep.subr.mxu0 0.0
    %4320 = vmatpush1.xpose.msra.mxu0 %v4317
    %4321 = vmatprep.subr.mxu0 0.0
    %4322 = vmatpush1.xpose.msra.mxu0 0.0
    %4323 = vmatprep.subr.mxu0 0.0
    %4324 = vmatpush1.xpose.msra.mxu0 0.0
    %4325 = vmatprep.subr.mxu0 0.0
    %4326 = vmatpush1.xpose.msra.mxu0 0.0
    %4327 = vmatprep.subr.mxu0 0.0
    %4328 = vmatpush1.xpose.msra.mxu0 0.0
    %4329 = vmatprep.subr.mxu0 0.0
    %4330 = vmatpush1.xpose.msra.mxu0 0.0
    %4331 = vmatprep.subr.mxu0 0.0
    %4332 = vmatpush1.xpose.msra.mxu0 0.0
    %4333 = vmatprep.subr.mxu0 0.0
    %4334 = vmatpush1.xpose.msra.mxu0 0.0
    %4335 = vmatprep.subr.mxu0 0.0
    %4336 = vmatpush1.xpose.msra.mxu0 0.0
    %4337 = vmatprep.subr.mxu0 0.0
    %4338 = vmatpush1.xpose.msra.mxu0 0.0
    %4339 = vmatprep.subr.mxu0 0.0
    %4340 = vmatpush1.xpose.msra.mxu0 0.0
    %4341 = vmatprep.subr.mxu0 0.0
    %4342 = vmatpush1.xpose.msra.mxu0 0.0
    %4343 = vmatprep.subr.mxu0 0.0
    %4344 = vmatpush1.xpose.msra.mxu0 0.0
    %4345 = vmatprep.subr.mxu0 0.0
    %4346 = vmatpush1.xpose.msra.mxu0 0.0
    %4347 = vmatprep.subr.mxu0 0.0
    %4348 = vmatpush1.xpose.msra.mxu0 0.0
    %4349 = vmatprep.subr.mxu0 0.0
    %4350 = vmatpush1.xpose.msra.mxu0 0.0
    %4351 = vmatprep.subr.mxu0 0.0
    %4352 = vmatpush1.xpose.msra.mxu0 0.0
    %4353 = vmatprep.subr.mxu0 0.0
    %4354 = vmatpush1.xpose.msra.mxu0 0.0
    %4355 = vmatprep.subr.mxu0 0.0
    %4356 = vmatpush1.xpose.msra.mxu0 0.0
    %4357 = vmatprep.subr.mxu0 0.0
    %4358 = vmatpush1.xpose.msra.mxu0 0.0
    %4359 = vmatprep.subr.mxu0 0.0
    %4360 = vmatpush1.xpose.msra.mxu0 0.0
    %4361 = vmatprep.subr.mxu0 0.0
    %4362 = vmatpush1.xpose.msra.mxu0 0.0
    %4363 = vmatprep.subr.mxu0 0.0
    %4364 = vmatpush1.xpose.msra.mxu0 0.0
    %4365 = vmatprep.subr.mxu0 0.0
    %4366 = vmatpush1.xpose.msra.mxu0 0.0
    %4367 = vmatprep.subr.mxu0 0.0
    %4368 = vmatpush1.xpose.msra.mxu0 0.0
    %4369 = vmatprep.subr.mxu0 0.0
    %4370 = vmatpush1.xpose.msra.mxu0 0.0
    %4371 = vmatprep.subr.mxu0 0.0
    %4372 = vmatpush1.xpose.msra.mxu0 0.0
    %4373 = vmatprep.subr.mxu0 0.0
    %4374 = vmatpush1.xpose.msra.mxu0 0.0
    %4375 = vmatprep.subr.mxu0 0.0
    %4376 = vmatpush1.xpose.msra.mxu0 0.0
    %4377 = vmatprep.subr.mxu0 0.0
    %4378 = vmatpush1.xpose.msra.mxu0 0.0
    %4379 = vmatprep.subr.mxu0 0.0
    %4380 = vmatpush1.xpose.msra.mxu0 0.0
    %4381 = vmatprep.subr.mxu0 0.0
    %4382 = vmatpush1.xpose.msra.mxu0 0.0
    %4383 = vmatprep.mubr.f32.mxu0 0.0
    %4384 = vmatmul.mubr.f32.gmra.mrb[0].mxu0 %v4315
    %v4385 = vpop.f32.mrb[0].mxu0
    %v4386 = vadd.f32 %v4167, %v4385
    %v4387 = vpop.f32.mrb[0].mxu0
    %4388 = vdwg.mxu0
    %4390 = vrot.lane.b32.xlu0 %v4306, 96
    %v4391 = vpop.permute.xlu0 %4390
    %v4393 = vsel %vm479, %v4310, 0
    %v4395 = vsel %vm479, %v4391, 0
    %4397 = vmatprep.subr.mxu0 0.0
    %4398 = vmatpush1.xpose.msra.mxu0 %v4395
    %4399 = vmatprep.subr.mxu0 0.0
    %4400 = vmatpush1.xpose.msra.mxu0 0.0
    %4401 = vmatprep.subr.mxu0 0.0
    %4402 = vmatpush1.xpose.msra.mxu0 0.0
    %4403 = vmatprep.subr.mxu0 0.0
    %4404 = vmatpush1.xpose.msra.mxu0 0.0
    %4405 = vmatprep.subr.mxu0 0.0
    %4406 = vmatpush1.xpose.msra.mxu0 0.0
    %4407 = vmatprep.subr.mxu0 0.0
    %4408 = vmatpush1.xpose.msra.mxu0 0.0
    %4409 = vmatprep.subr.mxu0 0.0
    %4410 = vmatpush1.xpose.msra.mxu0 0.0
    %4411 = vmatprep.subr.mxu0 0.0
    %4412 = vmatpush1.xpose.msra.mxu0 0.0
    %4413 = vmatprep.subr.mxu0 0.0
    %4414 = vmatpush1.xpose.msra.mxu0 0.0
    %4415 = vmatprep.subr.mxu0 0.0
    %4416 = vmatpush1.xpose.msra.mxu0 0.0
    %4417 = vmatprep.subr.mxu0 0.0
    %4418 = vmatpush1.xpose.msra.mxu0 0.0
    %4419 = vmatprep.subr.mxu0 0.0
    %4420 = vmatpush1.xpose.msra.mxu0 0.0
    %4421 = vmatprep.subr.mxu0 0.0
    %4422 = vmatpush1.xpose.msra.mxu0 0.0
    %4423 = vmatprep.subr.mxu0 0.0
    %4424 = vmatpush1.xpose.msra.mxu0 0.0
    %4425 = vmatprep.subr.mxu0 0.0
    %4426 = vmatpush1.xpose.msra.mxu0 0.0
    %4427 = vmatprep.subr.mxu0 0.0
    %4428 = vmatpush1.xpose.msra.mxu0 0.0
    %4429 = vmatprep.subr.mxu0 0.0
    %4430 = vmatpush1.xpose.msra.mxu0 0.0
    %4431 = vmatprep.subr.mxu0 0.0
    %4432 = vmatpush1.xpose.msra.mxu0 0.0
    %4433 = vmatprep.subr.mxu0 0.0
    %4434 = vmatpush1.xpose.msra.mxu0 0.0
    %4435 = vmatprep.subr.mxu0 0.0
    %4436 = vmatpush1.xpose.msra.mxu0 0.0
    %4437 = vmatprep.subr.mxu0 0.0
    %4438 = vmatpush1.xpose.msra.mxu0 0.0
    %4439 = vmatprep.subr.mxu0 0.0
    %4440 = vmatpush1.xpose.msra.mxu0 0.0
    %4441 = vmatprep.subr.mxu0 0.0
    %4442 = vmatpush1.xpose.msra.mxu0 0.0
    %4443 = vmatprep.subr.mxu0 0.0
    %4444 = vmatpush1.xpose.msra.mxu0 0.0
    %4445 = vmatprep.subr.mxu0 0.0
    %4446 = vmatpush1.xpose.msra.mxu0 0.0
    %4447 = vmatprep.subr.mxu0 0.0
    %4448 = vmatpush1.xpose.msra.mxu0 0.0
    %4449 = vmatprep.subr.mxu0 0.0
    %4450 = vmatpush1.xpose.msra.mxu0 0.0
    %4451 = vmatprep.subr.mxu0 0.0
    %4452 = vmatpush1.xpose.msra.mxu0 0.0
    %4453 = vmatprep.subr.mxu0 0.0
    %4454 = vmatpush1.xpose.msra.mxu0 0.0
    %4455 = vmatprep.subr.mxu0 0.0
    %4456 = vmatpush1.xpose.msra.mxu0 0.0
    %4457 = vmatprep.subr.mxu0 0.0
    %4458 = vmatpush1.xpose.msra.mxu0 0.0
    %4459 = vmatprep.subr.mxu0 0.0
    %4460 = vmatpush1.xpose.msra.mxu0 0.0
    %4461 = vmatprep.mubr.f32.mxu0 0.0
    %4462 = vmatmul.mubr.f32.gmra.mrb[0].mxu0 %v4393
    %v4463 = vpop.f32.mrb[0].mxu0
    %v4464 = vadd.f32 %v4167, %v4463
    %v4465 = vpop.f32.mrb[0].mxu0
    %4466 = vdwg.mxu0
    %v4467 = vsel %vm479, %v4386, -inf
    %4468 = vmax.xlane.f32.xlu0 %v4467
    %v4469 = vpop.xlane.xlu0 %4468
    %v4470 = vsel %vm479, %v4464, -inf
    %4471 = vmax.xlane.f32.xlu0 %v4470
    %v4472 = vpop.xlane.xlu0 %4471
    %v4473 = vsub.f32 %v4386, %v4469
    %v4474 = vsub.f32 %v4464, %v4472
    %v4475 = vmul.f32 %v4473, 1.442695
    %v4476 = vpow.pop %v4475
    %v4477 = vmul.f32 %v4474, 1.442695
    %v4478 = vpow.pop %v4477
    %v4479 = vsel %vm479, %v4476, 0.0
    %4480 = vadd.xlane.f32.xlu0 %v4479
    %v4481 = vpop.xlane.xlu0 %4480
    %v4482 = vsel %vm479, %v4478, 0.0
    %4483 = vadd.xlane.f32.xlu0 %v4482
    %v4484 = vpop.xlane.xlu0 %4483
    %v4485 = vrcp.pop %v4481
    %v4486 = vrcp.pop %v4484
    %v4487 = vmul.f32 %v4476, %v4485
    %v4488 = vmul.f32 %v4478, %v4486
    %4489 = vrot.lane.b32.xlu0 %v4301, 64
    %v4490 = vpop.permute.xlu0 %4489
    %v4493 = vsel %vm479, %v4487, 0
    %4495 = vmatprep.subr.mxu0 0.0
    %4496 = vmatpush1.msra.mxu0 %v4490
    %4497 = vmatprep.subr.mxu0 0.0
    %4498 = vmatpush1.msra.mxu0 0.0
    %4499 = vmatprep.subr.mxu0 0.0
    %4500 = vmatpush1.msra.mxu0 0.0
    %4501 = vmatprep.subr.mxu0 0.0
    %4502 = vmatpush1.msra.mxu0 0.0
    %4503 = vmatprep.subr.mxu0 0.0
    %4504 = vmatpush1.msra.mxu0 0.0
    %4505 = vmatprep.subr.mxu0 0.0
    %4506 = vmatpush1.msra.mxu0 0.0
    %4507 = vmatprep.subr.mxu0 0.0
    %4508 = vmatpush1.msra.mxu0 0.0
    %4509 = vmatprep.subr.mxu0 0.0
    %4510 = vmatpush1.msra.mxu0 0.0
    %4511 = vmatprep.subr.mxu0 0.0
    %4512 = vmatpush1.msra.mxu0 0.0
    %4513 = vmatprep.subr.mxu0 0.0
    %4514 = vmatpush1.msra.mxu0 0.0
    %4515 = vmatprep.subr.mxu0 0.0
    %4516 = vmatpush1.msra.mxu0 0.0
    %4517 = vmatprep.subr.mxu0 0.0
    %4518 = vmatpush1.msra.mxu0 0.0
    %4519 = vmatprep.subr.mxu0 0.0
    %4520 = vmatpush1.msra.mxu0 0.0
    %4521 = vmatprep.subr.mxu0 0.0
    %4522 = vmatpush1.msra.mxu0 0.0
    %4523 = vmatprep.subr.mxu0 0.0
    %4524 = vmatpush1.msra.mxu0 0.0
    %4525 = vmatprep.subr.mxu0 0.0
    %4526 = vmatpush1.msra.mxu0 0.0
    %4527 = vmatprep.subr.mxu0 0.0
    %4528 = vmatpush1.msra.mxu0 0.0
    %4529 = vmatprep.subr.mxu0 0.0
    %4530 = vmatpush1.msra.mxu0 0.0
    %4531 = vmatprep.subr.mxu0 0.0
    %4532 = vmatpush1.msra.mxu0 0.0
    %4533 = vmatprep.subr.mxu0 0.0
    %4534 = vmatpush1.msra.mxu0 0.0
    %4535 = vmatprep.subr.mxu0 0.0
    %4536 = vmatpush1.msra.mxu0 0.0
    %4537 = vmatprep.subr.mxu0 0.0
    %4538 = vmatpush1.msra.mxu0 0.0
    %4539 = vmatprep.subr.mxu0 0.0
    %4540 = vmatpush1.msra.mxu0 0.0
    %4541 = vmatprep.subr.mxu0 0.0
    %4542 = vmatpush1.msra.mxu0 0.0
    %4543 = vmatprep.subr.mxu0 0.0
    %4544 = vmatpush1.msra.mxu0 0.0
    %4545 = vmatprep.subr.mxu0 0.0
    %4546 = vmatpush1.msra.mxu0 0.0
    %4547 = vmatprep.subr.mxu0 0.0
    %4548 = vmatpush1.msra.mxu0 0.0
    %4549 = vmatprep.subr.mxu0 0.0
    %4550 = vmatpush1.msra.mxu0 0.0
    %4551 = vmatprep.subr.mxu0 0.0
    %4552 = vmatpush1.msra.mxu0 0.0
    %4553 = vmatprep.subr.mxu0 0.0
    %4554 = vmatpush1.msra.mxu0 0.0
    %4555 = vmatprep.subr.mxu0 0.0
    %4556 = vmatpush1.msra.mxu0 0.0
    %4557 = vmatprep.subr.mxu0 0.0
    %4558 = vmatpush1.msra.mxu0 0.0
    %4559 = vmatprep.mubr.f32.mxu0 0.0
    %4560 = vmatmul.mubr.f32.gmra.mrb[0].mxu0 %v4493
    %v4561 = vpop.f32.mrb[0].mxu0
    %v4562 = vadd.f32 0.0, %v4561
    %v4563 = vpop.f32.mrb[0].mxu0
    %4564 = vdwg.mxu0
    %4565 = vrot.lane.b32.xlu0 %v4306, 64
    %v4566 = vpop.permute.xlu0 %4565
    %v4569 = vsel %vm479, %v4488, 0
    %4571 = vmatprep.subr.mxu0 0.0
    %4572 = vmatpush1.msra.mxu0 %v4566
    %4573 = vmatprep.subr.mxu0 0.0
    %4574 = vmatpush1.msra.mxu0 0.0
    %4575 = vmatprep.subr.mxu0 0.0
    %4576 = vmatpush1.msra.mxu0 0.0
    %4577 = vmatprep.subr.mxu0 0.0
    %4578 = vmatpush1.msra.mxu0 0.0
    %4579 = vmatprep.subr.mxu0 0.0
    %4580 = vmatpush1.msra.mxu0 0.0
    %4581 = vmatprep.subr.mxu0 0.0
    %4582 = vmatpush1.msra.mxu0 0.0
    %4583 = vmatprep.subr.mxu0 0.0
    %4584 = vmatpush1.msra.mxu0 0.0
    %4585 = vmatprep.subr.mxu0 0.0
    %4586 = vmatpush1.msra.mxu0 0.0
    %4587 = vmatprep.subr.mxu0 0.0
    %4588 = vmatpush1.msra.mxu0 0.0
    %4589 = vmatprep.subr.mxu0 0.0
    %4590 = vmatpush1.msra.mxu0 0.0
    %4591 = vmatprep.subr.mxu0 0.0
    %4592 = vmatpush1.msra.mxu0 0.0
    %4593 = vmatprep.subr.mxu0 0.0
    %4594 = vmatpush1.msra.mxu0 0.0
    %4595 = vmatprep.subr.mxu0 0.0
    %4596 = vmatpush1.msra.mxu0 0.0
    %4597 = vmatprep.subr.mxu0 0.0
    %4598 = vmatpush1.msra.mxu0 0.0
    %4599 = vmatprep.subr.mxu0 0.0
    %4600 = vmatpush1.msra.mxu0 0.0
    %4601 = vmatprep.subr.mxu0 0.0
    %4602 = vmatpush1.msra.mxu0 0.0
    %4603 = vmatprep.subr.mxu0 0.0
    %4604 = vmatpush1.msra.mxu0 0.0
    %4605 = vmatprep.subr.mxu0 0.0
    %4606 = vmatpush1.msra.mxu0 0.0
    %4607 = vmatprep.subr.mxu0 0.0
    %4608 = vmatpush1.msra.mxu0 0.0
    %4609 = vmatprep.subr.mxu0 0.0
    %4610 = vmatpush1.msra.mxu0 0.0
    %4611 = vmatprep.subr.mxu0 0.0
    %4612 = vmatpush1.msra.mxu0 0.0
    %4613 = vmatprep.subr.mxu0 0.0
    %4614 = vmatpush1.msra.mxu0 0.0
    %4615 = vmatprep.subr.mxu0 0.0
    %4616 = vmatpush1.msra.mxu0 0.0
    %4617 = vmatprep.subr.mxu0 0.0
    %4618 = vmatpush1.msra.mxu0 0.0
    %4619 = vmatprep.subr.mxu0 0.0
    %4620 = vmatpush1.msra.mxu0 0.0
    %4621 = vmatprep.subr.mxu0 0.0
    %4622 = vmatpush1.msra.mxu0 0.0
    %4623 = vmatprep.subr.mxu0 0.0
    %4624 = vmatpush1.msra.mxu0 0.0
    %4625 = vmatprep.subr.mxu0 0.0
    %4626 = vmatpush1.msra.mxu0 0.0
    %4627 = vmatprep.subr.mxu0 0.0
    %4628 = vmatpush1.msra.mxu0 0.0
    %4629 = vmatprep.subr.mxu0 0.0
    %4630 = vmatpush1.msra.mxu0 0.0
    %4631 = vmatprep.subr.mxu0 0.0
    %4632 = vmatpush1.msra.mxu0 0.0
    %4633 = vmatprep.subr.mxu0 0.0
    %4634 = vmatpush1.msra.mxu0 0.0
    %4635 = vmatprep.mubr.f32.mxu0 0.0
    %4636 = vmatmul.mubr.f32.gmra.mrb[0].mxu0 %v4569
    %v4637 = vpop.f32.mrb[0].mxu0
    %v4638 = vadd.f32 0.0, %v4637
    %v4639 = vpop.f32.mrb[0].mxu0
    %4640 = vdwg.mxu0
    %4641 = vrot.lane.b32.xlu0 %v4309, 120
    %v4642 = vpop.permute.xlu0 %4641
    %4643 = vrot.lane.b32.xlu0 %v4301, 88
    %v4644 = vpop.permute.xlu0 %4643
    %v4645 = vsel %vm479, %v4642, 0
    %v4647 = vsel %vm479, %v4644, 0
    %4649 = vmatprep.subr.mxu0 0.0
    %4650 = vmatpush1.xpose.msra.mxu0 %v4647
    %4651 = vmatprep.subr.mxu0 0.0
    %4652 = vmatpush1.xpose.msra.mxu0 0.0
    %4653 = vmatprep.subr.mxu0 0.0
    %4654 = vmatpush1.xpose.msra.mxu0 0.0
    %4655 = vmatprep.subr.mxu0 0.0
    %4656 = vmatpush1.xpose.msra.mxu0 0.0
    %4657 = vmatprep.subr.mxu0 0.0
    %4658 = vmatpush1.xpose.msra.mxu0 0.0
    %4659 = vmatprep.subr.mxu0 0.0
    %4660 = vmatpush1.xpose.msra.mxu0 0.0
    %4661 = vmatprep.subr.mxu0 0.0
    %4662 = vmatpush1.xpose.msra.mxu0 0.0
    %4663 = vmatprep.subr.mxu0 0.0
    %4664 = vmatpush1.xpose.msra.mxu0 0.0
    %4665 = vmatprep.subr.mxu0 0.0
    %4666 = vmatpush1.xpose.msra.mxu0 0.0
    %4667 = vmatprep.subr.mxu0 0.0
    %4668 = vmatpush1.xpose.msra.mxu0 0.0
    %4669 = vmatprep.subr.mxu0 0.0
    %4670 = vmatpush1.xpose.msra.mxu0 0.0
    %4671 = vmatprep.subr.mxu0 0.0
    %4672 = vmatpush1.xpose.msra.mxu0 0.0
    %4673 = vmatprep.subr.mxu0 0.0
    %4674 = vmatpush1.xpose.msra.mxu0 0.0
    %4675 = vmatprep.subr.mxu0 0.0
    %4676 = vmatpush1.xpose.msra.mxu0 0.0
    %4677 = vmatprep.subr.mxu0 0.0
    %4678 = vmatpush1.xpose.msra.mxu0 0.0
    %4679 = vmatprep.subr.mxu0 0.0
    %4680 = vmatpush1.xpose.msra.mxu0 0.0
    %4681 = vmatprep.subr.mxu0 0.0
    %4682 = vmatpush1.xpose.msra.mxu0 0.0
    %4683 = vmatprep.subr.mxu0 0.0
    %4684 = vmatpush1.xpose.msra.mxu0 0.0
    %4685 = vmatprep.subr.mxu0 0.0
    %4686 = vmatpush1.xpose.msra.mxu0 0.0
    %4687 = vmatprep.subr.mxu0 0.0
    %4688 = vmatpush1.xpose.msra.mxu0 0.0
    %4689 = vmatprep.subr.mxu0 0.0
    %4690 = vmatpush1.xpose.msra.mxu0 0.0
    %4691 = vmatprep.subr.mxu0 0.0
    %4692 = vmatpush1.xpose.msra.mxu0 0.0
    %4693 = vmatprep.subr.mxu0 0.0
    %4694 = vmatpush1.xpose.msra.mxu0 0.0
    %4695 = vmatprep.subr.mxu0 0.0
    %4696 = vmatpush1.xpose.msra.mxu0 0.0
    %4697 = vmatprep.subr.mxu0 0.0
    %4698 = vmatpush1.xpose.msra.mxu0 0.0
    %4699 = vmatprep.subr.mxu0 0.0
    %4700 = vmatpush1.xpose.msra.mxu0 0.0
    %4701 = vmatprep.subr.mxu0 0.0
    %4702 = vmatpush1.xpose.msra.mxu0 0.0
    %4703 = vmatprep.subr.mxu0 0.0
    %4704 = vmatpush1.xpose.msra.mxu0 0.0
    %4705 = vmatprep.subr.mxu0 0.0
    %4706 = vmatpush1.xpose.msra.mxu0 0.0
    %4707 = vmatprep.subr.mxu0 0.0
    %4708 = vmatpush1.xpose.msra.mxu0 0.0
    %4709 = vmatprep.subr.mxu0 0.0
    %4710 = vmatpush1.xpose.msra.mxu0 0.0
    %4711 = vmatprep.subr.mxu0 0.0
    %4712 = vmatpush1.xpose.msra.mxu0 0.0
    %4713 = vmatprep.mubr.f32.mxu0 0.0
    %4714 = vmatmul.mubr.f32.gmra.mrb[0].mxu0 %v4645
    %v4715 = vpop.f32.mrb[0].mxu0
    %v4716 = vadd.f32 %v4167, %v4715
    %v4717 = vpop.f32.mrb[0].mxu0
    %4718 = vdwg.mxu0
    %4719 = vrot.lane.b32.xlu0 %v4310, 120
    %v4720 = vpop.permute.xlu0 %4719
    %4721 = vrot.lane.b32.xlu0 %v4306, 88
    %v4722 = vpop.permute.xlu0 %4721
    %v4723 = vsel %vm479, %v4720, 0
    %v4725 = vsel %vm479, %v4722, 0
    %4727 = vmatprep.subr.mxu0 0.0
    %4728 = vmatpush1.xpose.msra.mxu0 %v4725
    %4729 = vmatprep.subr.mxu0 0.0
    %4730 = vmatpush1.xpose.msra.mxu0 0.0
    %4731 = vmatprep.subr.mxu0 0.0
    %4732 = vmatpush1.xpose.msra.mxu0 0.0
    %4733 = vmatprep.subr.mxu0 0.0
    %4734 = vmatpush1.xpose.msra.mxu0 0.0
    %4735 = vmatprep.subr.mxu0 0.0
    %4736 = vmatpush1.xpose.msra.mxu0 0.0
    %4737 = vmatprep.subr.mxu0 0.0
    %4738 = vmatpush1.xpose.msra.mxu0 0.0
    %4739 = vmatprep.subr.mxu0 0.0
    %4740 = vmatpush1.xpose.msra.mxu0 0.0
    %4741 = vmatprep.subr.mxu0 0.0
    %4742 = vmatpush1.xpose.msra.mxu0 0.0
    %4743 = vmatprep.subr.mxu0 0.0
    %4744 = vmatpush1.xpose.msra.mxu0 0.0
    %4745 = vmatprep.subr.mxu0 0.0
    %4746 = vmatpush1.xpose.msra.mxu0 0.0
    %4747 = vmatprep.subr.mxu0 0.0
    %4748 = vmatpush1.xpose.msra.mxu0 0.0
    %4749 = vmatprep.subr.mxu0 0.0
    %4750 = vmatpush1.xpose.msra.mxu0 0.0
    %4751 = vmatprep.subr.mxu0 0.0
    %4752 = vmatpush1.xpose.msra.mxu0 0.0
    %4753 = vmatprep.subr.mxu0 0.0
    %4754 = vmatpush1.xpose.msra.mxu0 0.0
    %4755 = vmatprep.subr.mxu0 0.0
    %4756 = vmatpush1.xpose.msra.mxu0 0.0
    %4757 = vmatprep.subr.mxu0 0.0
    %4758 = vmatpush1.xpose.msra.mxu0 0.0
    %4759 = vmatprep.subr.mxu0 0.0
    %4760 = vmatpush1.xpose.msra.mxu0 0.0
    %4761 = vmatprep.subr.mxu0 0.0
    %4762 = vmatpush1.xpose.msra.mxu0 0.0
    %4763 = vmatprep.subr.mxu0 0.0
    %4764 = vmatpush1.xpose.msra.mxu0 0.0
    %4765 = vmatprep.subr.mxu0 0.0
    %4766 = vmatpush1.xpose.msra.mxu0 0.0
    %4767 = vmatprep.subr.mxu0 0.0
    %4768 = vmatpush1.xpose.msra.mxu0 0.0
    %4769 = vmatprep.subr.mxu0 0.0
    %4770 = vmatpush1.xpose.msra.mxu0 0.0
    %4771 = vmatprep.subr.mxu0 0.0
    %4772 = vmatpush1.xpose.msra.mxu0 0.0
    %4773 = vmatprep.subr.mxu0 0.0
    %4774 = vmatpush1.xpose.msra.mxu0 0.0
    %4775 = vmatprep.subr.mxu0 0.0
    %4776 = vmatpush1.xpose.msra.mxu0 0.0
    %4777 = vmatprep.subr.mxu0 0.0
    %4778 = vmatpush1.xpose.msra.mxu0 0.0
    %4779 = vmatprep.subr.mxu0 0.0
    %4780 = vmatpush1.xpose.msra.mxu0 0.0
    %4781 = vmatprep.subr.mxu0 0.0
    %4782 = vmatpush1.xpose.msra.mxu0 0.0
    %4783 = vmatprep.subr.mxu0 0.0
    %4784 = vmatpush1.xpose.msra.mxu0 0.0
    %4785 = vmatprep.subr.mxu0 0.0
    %4786 = vmatpush1.xpose.msra.mxu0 0.0
    %4787 = vmatprep.subr.mxu0 0.0
    %4788 = vmatpush1.xpose.msra.mxu0 0.0
    %4789 = vmatprep.subr.mxu0 0.0
    %4790 = vmatpush1.xpose.msra.mxu0 0.0
    %4791 = vmatprep.mubr.f32.mxu0 0.0
    %4792 = vmatmul.mubr.f32.gmra.mrb[0].mxu0 %v4723
    %v4793 = vpop.f32.mrb[0].mxu0
    %v4794 = vadd.f32 %v4167, %v4793
    %v4795 = vpop.f32.mrb[0].mxu0
    %4796 = vdwg.mxu0
    %v4797 = vsel %vm479, %v4716, -inf
    %4798 = vmax.xlane.f32.xlu0 %v4797
    %v4799 = vpop.xlane.xlu0 %4798
    %v4800 = vsel %vm479, %v4794, -inf
    %4801 = vmax.xlane.f32.xlu0 %v4800
    %v4802 = vpop.xlane.xlu0 %4801
    %v4803 = vsub.f32 %v4716, %v4799
    %v4804 = vsub.f32 %v4794, %v4802
    %v4805 = vmul.f32 %v4803, 1.442695
    %v4806 = vpow.pop %v4805
    %v4807 = vmul.f32 %v4804, 1.442695
    %v4808 = vpow.pop %v4807
    %v4809 = vsel %vm479, %v4806, 0.0
    %4810 = vadd.xlane.f32.xlu0 %v4809
    %v4811 = vpop.xlane.xlu0 %4810
    %v4812 = vsel %vm479, %v4808, 0.0
    %4813 = vadd.xlane.f32.xlu0 %v4812
    %v4814 = vpop.xlane.xlu0 %4813
    %v4815 = vrcp.pop %v4811
    %v4816 = vrcp.pop %v4814
    %v4817 = vmul.f32 %v4806, %v4815
    %v4818 = vmul.f32 %v4808, %v4816
    %4819 = vrot.lane.b32.xlu0 %v4301, 56
    %v4820 = vpop.permute.xlu0 %4819
    %v4823 = vsel %vm479, %v4817, 0
    %4825 = vmatprep.subr.mxu0 0.0
    %4826 = vmatpush1.msra.mxu0 %v4820
    %4827 = vmatprep.subr.mxu0 0.0
    %4828 = vmatpush1.msra.mxu0 0.0
    %4829 = vmatprep.subr.mxu0 0.0
    %4830 = vmatpush1.msra.mxu0 0.0
    %4831 = vmatprep.subr.mxu0 0.0
    %4832 = vmatpush1.msra.mxu0 0.0
    %4833 = vmatprep.subr.mxu0 0.0
    %4834 = vmatpush1.msra.mxu0 0.0
    %4835 = vmatprep.subr.mxu0 0.0
    %4836 = vmatpush1.msra.mxu0 0.0
    %4837 = vmatprep.subr.mxu0 0.0
    %4838 = vmatpush1.msra.mxu0 0.0
    %4839 = vmatprep.subr.mxu0 0.0
    %4840 = vmatpush1.msra.mxu0 0.0
    %4841 = vmatprep.subr.mxu0 0.0
    %4842 = vmatpush1.msra.mxu0 0.0
    %4843 = vmatprep.subr.mxu0 0.0
    %4844 = vmatpush1.msra.mxu0 0.0
    %4845 = vmatprep.subr.mxu0 0.0
    %4846 = vmatpush1.msra.mxu0 0.0
    %4847 = vmatprep.subr.mxu0 0.0
    %4848 = vmatpush1.msra.mxu0 0.0
    %4849 = vmatprep.subr.mxu0 0.0
    %4850 = vmatpush1.msra.mxu0 0.0
    %4851 = vmatprep.subr.mxu0 0.0
    %4852 = vmatpush1.msra.mxu0 0.0
    %4853 = vmatprep.subr.mxu0 0.0
    %4854 = vmatpush1.msra.mxu0 0.0
    %4855 = vmatprep.subr.mxu0 0.0
    %4856 = vmatpush1.msra.mxu0 0.0
    %4857 = vmatprep.subr.mxu0 0.0
    %4858 = vmatpush1.msra.mxu0 0.0
    %4859 = vmatprep.subr.mxu0 0.0
    %4860 = vmatpush1.msra.mxu0 0.0
    %4861 = vmatprep.subr.mxu0 0.0
    %4862 = vmatpush1.msra.mxu0 0.0
    %4863 = vmatprep.subr.mxu0 0.0
    %4864 = vmatpush1.msra.mxu0 0.0
    %4865 = vmatprep.subr.mxu0 0.0
    %4866 = vmatpush1.msra.mxu0 0.0
    %4867 = vmatprep.subr.mxu0 0.0
    %4868 = vmatpush1.msra.mxu0 0.0
    %4869 = vmatprep.subr.mxu0 0.0
    %4870 = vmatpush1.msra.mxu0 0.0
    %4871 = vmatprep.subr.mxu0 0.0
    %4872 = vmatpush1.msra.mxu0 0.0
    %4873 = vmatprep.subr.mxu0 0.0
    %4874 = vmatpush1.msra.mxu0 0.0
    %4875 = vmatprep.subr.mxu0 0.0
    %4876 = vmatpush1.msra.mxu0 0.0
    %4877 = vmatprep.subr.mxu0 0.0
    %4878 = vmatpush1.msra.mxu0 0.0
    %4879 = vmatprep.subr.mxu0 0.0
    %4880 = vmatpush1.msra.mxu0 0.0
    %4881 = vmatprep.subr.mxu0 0.0
    %4882 = vmatpush1.msra.mxu0 0.0
    %4883 = vmatprep.subr.mxu0 0.0
    %4884 = vmatpush1.msra.mxu0 0.0
    %4885 = vmatprep.subr.mxu0 0.0
    %4886 = vmatpush1.msra.mxu0 0.0
    %4887 = vmatprep.subr.mxu0 0.0
    %4888 = vmatpush1.msra.mxu0 0.0
    %4889 = vmatprep.mubr.f32.mxu0 0.0
    %4890 = vmatmul.mubr.f32.gmra.mrb[0].mxu0 %v4823
    %v4891 = vpop.f32.mrb[0].mxu0
    %v4892 = vadd.f32 0.0, %v4891
    %v4893 = vpop.f32.mrb[0].mxu0
    %4894 = vdwg.mxu0
    %4895 = vrot.lane.b32.xlu0 %v4306, 56
    %v4896 = vpop.permute.xlu0 %4895
    %v4899 = vsel %vm479, %v4818, 0
    %4901 = vmatprep.subr.mxu0 0.0
    %4902 = vmatpush1.msra.mxu0 %v4896
    %4903 = vmatprep.subr.mxu0 0.0
    %4904 = vmatpush1.msra.mxu0 0.0
    %4905 = vmatprep.subr.mxu0 0.0
    %4906 = vmatpush1.msra.mxu0 0.0
    %4907 = vmatprep.subr.mxu0 0.0
    %4908 = vmatpush1.msra.mxu0 0.0
    %4909 = vmatprep.subr.mxu0 0.0
    %4910 = vmatpush1.msra.mxu0 0.0
    %4911 = vmatprep.subr.mxu0 0.0
    %4912 = vmatpush1.msra.mxu0 0.0
    %4913 = vmatprep.subr.mxu0 0.0
    %4914 = vmatpush1.msra.mxu0 0.0
    %4915 = vmatprep.subr.mxu0 0.0
    %4916 = vmatpush1.msra.mxu0 0.0
    %4917 = vmatprep.subr.mxu0 0.0
    %4918 = vmatpush1.msra.mxu0 0.0
    %4919 = vmatprep.subr.mxu0 0.0
    %4920 = vmatpush1.msra.mxu0 0.0
    %4921 = vmatprep.subr.mxu0 0.0
    %4922 = vmatpush1.msra.mxu0 0.0
    %4923 = vmatprep.subr.mxu0 0.0
    %4924 = vmatpush1.msra.mxu0 0.0
    %4925 = vmatprep.subr.mxu0 0.0
    %4926 = vmatpush1.msra.mxu0 0.0
    %4927 = vmatprep.subr.mxu0 0.0
    %4928 = vmatpush1.msra.mxu0 0.0
    %4929 = vmatprep.subr.mxu0 0.0
    %4930 = vmatpush1.msra.mxu0 0.0
    %4931 = vmatprep.subr.mxu0 0.0
    %4932 = vmatpush1.msra.mxu0 0.0
    %4933 = vmatprep.subr.mxu0 0.0
    %4934 = vmatpush1.msra.mxu0 0.0
    %4935 = vmatprep.subr.mxu0 0.0
    %4936 = vmatpush1.msra.mxu0 0.0
    %4937 = vmatprep.subr.mxu0 0.0
    %4938 = vmatpush1.msra.mxu0 0.0
    %4939 = vmatprep.subr.mxu0 0.0
    %4940 = vmatpush1.msra.mxu0 0.0
    %4941 = vmatprep.subr.mxu0 0.0
    %4942 = vmatpush1.msra.mxu0 0.0
    %4943 = vmatprep.subr.mxu0 0.0
    %4944 = vmatpush1.msra.mxu0 0.0
    %4945 = vmatprep.subr.mxu0 0.0
    %4946 = vmatpush1.msra.mxu0 0.0
    %4947 = vmatprep.subr.mxu0 0.0
    %4948 = vmatpush1.msra.mxu0 0.0
    %4949 = vmatprep.subr.mxu0 0.0
    %4950 = vmatpush1.msra.mxu0 0.0
    %4951 = vmatprep.subr.mxu0 0.0
    %4952 = vmatpush1.msra.mxu0 0.0
    %4953 = vmatprep.subr.mxu0 0.0
    %4954 = vmatpush1.msra.mxu0 0.0
    %4955 = vmatprep.subr.mxu0 0.0
    %4956 = vmatpush1.msra.mxu0 0.0
    %4957 = vmatprep.subr.mxu0 0.0
    %4958 = vmatpush1.msra.mxu0 0.0
    %4959 = vmatprep.subr.mxu0 0.0
    %4960 = vmatpush1.msra.mxu0 0.0
    %4961 = vmatprep.subr.mxu0 0.0
    %4962 = vmatpush1.msra.mxu0 0.0
    %4963 = vmatprep.subr.mxu0 0.0
    %4964 = vmatpush1.msra.mxu0 0.0
    %4965 = vmatprep.mubr.f32.mxu0 0.0
    %4966 = vmatmul.mubr.f32.gmra.mrb[0].mxu0 %v4899
    %v4967 = vpop.f32.mrb[0].mxu0
    %v4968 = vadd.f32 0.0, %v4967
    %v4969 = vpop.f32.mrb[0].mxu0
    %4970 = vdwg.mxu0
    %4971 = vrot.lane.b32.xlu0 %v4309, 112
    %v4972 = vpop.permute.xlu0 %4971
    %4973 = vrot.lane.b32.xlu0 %v4301, 80
    %v4974 = vpop.permute.xlu0 %4973
    %v4975 = vsel %vm479, %v4972, 0
    %v4977 = vsel %vm479, %v4974, 0
    %4979 = vmatprep.subr.mxu0 0.0
    %4980 = vmatpush1.xpose.msra.mxu0 %v4977
    %4981 = vmatprep.subr.mxu0 0.0
    %4982 = vmatpush1.xpose.msra.mxu0 0.0
    %4983 = vmatprep.subr.mxu0 0.0
    %4984 = vmatpush1.xpose.msra.mxu0 0.0
    %4985 = vmatprep.subr.mxu0 0.0
    %4986 = vmatpush1.xpose.msra.mxu0 0.0
    %4987 = vmatprep.subr.mxu0 0.0
    %4988 = vmatpush1.xpose.msra.mxu0 0.0
    %4989 = vmatprep.subr.mxu0 0.0
    %4990 = vmatpush1.xpose.msra.mxu0 0.0
    %4991 = vmatprep.subr.mxu0 0.0
    %4992 = vmatpush1.xpose.msra.mxu0 0.0
    %4993 = vmatprep.subr.mxu0 0.0
    %4994 = vmatpush1.xpose.msra.mxu0 0.0
    %4995 = vmatprep.subr.mxu0 0.0
    %4996 = vmatpush1.xpose.msra.mxu0 0.0
    %4997 = vmatprep.subr.mxu0 0.0
    %4998 = vmatpush1.xpose.msra.mxu0 0.0
    %4999 = vmatprep.subr.mxu0 0.0
    %5000 = vmatpush1.xpose.msra.mxu0 0.0
    %5001 = vmatprep.subr.mxu0 0.0
    %5002 = vmatpush1.xpose.msra.mxu0 0.0
    %5003 = vmatprep.subr.mxu0 0.0
    %5004 = vmatpush1.xpose.msra.mxu0 0.0
    %5005 = vmatprep.subr.mxu0 0.0
    %5006 = vmatpush1.xpose.msra.mxu0 0.0
    %5007 = vmatprep.subr.mxu0 0.0
    %5008 = vmatpush1.xpose.msra.mxu0 0.0
    %5009 = vmatprep.subr.mxu0 0.0
    %5010 = vmatpush1.xpose.msra.mxu0 0.0
    %5011 = vmatprep.subr.mxu0 0.0
    %5012 = vmatpush1.xpose.msra.mxu0 0.0
    %5013 = vmatprep.subr.mxu0 0.0
    %5014 = vmatpush1.xpose.msra.mxu0 0.0
    %5015 = vmatprep.subr.mxu0 0.0
    %5016 = vmatpush1.xpose.msra.mxu0 0.0
    %5017 = vmatprep.subr.mxu0 0.0
    %5018 = vmatpush1.xpose.msra.mxu0 0.0
    %5019 = vmatprep.subr.mxu0 0.0
    %5020 = vmatpush1.xpose.msra.mxu0 0.0
    %5021 = vmatprep.subr.mxu0 0.0
    %5022 = vmatpush1.xpose.msra.mxu0 0.0
    %5023 = vmatprep.subr.mxu0 0.0
    %5024 = vmatpush1.xpose.msra.mxu0 0.0
    %5025 = vmatprep.subr.mxu0 0.0
    %5026 = vmatpush1.xpose.msra.mxu0 0.0
    %5027 = vmatprep.subr.mxu0 0.0
    %5028 = vmatpush1.xpose.msra.mxu0 0.0
    %5029 = vmatprep.subr.mxu0 0.0
    %5030 = vmatpush1.xpose.msra.mxu0 0.0
    %5031 = vmatprep.subr.mxu0 0.0
    %5032 = vmatpush1.xpose.msra.mxu0 0.0
    %5033 = vmatprep.subr.mxu0 0.0
    %5034 = vmatpush1.xpose.msra.mxu0 0.0
    %5035 = vmatprep.subr.mxu0 0.0
    %5036 = vmatpush1.xpose.msra.mxu0 0.0
    %5037 = vmatprep.subr.mxu0 0.0
    %5038 = vmatpush1.xpose.msra.mxu0 0.0
    %5039 = vmatprep.subr.mxu0 0.0
    %5040 = vmatpush1.xpose.msra.mxu0 0.0
    %5041 = vmatprep.subr.mxu0 0.0
    %5042 = vmatpush1.xpose.msra.mxu0 0.0
    %5043 = vmatprep.mubr.f32.mxu0 0.0
    %5044 = vmatmul.mubr.f32.gmra.mrb[0].mxu0 %v4975
    %v5045 = vpop.f32.mrb[0].mxu0
    %v5046 = vadd.f32 %v4167, %v5045
    %v5047 = vpop.f32.mrb[0].mxu0
    %5048 = vdwg.mxu0
    %5049 = vrot.lane.b32.xlu0 %v4310, 112
    %v5050 = vpop.permute.xlu0 %5049
    %5051 = vrot.lane.b32.xlu0 %v4306, 80
    %v5052 = vpop.permute.xlu0 %5051
    %v5053 = vsel %vm479, %v5050, 0
    %v5055 = vsel %vm479, %v5052, 0
    %5057 = vmatprep.subr.mxu0 0.0
    %5058 = vmatpush1.xpose.msra.mxu0 %v5055
    %5059 = vmatprep.subr.mxu0 0.0
    %5060 = vmatpush1.xpose.msra.mxu0 0.0
    %5061 = vmatprep.subr.mxu0 0.0
    %5062 = vmatpush1.xpose.msra.mxu0 0.0
    %5063 = vmatprep.subr.mxu0 0.0
    %5064 = vmatpush1.xpose.msra.mxu0 0.0
    %5065 = vmatprep.subr.mxu0 0.0
    %5066 = vmatpush1.xpose.msra.mxu0 0.0
    %5067 = vmatprep.subr.mxu0 0.0
    %5068 = vmatpush1.xpose.msra.mxu0 0.0
    %5069 = vmatprep.subr.mxu0 0.0
    %5070 = vmatpush1.xpose.msra.mxu0 0.0
    %5071 = vmatprep.subr.mxu0 0.0
    %5072 = vmatpush1.xpose.msra.mxu0 0.0
    %5073 = vmatprep.subr.mxu0 0.0
    %5074 = vmatpush1.xpose.msra.mxu0 0.0
    %5075 = vmatprep.subr.mxu0 0.0
    %5076 = vmatpush1.xpose.msra.mxu0 0.0
    %5077 = vmatprep.subr.mxu0 0.0
    %5078 = vmatpush1.xpose.msra.mxu0 0.0
    %5079 = vmatprep.subr.mxu0 0.0
    %5080 = vmatpush1.xpose.msra.mxu0 0.0
    %5081 = vmatprep.subr.mxu0 0.0
    %5082 = vmatpush1.xpose.msra.mxu0 0.0
    %5083 = vmatprep.subr.mxu0 0.0
    %5084 = vmatpush1.xpose.msra.mxu0 0.0
    %5085 = vmatprep.subr.mxu0 0.0
    %5086 = vmatpush1.xpose.msra.mxu0 0.0
    %5087 = vmatprep.subr.mxu0 0.0
    %5088 = vmatpush1.xpose.msra.mxu0 0.0
    %5089 = vmatprep.subr.mxu0 0.0
    %5090 = vmatpush1.xpose.msra.mxu0 0.0
    %5091 = vmatprep.subr.mxu0 0.0
    %5092 = vmatpush1.xpose.msra.mxu0 0.0
    %5093 = vmatprep.subr.mxu0 0.0
    %5094 = vmatpush1.xpose.msra.mxu0 0.0
    %5095 = vmatprep.subr.mxu0 0.0
    %5096 = vmatpush1.xpose.msra.mxu0 0.0
    %5097 = vmatprep.subr.mxu0 0.0
    %5098 = vmatpush1.xpose.msra.mxu0 0.0
    %5099 = vmatprep.subr.mxu0 0.0
    %5100 = vmatpush1.xpose.msra.mxu0 0.0
    %5101 = vmatprep.subr.mxu0 0.0
    %5102 = vmatpush1.xpose.msra.mxu0 0.0
    %5103 = vmatprep.subr.mxu0 0.0
    %5104 = vmatpush1.xpose.msra.mxu0 0.0
    %5105 = vmatprep.subr.mxu0 0.0
    %5106 = vmatpush1.xpose.msra.mxu0 0.0
    %5107 = vmatprep.subr.mxu0 0.0
    %5108 = vmatpush1.xpose.msra.mxu0 0.0
    %5109 = vmatprep.subr.mxu0 0.0
    %5110 = vmatpush1.xpose.msra.mxu0 0.0
    %5111 = vmatprep.subr.mxu0 0.0
    %5112 = vmatpush1.xpose.msra.mxu0 0.0
    %5113 = vmatprep.subr.mxu0 0.0
    %5114 = vmatpush1.xpose.msra.mxu0 0.0
    %5115 = vmatprep.subr.mxu0 0.0
    %5116 = vmatpush1.xpose.msra.mxu0 0.0
    %5117 = vmatprep.subr.mxu0 0.0
    %5118 = vmatpush1.xpose.msra.mxu0 0.0
    %5119 = vmatprep.subr.mxu0 0.0
    %5120 = vmatpush1.xpose.msra.mxu0 0.0
    %5121 = vmatprep.mubr.f32.mxu0 0.0
    %5122 = vmatmul.mubr.f32.gmra.mrb[0].mxu0 %v5053
    %v5123 = vpop.f32.mrb[0].mxu0
    %v5124 = vadd.f32 %v4167, %v5123
    %v5125 = vpop.f32.mrb[0].mxu0
    %5126 = vdwg.mxu0
    %v5127 = vsel %vm479, %v5046, -inf
    %5128 = vmax.xlane.f32.xlu0 %v5127
    %v5129 = vpop.xlane.xlu0 %5128
    %v5130 = vsel %vm479, %v5124, -inf
    %5131 = vmax.xlane.f32.xlu0 %v5130
    %v5132 = vpop.xlane.xlu0 %5131
    %v5133 = vsub.f32 %v5046, %v5129
    %v5134 = vsub.f32 %v5124, %v5132
    %v5135 = vmul.f32 %v5133, 1.442695
    %v5136 = vpow.pop %v5135
    %v5137 = vmul.f32 %v5134, 1.442695
    %v5138 = vpow.pop %v5137
    %v5139 = vsel %vm479, %v5136, 0.0
    %5140 = vadd.xlane.f32.xlu0 %v5139
    %v5141 = vpop.xlane.xlu0 %5140
    %v5142 = vsel %vm479, %v5138, 0.0
    %5143 = vadd.xlane.f32.xlu0 %v5142
    %v5144 = vpop.xlane.xlu0 %5143
    %v5145 = vrcp.pop %v5141
    %v5146 = vrcp.pop %v5144
    %v5147 = vmul.f32 %v5136, %v5145
    %v5148 = vmul.f32 %v5138, %v5146
    %5149 = vrot.lane.b32.xlu0 %v4301, 48
    %v5150 = vpop.permute.xlu0 %5149
    %v5153 = vsel %vm479, %v5147, 0
    %5155 = vmatprep.subr.mxu0 0.0
    %5156 = vmatpush1.msra.mxu0 %v5150
    %5157 = vmatprep.subr.mxu0 0.0
    %5158 = vmatpush1.msra.mxu0 0.0
    %5159 = vmatprep.subr.mxu0 0.0
    %5160 = vmatpush1.msra.mxu0 0.0
    %5161 = vmatprep.subr.mxu0 0.0
    %5162 = vmatpush1.msra.mxu0 0.0
    %5163 = vmatprep.subr.mxu0 0.0
    %5164 = vmatpush1.msra.mxu0 0.0
    %5165 = vmatprep.subr.mxu0 0.0
    %5166 = vmatpush1.msra.mxu0 0.0
    %5167 = vmatprep.subr.mxu0 0.0
    %5168 = vmatpush1.msra.mxu0 0.0
    %5169 = vmatprep.subr.mxu0 0.0
    %5170 = vmatpush1.msra.mxu0 0.0
    %5171 = vmatprep.subr.mxu0 0.0
    %5172 = vmatpush1.msra.mxu0 0.0
    %5173 = vmatprep.subr.mxu0 0.0
    %5174 = vmatpush1.msra.mxu0 0.0
    %5175 = vmatprep.subr.mxu0 0.0
    %5176 = vmatpush1.msra.mxu0 0.0
    %5177 = vmatprep.subr.mxu0 0.0
    %5178 = vmatpush1.msra.mxu0 0.0
    %5179 = vmatprep.subr.mxu0 0.0
    %5180 = vmatpush1.msra.mxu0 0.0
    %5181 = vmatprep.subr.mxu0 0.0
    %5182 = vmatpush1.msra.mxu0 0.0
    %5183 = vmatprep.subr.mxu0 0.0
    %5184 = vmatpush1.msra.mxu0 0.0
    %5185 = vmatprep.subr.mxu0 0.0
    %5186 = vmatpush1.msra.mxu0 0.0
    %5187 = vmatprep.subr.mxu0 0.0
    %5188 = vmatpush1.msra.mxu0 0.0
    %5189 = vmatprep.subr.mxu0 0.0
    %5190 = vmatpush1.msra.mxu0 0.0
    %5191 = vmatprep.subr.mxu0 0.0
    %5192 = vmatpush1.msra.mxu0 0.0
    %5193 = vmatprep.subr.mxu0 0.0
    %5194 = vmatpush1.msra.mxu0 0.0
    %5195 = vmatprep.subr.mxu0 0.0
    %5196 = vmatpush1.msra.mxu0 0.0
    %5197 = vmatprep.subr.mxu0 0.0
    %5198 = vmatpush1.msra.mxu0 0.0
    %5199 = vmatprep.subr.mxu0 0.0
    %5200 = vmatpush1.msra.mxu0 0.0
    %5201 = vmatprep.subr.mxu0 0.0
    %5202 = vmatpush1.msra.mxu0 0.0
    %5203 = vmatprep.subr.mxu0 0.0
    %5204 = vmatpush1.msra.mxu0 0.0
    %5205 = vmatprep.subr.mxu0 0.0
    %5206 = vmatpush1.msra.mxu0 0.0
    %5207 = vmatprep.subr.mxu0 0.0
    %5208 = vmatpush1.msra.mxu0 0.0
    %5209 = vmatprep.subr.mxu0 0.0
    %5210 = vmatpush1.msra.mxu0 0.0
    %5211 = vmatprep.subr.mxu0 0.0
    %5212 = vmatpush1.msra.mxu0 0.0
    %5213 = vmatprep.subr.mxu0 0.0
    %5214 = vmatpush1.msra.mxu0 0.0
    %5215 = vmatprep.subr.mxu0 0.0
    %5216 = vmatpush1.msra.mxu0 0.0
    %5217 = vmatprep.subr.mxu0 0.0
    %5218 = vmatpush1.msra.mxu0 0.0
    %5219 = vmatprep.mubr.f32.mxu0 0.0
    %5220 = vmatmul.mubr.f32.gmra.mrb[0].mxu0 %v5153
    %v5221 = vpop.f32.mrb[0].mxu0
    %v5222 = vadd.f32 0.0, %v5221
    %v5223 = vpop.f32.mrb[0].mxu0
    %5224 = vdwg.mxu0
    %5225 = vrot.lane.b32.xlu0 %v4306, 48
    %v5226 = vpop.permute.xlu0 %5225
    %v5229 = vsel %vm479, %v5148, 0
    %5231 = vmatprep.subr.mxu0 0.0
    %5232 = vmatpush1.msra.mxu0 %v5226
    %5233 = vmatprep.subr.mxu0 0.0
    %5234 = vmatpush1.msra.mxu0 0.0
    %5235 = vmatprep.subr.mxu0 0.0
    %5236 = vmatpush1.msra.mxu0 0.0
    %5237 = vmatprep.subr.mxu0 0.0
    %5238 = vmatpush1.msra.mxu0 0.0
    %5239 = vmatprep.subr.mxu0 0.0
    %5240 = vmatpush1.msra.mxu0 0.0
    %5241 = vmatprep.subr.mxu0 0.0
    %5242 = vmatpush1.msra.mxu0 0.0
    %5243 = vmatprep.subr.mxu0 0.0
    %5244 = vmatpush1.msra.mxu0 0.0
    %5245 = vmatprep.subr.mxu0 0.0
    %5246 = vmatpush1.msra.mxu0 0.0
    %5247 = vmatprep.subr.mxu0 0.0
    %5248 = vmatpush1.msra.mxu0 0.0
    %5249 = vmatprep.subr.mxu0 0.0
    %5250 = vmatpush1.msra.mxu0 0.0
    %5251 = vmatprep.subr.mxu0 0.0
    %5252 = vmatpush1.msra.mxu0 0.0
    %5253 = vmatprep.subr.mxu0 0.0
    %5254 = vmatpush1.msra.mxu0 0.0
    %5255 = vmatprep.subr.mxu0 0.0
    %5256 = vmatpush1.msra.mxu0 0.0
    %5257 = vmatprep.subr.mxu0 0.0
    %5258 = vmatpush1.msra.mxu0 0.0
    %5259 = vmatprep.subr.mxu0 0.0
    %5260 = vmatpush1.msra.mxu0 0.0
    %5261 = vmatprep.subr.mxu0 0.0
    %5262 = vmatpush1.msra.mxu0 0.0
    %5263 = vmatprep.subr.mxu0 0.0
    %5264 = vmatpush1.msra.mxu0 0.0
    %5265 = vmatprep.subr.mxu0 0.0
    %5266 = vmatpush1.msra.mxu0 0.0
    %5267 = vmatprep.subr.mxu0 0.0
    %5268 = vmatpush1.msra.mxu0 0.0
    %5269 = vmatprep.subr.mxu0 0.0
    %5270 = vmatpush1.msra.mxu0 0.0
    %5271 = vmatprep.subr.mxu0 0.0
    %5272 = vmatpush1.msra.mxu0 0.0
    %5273 = vmatprep.subr.mxu0 0.0
    %5274 = vmatpush1.msra.mxu0 0.0
    %5275 = vmatprep.subr.mxu0 0.0
    %5276 = vmatpush1.msra.mxu0 0.0
    %5277 = vmatprep.subr.mxu0 0.0
    %5278 = vmatpush1.msra.mxu0 0.0
    %5279 = vmatprep.subr.mxu0 0.0
    %5280 = vmatpush1.msra.mxu0 0.0
    %5281 = vmatprep.subr.mxu0 0.0
    %5282 = vmatpush1.msra.mxu0 0.0
    %5283 = vmatprep.subr.mxu0 0.0
    %5284 = vmatpush1.msra.mxu0 0.0
    %5285 = vmatprep.subr.mxu0 0.0
    %5286 = vmatpush1.msra.mxu0 0.0
    %5287 = vmatprep.subr.mxu0 0.0
    %5288 = vmatpush1.msra.mxu0 0.0
    %5289 = vmatprep.subr.mxu0 0.0
    %5290 = vmatpush1.msra.mxu0 0.0
    %5291 = vmatprep.subr.mxu0 0.0
    %5292 = vmatpush1.msra.mxu0 0.0
    %5293 = vmatprep.subr.mxu0 0.0
    %5294 = vmatpush1.msra.mxu0 0.0
    %5295 = vmatprep.mubr.f32.mxu0 0.0
    %5296 = vmatmul.mubr.f32.gmra.mrb[0].mxu0 %v5229
    %v5297 = vpop.f32.mrb[0].mxu0
    %v5298 = vadd.f32 0.0, %v5297
    %v5299 = vpop.f32.mrb[0].mxu0
    %5300 = vdwg.mxu0
    %5301 = vrot.lane.b32.xlu0 %v4309, 104
    %v5302 = vpop.permute.xlu0 %5301
    %5303 = vrot.lane.b32.xlu0 %v4301, 72
    %v5304 = vpop.permute.xlu0 %5303
    %v5305 = vsel %vm479, %v5302, 0
    %v5307 = vsel %vm479, %v5304, 0
    %5309 = vmatprep.subr.mxu0 0.0
    %5310 = vmatpush1.xpose.msra.mxu0 %v5307
    %5311 = vmatprep.subr.mxu0 0.0
    %5312 = vmatpush1.xpose.msra.mxu0 0.0
    %5313 = vmatprep.subr.mxu0 0.0
    %5314 = vmatpush1.xpose.msra.mxu0 0.0
    %5315 = vmatprep.subr.mxu0 0.0
    %5316 = vmatpush1.xpose.msra.mxu0 0.0
    %5317 = vmatprep.subr.mxu0 0.0
    %5318 = vmatpush1.xpose.msra.mxu0 0.0
    %5319 = vmatprep.subr.mxu0 0.0
    %5320 = vmatpush1.xpose.msra.mxu0 0.0
    %5321 = vmatprep.subr.mxu0 0.0
    %5322 = vmatpush1.xpose.msra.mxu0 0.0
    %5323 = vmatprep.subr.mxu0 0.0
    %5324 = vmatpush1.xpose.msra.mxu0 0.0
    %5325 = vmatprep.subr.mxu0 0.0
    %5326 = vmatpush1.xpose.msra.mxu0 0.0
    %5327 = vmatprep.subr.mxu0 0.0
    %5328 = vmatpush1.xpose.msra.mxu0 0.0
    %5329 = vmatprep.subr.mxu0 0.0
    %5330 = vmatpush1.xpose.msra.mxu0 0.0
    %5331 = vmatprep.subr.mxu0 0.0
    %5332 = vmatpush1.xpose.msra.mxu0 0.0
    %5333 = vmatprep.subr.mxu0 0.0
    %5334 = vmatpush1.xpose.msra.mxu0 0.0
    %5335 = vmatprep.subr.mxu0 0.0
    %5336 = vmatpush1.xpose.msra.mxu0 0.0
    %5337 = vmatprep.subr.mxu0 0.0
    %5338 = vmatpush1.xpose.msra.mxu0 0.0
    %5339 = vmatprep.subr.mxu0 0.0
    %5340 = vmatpush1.xpose.msra.mxu0 0.0
    %5341 = vmatprep.subr.mxu0 0.0
    %5342 = vmatpush1.xpose.msra.mxu0 0.0
    %5343 = vmatprep.subr.mxu0 0.0
    %5344 = vmatpush1.xpose.msra.mxu0 0.0
    %5345 = vmatprep.subr.mxu0 0.0
    %5346 = vmatpush1.xpose.msra.mxu0 0.0
    %5347 = vmatprep.subr.mxu0 0.0
    %5348 = vmatpush1.xpose.msra.mxu0 0.0
    %5349 = vmatprep.subr.mxu0 0.0
    %5350 = vmatpush1.xpose.msra.mxu0 0.0
    %5351 = vmatprep.subr.mxu0 0.0
    %5352 = vmatpush1.xpose.msra.mxu0 0.0
    %5353 = vmatprep.subr.mxu0 0.0
    %5354 = vmatpush1.xpose.msra.mxu0 0.0
    %5355 = vmatprep.subr.mxu0 0.0
    %5356 = vmatpush1.xpose.msra.mxu0 0.0
    %5357 = vmatprep.subr.mxu0 0.0
    %5358 = vmatpush1.xpose.msra.mxu0 0.0
    %5359 = vmatprep.subr.mxu0 0.0
    %5360 = vmatpush1.xpose.msra.mxu0 0.0
    %5361 = vmatprep.subr.mxu0 0.0
    %5362 = vmatpush1.xpose.msra.mxu0 0.0
    %5363 = vmatprep.subr.mxu0 0.0
    %5364 = vmatpush1.xpose.msra.mxu0 0.0
    %5365 = vmatprep.subr.mxu0 0.0
    %5366 = vmatpush1.xpose.msra.mxu0 0.0
    %5367 = vmatprep.subr.mxu0 0.0
    %5368 = vmatpush1.xpose.msra.mxu0 0.0
    %5369 = vmatprep.subr.mxu0 0.0
    %5370 = vmatpush1.xpose.msra.mxu0 0.0
    %5371 = vmatprep.subr.mxu0 0.0
    %5372 = vmatpush1.xpose.msra.mxu0 0.0
    %5373 = vmatprep.mubr.f32.mxu0 0.0
    %5374 = vmatmul.mubr.f32.gmra.mrb[0].mxu0 %v5305
    %v5375 = vpop.f32.mrb[0].mxu0
    %v5376 = vadd.f32 %v4167, %v5375
    %v5377 = vpop.f32.mrb[0].mxu0
    %5378 = vdwg.mxu0
    %5379 = vrot.lane.b32.xlu0 %v4310, 104
    %v5380 = vpop.permute.xlu0 %5379
    %5381 = vrot.lane.b32.xlu0 %v4306, 72
    %v5382 = vpop.permute.xlu0 %5381
    %v5383 = vsel %vm479, %v5380, 0
    %v5385 = vsel %vm479, %v5382, 0
    %5387 = vmatprep.subr.mxu0 0.0
    %5388 = vmatpush1.xpose.msra.mxu0 %v5385
    %5389 = vmatprep.subr.mxu0 0.0
    %5390 = vmatpush1.xpose.msra.mxu0 0.0
    %5391 = vmatprep.subr.mxu0 0.0
    %5392 = vmatpush1.xpose.msra.mxu0 0.0
    %5393 = vmatprep.subr.mxu0 0.0
    %5394 = vmatpush1.xpose.msra.mxu0 0.0
    %5395 = vmatprep.subr.mxu0 0.0
    %5396 = vmatpush1.xpose.msra.mxu0 0.0
    %5397 = vmatprep.subr.mxu0 0.0
    %5398 = vmatpush1.xpose.msra.mxu0 0.0
    %5399 = vmatprep.subr.mxu0 0.0
    %5400 = vmatpush1.xpose.msra.mxu0 0.0
    %5401 = vmatprep.subr.mxu0 0.0
    %5402 = vmatpush1.xpose.msra.mxu0 0.0
    %5403 = vmatprep.subr.mxu0 0.0
    %5404 = vmatpush1.xpose.msra.mxu0 0.0
    %5405 = vmatprep.subr.mxu0 0.0
    %5406 = vmatpush1.xpose.msra.mxu0 0.0
    %5407 = vmatprep.subr.mxu0 0.0
    %5408 = vmatpush1.xpose.msra.mxu0 0.0
    %5409 = vmatprep.subr.mxu0 0.0
    %5410 = vmatpush1.xpose.msra.mxu0 0.0
    %5411 = vmatprep.subr.mxu0 0.0
    %5412 = vmatpush1.xpose.msra.mxu0 0.0
    %5413 = vmatprep.subr.mxu0 0.0
    %5414 = vmatpush1.xpose.msra.mxu0 0.0
    %5415 = vmatprep.subr.mxu0 0.0
    %5416 = vmatpush1.xpose.msra.mxu0 0.0
    %5417 = vmatprep.subr.mxu0 0.0
    %5418 = vmatpush1.xpose.msra.mxu0 0.0
    %5419 = vmatprep.subr.mxu0 0.0
    %5420 = vmatpush1.xpose.msra.mxu0 0.0
    %5421 = vmatprep.subr.mxu0 0.0
    %5422 = vmatpush1.xpose.msra.mxu0 0.0
    %5423 = vmatprep.subr.mxu0 0.0
    %5424 = vmatpush1.xpose.msra.mxu0 0.0
    %5425 = vmatprep.subr.mxu0 0.0
    %5426 = vmatpush1.xpose.msra.mxu0 0.0
    %5427 = vmatprep.subr.mxu0 0.0
    %5428 = vmatpush1.xpose.msra.mxu0 0.0
    %5429 = vmatprep.subr.mxu0 0.0
    %5430 = vmatpush1.xpose.msra.mxu0 0.0
    %5431 = vmatprep.subr.mxu0 0.0
    %5432 = vmatpush1.xpose.msra.mxu0 0.0
    %5433 = vmatprep.subr.mxu0 0.0
    %5434 = vmatpush1.xpose.msra.mxu0 0.0
    %5435 = vmatprep.subr.mxu0 0.0
    %5436 = vmatpush1.xpose.msra.mxu0 0.0
    %5437 = vmatprep.subr.mxu0 0.0
    %5438 = vmatpush1.xpose.msra.mxu0 0.0
    %5439 = vmatprep.subr.mxu0 0.0
    %5440 = vmatpush1.xpose.msra.mxu0 0.0
    %5441 = vmatprep.subr.mxu0 0.0
    %5442 = vmatpush1.xpose.msra.mxu0 0.0
    %5443 = vmatprep.subr.mxu0 0.0
    %5444 = vmatpush1.xpose.msra.mxu0 0.0
    %5445 = vmatprep.subr.mxu0 0.0
    %5446 = vmatpush1.xpose.msra.mxu0 0.0
    %5447 = vmatprep.subr.mxu0 0.0
    %5448 = vmatpush1.xpose.msra.mxu0 0.0
    %5449 = vmatprep.subr.mxu0 0.0
    %5450 = vmatpush1.xpose.msra.mxu0 0.0
    %5451 = vmatprep.mubr.f32.mxu0 0.0
    %5452 = vmatmul.mubr.f32.gmra.mrb[0].mxu0 %v5383
    %v5453 = vpop.f32.mrb[0].mxu0
    %v5454 = vadd.f32 %v4167, %v5453
    %v5455 = vpop.f32.mrb[0].mxu0
    %5456 = vdwg.mxu0
    %v5457 = vsel %vm479, %v5376, -inf
    %5458 = vmax.xlane.f32.xlu0 %v5457
    %v5459 = vpop.xlane.xlu0 %5458
    %v5460 = vsel %vm479, %v5454, -inf
    %5461 = vmax.xlane.f32.xlu0 %v5460
    %v5462 = vpop.xlane.xlu0 %5461
    %v5463 = vsub.f32 %v5376, %v5459
    %v5464 = vsub.f32 %v5454, %v5462
    %v5465 = vmul.f32 %v5463, 1.442695
    %v5466 = vpow.pop %v5465
    %v5467 = vmul.f32 %v5464, 1.442695
    %v5468 = vpow.pop %v5467
    %v5469 = vsel %vm479, %v5466, 0.0
    %5470 = vadd.xlane.f32.xlu0 %v5469
    %v5471 = vpop.xlane.xlu0 %5470
    %v5472 = vsel %vm479, %v5468, 0.0
    %5473 = vadd.xlane.f32.xlu0 %v5472
    %v5474 = vpop.xlane.xlu0 %5473
    %v5475 = vrcp.pop %v5471
    %v5476 = vrcp.pop %v5474
    %v5477 = vmul.f32 %v5466, %v5475
    %v5478 = vmul.f32 %v5468, %v5476
    %5479 = vrot.lane.b32.xlu0 %v4301, 40
    %v5480 = vpop.permute.xlu0 %5479
    %v5483 = vsel %vm479, %v5477, 0
    %5485 = vmatprep.subr.mxu0 0.0
    %5486 = vmatpush1.msra.mxu0 %v5480
    %5487 = vmatprep.subr.mxu0 0.0
    %5488 = vmatpush1.msra.mxu0 0.0
    %5489 = vmatprep.subr.mxu0 0.0
    %5490 = vmatpush1.msra.mxu0 0.0
    %5491 = vmatprep.subr.mxu0 0.0
    %5492 = vmatpush1.msra.mxu0 0.0
    %5493 = vmatprep.subr.mxu0 0.0
    %5494 = vmatpush1.msra.mxu0 0.0
    %5495 = vmatprep.subr.mxu0 0.0
    %5496 = vmatpush1.msra.mxu0 0.0
    %5497 = vmatprep.subr.mxu0 0.0
    %5498 = vmatpush1.msra.mxu0 0.0
    %5499 = vmatprep.subr.mxu0 0.0
    %5500 = vmatpush1.msra.mxu0 0.0
    %5501 = vmatprep.subr.mxu0 0.0
    %5502 = vmatpush1.msra.mxu0 0.0
    %5503 = vmatprep.subr.mxu0 0.0
    %5504 = vmatpush1.msra.mxu0 0.0
    %5505 = vmatprep.subr.mxu0 0.0
    %5506 = vmatpush1.msra.mxu0 0.0
    %5507 = vmatprep.subr.mxu0 0.0
    %5508 = vmatpush1.msra.mxu0 0.0
    %5509 = vmatprep.subr.mxu0 0.0
    %5510 = vmatpush1.msra.mxu0 0.0
    %5511 = vmatprep.subr.mxu0 0.0
    %5512 = vmatpush1.msra.mxu0 0.0
    %5513 = vmatprep.subr.mxu0 0.0
    %5514 = vmatpush1.msra.mxu0 0.0
    %5515 = vmatprep.subr.mxu0 0.0
    %5516 = vmatpush1.msra.mxu0 0.0
    %5517 = vmatprep.subr.mxu0 0.0
    %5518 = vmatpush1.msra.mxu0 0.0
    %5519 = vmatprep.subr.mxu0 0.0
    %5520 = vmatpush1.msra.mxu0 0.0
    %5521 = vmatprep.subr.mxu0 0.0
    %5522 = vmatpush1.msra.mxu0 0.0
    %5523 = vmatprep.subr.mxu0 0.0
    %5524 = vmatpush1.msra.mxu0 0.0
    %5525 = vmatprep.subr.mxu0 0.0
    %5526 = vmatpush1.msra.mxu0 0.0
    %5527 = vmatprep.subr.mxu0 0.0
    %5528 = vmatpush1.msra.mxu0 0.0
    %5529 = vmatprep.subr.mxu0 0.0
    %5530 = vmatpush1.msra.mxu0 0.0
    %5531 = vmatprep.subr.mxu0 0.0
    %5532 = vmatpush1.msra.mxu0 0.0
    %5533 = vmatprep.subr.mxu0 0.0
    %5534 = vmatpush1.msra.mxu0 0.0
    %5535 = vmatprep.subr.mxu0 0.0
    %5536 = vmatpush1.msra.mxu0 0.0
    %5537 = vmatprep.subr.mxu0 0.0
    %5538 = vmatpush1.msra.mxu0 0.0
    %5539 = vmatprep.subr.mxu0 0.0
    %5540 = vmatpush1.msra.mxu0 0.0
    %5541 = vmatprep.subr.mxu0 0.0
    %5542 = vmatpush1.msra.mxu0 0.0
    %5543 = vmatprep.subr.mxu0 0.0
    %5544 = vmatpush1.msra.mxu0 0.0
    %5545 = vmatprep.subr.mxu0 0.0
    %5546 = vmatpush1.msra.mxu0 0.0
    %5547 = vmatprep.subr.mxu0 0.0
    %5548 = vmatpush1.msra.mxu0 0.0
    %5549 = vmatprep.mubr.f32.mxu0 0.0
    %5550 = vmatmul.mubr.f32.gmra.mrb[0].mxu0 %v5483
    %v5551 = vpop.f32.mrb[0].mxu0
    %v5552 = vadd.f32 0.0, %v5551
    %v5553 = vpop.f32.mrb[0].mxu0
    %5554 = vdwg.mxu0
    %5555 = vrot.lane.b32.xlu0 %v4306, 40
    %v5556 = vpop.permute.xlu0 %5555
    %v5559 = vsel %vm479, %v5478, 0
    %5561 = vmatprep.subr.mxu0 0.0
    %5562 = vmatpush1.msra.mxu0 %v5556
    %5563 = vmatprep.subr.mxu0 0.0
    %5564 = vmatpush1.msra.mxu0 0.0
    %5565 = vmatprep.subr.mxu0 0.0
    %5566 = vmatpush1.msra.mxu0 0.0
    %5567 = vmatprep.subr.mxu0 0.0
    %5568 = vmatpush1.msra.mxu0 0.0
    %5569 = vmatprep.subr.mxu0 0.0
    %5570 = vmatpush1.msra.mxu0 0.0
    %5571 = vmatprep.subr.mxu0 0.0
    %5572 = vmatpush1.msra.mxu0 0.0
    %5573 = vmatprep.subr.mxu0 0.0
    %5574 = vmatpush1.msra.mxu0 0.0
    %5575 = vmatprep.subr.mxu0 0.0
    %5576 = vmatpush1.msra.mxu0 0.0
    %5577 = vmatprep.subr.mxu0 0.0
    %5578 = vmatpush1.msra.mxu0 0.0
    %5579 = vmatprep.subr.mxu0 0.0
    %5580 = vmatpush1.msra.mxu0 0.0
    %5581 = vmatprep.subr.mxu0 0.0
    %5582 = vmatpush1.msra.mxu0 0.0
    %5583 = vmatprep.subr.mxu0 0.0
    %5584 = vmatpush1.msra.mxu0 0.0
    %5585 = vmatprep.subr.mxu0 0.0
    %5586 = vmatpush1.msra.mxu0 0.0
    %5587 = vmatprep.subr.mxu0 0.0
    %5588 = vmatpush1.msra.mxu0 0.0
    %5589 = vmatprep.subr.mxu0 0.0
    %5590 = vmatpush1.msra.mxu0 0.0
    %5591 = vmatprep.subr.mxu0 0.0
    %5592 = vmatpush1.msra.mxu0 0.0
    %5593 = vmatprep.subr.mxu0 0.0
    %5594 = vmatpush1.msra.mxu0 0.0
    %5595 = vmatprep.subr.mxu0 0.0
    %5596 = vmatpush1.msra.mxu0 0.0
    %5597 = vmatprep.subr.mxu0 0.0
    %5598 = vmatpush1.msra.mxu0 0.0
    %5599 = vmatprep.subr.mxu0 0.0
    %5600 = vmatpush1.msra.mxu0 0.0
    %5601 = vmatprep.subr.mxu0 0.0
    %5602 = vmatpush1.msra.mxu0 0.0
    %5603 = vmatprep.subr.mxu0 0.0
    %5604 = vmatpush1.msra.mxu0 0.0
    %5605 = vmatprep.subr.mxu0 0.0
    %5606 = vmatpush1.msra.mxu0 0.0
    %5607 = vmatprep.subr.mxu0 0.0
    %5608 = vmatpush1.msra.mxu0 0.0
    %5609 = vmatprep.subr.mxu0 0.0
    %5610 = vmatpush1.msra.mxu0 0.0
    %5611 = vmatprep.subr.mxu0 0.0
    %5612 = vmatpush1.msra.mxu0 0.0
    %5613 = vmatprep.subr.mxu0 0.0
    %5614 = vmatpush1.msra.mxu0 0.0
    %5615 = vmatprep.subr.mxu0 0.0
    %5616 = vmatpush1.msra.mxu0 0.0
    %5617 = vmatprep.subr.mxu0 0.0
    %5618 = vmatpush1.msra.mxu0 0.0
    %5619 = vmatprep.subr.mxu0 0.0
    %5620 = vmatpush1.msra.mxu0 0.0
    %5621 = vmatprep.subr.mxu0 0.0
    %5622 = vmatpush1.msra.mxu0 0.0
    %5623 = vmatprep.subr.mxu0 0.0
    %5624 = vmatpush1.msra.mxu0 0.0
    %5625 = vmatprep.mubr.f32.mxu0 0.0
    %5626 = vmatmul.mubr.f32.gmra.mrb[0].mxu0 %v5559
    %v5627 = vpop.f32.mrb[0].mxu0
    %v5628 = vadd.f32 0.0, %v5627
    %v5629 = vpop.f32.mrb[0].mxu0
    %5630 = vdwg.mxu0
    %5633 = vrot.lane.b32.xlu0 %v4892, 8
    %v5634 = vpop.permute.xlu0 %5633
    %5635 = vrot.lane.b32.xlu0 %v4968, 8
    %v5636 = vpop.permute.xlu0 %5635
    %5641 = vrot.lane.b32.xlu0 %v5222, 16
    %v5642 = vpop.permute.xlu0 %5641
    %5643 = vrot.lane.b32.xlu0 %v5298, 16
    %v5644 = vpop.permute.xlu0 %5643
    %5649 = vrot.lane.b32.xlu0 %v5552, 24
    %v5650 = vpop.permute.xlu0 %5649
    %5651 = vrot.lane.b32.xlu0 %v5628, 24
    %v5652 = vpop.permute.xlu0 %5651
    %v5655 = vsel %vm479, %v4562, %v5634
    %v5656 = vsel %vm479, %v4638, %v5636
    %v5657 = vsel %vm1823, %v5655, %v5642
    %v5658 = vsel %vm1823, %v5656, %v5644
    %v5659 = vsel %vm1826, %v5657, %v5650
    %v5660 = vsel %vm1826, %v5658, %v5652
    %v5662 = vlaneseq
    %v5663 = vshrl.u32 %v5662, 7
    %v5664 = vsub.s32 0, %v5663
    %v5665 = vrot.slane %v4221, %v5664
    %v5668 = vsel %vm285, %v5659, 0
    %v5671 = vsel %vm285, %v5660, 0
    %5673 = vmatprep.subr.mxu0 0.0
    %5674 = vmatpush1.msra.mxu0 %v4217
    %5675 = vmatprep.subr.mxu0 0.0
    %5676 = vmatpush1.msra.mxu0 %v4218
    %5677 = vmatprep.subr.mxu0 0.0
    %5678 = vmatpush1.msra.mxu0 %v4219
    %5679 = vmatprep.subr.mxu0 0.0
    %5680 = vmatpush1.msra.mxu0 %v4220
    %5681 = vmatprep.subr.mxu0 0.0
    %5682 = vmatpush1.msra.mxu0 0.0
    %5683 = vmatprep.subr.mxu0 0.0
    %5684 = vmatpush1.msra.mxu0 0.0
    %5685 = vmatprep.subr.mxu0 0.0
    %5686 = vmatpush1.msra.mxu0 0.0
    %5687 = vmatprep.subr.mxu0 0.0
    %5688 = vmatpush1.msra.mxu0 0.0
    %5689 = vmatprep.subr.mxu0 0.0
    %5690 = vmatpush1.msra.mxu0 0.0
    %5691 = vmatprep.subr.mxu0 0.0
    %5692 = vmatpush1.msra.mxu0 0.0
    %5693 = vmatprep.subr.mxu0 0.0
    %5694 = vmatpush1.msra.mxu0 0.0
    %5695 = vmatprep.subr.mxu0 0.0
    %5696 = vmatpush1.msra.mxu0 0.0
    %5697 = vmatprep.subr.mxu0 0.0
    %5698 = vmatpush1.msra.mxu0 0.0
    %5699 = vmatprep.subr.mxu0 0.0
    %5700 = vmatpush1.msra.mxu0 0.0
    %5701 = vmatprep.subr.mxu0 0.0
    %5702 = vmatpush1.msra.mxu0 0.0
    %5703 = vmatprep.subr.mxu0 0.0
    %5704 = vmatpush1.msra.mxu0 0.0
    %5705 = vmatprep.subr.mxu0 0.0
    %5706 = vmatpush1.msra.mxu0 0.0
    %5707 = vmatprep.subr.mxu0 0.0
    %5708 = vmatpush1.msra.mxu0 0.0
    %5709 = vmatprep.subr.mxu0 0.0
    %5710 = vmatpush1.msra.mxu0 0.0
    %5711 = vmatprep.subr.mxu0 0.0
    %5712 = vmatpush1.msra.mxu0 0.0
    %5713 = vmatprep.subr.mxu0 0.0
    %5714 = vmatpush1.msra.mxu0 0.0
    %5715 = vmatprep.subr.mxu0 0.0
    %5716 = vmatpush1.msra.mxu0 0.0
    %5717 = vmatprep.subr.mxu0 0.0
    %5718 = vmatpush1.msra.mxu0 0.0
    %5719 = vmatprep.subr.mxu0 0.0
    %5720 = vmatpush1.msra.mxu0 0.0
    %5721 = vmatprep.subr.mxu0 0.0
    %5722 = vmatpush1.msra.mxu0 0.0
    %5723 = vmatprep.subr.mxu0 0.0
    %5724 = vmatpush1.msra.mxu0 0.0
    %5725 = vmatprep.subr.mxu0 0.0
    %5726 = vmatpush1.msra.mxu0 0.0
    %5727 = vmatprep.subr.mxu0 0.0
    %5728 = vmatpush1.msra.mxu0 0.0
    %5729 = vmatprep.subr.mxu0 0.0
    %5730 = vmatpush1.msra.mxu0 0.0
    %5731 = vmatprep.subr.mxu0 0.0
    %5732 = vmatpush1.msra.mxu0 0.0
    %5733 = vmatprep.subr.mxu0 0.0
    %5734 = vmatpush1.msra.mxu0 0.0
    %5735 = vmatprep.subr.mxu0 0.0
    %5736 = vmatpush1.msra.mxu0 0.0
    %5737 = vmatprep.mubr.f32.mxu0 0.0
    %5738 = vmatmul.mubr.f32.gmra.mrb[0].mxu0 %v5668
    %v5739 = vpop.f32.mrb[0].mxu0
    %v5740 = vadd.f32 %v5665, %v5739
    %v5741 = vpop.f32.mrb[0].mxu0
    %5742 = vmatprep.mubr.f32.mxu0 0.0
    %5743 = vmatmul.mubr.f32.gmra.mrb[0].mxu0 %v5671
    %v5744 = vpop.f32.mrb[0].mxu0
    %v5745 = vadd.f32 %v5665, %v5744
    %v5746 = vpop.f32.mrb[0].mxu0
    %5747 = vdwg.mxu0
    %v5748 = vadd.f32 %v4162, %v5740
    %v5749 = vadd.f32 %v4163, %v5745
    %v5750 = vld [vmem:[%s59] sm:$0x1]
    %v5751 = vld [vmem:[%s61] sm:$0x1]
    %v5752 = vsel %vm285, %v5748, 0.0
    %5753 = vadd.xlane.f32.xlu0 %v5752
    %v5754 = vpop.xlane.xlu0 %5753
    %v5755 = vsel %vm285, %v5749, 0.0
    %5756 = vadd.xlane.f32.xlu0 %v5755
    %v5757 = vpop.xlane.xlu0 %5756
    %v5758 = vmul.f32 %v5754, %v292
    %v5759 = vmul.f32 %v5757, %v292
    %v5760 = vsub.f32 %v5748, %v5758
    %v5761 = vsub.f32 %v5749, %v5759
    %v5762 = vmul.f32 %v5760, %v5760
    %v5763 = vmul.f32 %v5761, %v5761
    %v5764 = vsel %vm285, %v5762, 0.0
    %5765 = vadd.xlane.f32.xlu0 %v5764
    %v5766 = vpop.xlane.xlu0 %5765
    %v5767 = vsel %vm285, %v5763, 0.0
    %5768 = vadd.xlane.f32.xlu0 %v5767
    %v5769 = vpop.xlane.xlu0 %5768
    %v5770 = vmul.f32 %v5766, %v292
    %v5771 = vmul.f32 %v5769, %v292
    %v5772 = vadd.f32 %v5770, 1e-05
    %v5773 = vadd.f32 %v5771, 1e-05
    %v5774 = vrsqrt.pop %v5772
    %v5775 = vrsqrt.pop %v5773
    %v5776 = vmul.f32 %v5760, %v5774
    %v5777 = vmul.f32 %v5761, %v5775
    %v5779 = vlaneseq
    %v5780 = vshrl.u32 %v5779, 7
    %v5781 = vsub.s32 0, %v5780
    %v5782 = vrot.slane %v5750, %v5781
    %v5784 = vmul.f32 %v5776, %v5782
    %v5785 = vmul.f32 %v5777, %v5782
    %v5787 = vlaneseq
    %v5788 = vshrl.u32 %v5787, 7
    %v5789 = vsub.s32 0, %v5788
    %v5790 = vrot.slane %v5751, %v5789
    %v5792 = vadd.f32 %v5784, %v5790
    %v5793 = vadd.f32 %v5785, %v5790
    %v5794 = vld [vmem:[%s63] sm:$0xff]
    %v5795 = vld [vmem:[%s63 + $0x8] sm:$0xff]
    %v5796 = vld [vmem:[%s63 + $0x10] sm:$0xff]
    %v5797 = vld [vmem:[%s63 + $0x18] sm:$0xff]
    %v5798 = vld [vmem:[%s65] sm:$0x1]
    %v5800 = vlaneseq
    %v5801 = vshrl.u32 %v5800, 7
    %v5802 = vsub.s32 0, %v5801
    %v5803 = vrot.slane %v5798, %v5802
    %v5806 = vsel %vm285, %v5792, 0
    %v5809 = vsel %vm285, %v5793, 0
    %5811 = vmatprep.subr.mxu0 0.0
    %5812 = vmatpush1.msra.mxu0 %v5794
    %5813 = vmatprep.subr.mxu0 0.0
    %5814 = vmatpush1.msra.mxu0 %v5795
    %5815 = vmatprep.subr.mxu0 0.0
    %5816 = vmatpush1.msra.mxu0 %v5796
    %5817 = vmatprep.subr.mxu0 0.0
    %5818 = vmatpush1.msra.mxu0 %v5797
    %5819 = vmatprep.subr.mxu0 0.0
    %5820 = vmatpush1.msra.mxu0 0.0
    %5821 = vmatprep.subr.mxu0 0.0
    %5822 = vmatpush1.msra.mxu0 0.0
    %5823 = vmatprep.subr.mxu0 0.0
    %5824 = vmatpush1.msra.mxu0 0.0
    %5825 = vmatprep.subr.mxu0 0.0
    %5826 = vmatpush1.msra.mxu0 0.0
    %5827 = vmatprep.subr.mxu0 0.0
    %5828 = vmatpush1.msra.mxu0 0.0
    %5829 = vmatprep.subr.mxu0 0.0
    %5830 = vmatpush1.msra.mxu0 0.0
    %5831 = vmatprep.subr.mxu0 0.0
    %5832 = vmatpush1.msra.mxu0 0.0
    %5833 = vmatprep.subr.mxu0 0.0
    %5834 = vmatpush1.msra.mxu0 0.0
    %5835 = vmatprep.subr.mxu0 0.0
    %5836 = vmatpush1.msra.mxu0 0.0
    %5837 = vmatprep.subr.mxu0 0.0
    %5838 = vmatpush1.msra.mxu0 0.0
    %5839 = vmatprep.subr.mxu0 0.0
    %5840 = vmatpush1.msra.mxu0 0.0
    %5841 = vmatprep.subr.mxu0 0.0
    %5842 = vmatpush1.msra.mxu0 0.0
    %5843 = vmatprep.subr.mxu0 0.0
    %5844 = vmatpush1.msra.mxu0 0.0
    %5845 = vmatprep.subr.mxu0 0.0
    %5846 = vmatpush1.msra.mxu0 0.0
    %5847 = vmatprep.subr.mxu0 0.0
    %5848 = vmatpush1.msra.mxu0 0.0
    %5849 = vmatprep.subr.mxu0 0.0
    %5850 = vmatpush1.msra.mxu0 0.0
    %5851 = vmatprep.subr.mxu0 0.0
    %5852 = vmatpush1.msra.mxu0 0.0
    %5853 = vmatprep.subr.mxu0 0.0
    %5854 = vmatpush1.msra.mxu0 0.0
    %5855 = vmatprep.subr.mxu0 0.0
    %5856 = vmatpush1.msra.mxu0 0.0
    %5857 = vmatprep.subr.mxu0 0.0
    %5858 = vmatpush1.msra.mxu0 0.0
    %5859 = vmatprep.subr.mxu0 0.0
    %5860 = vmatpush1.msra.mxu0 0.0
    %5861 = vmatprep.subr.mxu0 0.0
    %5862 = vmatpush1.msra.mxu0 0.0
    %5863 = vmatprep.subr.mxu0 0.0
    %5864 = vmatpush1.msra.mxu0 0.0
    %5865 = vmatprep.subr.mxu0 0.0
    %5866 = vmatpush1.msra.mxu0 0.0
    %5867 = vmatprep.subr.mxu0 0.0
    %5868 = vmatpush1.msra.mxu0 0.0
    %5869 = vmatprep.subr.mxu0 0.0
    %5870 = vmatpush1.msra.mxu0 0.0
    %5871 = vmatprep.subr.mxu0 0.0
    %5872 = vmatpush1.msra.mxu0 0.0
    %5873 = vmatprep.subr.mxu0 0.0
    %5874 = vmatpush1.msra.mxu0 0.0
    %5875 = vmatprep.mubr.f32.mxu0 0.0
    %5876 = vmatmul.mubr.f32.gmra.mrb[0].mxu0 %v5806
    %v5877 = vpop.f32.mrb[0].mxu0
    %v5878 = vadd.f32 %v5803, %v5877
    %v5879 = vpop.f32.mrb[0].mxu0
    %5880 = vmatprep.mubr.f32.mxu0 0.0
    %5881 = vmatmul.mubr.f32.gmra.mrb[0].mxu0 %v5809
    %v5882 = vpop.f32.mrb[0].mxu0
    %v5883 = vadd.f32 %v5803, %v5882
    %v5884 = vpop.f32.mrb[0].mxu0
    %5885 = vdwg.mxu0
    %v5886 = vmul.f32 %v5878, 1.702
    %v5887 = vmul.f32 %v5883, 1.702
    %v5888 = vxor.u32 %v5886, 2147483648
    %v5889 = vxor.u32 %v5887, 2147483648
    %v5890 = vmul.f32 %v5888, 1.442695
    %v5891 = vpow.pop %v5890
    %v5892 = vmul.f32 %v5889, 1.442695
    %v5893 = vpow.pop %v5892
    %v5894 = vadd.f32 %v5891, 1.0
    %v5895 = vadd.f32 %v5893, 1.0
    %v5896 = vrcp.pop %v5894
    %v5897 = vmul.f32 1.0, %v5896
    %v5898 = vrcp.pop %v5895
    %v5899 = vmul.f32 1.0, %v5898
    %v5900 = vmul.f32 %v5878, %v5897
    %v5901 = vmul.f32 %v5883, %v5899
    %v5902 = vld [vmem:[%s67] sm:$0xff]
    %v5903 = vld [vmem:[%s67 + $0x8] sm:$0xff]
    %v5904 = vld [vmem:[%s67 + $0x10] sm:$0xff]
    %v5905 = vld [vmem:[%s67 + $0x18] sm:$0xff]
    %v5906 = vld [vmem:[%s67 + $0x20] sm:$0xff]
    %v5907 = vld [vmem:[%s67 + $0x28] sm:$0xff]
    %v5908 = vld [vmem:[%s67 + $0x30] sm:$0xff]
    %v5909 = vld [vmem:[%s67 + $0x38] sm:$0xff]
    %v5910 = vld [vmem:[%s67 + $0x40] sm:$0xff]
    %v5911 = vld [vmem:[%s67 + $0x48] sm:$0xff]
    %v5912 = vld [vmem:[%s67 + $0x50] sm:$0xff]
    %v5913 = vld [vmem:[%s67 + $0x58] sm:$0xff]
    %v5914 = vld [vmem:[%s67 + $0x60] sm:$0xff]
    %v5915 = vld [vmem:[%s67 + $0x68] sm:$0xff]
    %v5916 = vld [vmem:[%s67 + $0x70] sm:$0xff]
    %v5917 = vld [vmem:[%s67 + $0x78] sm:$0xff]
    %v5918 = vld [vmem:[%s69] sm:$0x1]
    %v5920 = vlaneseq
    %v5921 = vshrl.u32 %v5920, 7
    %v5922 = vsub.s32 0, %v5921
    %v5923 = vrot.slane %v5918, %v5922
    %5925 = vmatprep.subr.mxu0 0.0
    %5926 = vmatpush1.msra.mxu0 %v5902
    %5927 = vmatprep.subr.mxu0 0.0
    %5928 = vmatpush1.msra.mxu0 %v5903
    %5929 = vmatprep.subr.mxu0 0.0
    %5930 = vmatpush1.msra.mxu0 %v5904
    %5931 = vmatprep.subr.mxu0 0.0
    %5932 = vmatpush1.msra.mxu0 %v5905
    %5933 = vmatprep.subr.mxu0 0.0
    %5934 = vmatpush1.msra.mxu0 %v5906
    %5935 = vmatprep.subr.mxu0 0.0
    %5936 = vmatpush1.msra.mxu0 %v5907
    %5937 = vmatprep.subr.mxu0 0.0
    %5938 = vmatpush1.msra.mxu0 %v5908
    %5939 = vmatprep.subr.mxu0 0.0
    %5940 = vmatpush1.msra.mxu0 %v5909
    %5941 = vmatprep.subr.mxu0 0.0
    %5942 = vmatpush1.msra.mxu0 %v5910
    %5943 = vmatprep.subr.mxu0 0.0
    %5944 = vmatpush1.msra.mxu0 %v5911
    %5945 = vmatprep.subr.mxu0 0.0
    %5946 = vmatpush1.msra.mxu0 %v5912
    %5947 = vmatprep.subr.mxu0 0.0
    %5948 = vmatpush1.msra.mxu0 %v5913
    %5949 = vmatprep.subr.mxu0 0.0
    %5950 = vmatpush1.msra.mxu0 %v5914
    %5951 = vmatprep.subr.mxu0 0.0
    %5952 = vmatpush1.msra.mxu0 %v5915
    %5953 = vmatprep.subr.mxu0 0.0
    %5954 = vmatpush1.msra.mxu0 %v5916
    %5955 = vmatprep.subr.mxu0 0.0
    %5956 = vmatpush1.msra.mxu0 %v5917
    %5957 = vmatprep.subr.mxu0 0.0
    %5958 = vmatpush1.msra.mxu0 0.0
    %5959 = vmatprep.subr.mxu0 0.0
    %5960 = vmatpush1.msra.mxu0 0.0
    %5961 = vmatprep.subr.mxu0 0.0
    %5962 = vmatpush1.msra.mxu0 0.0
    %5963 = vmatprep.subr.mxu0 0.0
    %5964 = vmatpush1.msra.mxu0 0.0
    %5965 = vmatprep.subr.mxu0 0.0
    %5966 = vmatpush1.msra.mxu0 0.0
    %5967 = vmatprep.subr.mxu0 0.0
    %5968 = vmatpush1.msra.mxu0 0.0
    %5969 = vmatprep.subr.mxu0 0.0
    %5970 = vmatpush1.msra.mxu0 0.0
    %5971 = vmatprep.subr.mxu0 0.0
    %5972 = vmatpush1.msra.mxu0 0.0
    %5973 = vmatprep.subr.mxu0 0.0
    %5974 = vmatpush1.msra.mxu0 0.0
    %5975 = vmatprep.subr.mxu0 0.0
    %5976 = vmatpush1.msra.mxu0 0.0
    %5977 = vmatprep.subr.mxu0 0.0
    %5978 = vmatpush1.msra.mxu0 0.0
    %5979 = vmatprep.subr.mxu0 0.0
    %5980 = vmatpush1.msra.mxu0 0.0
    %5981 = vmatprep.subr.mxu0 0.0
    %5982 = vmatpush1.msra.mxu0 0.0
    %5983 = vmatprep.subr.mxu0 0.0
    %5984 = vmatpush1.msra.mxu0 0.0
    %5985 = vmatprep.subr.mxu0 0.0
    %5986 = vmatpush1.msra.mxu0 0.0
    %5987 = vmatprep.subr.mxu0 0.0
    %5988 = vmatpush1.msra.mxu0 0.0
    %5989 = vmatprep.mubr.f32.mxu0 0.0
    %5990 = vmatmul.mubr.f32.gmra.mrb[0].mxu0 %v5900
    %v5991 = vpop.f32.mrb[0].mxu0
    %v5992 = vadd.f32 %v5923, %v5991
    %v5993 = vpop.f32.mrb[0].mxu0
    %5994 = vmatprep.mubr.f32.mxu0 0.0
    %5995 = vmatmul.mubr.f32.gmra.mrb[0].mxu0 %v5901
    %v5996 = vpop.f32.mrb[0].mxu0
    %v5997 = vadd.f32 %v5923, %v5996
    %v5998 = vpop.f32.mrb[0].mxu0
    %5999 = vdwg.mxu0
    %v6000 = vadd.f32 %v5748, %v5992
    %v6001 = vadd.f32 %v5749, %v5997
    %s6002 = scalar_lea.vmem %s47, 1
    %v6003 = vld [vmem:[%s6002] sm:$0x1]
    %s6004 = scalar_lea.vmem %s49, 1
    %v6005 = vld [vmem:[%s6004] sm:$0x1]
    %v6006 = vsel %vm285, %v6000, 0.0
    %6007 = vadd.xlane.f32.xlu0 %v6006
    %v6008 = vpop.xlane.xlu0 %6007
    %v6009 = vsel %vm285, %v6001, 0.0
    %6010 = vadd.xlane.f32.xlu0 %v6009
    %v6011 = vpop.xlane.xlu0 %6010
    %v6012 = vmul.f32 %v6008, %v292
    %v6013 = vmul.f32 %v6011, %v292
    %v6014 = vsub.f32 %v6000, %v6012
    %v6015 = vsub.f32 %v6001, %v6013
    %v6016 = vmul.f32 %v6014, %v6014
    %v6017 = vmul.f32 %v6015, %v6015
    %v6018 = vsel %vm285, %v6016, 0.0
    %6019 = vadd.xlane.f32.xlu0 %v6018
    %v6020 = vpop.xlane.xlu0 %6019
    %v6021 = vsel %vm285, %v6017, 0.0
    %6022 = vadd.xlane.f32.xlu0 %v6021
    %v6023 = vpop.xlane.xlu0 %6022
    %v6024 = vmul.f32 %v6020, %v292
    %v6025 = vmul.f32 %v6023, %v292
    %v6026 = vadd.f32 %v6024, 1e-05
    %v6027 = vadd.f32 %v6025, 1e-05
    %v6028 = vrsqrt.pop %v6026
    %v6029 = vrsqrt.pop %v6027
    %v6030 = vmul.f32 %v6014, %v6028
    %v6031 = vmul.f32 %v6015, %v6029
    %v6033 = vlaneseq
    %v6034 = vshrl.u32 %v6033, 7
    %v6035 = vsub.s32 0, %v6034
    %v6036 = vrot.slane %v6003, %v6035
    %v6038 = vmul.f32 %v6030, %v6036
    %v6039 = vmul.f32 %v6031, %v6036
    %v6041 = vlaneseq
    %v6042 = vshrl.u32 %v6041, 7
    %v6043 = vsub.s32 0, %v6042
    %v6044 = vrot.slane %v6005, %v6043
    %v6046 = vadd.f32 %v6038, %v6044
    %v6047 = vadd.f32 %v6039, %v6044
    %s6048 = scalar_lea.vmem %s51, 32
    %v6049 = vld [vmem:[%s6048] sm:$0xff]
    %v6050 = vld [vmem:[%s6048 + $0x8] sm:$0xff]
    %v6051 = vld [vmem:[%s6048 + $0x10] sm:$0xff]
    %v6052 = vld [vmem:[%s6048 + $0x18] sm:$0xff]
    %s6053 = scalar_lea.vmem %s53, 1
    %v6054 = vld [vmem:[%s6053] sm:$0x1]
    %s6055 = scalar_lea.vmem %s55, 32
    %v6056 = vld [vmem:[%s6055] sm:$0xff]
    %v6057 = vld [vmem:[%s6055 + $0x8] sm:$0xff]
    %v6058 = vld [vmem:[%s6055 + $0x10] sm:$0xff]
    %v6059 = vld [vmem:[%s6055 + $0x18] sm:$0xff]
    %s6060 = scalar_lea.vmem %s57, 1
    %v6061 = vld [vmem:[%s6060] sm:$0x1]
    %v6063 = vlaneseq
    %v6064 = vshrl.u32 %v6063, 7
    %v6065 = vsub.s32 0, %v6064
    %v6066 = vrot.slane %v6054, %v6065
    %v6069 = vsel %vm285, %v6046, 0
    %v6072 = vsel %vm285, %v6047, 0
    %6074 = vmatprep.subr.mxu0 0.0
    %6075 = vmatpush1.msra.mxu0 %v6049
    %6076 = vmatprep.subr.mxu0 0.0
    %6077 = vmatpush1.msra.mxu0 %v6050
    %6078 = vmatprep.subr.mxu0 0.0
    %6079 = vmatpush1.msra.mxu0 %v6051
    %6080 = vmatprep.subr.mxu0 0.0
    %6081 = vmatpush1.msra.mxu0 %v6052
    %6082 = vmatprep.subr.mxu0 0.0
    %6083 = vmatpush1.msra.mxu0 0.0
    %6084 = vmatprep.subr.mxu0 0.0
    %6085 = vmatpush1.msra.mxu0 0.0
    %6086 = vmatprep.subr.mxu0 0.0
    %6087 = vmatpush1.msra.mxu0 0.0
    %6088 = vmatprep.subr.mxu0 0.0
    %6089 = vmatpush1.msra.mxu0 0.0
    %6090 = vmatprep.subr.mxu0 0.0
    %6091 = vmatpush1.msra.mxu0 0.0
    %6092 = vmatprep.subr.mxu0 0.0
    %6093 = vmatpush1.msra.mxu0 0.0
    %6094 = vmatprep.subr.mxu0 0.0
    %6095 = vmatpush1.msra.mxu0 0.0
    %6096 = vmatprep.subr.mxu0 0.0
    %6097 = vmatpush1.msra.mxu0 0.0
    %6098 = vmatprep.subr.mxu0 0.0
    %6099 = vmatpush1.msra.mxu0 0.0
    %6100 = vmatprep.subr.mxu0 0.0
    %6101 = vmatpush1.msra.mxu0 0.0
    %6102 = vmatprep.subr.mxu0 0.0
    %6103 = vmatpush1.msra.mxu0 0.0
    %6104 = vmatprep.subr.mxu0 0.0
    %6105 = vmatpush1.msra.mxu0 0.0
    %6106 = vmatprep.subr.mxu0 0.0
    %6107 = vmatpush1.msra.mxu0 0.0
    %6108 = vmatprep.subr.mxu0 0.0
    %6109 = vmatpush1.msra.mxu0 0.0
    %6110 = vmatprep.subr.mxu0 0.0
    %6111 = vmatpush1.msra.mxu0 0.0
    %6112 = vmatprep.subr.mxu0 0.0
    %6113 = vmatpush1.msra.mxu0 0.0
    %6114 = vmatprep.subr.mxu0 0.0
    %6115 = vmatpush1.msra.mxu0 0.0
    %6116 = vmatprep.subr.mxu0 0.0
    %6117 = vmatpush1.msra.mxu0 0.0
    %6118 = vmatprep.subr.mxu0 0.0
    %6119 = vmatpush1.msra.mxu0 0.0
    %6120 = vmatprep.subr.mxu0 0.0
    %6121 = vmatpush1.msra.mxu0 0.0
    %6122 = vmatprep.subr.mxu0 0.0
    %6123 = vmatpush1.msra.mxu0 0.0
    %6124 = vmatprep.subr.mxu0 0.0
    %6125 = vmatpush1.msra.mxu0 0.0
    %6126 = vmatprep.subr.mxu0 0.0
    %6127 = vmatpush1.msra.mxu0 0.0
    %6128 = vmatprep.subr.mxu0 0.0
    %6129 = vmatpush1.msra.mxu0 0.0
    %6130 = vmatprep.subr.mxu0 0.0
    %6131 = vmatpush1.msra.mxu0 0.0
    %6132 = vmatprep.subr.mxu0 0.0
    %6133 = vmatpush1.msra.mxu0 0.0
    %6134 = vmatprep.subr.mxu0 0.0
    %6135 = vmatpush1.msra.mxu0 0.0
    %6136 = vmatprep.subr.mxu0 0.0
    %6137 = vmatpush1.msra.mxu0 0.0
    %6138 = vmatprep.mubr.f32.mxu0 0.0
    %6139 = vmatmul.mubr.f32.gmra.mrb[0].mxu0 %v6069
    %v6140 = vpop.f32.mrb[0].mxu0
    %v6141 = vadd.f32 %v6066, %v6140
    %v6142 = vpop.f32.mrb[0].mxu0
    %6143 = vmatprep.mubr.f32.mxu0 0.0
    %6144 = vmatmul.mubr.f32.gmra.mrb[0].mxu0 %v6072
    %v6145 = vpop.f32.mrb[0].mxu0
    %v6146 = vadd.f32 %v6066, %v6145
    %v6147 = vpop.f32.mrb[0].mxu0
    %6148 = vdwg.mxu0
    %v6149 = vmul.f32 %v6141, 0.35355338
    %v6150 = vmul.f32 %v6146, 0.35355338
    %6152 = vrot.lane.b32.xlu0 %v6141, 96
    %v6153 = vpop.permute.xlu0 %6152
    %v6155 = vsel %vm479, %v6149, 0
    %v6157 = vsel %vm479, %v6153, 0
    %6159 = vmatprep.subr.mxu0 0.0
    %6160 = vmatpush1.xpose.msra.mxu0 %v6157
    %6161 = vmatprep.subr.mxu0 0.0
    %6162 = vmatpush1.xpose.msra.mxu0 0.0
    %6163 = vmatprep.subr.mxu0 0.0
    %6164 = vmatpush1.xpose.msra.mxu0 0.0
    %6165 = vmatprep.subr.mxu0 0.0
    %6166 = vmatpush1.xpose.msra.mxu0 0.0
    %6167 = vmatprep.subr.mxu0 0.0
    %6168 = vmatpush1.xpose.msra.mxu0 0.0
    %6169 = vmatprep.subr.mxu0 0.0
    %6170 = vmatpush1.xpose.msra.mxu0 0.0
    %6171 = vmatprep.subr.mxu0 0.0
    %6172 = vmatpush1.xpose.msra.mxu0 0.0
    %6173 = vmatprep.subr.mxu0 0.0
    %6174 = vmatpush1.xpose.msra.mxu0 0.0
    %6175 = vmatprep.subr.mxu0 0.0
    %6176 = vmatpush1.xpose.msra.mxu0 0.0
    %6177 = vmatprep.subr.mxu0 0.0
    %6178 = vmatpush1.xpose.msra.mxu0 0.0
    %6179 = vmatprep.subr.mxu0 0.0
    %6180 = vmatpush1.xpose.msra.mxu0 0.0
    %6181 = vmatprep.subr.mxu0 0.0
    %6182 = vmatpush1.xpose.msra.mxu0 0.0
    %6183 = vmatprep.subr.mxu0 0.0
    %6184 = vmatpush1.xpose.msra.mxu0 0.0
    %6185 = vmatprep.subr.mxu0 0.0
    %6186 = vmatpush1.xpose.msra.mxu0 0.0
    %6187 = vmatprep.subr.mxu0 0.0
    %6188 = vmatpush1.xpose.msra.mxu0 0.0
    %6189 = vmatprep.subr.mxu0 0.0
    %6190 = vmatpush1.xpose.msra.mxu0 0.0
    %6191 = vmatprep.subr.mxu0 0.0
    %6192 = vmatpush1.xpose.msra.mxu0 0.0
    %6193 = vmatprep.subr.mxu0 0.0
    %6194 = vmatpush1.xpose.msra.mxu0 0.0
    %6195 = vmatprep.subr.mxu0 0.0
    %6196 = vmatpush1.xpose.msra.mxu0 0.0
    %6197 = vmatprep.subr.mxu0 0.0
    %6198 = vmatpush1.xpose.msra.mxu0 0.0
    %6199 = vmatprep.subr.mxu0 0.0
    %6200 = vmatpush1.xpose.msra.mxu0 0.0
    %6201 = vmatprep.subr.mxu0 0.0
    %6202 = vmatpush1.xpose.msra.mxu0 0.0
    %6203 = vmatprep.subr.mxu0 0.0
    %6204 = vmatpush1.xpose.msra.mxu0 0.0
    %6205 = vmatprep.subr.mxu0 0.0
    %6206 = vmatpush1.xpose.msra.mxu0 0.0
    %6207 = vmatprep.subr.mxu0 0.0
    %6208 = vmatpush1.xpose.msra.mxu0 0.0
    %6209 = vmatprep.subr.mxu0 0.0
    %6210 = vmatpush1.xpose.msra.mxu0 0.0
    %6211 = vmatprep.subr.mxu0 0.0
    %6212 = vmatpush1.xpose.msra.mxu0 0.0
    %6213 = vmatprep.subr.mxu0 0.0
    %6214 = vmatpush1.xpose.msra.mxu0 0.0
    %6215 = vmatprep.subr.mxu0 0.0
    %6216 = vmatpush1.xpose.msra.mxu0 0.0
    %6217 = vmatprep.subr.mxu0 0.0
    %6218 = vmatpush1.xpose.msra.mxu0 0.0
    %6219 = vmatprep.subr.mxu0 0.0
    %6220 = vmatpush1.xpose.msra.mxu0 0.0
    %6221 = vmatprep.subr.mxu0 0.0
    %6222 = vmatpush1.xpose.msra.mxu0 0.0
    %6223 = vmatprep.mubr.f32.mxu0 0.0
    %6224 = vmatmul.mubr.f32.gmra.mrb[0].mxu0 %v6155
    %v6225 = vpop.f32.mrb[0].mxu0
    %v6226 = vadd.f32 %v4167, %v6225
    %v6227 = vpop.f32.mrb[0].mxu0
    %6228 = vdwg.mxu0
    %6230 = vrot.lane.b32.xlu0 %v6146, 96
    %v6231 = vpop.permute.xlu0 %6230
    %v6233 = vsel %vm479, %v6150, 0
    %v6235 = vsel %vm479, %v6231, 0
    %6237 = vmatprep.subr.mxu0 0.0
    %6238 = vmatpush1.xpose.msra.mxu0 %v6235
    %6239 = vmatprep.subr.mxu0 0.0
    %6240 = vmatpush1.xpose.msra.mxu0 0.0
    %6241 = vmatprep.subr.mxu0 0.0
    %6242 = vmatpush1.xpose.msra.mxu0 0.0
    %6243 = vmatprep.subr.mxu0 0.0
    %6244 = vmatpush1.xpose.msra.mxu0 0.0
    %6245 = vmatprep.subr.mxu0 0.0
    %6246 = vmatpush1.xpose.msra.mxu0 0.0
    %6247 = vmatprep.subr.mxu0 0.0
    %6248 = vmatpush1.xpose.msra.mxu0 0.0
    %6249 = vmatprep.subr.mxu0 0.0
    %6250 = vmatpush1.xpose.msra.mxu0 0.0
    %6251 = vmatprep.subr.mxu0 0.0
    %6252 = vmatpush1.xpose.msra.mxu0 0.0
    %6253 = vmatprep.subr.mxu0 0.0
    %6254 = vmatpush1.xpose.msra.mxu0 0.0
    %6255 = vmatprep.subr.mxu0 0.0
    %6256 = vmatpush1.xpose.msra.mxu0 0.0
    %6257 = vmatprep.subr.mxu0 0.0
    %6258 = vmatpush1.xpose.msra.mxu0 0.0
    %6259 = vmatprep.subr.mxu0 0.0
    %6260 = vmatpush1.xpose.msra.mxu0 0.0
    %6261 = vmatprep.subr.mxu0 0.0
    %6262 = vmatpush1.xpose.msra.mxu0 0.0
    %6263 = vmatprep.subr.mxu0 0.0
    %6264 = vmatpush1.xpose.msra.mxu0 0.0
    %6265 = vmatprep.subr.mxu0 0.0
    %6266 = vmatpush1.xpose.msra.mxu0 0.0
    %6267 = vmatprep.subr.mxu0 0.0
    %6268 = vmatpush1.xpose.msra.mxu0 0.0
    %6269 = vmatprep.subr.mxu0 0.0
    %6270 = vmatpush1.xpose.msra.mxu0 0.0
    %6271 = vmatprep.subr.mxu0 0.0
    %6272 = vmatpush1.xpose.msra.mxu0 0.0
    %6273 = vmatprep.subr.mxu0 0.0
    %6274 = vmatpush1.xpose.msra.mxu0 0.0
    %6275 = vmatprep.subr.mxu0 0.0
    %6276 = vmatpush1.xpose.msra.mxu0 0.0
    %6277 = vmatprep.subr.mxu0 0.0
    %6278 = vmatpush1.xpose.msra.mxu0 0.0
    %6279 = vmatprep.subr.mxu0 0.0
    %6280 = vmatpush1.xpose.msra.mxu0 0.0
    %6281 = vmatprep.subr.mxu0 0.0
    %6282 = vmatpush1.xpose.msra.mxu0 0.0
    %6283 = vmatprep.subr.mxu0 0.0
    %6284 = vmatpush1.xpose.msra.mxu0 0.0
    %6285 = vmatprep.subr.mxu0 0.0
    %6286 = vmatpush1.xpose.msra.mxu0 0.0
    %6287 = vmatprep.subr.mxu0 0.0
    %6288 = vmatpush1.xpose.msra.mxu0 0.0
    %6289 = vmatprep.subr.mxu0 0.0
    %6290 = vmatpush1.xpose.msra.mxu0 0.0
    %6291 = vmatprep.subr.mxu0 0.0
    %6292 = vmatpush1.xpose.msra.mxu0 0.0
    %6293 = vmatprep.subr.mxu0 0.0
    %6294 = vmatpush1.xpose.msra.mxu0 0.0
    %6295 = vmatprep.subr.mxu0 0.0
    %6296 = vmatpush1.xpose.msra.mxu0 0.0
    %6297 = vmatprep.subr.mxu0 0.0
    %6298 = vmatpush1.xpose.msra.mxu0 0.0
    %6299 = vmatprep.subr.mxu0 0.0
    %6300 = vmatpush1.xpose.msra.mxu0 0.0
    %6301 = vmatprep.mubr.f32.mxu0 0.0
    %6302 = vmatmul.mubr.f32.gmra.mrb[0].mxu0 %v6233
    %v6303 = vpop.f32.mrb[0].mxu0
    %v6304 = vadd.f32 %v4167, %v6303
    %v6305 = vpop.f32.mrb[0].mxu0
    %6306 = vdwg.mxu0
    %v6307 = vsel %vm479, %v6226, -inf
    %6308 = vmax.xlane.f32.xlu0 %v6307
    %v6309 = vpop.xlane.xlu0 %6308
    %v6310 = vsel %vm479, %v6304, -inf
    %6311 = vmax.xlane.f32.xlu0 %v6310
    %v6312 = vpop.xlane.xlu0 %6311
    %v6313 = vsub.f32 %v6226, %v6309
    %v6314 = vsub.f32 %v6304, %v6312
    %v6315 = vmul.f32 %v6313, 1.442695
    %v6316 = vpow.pop %v6315
    %v6317 = vmul.f32 %v6314, 1.442695
    %v6318 = vpow.pop %v6317
    %v6319 = vsel %vm479, %v6316, 0.0
    %6320 = vadd.xlane.f32.xlu0 %v6319
    %v6321 = vpop.xlane.xlu0 %6320
    %v6322 = vsel %vm479, %v6318, 0.0
    %6323 = vadd.xlane.f32.xlu0 %v6322
    %v6324 = vpop.xlane.xlu0 %6323
    %v6325 = vrcp.pop %v6321
    %v6326 = vrcp.pop %v6324
    %v6327 = vmul.f32 %v6316, %v6325
    %v6328 = vmul.f32 %v6318, %v6326
    %6329 = vrot.lane.b32.xlu0 %v6141, 64
    %v6330 = vpop.permute.xlu0 %6329
    %v6333 = vsel %vm479, %v6327, 0
    %6335 = vmatprep.subr.mxu0 0.0
    %6336 = vmatpush1.msra.mxu0 %v6330
    %6337 = vmatprep.subr.mxu0 0.0
    %6338 = vmatpush1.msra.mxu0 0.0
    %6339 = vmatprep.subr.mxu0 0.0
    %6340 = vmatpush1.msra.mxu0 0.0
    %6341 = vmatprep.subr.mxu0 0.0
    %6342 = vmatpush1.msra.mxu0 0.0
    %6343 = vmatprep.subr.mxu0 0.0
    %6344 = vmatpush1.msra.mxu0 0.0
    %6345 = vmatprep.subr.mxu0 0.0
    %6346 = vmatpush1.msra.mxu0 0.0
    %6347 = vmatprep.subr.mxu0 0.0
    %6348 = vmatpush1.msra.mxu0 0.0
    %6349 = vmatprep.subr.mxu0 0.0
    %6350 = vmatpush1.msra.mxu0 0.0
    %6351 = vmatprep.subr.mxu0 0.0
    %6352 = vmatpush1.msra.mxu0 0.0
    %6353 = vmatprep.subr.mxu0 0.0
    %6354 = vmatpush1.msra.mxu0 0.0
    %6355 = vmatprep.subr.mxu0 0.0
    %6356 = vmatpush1.msra.mxu0 0.0
    %6357 = vmatprep.subr.mxu0 0.0
    %6358 = vmatpush1.msra.mxu0 0.0
    %6359 = vmatprep.subr.mxu0 0.0
    %6360 = vmatpush1.msra.mxu0 0.0
    %6361 = vmatprep.subr.mxu0 0.0
    %6362 = vmatpush1.msra.mxu0 0.0
    %6363 = vmatprep.subr.mxu0 0.0
    %6364 = vmatpush1.msra.mxu0 0.0
    %6365 = vmatprep.subr.mxu0 0.0
    %6366 = vmatpush1.msra.mxu0 0.0
    %6367 = vmatprep.subr.mxu0 0.0
    %6368 = vmatpush1.msra.mxu0 0.0
    %6369 = vmatprep.subr.mxu0 0.0
    %6370 = vmatpush1.msra.mxu0 0.0
    %6371 = vmatprep.subr.mxu0 0.0
    %6372 = vmatpush1.msra.mxu0 0.0
    %6373 = vmatprep.subr.mxu0 0.0
    %6374 = vmatpush1.msra.mxu0 0.0
    %6375 = vmatprep.subr.mxu0 0.0
    %6376 = vmatpush1.msra.mxu0 0.0
    %6377 = vmatprep.subr.mxu0 0.0
    %6378 = vmatpush1.msra.mxu0 0.0
    %6379 = vmatprep.subr.mxu0 0.0
    %6380 = vmatpush1.msra.mxu0 0.0
    %6381 = vmatprep.subr.mxu0 0.0
    %6382 = vmatpush1.msra.mxu0 0.0
    %6383 = vmatprep.subr.mxu0 0.0
    %6384 = vmatpush1.msra.mxu0 0.0
    %6385 = vmatprep.subr.mxu0 0.0
    %6386 = vmatpush1.msra.mxu0 0.0
    %6387 = vmatprep.subr.mxu0 0.0
    %6388 = vmatpush1.msra.mxu0 0.0
    %6389 = vmatprep.subr.mxu0 0.0
    %6390 = vmatpush1.msra.mxu0 0.0
    %6391 = vmatprep.subr.mxu0 0.0
    %6392 = vmatpush1.msra.mxu0 0.0
    %6393 = vmatprep.subr.mxu0 0.0
    %6394 = vmatpush1.msra.mxu0 0.0
    %6395 = vmatprep.subr.mxu0 0.0
    %6396 = vmatpush1.msra.mxu0 0.0
    %6397 = vmatprep.subr.mxu0 0.0
    %6398 = vmatpush1.msra.mxu0 0.0
    %6399 = vmatprep.mubr.f32.mxu0 0.0
    %6400 = vmatmul.mubr.f32.gmra.mrb[0].mxu0 %v6333
    %v6401 = vpop.f32.mrb[0].mxu0
    %v6402 = vadd.f32 0.0, %v6401
    %v6403 = vpop.f32.mrb[0].mxu0
    %6404 = vdwg.mxu0
    %6405 = vrot.lane.b32.xlu0 %v6146, 64
    %v6406 = vpop.permute.xlu0 %6405
    %v6409 = vsel %vm479, %v6328, 0
    %6411 = vmatprep.subr.mxu0 0.0
    %6412 = vmatpush1.msra.mxu0 %v6406
    %6413 = vmatprep.subr.mxu0 0.0
    %6414 = vmatpush1.msra.mxu0 0.0
    %6415 = vmatprep.subr.mxu0 0.0
    %6416 = vmatpush1.msra.mxu0 0.0
    %6417 = vmatprep.subr.mxu0 0.0
    %6418 = vmatpush1.msra.mxu0 0.0
    %6419 = vmatprep.subr.mxu0 0.0
    %6420 = vmatpush1.msra.mxu0 0.0
    %6421 = vmatprep.subr.mxu0 0.0
    %6422 = vmatpush1.msra.mxu0 0.0
    %6423 = vmatprep.subr.mxu0 0.0
    %6424 = vmatpush1.msra.mxu0 0.0
    %6425 = vmatprep.subr.mxu0 0.0
    %6426 = vmatpush1.msra.mxu0 0.0
    %6427 = vmatprep.subr.mxu0 0.0
    %6428 = vmatpush1.msra.mxu0 0.0
    %6429 = vmatprep.subr.mxu0 0.0
    %6430 = vmatpush1.msra.mxu0 0.0
    %6431 = vmatprep.subr.mxu0 0.0
    %6432 = vmatpush1.msra.mxu0 0.0
    %6433 = vmatprep.subr.mxu0 0.0
    %6434 = vmatpush1.msra.mxu0 0.0
    %6435 = vmatprep.subr.mxu0 0.0
    %6436 = vmatpush1.msra.mxu0 0.0
    %6437 = vmatprep.subr.mxu0 0.0
    %6438 = vmatpush1.msra.mxu0 0.0
    %6439 = vmatprep.subr.mxu0 0.0
    %6440 = vmatpush1.msra.mxu0 0.0
    %6441 = vmatprep.subr.mxu0 0.0
    %6442 = vmatpush1.msra.mxu0 0.0
    %6443 = vmatprep.subr.mxu0 0.0
    %6444 = vmatpush1.msra.mxu0 0.0
    %6445 = vmatprep.subr.mxu0 0.0
    %6446 = vmatpush1.msra.mxu0 0.0
    %6447 = vmatprep.subr.mxu0 0.0
    %6448 = vmatpush1.msra.mxu0 0.0
    %6449 = vmatprep.subr.mxu0 0.0
    %6450 = vmatpush1.msra.mxu0 0.0
    %6451 = vmatprep.subr.mxu0 0.0
    %6452 = vmatpush1.msra.mxu0 0.0
    %6453 = vmatprep.subr.mxu0 0.0
    %6454 = vmatpush1.msra.mxu0 0.0
    %6455 = vmatprep.subr.mxu0 0.0
    %6456 = vmatpush1.msra.mxu0 0.0
    %6457 = vmatprep.subr.mxu0 0.0
    %6458 = vmatpush1.msra.mxu0 0.0
    %6459 = vmatprep.subr.mxu0 0.0
    %6460 = vmatpush1.msra.mxu0 0.0
    %6461 = vmatprep.subr.mxu0 0.0
    %6462 = vmatpush1.msra.mxu0 0.0
    %6463 = vmatprep.subr.mxu0 0.0
    %6464 = vmatpush1.msra.mxu0 0.0
    %6465 = vmatprep.subr.mxu0 0.0
    %6466 = vmatpush1.msra.mxu0 0.0
    %6467 = vmatprep.subr.mxu0 0.0
    %6468 = vmatpush1.msra.mxu0 0.0
    %6469 = vmatprep.subr.mxu0 0.0
    %6470 = vmatpush1.msra.mxu0 0.0
    %6471 = vmatprep.subr.mxu0 0.0
    %6472 = vmatpush1.msra.mxu0 0.0
    %6473 = vmatprep.subr.mxu0 0.0
    %6474 = vmatpush1.msra.mxu0 0.0
    %6475 = vmatprep.mubr.f32.mxu0 0.0
    %6476 = vmatmul.mubr.f32.gmra.mrb[0].mxu0 %v6409
    %v6477 = vpop.f32.mrb[0].mxu0
    %v6478 = vadd.f32 0.0, %v6477
    %v6479 = vpop.f32.mrb[0].mxu0
    %6480 = vdwg.mxu0
    %6481 = vrot.lane.b32.xlu0 %v6149, 120
    %v6482 = vpop.permute.xlu0 %6481
    %6483 = vrot.lane.b32.xlu0 %v6141, 88
    %v6484 = vpop.permute.xlu0 %6483
    %v6485 = vsel %vm479, %v6482, 0
    %v6487 = vsel %vm479, %v6484, 0
    %6489 = vmatprep.subr.mxu0 0.0
    %6490 = vmatpush1.xpose.msra.mxu0 %v6487
    %6491 = vmatprep.subr.mxu0 0.0
    %6492 = vmatpush1.xpose.msra.mxu0 0.0
    %6493 = vmatprep.subr.mxu0 0.0
    %6494 = vmatpush1.xpose.msra.mxu0 0.0
    %6495 = vmatprep.subr.mxu0 0.0
    %6496 = vmatpush1.xpose.msra.mxu0 0.0
    %6497 = vmatprep.subr.mxu0 0.0
    %6498 = vmatpush1.xpose.msra.mxu0 0.0
    %6499 = vmatprep.subr.mxu0 0.0
    %6500 = vmatpush1.xpose.msra.mxu0 0.0
    %6501 = vmatprep.subr.mxu0 0.0
    %6502 = vmatpush1.xpose.msra.mxu0 0.0
    %6503 = vmatprep.subr.mxu0 0.0
    %6504 = vmatpush1.xpose.msra.mxu0 0.0
    %6505 = vmatprep.subr.mxu0 0.0
    %6506 = vmatpush1.xpose.msra.mxu0 0.0
    %6507 = vmatprep.subr.mxu0 0.0
    %6508 = vmatpush1.xpose.msra.mxu0 0.0
    %6509 = vmatprep.subr.mxu0 0.0
    %6510 = vmatpush1.xpose.msra.mxu0 0.0
    %6511 = vmatprep.subr.mxu0 0.0
    %6512 = vmatpush1.xpose.msra.mxu0 0.0
    %6513 = vmatprep.subr.mxu0 0.0
    %6514 = vmatpush1.xpose.msra.mxu0 0.0
    %6515 = vmatprep.subr.mxu0 0.0
    %6516 = vmatpush1.xpose.msra.mxu0 0.0
    %6517 = vmatprep.subr.mxu0 0.0
    %6518 = vmatpush1.xpose.msra.mxu0 0.0
    %6519 = vmatprep.subr.mxu0 0.0
    %6520 = vmatpush1.xpose.msra.mxu0 0.0
    %6521 = vmatprep.subr.mxu0 0.0
    %6522 = vmatpush1.xpose.msra.mxu0 0.0
    %6523 = vmatprep.subr.mxu0 0.0
    %6524 = vmatpush1.xpose.msra.mxu0 0.0
    %6525 = vmatprep.subr.mxu0 0.0
    %6526 = vmatpush1.xpose.msra.mxu0 0.0
    %6527 = vmatprep.subr.mxu0 0.0
    %6528 = vmatpush1.xpose.msra.mxu0 0.0
    %6529 = vmatprep.subr.mxu0 0.0
    %6530 = vmatpush1.xpose.msra.mxu0 0.0
    %6531 = vmatprep.subr.mxu0 0.0
    %6532 = vmatpush1.xpose.msra.mxu0 0.0
    %6533 = vmatprep.subr.mxu0 0.0
    %6534 = vmatpush1.xpose.msra.mxu0 0.0
    %6535 = vmatprep.subr.mxu0 0.0
    %6536 = vmatpush1.xpose.msra.mxu0 0.0
    %6537 = vmatprep.subr.mxu0 0.0
    %6538 = vmatpush1.xpose.msra.mxu0 0.0
    %6539 = vmatprep.subr.mxu0 0.0
    %6540 = vmatpush1.xpose.msra.mxu0 0.0
    %6541 = vmatprep.subr.mxu0 0.0
    %6542 = vmatpush1.xpose.msra.mxu0 0.0
    %6543 = vmatprep.subr.mxu0 0.0
    %6544 = vmatpush1.xpose.msra.mxu0 0.0
    %6545 = vmatprep.subr.mxu0 0.0
    %6546 = vmatpush1.xpose.msra.mxu0 0.0
    %6547 = vmatprep.subr.mxu0 0.0
    %6548 = vmatpush1.xpose.msra.mxu0 0.0
    %6549 = vmatprep.subr.mxu0 0.0
    %6550 = vmatpush1.xpose.msra.mxu0 0.0
    %6551 = vmatprep.subr.mxu0 0.0
    %6552 = vmatpush1.xpose.msra.mxu0 0.0
    %6553 = vmatprep.mubr.f32.mxu0 0.0
    %6554 = vmatmul.mubr.f32.gmra.mrb[0].mxu0 %v6485
    %v6555 = vpop.f32.mrb[0].mxu0
    %v6556 = vadd.f32 %v4167, %v6555
    %v6557 = vpop.f32.mrb[0].mxu0
    %6558 = vdwg.mxu0
    %6559 = vrot.lane.b32.xlu0 %v6150, 120
    %v6560 = vpop.permute.xlu0 %6559
    %6561 = vrot.lane.b32.xlu0 %v6146, 88
    %v6562 = vpop.permute.xlu0 %6561
    %v6563 = vsel %vm479, %v6560, 0
    %v6565 = vsel %vm479, %v6562, 0
    %6567 = vmatprep.subr.mxu0 0.0
    %6568 = vmatpush1.xpose.msra.mxu0 %v6565
    %6569 = vmatprep.subr.mxu0 0.0
    %6570 = vmatpush1.xpose.msra.mxu0 0.0
    %6571 = vmatprep.subr.mxu0 0.0
    %6572 = vmatpush1.xpose.msra.mxu0 0.0
    %6573 = vmatprep.subr.mxu0 0.0
    %6574 = vmatpush1.xpose.msra.mxu0 0.0
    %6575 = vmatprep.subr.mxu0 0.0
    %6576 = vmatpush1.xpose.msra.mxu0 0.0
    %6577 = vmatprep.subr.mxu0 0.0
    %6578 = vmatpush1.xpose.msra.mxu0 0.0
    %6579 = vmatprep.subr.mxu0 0.0
    %6580 = vmatpush1.xpose.msra.mxu0 0.0
    %6581 = vmatprep.subr.mxu0 0.0
    %6582 = vmatpush1.xpose.msra.mxu0 0.0
    %6583 = vmatprep.subr.mxu0 0.0
    %6584 = vmatpush1.xpose.msra.mxu0 0.0
    %6585 = vmatprep.subr.mxu0 0.0
    %6586 = vmatpush1.xpose.msra.mxu0 0.0
    %6587 = vmatprep.subr.mxu0 0.0
    %6588 = vmatpush1.xpose.msra.mxu0 0.0
    %6589 = vmatprep.subr.mxu0 0.0
    %6590 = vmatpush1.xpose.msra.mxu0 0.0
    %6591 = vmatprep.subr.mxu0 0.0
    %6592 = vmatpush1.xpose.msra.mxu0 0.0
    %6593 = vmatprep.subr.mxu0 0.0
    %6594 = vmatpush1.xpose.msra.mxu0 0.0
    %6595 = vmatprep.subr.mxu0 0.0
    %6596 = vmatpush1.xpose.msra.mxu0 0.0
    %6597 = vmatprep.subr.mxu0 0.0
    %6598 = vmatpush1.xpose.msra.mxu0 0.0
    %6599 = vmatprep.subr.mxu0 0.0
    %6600 = vmatpush1.xpose.msra.mxu0 0.0
    %6601 = vmatprep.subr.mxu0 0.0
    %6602 = vmatpush1.xpose.msra.mxu0 0.0
    %6603 = vmatprep.subr.mxu0 0.0
    %6604 = vmatpush1.xpose.msra.mxu0 0.0
    %6605 = vmatprep.subr.mxu0 0.0
    %6606 = vmatpush1.xpose.msra.mxu0 0.0
    %6607 = vmatprep.subr.mxu0 0.0
    %6608 = vmatpush1.xpose.msra.mxu0 0.0
    %6609 = vmatprep.subr.mxu0 0.0
    %6610 = vmatpush1.xpose.msra.mxu0 0.0
    %6611 = vmatprep.subr.mxu0 0.0
    %6612 = vmatpush1.xpose.msra.mxu0 0.0
    %6613 = vmatprep.subr.mxu0 0.0
    %6614 = vmatpush1.xpose.msra.mxu0 0.0
    %6615 = vmatprep.subr.mxu0 0.0
    %6616 = vmatpush1.xpose.msra.mxu0 0.0
    %6617 = vmatprep.subr.mxu0 0.0
    %6618 = vmatpush1.xpose.msra.mxu0 0.0
    %6619 = vmatprep.subr.mxu0 0.0
    %6620 = vmatpush1.xpose.msra.mxu0 0.0
    %6621 = vmatprep.subr.mxu0 0.0
    %6622 = vmatpush1.xpose.msra.mxu0 0.0
    %6623 = vmatprep.subr.mxu0 0.0
    %6624 = vmatpush1.xpose.msra.mxu0 0.0
    %6625 = vmatprep.subr.mxu0 0.0
    %6626 = vmatpush1.xpose.msra.mxu0 0.0
    %6627 = vmatprep.subr.mxu0 0.0
    %6628 = vmatpush1.xpose.msra.mxu0 0.0
    %6629 = vmatprep.subr.mxu0 0.0
    %6630 = vmatpush1.xpose.msra.mxu0 0.0
    %6631 = vmatprep.mubr.f32.mxu0 0.0
    %6632 = vmatmul.mubr.f32.gmra.mrb[0].mxu0 %v6563
    %v6633 = vpop.f32.mrb[0].mxu0
    %v6634 = vadd.f32 %v4167, %v6633
    %v6635 = vpop.f32.mrb[0].mxu0
    %6636 = vdwg.mxu0
    %v6637 = vsel %vm479, %v6556, -inf
    %6638 = vmax.xlane.f32.xlu0 %v6637
    %v6639 = vpop.xlane.xlu0 %6638
    %v6640 = vsel %vm479, %v6634, -inf
    %6641 = vmax.xlane.f32.xlu0 %v6640
    %v6642 = vpop.xlane.xlu0 %6641
    %v6643 = vsub.f32 %v6556, %v6639
    %v6644 = vsub.f32 %v6634, %v6642
    %v6645 = vmul.f32 %v6643, 1.442695
    %v6646 = vpow.pop %v6645
    %v6647 = vmul.f32 %v6644, 1.442695
    %v6648 = vpow.pop %v6647
    %v6649 = vsel %vm479, %v6646, 0.0
    %6650 = vadd.xlane.f32.xlu0 %v6649
    %v6651 = vpop.xlane.xlu0 %6650
    %v6652 = vsel %vm479, %v6648, 0.0
    %6653 = vadd.xlane.f32.xlu0 %v6652
    %v6654 = vpop.xlane.xlu0 %6653
    %v6655 = vrcp.pop %v6651
    %v6656 = vrcp.pop %v6654
    %v6657 = vmul.f32 %v6646, %v6655
    %v6658 = vmul.f32 %v6648, %v6656
    %6659 = vrot.lane.b32.xlu0 %v6141, 56
    %v6660 = vpop.permute.xlu0 %6659
    %v6663 = vsel %vm479, %v6657, 0
    %6665 = vmatprep.subr.mxu0 0.0
    %6666 = vmatpush1.msra.mxu0 %v6660
    %6667 = vmatprep.subr.mxu0 0.0
    %6668 = vmatpush1.msra.mxu0 0.0
    %6669 = vmatprep.subr.mxu0 0.0
    %6670 = vmatpush1.msra.mxu0 0.0
    %6671 = vmatprep.subr.mxu0 0.0
    %6672 = vmatpush1.msra.mxu0 0.0
    %6673 = vmatprep.subr.mxu0 0.0
    %6674 = vmatpush1.msra.mxu0 0.0
    %6675 = vmatprep.subr.mxu0 0.0
    %6676 = vmatpush1.msra.mxu0 0.0
    %6677 = vmatprep.subr.mxu0 0.0
    %6678 = vmatpush1.msra.mxu0 0.0
    %6679 = vmatprep.subr.mxu0 0.0
    %6680 = vmatpush1.msra.mxu0 0.0
    %6681 = vmatprep.subr.mxu0 0.0
    %6682 = vmatpush1.msra.mxu0 0.0
    %6683 = vmatprep.subr.mxu0 0.0
    %6684 = vmatpush1.msra.mxu0 0.0
    %6685 = vmatprep.subr.mxu0 0.0
    %6686 = vmatpush1.msra.mxu0 0.0
    %6687 = vmatprep.subr.mxu0 0.0
    %6688 = vmatpush1.msra.mxu0 0.0
    %6689 = vmatprep.subr.mxu0 0.0
    %6690 = vmatpush1.msra.mxu0 0.0
    %6691 = vmatprep.subr.mxu0 0.0
    %6692 = vmatpush1.msra.mxu0 0.0
    %6693 = vmatprep.subr.mxu0 0.0
    %6694 = vmatpush1.msra.mxu0 0.0
    %6695 = vmatprep.subr.mxu0 0.0
    %6696 = vmatpush1.msra.mxu0 0.0
    %6697 = vmatprep.subr.mxu0 0.0
    %6698 = vmatpush1.msra.mxu0 0.0
    %6699 = vmatprep.subr.mxu0 0.0
    %6700 = vmatpush1.msra.mxu0 0.0
    %6701 = vmatprep.subr.mxu0 0.0
    %6702 = vmatpush1.msra.mxu0 0.0
    %6703 = vmatprep.subr.mxu0 0.0
    %6704 = vmatpush1.msra.mxu0 0.0
    %6705 = vmatprep.subr.mxu0 0.0
    %6706 = vmatpush1.msra.mxu0 0.0
    %6707 = vmatprep.subr.mxu0 0.0
    %6708 = vmatpush1.msra.mxu0 0.0
    %6709 = vmatprep.subr.mxu0 0.0
    %6710 = vmatpush1.msra.mxu0 0.0
    %6711 = vmatprep.subr.mxu0 0.0
    %6712 = vmatpush1.msra.mxu0 0.0
    %6713 = vmatprep.subr.mxu0 0.0
    %6714 = vmatpush1.msra.mxu0 0.0
    %6715 = vmatprep.subr.mxu0 0.0
    %6716 = vmatpush1.msra.mxu0 0.0
    %6717 = vmatprep.subr.mxu0 0.0
    %6718 = vmatpush1.msra.mxu0 0.0
    %6719 = vmatprep.subr.mxu0 0.0
    %6720 = vmatpush1.msra.mxu0 0.0
    %6721 = vmatprep.subr.mxu0 0.0
    %6722 = vmatpush1.msra.mxu0 0.0
    %6723 = vmatprep.subr.mxu0 0.0
    %6724 = vmatpush1.msra.mxu0 0.0
    %6725 = vmatprep.subr.mxu0 0.0
    %6726 = vmatpush1.msra.mxu0 0.0
    %6727 = vmatprep.subr.mxu0 0.0
    %6728 = vmatpush1.msra.mxu0 0.0
    %6729 = vmatprep.mubr.f32.mxu0 0.0
    %6730 = vmatmul.mubr.f32.gmra.mrb[0].mxu0 %v6663
    %v6731 = vpop.f32.mrb[0].mxu0
    %v6732 = vadd.f32 0.0, %v6731
    %v6733 = vpop.f32.mrb[0].mxu0
    %6734 = vdwg.mxu0
    %6735 = vrot.lane.b32.xlu0 %v6146, 56
    %v6736 = vpop.permute.xlu0 %6735
    %v6739 = vsel %vm479, %v6658, 0
    %6741 = vmatprep.subr.mxu0 0.0
    %6742 = vmatpush1.msra.mxu0 %v6736
    %6743 = vmatprep.subr.mxu0 0.0
    %6744 = vmatpush1.msra.mxu0 0.0
    %6745 = vmatprep.subr.mxu0 0.0
    %6746 = vmatpush1.msra.mxu0 0.0
    %6747 = vmatprep.subr.mxu0 0.0
    %6748 = vmatpush1.msra.mxu0 0.0
    %6749 = vmatprep.subr.mxu0 0.0
    %6750 = vmatpush1.msra.mxu0 0.0
    %6751 = vmatprep.subr.mxu0 0.0
    %6752 = vmatpush1.msra.mxu0 0.0
    %6753 = vmatprep.subr.mxu0 0.0
    %6754 = vmatpush1.msra.mxu0 0.0
    %6755 = vmatprep.subr.mxu0 0.0
    %6756 = vmatpush1.msra.mxu0 0.0
    %6757 = vmatprep.subr.mxu0 0.0
    %6758 = vmatpush1.msra.mxu0 0.0
    %6759 = vmatprep.subr.mxu0 0.0
    %6760 = vmatpush1.msra.mxu0 0.0
    %6761 = vmatprep.subr.mxu0 0.0
    %6762 = vmatpush1.msra.mxu0 0.0
    %6763 = vmatprep.subr.mxu0 0.0
    %6764 = vmatpush1.msra.mxu0 0.0
    %6765 = vmatprep.subr.mxu0 0.0
    %6766 = vmatpush1.msra.mxu0 0.0
    %6767 = vmatprep.subr.mxu0 0.0
    %6768 = vmatpush1.msra.mxu0 0.0
    %6769 = vmatprep.subr.mxu0 0.0
    %6770 = vmatpush1.msra.mxu0 0.0
    %6771 = vmatprep.subr.mxu0 0.0
    %6772 = vmatpush1.msra.mxu0 0.0
    %6773 = vmatprep.subr.mxu0 0.0
    %6774 = vmatpush1.msra.mxu0 0.0
    %6775 = vmatprep.subr.mxu0 0.0
    %6776 = vmatpush1.msra.mxu0 0.0
    %6777 = vmatprep.subr.mxu0 0.0
    %6778 = vmatpush1.msra.mxu0 0.0
    %6779 = vmatprep.subr.mxu0 0.0
    %6780 = vmatpush1.msra.mxu0 0.0
    %6781 = vmatprep.subr.mxu0 0.0
    %6782 = vmatpush1.msra.mxu0 0.0
    %6783 = vmatprep.subr.mxu0 0.0
    %6784 = vmatpush1.msra.mxu0 0.0
    %6785 = vmatprep.subr.mxu0 0.0
    %6786 = vmatpush1.msra.mxu0 0.0
    %6787 = vmatprep.subr.mxu0 0.0
    %6788 = vmatpush1.msra.mxu0 0.0
    %6789 = vmatprep.subr.mxu0 0.0
    %6790 = vmatpush1.msra.mxu0 0.0
    %6791 = vmatprep.subr.mxu0 0.0
    %6792 = vmatpush1.msra.mxu0 0.0
    %6793 = vmatprep.subr.mxu0 0.0
    %6794 = vmatpush1.msra.mxu0 0.0
    %6795 = vmatprep.subr.mxu0 0.0
    %6796 = vmatpush1.msra.mxu0 0.0
    %6797 = vmatprep.subr.mxu0 0.0
    %6798 = vmatpush1.msra.mxu0 0.0
    %6799 = vmatprep.subr.mxu0 0.0
    %6800 = vmatpush1.msra.mxu0 0.0
    %6801 = vmatprep.subr.mxu0 0.0
    %6802 = vmatpush1.msra.mxu0 0.0
    %6803 = vmatprep.subr.mxu0 0.0
    %6804 = vmatpush1.msra.mxu0 0.0
    %6805 = vmatprep.mubr.f32.mxu0 0.0
    %6806 = vmatmul.mubr.f32.gmra.mrb[0].mxu0 %v6739
    %v6807 = vpop.f32.mrb[0].mxu0
    %v6808 = vadd.f32 0.0, %v6807
    %v6809 = vpop.f32.mrb[0].mxu0
    %6810 = vdwg.mxu0
    %6811 = vrot.lane.b32.xlu0 %v6149, 112
    %v6812 = vpop.permute.xlu0 %6811
    %6813 = vrot.lane.b32.xlu0 %v6141, 80
    %v6814 = vpop.permute.xlu0 %6813
    %v6815 = vsel %vm479, %v6812, 0
    %v6817 = vsel %vm479, %v6814, 0
    %6819 = vmatprep.subr.mxu0 0.0
    %6820 = vmatpush1.xpose.msra.mxu0 %v6817
    %6821 = vmatprep.subr.mxu0 0.0
    %6822 = vmatpush1.xpose.msra.mxu0 0.0
    %6823 = vmatprep.subr.mxu0 0.0
    %6824 = vmatpush1.xpose.msra.mxu0 0.0
    %6825 = vmatprep.subr.mxu0 0.0
    %6826 = vmatpush1.xpose.msra.mxu0 0.0
    %6827 = vmatprep.subr.mxu0 0.0
    %6828 = vmatpush1.xpose.msra.mxu0 0.0
    %6829 = vmatprep.subr.mxu0 0.0
    %6830 = vmatpush1.xpose.msra.mxu0 0.0
    %6831 = vmatprep.subr.mxu0 0.0
    %6832 = vmatpush1.xpose.msra.mxu0 0.0
    %6833 = vmatprep.subr.mxu0 0.0
    %6834 = vmatpush1.xpose.msra.mxu0 0.0
    %6835 = vmatprep.subr.mxu0 0.0
    %6836 = vmatpush1.xpose.msra.mxu0 0.0
    %6837 = vmatprep.subr.mxu0 0.0
    %6838 = vmatpush1.xpose.msra.mxu0 0.0
    %6839 = vmatprep.subr.mxu0 0.0
    %6840 = vmatpush1.xpose.msra.mxu0 0.0
    %6841 = vmatprep.subr.mxu0 0.0
    %6842 = vmatpush1.xpose.msra.mxu0 0.0
    %6843 = vmatprep.subr.mxu0 0.0
    %6844 = vmatpush1.xpose.msra.mxu0 0.0
    %6845 = vmatprep.subr.mxu0 0.0
    %6846 = vmatpush1.xpose.msra.mxu0 0.0
    %6847 = vmatprep.subr.mxu0 0.0
    %6848 = vmatpush1.xpose.msra.mxu0 0.0
    %6849 = vmatprep.subr.mxu0 0.0
    %6850 = vmatpush1.xpose.msra.mxu0 0.0
    %6851 = vmatprep.subr.mxu0 0.0
    %6852 = vmatpush1.xpose.msra.mxu0 0.0
    %6853 = vmatprep.subr.mxu0 0.0
    %6854 = vmatpush1.xpose.msra.mxu0 0.0
    %6855 = vmatprep.subr.mxu0 0.0
    %6856 = vmatpush1.xpose.msra.mxu0 0.0
    %6857 = vmatprep.subr.mxu0 0.0
    %6858 = vmatpush1.xpose.msra.mxu0 0.0
    %6859 = vmatprep.subr.mxu0 0.0
    %6860 = vmatpush1.xpose.msra.mxu0 0.0
    %6861 = vmatprep.subr.mxu0 0.0
    %6862 = vmatpush1.xpose.msra.mxu0 0.0
    %6863 = vmatprep.subr.mxu0 0.0
    %6864 = vmatpush1.xpose.msra.mxu0 0.0
    %6865 = vmatprep.subr.mxu0 0.0
    %6866 = vmatpush1.xpose.msra.mxu0 0.0
    %6867 = vmatprep.subr.mxu0 0.0
    %6868 = vmatpush1.xpose.msra.mxu0 0.0
    %6869 = vmatprep.subr.mxu0 0.0
    %6870 = vmatpush1.xpose.msra.mxu0 0.0
    %6871 = vmatprep.subr.mxu0 0.0
    %6872 = vmatpush1.xpose.msra.mxu0 0.0
    %6873 = vmatprep.subr.mxu0 0.0
    %6874 = vmatpush1.xpose.msra.mxu0 0.0
    %6875 = vmatprep.subr.mxu0 0.0
    %6876 = vmatpush1.xpose.msra.mxu0 0.0
    %6877 = vmatprep.subr.mxu0 0.0
    %6878 = vmatpush1.xpose.msra.mxu0 0.0
    %6879 = vmatprep.subr.mxu0 0.0
    %6880 = vmatpush1.xpose.msra.mxu0 0.0
    %6881 = vmatprep.subr.mxu0 0.0
    %6882 = vmatpush1.xpose.msra.mxu0 0.0
    %6883 = vmatprep.mubr.f32.mxu0 0.0
    %6884 = vmatmul.mubr.f32.gmra.mrb[0].mxu0 %v6815
    %v6885 = vpop.f32.mrb[0].mxu0
    %v6886 = vadd.f32 %v4167, %v6885
    %v6887 = vpop.f32.mrb[0].mxu0
    %6888 = vdwg.mxu0
    %6889 = vrot.lane.b32.xlu0 %v6150, 112
    %v6890 = vpop.permute.xlu0 %6889
    %6891 = vrot.lane.b32.xlu0 %v6146, 80
    %v6892 = vpop.permute.xlu0 %6891
    %v6893 = vsel %vm479, %v6890, 0
    %v6895 = vsel %vm479, %v6892, 0
    %6897 = vmatprep.subr.mxu0 0.0
    %6898 = vmatpush1.xpose.msra.mxu0 %v6895
    %6899 = vmatprep.subr.mxu0 0.0
    %6900 = vmatpush1.xpose.msra.mxu0 0.0
    %6901 = vmatprep.subr.mxu0 0.0
    %6902 = vmatpush1.xpose.msra.mxu0 0.0
    %6903 = vmatprep.subr.mxu0 0.0
    %6904 = vmatpush1.xpose.msra.mxu0 0.0
    %6905 = vmatprep.subr.mxu0 0.0
    %6906 = vmatpush1.xpose.msra.mxu0 0.0
    %6907 = vmatprep.subr.mxu0 0.0
    %6908 = vmatpush1.xpose.msra.mxu0 0.0
    %6909 = vmatprep.subr.mxu0 0.0
    %6910 = vmatpush1.xpose.msra.mxu0 0.0
    %6911 = vmatprep.subr.mxu0 0.0
    %6912 = vmatpush1.xpose.msra.mxu0 0.0
    %6913 = vmatprep.subr.mxu0 0.0
    %6914 = vmatpush1.xpose.msra.mxu0 0.0
    %6915 = vmatprep.subr.mxu0 0.0
    %6916 = vmatpush1.xpose.msra.mxu0 0.0
    %6917 = vmatprep.subr.mxu0 0.0
    %6918 = vmatpush1.xpose.msra.mxu0 0.0
    %6919 = vmatprep.subr.mxu0 0.0
    %6920 = vmatpush1.xpose.msra.mxu0 0.0
    %6921 = vmatprep.subr.mxu0 0.0
    %6922 = vmatpush1.xpose.msra.mxu0 0.0
    %6923 = vmatprep.subr.mxu0 0.0
    %6924 = vmatpush1.xpose.msra.mxu0 0.0
    %6925 = vmatprep.subr.mxu0 0.0
    %6926 = vmatpush1.xpose.msra.mxu0 0.0
    %6927 = vmatprep.subr.mxu0 0.0
    %6928 = vmatpush1.xpose.msra.mxu0 0.0
    %6929 = vmatprep.subr.mxu0 0.0
    %6930 = vmatpush1.xpose.msra.mxu0 0.0
    %6931 = vmatprep.subr.mxu0 0.0
    %6932 = vmatpush1.xpose.msra.mxu0 0.0
    %6933 = vmatprep.subr.mxu0 0.0
    %6934 = vmatpush1.xpose.msra.mxu0 0.0
    %6935 = vmatprep.subr.mxu0 0.0
    %6936 = vmatpush1.xpose.msra.mxu0 0.0
    %6937 = vmatprep.subr.mxu0 0.0
    %6938 = vmatpush1.xpose.msra.mxu0 0.0
    %6939 = vmatprep.subr.mxu0 0.0
    %6940 = vmatpush1.xpose.msra.mxu0 0.0
    %6941 = vmatprep.subr.mxu0 0.0
    %6942 = vmatpush1.xpose.msra.mxu0 0.0
    %6943 = vmatprep.subr.mxu0 0.0
    %6944 = vmatpush1.xpose.msra.mxu0 0.0
    %6945 = vmatprep.subr.mxu0 0.0
    %6946 = vmatpush1.xpose.msra.mxu0 0.0
    %6947 = vmatprep.subr.mxu0 0.0
    %6948 = vmatpush1.xpose.msra.mxu0 0.0
    %6949 = vmatprep.subr.mxu0 0.0
    %6950 = vmatpush1.xpose.msra.mxu0 0.0
    %6951 = vmatprep.subr.mxu0 0.0
    %6952 = vmatpush1.xpose.msra.mxu0 0.0
    %6953 = vmatprep.subr.mxu0 0.0
    %6954 = vmatpush1.xpose.msra.mxu0 0.0
    %6955 = vmatprep.subr.mxu0 0.0
    %6956 = vmatpush1.xpose.msra.mxu0 0.0
    %6957 = vmatprep.subr.mxu0 0.0
    %6958 = vmatpush1.xpose.msra.mxu0 0.0
    %6959 = vmatprep.subr.mxu0 0.0
    %6960 = vmatpush1.xpose.msra.mxu0 0.0
    %6961 = vmatprep.mubr.f32.mxu0 0.0
    %6962 = vmatmul.mubr.f32.gmra.mrb[0].mxu0 %v6893
    %v6963 = vpop.f32.mrb[0].mxu0
    %v6964 = vadd.f32 %v4167, %v6963
    %v6965 = vpop.f32.mrb[0].mxu0
    %6966 = vdwg.mxu0
    %v6967 = vsel %vm479, %v6886, -inf
    %6968 = vmax.xlane.f32.xlu0 %v6967
    %v6969 = vpop.xlane.xlu0 %6968
    %v6970 = vsel %vm479, %v6964, -inf
    %6971 = vmax.xlane.f32.xlu0 %v6970
    %v6972 = vpop.xlane.xlu0 %6971
    %v6973 = vsub.f32 %v6886, %v6969
    %v6974 = vsub.f32 %v6964, %v6972
    %v6975 = vmul.f32 %v6973, 1.442695
    %v6976 = vpow.pop %v6975
    %v6977 = vmul.f32 %v6974, 1.442695
    %v6978 = vpow.pop %v6977
    %v6979 = vsel %vm479, %v6976, 0.0
    %6980 = vadd.xlane.f32.xlu0 %v6979
    %v6981 = vpop.xlane.xlu0 %6980
    %v6982 = vsel %vm479, %v6978, 0.0
    %6983 = vadd.xlane.f32.xlu0 %v6982
    %v6984 = vpop.xlane.xlu0 %6983
    %v6985 = vrcp.pop %v6981
    %v6986 = vrcp.pop %v6984
    %v6987 = vmul.f32 %v6976, %v6985
    %v6988 = vmul.f32 %v6978, %v6986
    %6989 = vrot.lane.b32.xlu0 %v6141, 48
    %v6990 = vpop.permute.xlu0 %6989
    %v6993 = vsel %vm479, %v6987, 0
    %6995 = vmatprep.subr.mxu0 0.0
    %6996 = vmatpush1.msra.mxu0 %v6990
    %6997 = vmatprep.subr.mxu0 0.0
    %6998 = vmatpush1.msra.mxu0 0.0
    %6999 = vmatprep.subr.mxu0 0.0
    %7000 = vmatpush1.msra.mxu0 0.0
    %7001 = vmatprep.subr.mxu0 0.0
    %7002 = vmatpush1.msra.mxu0 0.0
    %7003 = vmatprep.subr.mxu0 0.0
    %7004 = vmatpush1.msra.mxu0 0.0
    %7005 = vmatprep.subr.mxu0 0.0
    %7006 = vmatpush1.msra.mxu0 0.0
    %7007 = vmatprep.subr.mxu0 0.0
    %7008 = vmatpush1.msra.mxu0 0.0
    %7009 = vmatprep.subr.mxu0 0.0
    %7010 = vmatpush1.msra.mxu0 0.0
    %7011 = vmatprep.subr.mxu0 0.0
    %7012 = vmatpush1.msra.mxu0 0.0
    %7013 = vmatprep.subr.mxu0 0.0
    %7014 = vmatpush1.msra.mxu0 0.0
    %7015 = vmatprep.subr.mxu0 0.0
    %7016 = vmatpush1.msra.mxu0 0.0
    %7017 = vmatprep.subr.mxu0 0.0
    %7018 = vmatpush1.msra.mxu0 0.0
    %7019 = vmatprep.subr.mxu0 0.0
    %7020 = vmatpush1.msra.mxu0 0.0
    %7021 = vmatprep.subr.mxu0 0.0
    %7022 = vmatpush1.msra.mxu0 0.0
    %7023 = vmatprep.subr.mxu0 0.0
    %7024 = vmatpush1.msra.mxu0 0.0
    %7025 = vmatprep.subr.mxu0 0.0
    %7026 = vmatpush1.msra.mxu0 0.0
    %7027 = vmatprep.subr.mxu0 0.0
    %7028 = vmatpush1.msra.mxu0 0.0
    %7029 = vmatprep.subr.mxu0 0.0
    %7030 = vmatpush1.msra.mxu0 0.0
    %7031 = vmatprep.subr.mxu0 0.0
    %7032 = vmatpush1.msra.mxu0 0.0
    %7033 = vmatprep.subr.mxu0 0.0
    %7034 = vmatpush1.msra.mxu0 0.0
    %7035 = vmatprep.subr.mxu0 0.0
    %7036 = vmatpush1.msra.mxu0 0.0
    %7037 = vmatprep.subr.mxu0 0.0
    %7038 = vmatpush1.msra.mxu0 0.0
    %7039 = vmatprep.subr.mxu0 0.0
    %7040 = vmatpush1.msra.mxu0 0.0
    %7041 = vmatprep.subr.mxu0 0.0
    %7042 = vmatpush1.msra.mxu0 0.0
    %7043 = vmatprep.subr.mxu0 0.0
    %7044 = vmatpush1.msra.mxu0 0.0
    %7045 = vmatprep.subr.mxu0 0.0
    %7046 = vmatpush1.msra.mxu0 0.0
    %7047 = vmatprep.subr.mxu0 0.0
    %7048 = vmatpush1.msra.mxu0 0.0
    %7049 = vmatprep.subr.mxu0 0.0
    %7050 = vmatpush1.msra.mxu0 0.0
    %7051 = vmatprep.subr.mxu0 0.0
    %7052 = vmatpush1.msra.mxu0 0.0
    %7053 = vmatprep.subr.mxu0 0.0
    %7054 = vmatpush1.msra.mxu0 0.0
    %7055 = vmatprep.subr.mxu0 0.0
    %7056 = vmatpush1.msra.mxu0 0.0
    %7057 = vmatprep.subr.mxu0 0.0
    %7058 = vmatpush1.msra.mxu0 0.0
    %7059 = vmatprep.mubr.f32.mxu0 0.0
    %7060 = vmatmul.mubr.f32.gmra.mrb[0].mxu0 %v6993
    %v7061 = vpop.f32.mrb[0].mxu0
    %v7062 = vadd.f32 0.0, %v7061
    %v7063 = vpop.f32.mrb[0].mxu0
    %7064 = vdwg.mxu0
    %7065 = vrot.lane.b32.xlu0 %v6146, 48
    %v7066 = vpop.permute.xlu0 %7065
    %v7069 = vsel %vm479, %v6988, 0
    %7071 = vmatprep.subr.mxu0 0.0
    %7072 = vmatpush1.msra.mxu0 %v7066
    %7073 = vmatprep.subr.mxu0 0.0
    %7074 = vmatpush1.msra.mxu0 0.0
    %7075 = vmatprep.subr.mxu0 0.0
    %7076 = vmatpush1.msra.mxu0 0.0
    %7077 = vmatprep.subr.mxu0 0.0
    %7078 = vmatpush1.msra.mxu0 0.0
    %7079 = vmatprep.subr.mxu0 0.0
    %7080 = vmatpush1.msra.mxu0 0.0
    %7081 = vmatprep.subr.mxu0 0.0
    %7082 = vmatpush1.msra.mxu0 0.0
    %7083 = vmatprep.subr.mxu0 0.0
    %7084 = vmatpush1.msra.mxu0 0.0
    %7085 = vmatprep.subr.mxu0 0.0
    %7086 = vmatpush1.msra.mxu0 0.0
    %7087 = vmatprep.subr.mxu0 0.0
    %7088 = vmatpush1.msra.mxu0 0.0
    %7089 = vmatprep.subr.mxu0 0.0
    %7090 = vmatpush1.msra.mxu0 0.0
    %7091 = vmatprep.subr.mxu0 0.0
    %7092 = vmatpush1.msra.mxu0 0.0
    %7093 = vmatprep.subr.mxu0 0.0
    %7094 = vmatpush1.msra.mxu0 0.0
    %7095 = vmatprep.subr.mxu0 0.0
    %7096 = vmatpush1.msra.mxu0 0.0
    %7097 = vmatprep.subr.mxu0 0.0
    %7098 = vmatpush1.msra.mxu0 0.0
    %7099 = vmatprep.subr.mxu0 0.0
    %7100 = vmatpush1.msra.mxu0 0.0
    %7101 = vmatprep.subr.mxu0 0.0
    %7102 = vmatpush1.msra.mxu0 0.0
    %7103 = vmatprep.subr.mxu0 0.0
    %7104 = vmatpush1.msra.mxu0 0.0
    %7105 = vmatprep.subr.mxu0 0.0
    %7106 = vmatpush1.msra.mxu0 0.0
    %7107 = vmatprep.subr.mxu0 0.0
    %7108 = vmatpush1.msra.mxu0 0.0
    %7109 = vmatprep.subr.mxu0 0.0
    %7110 = vmatpush1.msra.mxu0 0.0
    %7111 = vmatprep.subr.mxu0 0.0
    %7112 = vmatpush1.msra.mxu0 0.0
    %7113 = vmatprep.subr.mxu0 0.0
    %7114 = vmatpush1.msra.mxu0 0.0
    %7115 = vmatprep.subr.mxu0 0.0
    %7116 = vmatpush1.msra.mxu0 0.0
    %7117 = vmatprep.subr.mxu0 0.0
    %7118 = vmatpush1.msra.mxu0 0.0
    %7119 = vmatprep.subr.mxu0 0.0
    %7120 = vmatpush1.msra.mxu0 0.0
    %7121 = vmatprep.subr.mxu0 0.0
    %7122 = vmatpush1.msra.mxu0 0.0
    %7123 = vmatprep.subr.mxu0 0.0
    %7124 = vmatpush1.msra.mxu0 0.0
    %7125 = vmatprep.subr.mxu0 0.0
    %7126 = vmatpush1.msra.mxu0 0.0
    %7127 = vmatprep.subr.mxu0 0.0
    %7128 = vmatpush1.msra.mxu0 0.0
    %7129 = vmatprep.subr.mxu0 0.0
    %7130 = vmatpush1.msra.mxu0 0.0
    %7131 = vmatprep.subr.mxu0 0.0
    %7132 = vmatpush1.msra.mxu0 0.0
    %7133 = vmatprep.subr.mxu0 0.0
    %7134 = vmatpush1.msra.mxu0 0.0
    %7135 = vmatprep.mubr.f32.mxu0 0.0
    %7136 = vmatmul.mubr.f32.gmra.mrb[0].mxu0 %v7069
    %v7137 = vpop.f32.mrb[0].mxu0
    %v7138 = vadd.f32 0.0, %v7137
    %v7139 = vpop.f32.mrb[0].mxu0
    %7140 = vdwg.mxu0
    %7141 = vrot.lane.b32.xlu0 %v6149, 104
    %v7142 = vpop.permute.xlu0 %7141
    %7143 = vrot.lane.b32.xlu0 %v6141, 72
    %v7144 = vpop.permute.xlu0 %7143
    %v7145 = vsel %vm479, %v7142, 0
    %v7147 = vsel %vm479, %v7144, 0
    %7149 = vmatprep.subr.mxu0 0.0
    %7150 = vmatpush1.xpose.msra.mxu0 %v7147
    %7151 = vmatprep.subr.mxu0 0.0
    %7152 = vmatpush1.xpose.msra.mxu0 0.0
    %7153 = vmatprep.subr.mxu0 0.0
    %7154 = vmatpush1.xpose.msra.mxu0 0.0
    %7155 = vmatprep.subr.mxu0 0.0
    %7156 = vmatpush1.xpose.msra.mxu0 0.0
    %7157 = vmatprep.subr.mxu0 0.0
    %7158 = vmatpush1.xpose.msra.mxu0 0.0
    %7159 = vmatprep.subr.mxu0 0.0
    %7160 = vmatpush1.xpose.msra.mxu0 0.0
    %7161 = vmatprep.subr.mxu0 0.0
    %7162 = vmatpush1.xpose.msra.mxu0 0.0
    %7163 = vmatprep.subr.mxu0 0.0
    %7164 = vmatpush1.xpose.msra.mxu0 0.0
    %7165 = vmatprep.subr.mxu0 0.0
    %7166 = vmatpush1.xpose.msra.mxu0 0.0
    %7167 = vmatprep.subr.mxu0 0.0
    %7168 = vmatpush1.xpose.msra.mxu0 0.0
    %7169 = vmatprep.subr.mxu0 0.0
    %7170 = vmatpush1.xpose.msra.mxu0 0.0
    %7171 = vmatprep.subr.mxu0 0.0
    %7172 = vmatpush1.xpose.msra.mxu0 0.0
    %7173 = vmatprep.subr.mxu0 0.0
    %7174 = vmatpush1.xpose.msra.mxu0 0.0
    %7175 = vmatprep.subr.mxu0 0.0
    %7176 = vmatpush1.xpose.msra.mxu0 0.0
    %7177 = vmatprep.subr.mxu0 0.0
    %7178 = vmatpush1.xpose.msra.mxu0 0.0
    %7179 = vmatprep.subr.mxu0 0.0
    %7180 = vmatpush1.xpose.msra.mxu0 0.0
    %7181 = vmatprep.subr.mxu0 0.0
    %7182 = vmatpush1.xpose.msra.mxu0 0.0
    %7183 = vmatprep.subr.mxu0 0.0
    %7184 = vmatpush1.xpose.msra.mxu0 0.0
    %7185 = vmatprep.subr.mxu0 0.0
    %7186 = vmatpush1.xpose.msra.mxu0 0.0
    %7187 = vmatprep.subr.mxu0 0.0
    %7188 = vmatpush1.xpose.msra.mxu0 0.0
    %7189 = vmatprep.subr.mxu0 0.0
    %7190 = vmatpush1.xpose.msra.mxu0 0.0
    %7191 = vmatprep.subr.mxu0 0.0
    %7192 = vmatpush1.xpose.msra.mxu0 0.0
    %7193 = vmatprep.subr.mxu0 0.0
    %7194 = vmatpush1.xpose.msra.mxu0 0.0
    %7195 = vmatprep.subr.mxu0 0.0
    %7196 = vmatpush1.xpose.msra.mxu0 0.0
    %7197 = vmatprep.subr.mxu0 0.0
    %7198 = vmatpush1.xpose.msra.mxu0 0.0
    %7199 = vmatprep.subr.mxu0 0.0
    %7200 = vmatpush1.xpose.msra.mxu0 0.0
    %7201 = vmatprep.subr.mxu0 0.0
    %7202 = vmatpush1.xpose.msra.mxu0 0.0
    %7203 = vmatprep.subr.mxu0 0.0
    %7204 = vmatpush1.xpose.msra.mxu0 0.0
    %7205 = vmatprep.subr.mxu0 0.0
    %7206 = vmatpush1.xpose.msra.mxu0 0.0
    %7207 = vmatprep.subr.mxu0 0.0
    %7208 = vmatpush1.xpose.msra.mxu0 0.0
    %7209 = vmatprep.subr.mxu0 0.0
    %7210 = vmatpush1.xpose.msra.mxu0 0.0
    %7211 = vmatprep.subr.mxu0 0.0
    %7212 = vmatpush1.xpose.msra.mxu0 0.0
    %7213 = vmatprep.mubr.f32.mxu0 0.0
    %7214 = vmatmul.mubr.f32.gmra.mrb[0].mxu0 %v7145
    %v7215 = vpop.f32.mrb[0].mxu0
    %v7216 = vadd.f32 %v4167, %v7215
    %v7217 = vpop.f32.mrb[0].mxu0
    %7218 = vdwg.mxu0
    %7219 = vrot.lane.b32.xlu0 %v6150, 104
    %v7220 = vpop.permute.xlu0 %7219
    %7221 = vrot.lane.b32.xlu0 %v6146, 72
    %v7222 = vpop.permute.xlu0 %7221
    %v7223 = vsel %vm479, %v7220, 0
    %v7225 = vsel %vm479, %v7222, 0
    %7227 = vmatprep.subr.mxu0 0.0
    %7228 = vmatpush1.xpose.msra.mxu0 %v7225
    %7229 = vmatprep.subr.mxu0 0.0
    %7230 = vmatpush1.xpose.msra.mxu0 0.0
    %7231 = vmatprep.subr.mxu0 0.0
    %7232 = vmatpush1.xpose.msra.mxu0 0.0
    %7233 = vmatprep.subr.mxu0 0.0
    %7234 = vmatpush1.xpose.msra.mxu0 0.0
    %7235 = vmatprep.subr.mxu0 0.0
    %7236 = vmatpush1.xpose.msra.mxu0 0.0
    %7237 = vmatprep.subr.mxu0 0.0
    %7238 = vmatpush1.xpose.msra.mxu0 0.0
    %7239 = vmatprep.subr.mxu0 0.0
    %7240 = vmatpush1.xpose.msra.mxu0 0.0
    %7241 = vmatprep.subr.mxu0 0.0
    %7242 = vmatpush1.xpose.msra.mxu0 0.0
    %7243 = vmatprep.subr.mxu0 0.0
    %7244 = vmatpush1.xpose.msra.mxu0 0.0
    %7245 = vmatprep.subr.mxu0 0.0
    %7246 = vmatpush1.xpose.msra.mxu0 0.0
    %7247 = vmatprep.subr.mxu0 0.0
    %7248 = vmatpush1.xpose.msra.mxu0 0.0
    %7249 = vmatprep.subr.mxu0 0.0
    %7250 = vmatpush1.xpose.msra.mxu0 0.0
    %7251 = vmatprep.subr.mxu0 0.0
    %7252 = vmatpush1.xpose.msra.mxu0 0.0
    %7253 = vmatprep.subr.mxu0 0.0
    %7254 = vmatpush1.xpose.msra.mxu0 0.0
    %7255 = vmatprep.subr.mxu0 0.0
    %7256 = vmatpush1.xpose.msra.mxu0 0.0
    %7257 = vmatprep.subr.mxu0 0.0
    %7258 = vmatpush1.xpose.msra.mxu0 0.0
    %7259 = vmatprep.subr.mxu0 0.0
    %7260 = vmatpush1.xpose.msra.mxu0 0.0
    %7261 = vmatprep.subr.mxu0 0.0
    %7262 = vmatpush1.xpose.msra.mxu0 0.0
    %7263 = vmatprep.subr.mxu0 0.0
    %7264 = vmatpush1.xpose.msra.mxu0 0.0
    %7265 = vmatprep.subr.mxu0 0.0
    %7266 = vmatpush1.xpose.msra.mxu0 0.0
    %7267 = vmatprep.subr.mxu0 0.0
    %7268 = vmatpush1.xpose.msra.mxu0 0.0
    %7269 = vmatprep.subr.mxu0 0.0
    %7270 = vmatpush1.xpose.msra.mxu0 0.0
    %7271 = vmatprep.subr.mxu0 0.0
    %7272 = vmatpush1.xpose.msra.mxu0 0.0
    %7273 = vmatprep.subr.mxu0 0.0
    %7274 = vmatpush1.xpose.msra.mxu0 0.0
    %7275 = vmatprep.subr.mxu0 0.0
    %7276 = vmatpush1.xpose.msra.mxu0 0.0
    %7277 = vmatprep.subr.mxu0 0.0
    %7278 = vmatpush1.xpose.msra.mxu0 0.0
    %7279 = vmatprep.subr.mxu0 0.0
    %7280 = vmatpush1.xpose.msra.mxu0 0.0
    %7281 = vmatprep.subr.mxu0 0.0
    %7282 = vmatpush1.xpose.msra.mxu0 0.0
    %7283 = vmatprep.subr.mxu0 0.0
    %7284 = vmatpush1.xpose.msra.mxu0 0.0
    %7285 = vmatprep.subr.mxu0 0.0
    %7286 = vmatpush1.xpose.msra.mxu0 0.0
    %7287 = vmatprep.subr.mxu0 0.0
    %7288 = vmatpush1.xpose.msra.mxu0 0.0
    %7289 = vmatprep.subr.mxu0 0.0
    %7290 = vmatpush1.xpose.msra.mxu0 0.0
    %7291 = vmatprep.mubr.f32.mxu0 0.0
    %7292 = vmatmul.mubr.f32.gmra.mrb[0].mxu0 %v7223
    %v7293 = vpop.f32.mrb[0].mxu0
    %v7294 = vadd.f32 %v4167, %v7293
    %v7295 = vpop.f32.mrb[0].mxu0
    %7296 = vdwg.mxu0
    %v7297 = vsel %vm479, %v7216, -inf
    %7298 = vmax.xlane.f32.xlu0 %v7297
    %v7299 = vpop.xlane.xlu0 %7298
    %v7300 = vsel %vm479, %v7294, -inf
    %7301 = vmax.xlane.f32.xlu0 %v7300
    %v7302 = vpop.xlane.xlu0 %7301
    %v7303 = vsub.f32 %v7216, %v7299
    %v7304 = vsub.f32 %v7294, %v7302
    %v7305 = vmul.f32 %v7303, 1.442695
    %v7306 = vpow.pop %v7305
    %v7307 = vmul.f32 %v7304, 1.442695
    %v7308 = vpow.pop %v7307
    %v7309 = vsel %vm479, %v7306, 0.0
    %7310 = vadd.xlane.f32.xlu0 %v7309
    %v7311 = vpop.xlane.xlu0 %7310
    %v7312 = vsel %vm479, %v7308, 0.0
    %7313 = vadd.xlane.f32.xlu0 %v7312
    %v7314 = vpop.xlane.xlu0 %7313
    %v7315 = vrcp.pop %v7311
    %v7316 = vrcp.pop %v7314
    %v7317 = vmul.f32 %v7306, %v7315
    %v7318 = vmul.f32 %v7308, %v7316
    %7319 = vrot.lane.b32.xlu0 %v6141, 40
    %v7320 = vpop.permute.xlu0 %7319
    %v7323 = vsel %vm479, %v7317, 0
    %7325 = vmatprep.subr.mxu0 0.0
    %7326 = vmatpush1.msra.mxu0 %v7320
    %7327 = vmatprep.subr.mxu0 0.0
    %7328 = vmatpush1.msra.mxu0 0.0
    %7329 = vmatprep.subr.mxu0 0.0
    %7330 = vmatpush1.msra.mxu0 0.0
    %7331 = vmatprep.subr.mxu0 0.0
    %7332 = vmatpush1.msra.mxu0 0.0
    %7333 = vmatprep.subr.mxu0 0.0
    %7334 = vmatpush1.msra.mxu0 0.0
    %7335 = vmatprep.subr.mxu0 0.0
    %7336 = vmatpush1.msra.mxu0 0.0
    %7337 = vmatprep.subr.mxu0 0.0
    %7338 = vmatpush1.msra.mxu0 0.0
    %7339 = vmatprep.subr.mxu0 0.0
    %7340 = vmatpush1.msra.mxu0 0.0
    %7341 = vmatprep.subr.mxu0 0.0
    %7342 = vmatpush1.msra.mxu0 0.0
    %7343 = vmatprep.subr.mxu0 0.0
    %7344 = vmatpush1.msra.mxu0 0.0
    %7345 = vmatprep.subr.mxu0 0.0
    %7346 = vmatpush1.msra.mxu0 0.0
    %7347 = vmatprep.subr.mxu0 0.0
    %7348 = vmatpush1.msra.mxu0 0.0
    %7349 = vmatprep.subr.mxu0 0.0
    %7350 = vmatpush1.msra.mxu0 0.0
    %7351 = vmatprep.subr.mxu0 0.0
    %7352 = vmatpush1.msra.mxu0 0.0
    %7353 = vmatprep.subr.mxu0 0.0
    %7354 = vmatpush1.msra.mxu0 0.0
    %7355 = vmatprep.subr.mxu0 0.0
    %7356 = vmatpush1.msra.mxu0 0.0
    %7357 = vmatprep.subr.mxu0 0.0
    %7358 = vmatpush1.msra.mxu0 0.0
    %7359 = vmatprep.subr.mxu0 0.0
    %7360 = vmatpush1.msra.mxu0 0.0
    %7361 = vmatprep.subr.mxu0 0.0
    %7362 = vmatpush1.msra.mxu0 0.0
    %7363 = vmatprep.subr.mxu0 0.0
    %7364 = vmatpush1.msra.mxu0 0.0
    %7365 = vmatprep.subr.mxu0 0.0
    %7366 = vmatpush1.msra.mxu0 0.0
    %7367 = vmatprep.subr.mxu0 0.0
    %7368 = vmatpush1.msra.mxu0 0.0
    %7369 = vmatprep.subr.mxu0 0.0
    %7370 = vmatpush1.msra.mxu0 0.0
    %7371 = vmatprep.subr.mxu0 0.0
    %7372 = vmatpush1.msra.mxu0 0.0
    %7373 = vmatprep.subr.mxu0 0.0
    %7374 = vmatpush1.msra.mxu0 0.0
    %7375 = vmatprep.subr.mxu0 0.0
    %7376 = vmatpush1.msra.mxu0 0.0
    %7377 = vmatprep.subr.mxu0 0.0
    %7378 = vmatpush1.msra.mxu0 0.0
    %7379 = vmatprep.subr.mxu0 0.0
    %7380 = vmatpush1.msra.mxu0 0.0
    %7381 = vmatprep.subr.mxu0 0.0
    %7382 = vmatpush1.msra.mxu0 0.0
    %7383 = vmatprep.subr.mxu0 0.0
    %7384 = vmatpush1.msra.mxu0 0.0
    %7385 = vmatprep.subr.mxu0 0.0
    %7386 = vmatpush1.msra.mxu0 0.0
    %7387 = vmatprep.subr.mxu0 0.0
    %7388 = vmatpush1.msra.mxu0 0.0
    %7389 = vmatprep.mubr.f32.mxu0 0.0
    %7390 = vmatmul.mubr.f32.gmra.mrb[0].mxu0 %v7323
    %v7391 = vpop.f32.mrb[0].mxu0
    %v7392 = vadd.f32 0.0, %v7391
    %v7393 = vpop.f32.mrb[0].mxu0
    %7394 = vdwg.mxu0
    %7395 = vrot.lane.b32.xlu0 %v6146, 40
    %v7396 = vpop.permute.xlu0 %7395
    %v7399 = vsel %vm479, %v7318, 0
    %7401 = vmatprep.subr.mxu0 0.0
    %7402 = vmatpush1.msra.mxu0 %v7396
    %7403 = vmatprep.subr.mxu0 0.0
    %7404 = vmatpush1.msra.mxu0 0.0
    %7405 = vmatprep.subr.mxu0 0.0
    %7406 = vmatpush1.msra.mxu0 0.0
    %7407 = vmatprep.subr.mxu0 0.0
    %7408 = vmatpush1.msra.mxu0 0.0
    %7409 = vmatprep.subr.mxu0 0.0
    %7410 = vmatpush1.msra.mxu0 0.0
    %7411 = vmatprep.subr.mxu0 0.0
    %7412 = vmatpush1.msra.mxu0 0.0
    %7413 = vmatprep.subr.mxu0 0.0
    %7414 = vmatpush1.msra.mxu0 0.0
    %7415 = vmatprep.subr.mxu0 0.0
    %7416 = vmatpush1.msra.mxu0 0.0
    %7417 = vmatprep.subr.mxu0 0.0
    %7418 = vmatpush1.msra.mxu0 0.0
    %7419 = vmatprep.subr.mxu0 0.0
    %7420 = vmatpush1.msra.mxu0 0.0
    %7421 = vmatprep.subr.mxu0 0.0
    %7422 = vmatpush1.msra.mxu0 0.0
    %7423 = vmatprep.subr.mxu0 0.0
    %7424 = vmatpush1.msra.mxu0 0.0
    %7425 = vmatprep.subr.mxu0 0.0
    %7426 = vmatpush1.msra.mxu0 0.0
    %7427 = vmatprep.subr.mxu0 0.0
    %7428 = vmatpush1.msra.mxu0 0.0
    %7429 = vmatprep.subr.mxu0 0.0
    %7430 = vmatpush1.msra.mxu0 0.0
    %7431 = vmatprep.subr.mxu0 0.0
    %7432 = vmatpush1.msra.mxu0 0.0
    %7433 = vmatprep.subr.mxu0 0.0
    %7434 = vmatpush1.msra.mxu0 0.0
    %7435 = vmatprep.subr.mxu0 0.0
    %7436 = vmatpush1.msra.mxu0 0.0
    %7437 = vmatprep.subr.mxu0 0.0
    %7438 = vmatpush1.msra.mxu0 0.0
    %7439 = vmatprep.subr.mxu0 0.0
    %7440 = vmatpush1.msra.mxu0 0.0
    %7441 = vmatprep.subr.mxu0 0.0
    %7442 = vmatpush1.msra.mxu0 0.0
    %7443 = vmatprep.subr.mxu0 0.0
    %7444 = vmatpush1.msra.mxu0 0.0
    %7445 = vmatprep.subr.mxu0 0.0
    %7446 = vmatpush1.msra.mxu0 0.0
    %7447 = vmatprep.subr.mxu0 0.0
    %7448 = vmatpush1.msra.mxu0 0.0
    %7449 = vmatprep.subr.mxu0 0.0
    %7450 = vmatpush1.msra.mxu0 0.0
    %7451 = vmatprep.subr.mxu0 0.0
    %7452 = vmatpush1.msra.mxu0 0.0
    %7453 = vmatprep.subr.mxu0 0.0
    %7454 = vmatpush1.msra.mxu0 0.0
    %7455 = vmatprep.subr.mxu0 0.0
    %7456 = vmatpush1.msra.mxu0 0.0
    %7457 = vmatprep.subr.mxu0 0.0
    %7458 = vmatpush1.msra.mxu0 0.0
    %7459 = vmatprep.subr.mxu0 0.0
    %7460 = vmatpush1.msra.mxu0 0.0
    %7461 = vmatprep.subr.mxu0 0.0
    %7462 = vmatpush1.msra.mxu0 0.0
    %7463 = vmatprep.subr.mxu0 0.0
    %7464 = vmatpush1.msra.mxu0 0.0
    %7465 = vmatprep.mubr.f32.mxu0 0.0
    %7466 = vmatmul.mubr.f32.gmra.mrb[0].mxu0 %v7399
    %v7467 = vpop.f32.mrb[0].mxu0
    %v7468 = vadd.f32 0.0, %v7467
    %v7469 = vpop.f32.mrb[0].mxu0
    %7470 = vdwg.mxu0
    %7473 = vrot.lane.b32.xlu0 %v6732, 8
    %v7474 = vpop.permute.xlu0 %7473
    %7475 = vrot.lane.b32.xlu0 %v6808, 8
    %v7476 = vpop.permute.xlu0 %7475
    %7481 = vrot.lane.b32.xlu0 %v7062, 16
    %v7482 = vpop.permute.xlu0 %7481
    %7483 = vrot.lane.b32.xlu0 %v7138, 16
    %v7484 = vpop.permute.xlu0 %7483
    %7489 = vrot.lane.b32.xlu0 %v7392, 24
    %v7490 = vpop.permute.xlu0 %7489
    %7491 = vrot.lane.b32.xlu0 %v7468, 24
    %v7492 = vpop.permute.xlu0 %7491
    %v7495 = vsel %vm479, %v6402, %v7474
    %v7496 = vsel %vm479, %v6478, %v7476
    %v7497 = vsel %vm1823, %v7495, %v7482
    %v7498 = vsel %vm1823, %v7496, %v7484
    %v7499 = vsel %vm1826, %v7497, %v7490
    %v7500 = vsel %vm1826, %v7498, %v7492
    %v7502 = vlaneseq
    %v7503 = vshrl.u32 %v7502, 7
    %v7504 = vsub.s32 0, %v7503
    %v7505 = vrot.slane %v6061, %v7504
    %v7508 = vsel %vm285, %v7499, 0
    %v7511 = vsel %vm285, %v7500, 0
    %7513 = vmatprep.subr.mxu0 0.0
    %7514 = vmatpush1.msra.mxu0 %v6056
    %7515 = vmatprep.subr.mxu0 0.0
    %7516 = vmatpush1.msra.mxu0 %v6057
    %7517 = vmatprep.subr.mxu0 0.0
    %7518 = vmatpush1.msra.mxu0 %v6058
    %7519 = vmatprep.subr.mxu0 0.0
    %7520 = vmatpush1.msra.mxu0 %v6059
    %7521 = vmatprep.subr.mxu0 0.0
    %7522 = vmatpush1.msra.mxu0 0.0
    %7523 = vmatprep.subr.mxu0 0.0
    %7524 = vmatpush1.msra.mxu0 0.0
    %7525 = vmatprep.subr.mxu0 0.0
    %7526 = vmatpush1.msra.mxu0 0.0
    %7527 = vmatprep.subr.mxu0 0.0
    %7528 = vmatpush1.msra.mxu0 0.0
    %7529 = vmatprep.subr.mxu0 0.0
    %7530 = vmatpush1.msra.mxu0 0.0
    %7531 = vmatprep.subr.mxu0 0.0
    %7532 = vmatpush1.msra.mxu0 0.0
    %7533 = vmatprep.subr.mxu0 0.0
    %7534 = vmatpush1.msra.mxu0 0.0
    %7535 = vmatprep.subr.mxu0 0.0
    %7536 = vmatpush1.msra.mxu0 0.0
    %7537 = vmatprep.subr.mxu0 0.0
    %7538 = vmatpush1.msra.mxu0 0.0
    %7539 = vmatprep.subr.mxu0 0.0
    %7540 = vmatpush1.msra.mxu0 0.0
    %7541 = vmatprep.subr.mxu0 0.0
    %7542 = vmatpush1.msra.mxu0 0.0
    %7543 = vmatprep.subr.mxu0 0.0
    %7544 = vmatpush1.msra.mxu0 0.0
    %7545 = vmatprep.subr.mxu0 0.0
    %7546 = vmatpush1.msra.mxu0 0.0
    %7547 = vmatprep.subr.mxu0 0.0
    %7548 = vmatpush1.msra.mxu0 0.0
    %7549 = vmatprep.subr.mxu0 0.0
    %7550 = vmatpush1.msra.mxu0 0.0
    %7551 = vmatprep.subr.mxu0 0.0
    %7552 = vmatpush1.msra.mxu0 0.0
    %7553 = vmatprep.subr.mxu0 0.0
    %7554 = vmatpush1.msra.mxu0 0.0
    %7555 = vmatprep.subr.mxu0 0.0
    %7556 = vmatpush1.msra.mxu0 0.0
    %7557 = vmatprep.subr.mxu0 0.0
    %7558 = vmatpush1.msra.mxu0 0.0
    %7559 = vmatprep.subr.mxu0 0.0
    %7560 = vmatpush1.msra.mxu0 0.0
    %7561 = vmatprep.subr.mxu0 0.0
    %7562 = vmatpush1.msra.mxu0 0.0
    %7563 = vmatprep.subr.mxu0 0.0
    %7564 = vmatpush1.msra.mxu0 0.0
    %7565 = vmatprep.subr.mxu0 0.0
    %7566 = vmatpush1.msra.mxu0 0.0
    %7567 = vmatprep.subr.mxu0 0.0
    %7568 = vmatpush1.msra.mxu0 0.0
    %7569 = vmatprep.subr.mxu0 0.0
    %7570 = vmatpush1.msra.mxu0 0.0
    %7571 = vmatprep.subr.mxu0 0.0
    %7572 = vmatpush1.msra.mxu0 0.0
    %7573 = vmatprep.subr.mxu0 0.0
    %7574 = vmatpush1.msra.mxu0 0.0
    %7575 = vmatprep.subr.mxu0 0.0
    %7576 = vmatpush1.msra.mxu0 0.0
    %7577 = vmatprep.mubr.f32.mxu0 0.0
    %7578 = vmatmul.mubr.f32.gmra.mrb[0].mxu0 %v7508
    %v7579 = vpop.f32.mrb[0].mxu0
    %v7580 = vadd.f32 %v7505, %v7579
    %v7581 = vpop.f32.mrb[0].mxu0
    %7582 = vmatprep.mubr.f32.mxu0 0.0
    %7583 = vmatmul.mubr.f32.gmra.mrb[0].mxu0 %v7511
    %v7584 = vpop.f32.mrb[0].mxu0
    %v7585 = vadd.f32 %v7505, %v7584
    %v7586 = vpop.f32.mrb[0].mxu0
    %7587 = vdwg.mxu0
    %v7588 = vadd.f32 %v6000, %v7580
    %v7589 = vadd.f32 %v6001, %v7585
    %s7590 = scalar_lea.vmem %s59, 1
    %v7591 = vld [vmem:[%s7590] sm:$0x1]
    %s7592 = scalar_lea.vmem %s61, 1
    %v7593 = vld [vmem:[%s7592] sm:$0x1]
    %v7594 = vsel %vm285, %v7588, 0.0
    %7595 = vadd.xlane.f32.xlu0 %v7594
    %v7596 = vpop.xlane.xlu0 %7595
    %v7597 = vsel %vm285, %v7589, 0.0
    %7598 = vadd.xlane.f32.xlu0 %v7597
    %v7599 = vpop.xlane.xlu0 %7598
    %v7600 = vmul.f32 %v7596, %v292
    %v7601 = vmul.f32 %v7599, %v292
    %v7602 = vsub.f32 %v7588, %v7600
    %v7603 = vsub.f32 %v7589, %v7601
    %v7604 = vmul.f32 %v7602, %v7602
    %v7605 = vmul.f32 %v7603, %v7603
    %v7606 = vsel %vm285, %v7604, 0.0
    %7607 = vadd.xlane.f32.xlu0 %v7606
    %v7608 = vpop.xlane.xlu0 %7607
    %v7609 = vsel %vm285, %v7605, 0.0
    %7610 = vadd.xlane.f32.xlu0 %v7609
    %v7611 = vpop.xlane.xlu0 %7610
    %v7612 = vmul.f32 %v7608, %v292
    %v7613 = vmul.f32 %v7611, %v292
    %v7614 = vadd.f32 %v7612, 1e-05
    %v7615 = vadd.f32 %v7613, 1e-05
    %v7616 = vrsqrt.pop %v7614
    %v7617 = vrsqrt.pop %v7615
    %v7618 = vmul.f32 %v7602, %v7616
    %v7619 = vmul.f32 %v7603, %v7617
    %v7621 = vlaneseq
    %v7622 = vshrl.u32 %v7621, 7
    %v7623 = vsub.s32 0, %v7622
    %v7624 = vrot.slane %v7591, %v7623
    %v7626 = vmul.f32 %v7618, %v7624
    %v7627 = vmul.f32 %v7619, %v7624
    %v7629 = vlaneseq
    %v7630 = vshrl.u32 %v7629, 7
    %v7631 = vsub.s32 0, %v7630
    %v7632 = vrot.slane %v7593, %v7631
    %v7634 = vadd.f32 %v7626, %v7632
    %v7635 = vadd.f32 %v7627, %v7632
    %s7636 = scalar_lea.vmem %s63, 32
    %v7637 = vld [vmem:[%s7636] sm:$0xff]
    %v7638 = vld [vmem:[%s7636 + $0x8] sm:$0xff]
    %v7639 = vld [vmem:[%s7636 + $0x10] sm:$0xff]
    %v7640 = vld [vmem:[%s7636 + $0x18] sm:$0xff]
    %s7641 = scalar_lea.vmem %s65, 1
    %v7642 = vld [vmem:[%s7641] sm:$0x1]
    %v7644 = vlaneseq
    %v7645 = vshrl.u32 %v7644, 7
    %v7646 = vsub.s32 0, %v7645
    %v7647 = vrot.slane %v7642, %v7646
    %v7650 = vsel %vm285, %v7634, 0
    %v7653 = vsel %vm285, %v7635, 0
    %7655 = vmatprep.subr.mxu0 0.0
    %7656 = vmatpush1.msra.mxu0 %v7637
    %7657 = vmatprep.subr.mxu0 0.0
    %7658 = vmatpush1.msra.mxu0 %v7638
    %7659 = vmatprep.subr.mxu0 0.0
    %7660 = vmatpush1.msra.mxu0 %v7639
    %7661 = vmatprep.subr.mxu0 0.0
    %7662 = vmatpush1.msra.mxu0 %v7640
    %7663 = vmatprep.subr.mxu0 0.0
    %7664 = vmatpush1.msra.mxu0 0.0
    %7665 = vmatprep.subr.mxu0 0.0
    %7666 = vmatpush1.msra.mxu0 0.0
    %7667 = vmatprep.subr.mxu0 0.0
    %7668 = vmatpush1.msra.mxu0 0.0
    %7669 = vmatprep.subr.mxu0 0.0
    %7670 = vmatpush1.msra.mxu0 0.0
    %7671 = vmatprep.subr.mxu0 0.0
    %7672 = vmatpush1.msra.mxu0 0.0
    %7673 = vmatprep.subr.mxu0 0.0
    %7674 = vmatpush1.msra.mxu0 0.0
    %7675 = vmatprep.subr.mxu0 0.0
    %7676 = vmatpush1.msra.mxu0 0.0
    %7677 = vmatprep.subr.mxu0 0.0
    %7678 = vmatpush1.msra.mxu0 0.0
    %7679 = vmatprep.subr.mxu0 0.0
    %7680 = vmatpush1.msra.mxu0 0.0
    %7681 = vmatprep.subr.mxu0 0.0
    %7682 = vmatpush1.msra.mxu0 0.0
    %7683 = vmatprep.subr.mxu0 0.0
    %7684 = vmatpush1.msra.mxu0 0.0
    %7685 = vmatprep.subr.mxu0 0.0
    %7686 = vmatpush1.msra.mxu0 0.0
    %7687 = vmatprep.subr.mxu0 0.0
    %7688 = vmatpush1.msra.mxu0 0.0
    %7689 = vmatprep.subr.mxu0 0.0
    %7690 = vmatpush1.msra.mxu0 0.0
    %7691 = vmatprep.subr.mxu0 0.0
    %7692 = vmatpush1.msra.mxu0 0.0
    %7693 = vmatprep.subr.mxu0 0.0
    %7694 = vmatpush1.msra.mxu0 0.0
    %7695 = vmatprep.subr.mxu0 0.0
    %7696 = vmatpush1.msra.mxu0 0.0
    %7697 = vmatprep.subr.mxu0 0.0
    %7698 = vmatpush1.msra.mxu0 0.0
    %7699 = vmatprep.subr.mxu0 0.0
    %7700 = vmatpush1.msra.mxu0 0.0
    %7701 = vmatprep.subr.mxu0 0.0
    %7702 = vmatpush1.msra.mxu0 0.0
    %7703 = vmatprep.subr.mxu0 0.0
    %7704 = vmatpush1.msra.mxu0 0.0
    %7705 = vmatprep.subr.mxu0 0.0
    %7706 = vmatpush1.msra.mxu0 0.0
    %7707 = vmatprep.subr.mxu0 0.0
    %7708 = vmatpush1.msra.mxu0 0.0
    %7709 = vmatprep.subr.mxu0 0.0
    %7710 = vmatpush1.msra.mxu0 0.0
    %7711 = vmatprep.subr.mxu0 0.0
    %7712 = vmatpush1.msra.mxu0 0.0
    %7713 = vmatprep.subr.mxu0 0.0
    %7714 = vmatpush1.msra.mxu0 0.0
    %7715 = vmatprep.subr.mxu0 0.0
    %7716 = vmatpush1.msra.mxu0 0.0
    %7717 = vmatprep.subr.mxu0 0.0
    %7718 = vmatpush1.msra.mxu0 0.0
    %7719 = vmatprep.mubr.f32.mxu0 0.0
    %7720 = vmatmul.mubr.f32.gmra.mrb[0].mxu0 %v7650
    %v7721 = vpop.f32.mrb[0].mxu0
    %v7722 = vadd.f32 %v7647, %v7721
    %v7723 = vpop.f32.mrb[0].mxu0
    %7724 = vmatprep.mubr.f32.mxu0 0.0
    %7725 = vmatmul.mubr.f32.gmra.mrb[0].mxu0 %v7653
    %v7726 = vpop.f32.mrb[0].mxu0
    %v7727 = vadd.f32 %v7647, %v7726
    %v7728 = vpop.f32.mrb[0].mxu0
    %7729 = vdwg.mxu0
    %v7730 = vmul.f32 %v7722, 1.702
    %v7731 = vmul.f32 %v7727, 1.702
    %v7732 = vxor.u32 %v7730, 2147483648
    %v7733 = vxor.u32 %v7731, 2147483648
    %v7734 = vmul.f32 %v7732, 1.442695
    %v7735 = vpow.pop %v7734
    %v7736 = vmul.f32 %v7733, 1.442695
    %v7737 = vpow.pop %v7736
    %v7738 = vadd.f32 %v7735, 1.0
    %v7739 = vadd.f32 %v7737, 1.0
    %v7740 = vrcp.pop %v7738
    %v7741 = vmul.f32 1.0, %v7740
    %v7742 = vrcp.pop %v7739
    %v7743 = vmul.f32 1.0, %v7742
    %v7744 = vmul.f32 %v7722, %v7741
    %v7745 = vmul.f32 %v7727, %v7743
    %s7746 = scalar_lea.vmem %s67, 128
    %v7747 = vld [vmem:[%s7746] sm:$0xff]
    %v7748 = vld [vmem:[%s7746 + $0x8] sm:$0xff]
    %v7749 = vld [vmem:[%s7746 + $0x10] sm:$0xff]
    %v7750 = vld [vmem:[%s7746 + $0x18] sm:$0xff]
    %v7751 = vld [vmem:[%s7746 + $0x20] sm:$0xff]
    %v7752 = vld [vmem:[%s7746 + $0x28] sm:$0xff]
    %v7753 = vld [vmem:[%s7746 + $0x30] sm:$0xff]
    %v7754 = vld [vmem:[%s7746 + $0x38] sm:$0xff]
    %v7755 = vld [vmem:[%s7746 + $0x40] sm:$0xff]
    %v7756 = vld [vmem:[%s7746 + $0x48] sm:$0xff]
    %v7757 = vld [vmem:[%s7746 + $0x50] sm:$0xff]
    %v7758 = vld [vmem:[%s7746 + $0x58] sm:$0xff]
    %v7759 = vld [vmem:[%s7746 + $0x60] sm:$0xff]
    %v7760 = vld [vmem:[%s7746 + $0x68] sm:$0xff]
    %v7761 = vld [vmem:[%s7746 + $0x70] sm:$0xff]
    %v7762 = vld [vmem:[%s7746 + $0x78] sm:$0xff]
    %s7763 = scalar_lea.vmem %s69, 1
    %v7764 = vld [vmem:[%s7763] sm:$0x1]
    %v7766 = vlaneseq
    %v7767 = vshrl.u32 %v7766, 7
    %v7768 = vsub.s32 0, %v7767
    %v7769 = vrot.slane %v7764, %v7768
    %7771 = vmatprep.subr.mxu0 0.0
    %7772 = vmatpush1.msra.mxu0 %v7747
    %7773 = vmatprep.subr.mxu0 0.0
    %7774 = vmatpush1.msra.mxu0 %v7748
    %7775 = vmatprep.subr.mxu0 0.0
    %7776 = vmatpush1.msra.mxu0 %v7749
    %7777 = vmatprep.subr.mxu0 0.0
    %7778 = vmatpush1.msra.mxu0 %v7750
    %7779 = vmatprep.subr.mxu0 0.0
    %7780 = vmatpush1.msra.mxu0 %v7751
    %7781 = vmatprep.subr.mxu0 0.0
    %7782 = vmatpush1.msra.mxu0 %v7752
    %7783 = vmatprep.subr.mxu0 0.0
    %7784 = vmatpush1.msra.mxu0 %v7753
    %7785 = vmatprep.subr.mxu0 0.0
    %7786 = vmatpush1.msra.mxu0 %v7754
    %7787 = vmatprep.subr.mxu0 0.0
    %7788 = vmatpush1.msra.mxu0 %v7755
    %7789 = vmatprep.subr.mxu0 0.0
    %7790 = vmatpush1.msra.mxu0 %v7756
    %7791 = vmatprep.subr.mxu0 0.0
    %7792 = vmatpush1.msra.mxu0 %v7757
    %7793 = vmatprep.subr.mxu0 0.0
    %7794 = vmatpush1.msra.mxu0 %v7758
    %7795 = vmatprep.subr.mxu0 0.0
    %7796 = vmatpush1.msra.mxu0 %v7759
    %7797 = vmatprep.subr.mxu0 0.0
    %7798 = vmatpush1.msra.mxu0 %v7760
    %7799 = vmatprep.subr.mxu0 0.0
    %7800 = vmatpush1.msra.mxu0 %v7761
    %7801 = vmatprep.subr.mxu0 0.0
    %7802 = vmatpush1.msra.mxu0 %v7762
    %7803 = vmatprep.subr.mxu0 0.0
    %7804 = vmatpush1.msra.mxu0 0.0
    %7805 = vmatprep.subr.mxu0 0.0
    %7806 = vmatpush1.msra.mxu0 0.0
    %7807 = vmatprep.subr.mxu0 0.0
    %7808 = vmatpush1.msra.mxu0 0.0
    %7809 = vmatprep.subr.mxu0 0.0
    %7810 = vmatpush1.msra.mxu0 0.0
    %7811 = vmatprep.subr.mxu0 0.0
    %7812 = vmatpush1.msra.mxu0 0.0
    %7813 = vmatprep.subr.mxu0 0.0
    %7814 = vmatpush1.msra.mxu0 0.0
    %7815 = vmatprep.subr.mxu0 0.0
    %7816 = vmatpush1.msra.mxu0 0.0
    %7817 = vmatprep.subr.mxu0 0.0
    %7818 = vmatpush1.msra.mxu0 0.0
    %7819 = vmatprep.subr.mxu0 0.0
    %7820 = vmatpush1.msra.mxu0 0.0
    %7821 = vmatprep.subr.mxu0 0.0
    %7822 = vmatpush1.msra.mxu0 0.0
    %7823 = vmatprep.subr.mxu0 0.0
    %7824 = vmatpush1.msra.mxu0 0.0
    %7825 = vmatprep.subr.mxu0 0.0
    %7826 = vmatpush1.msra.mxu0 0.0
    %7827 = vmatprep.subr.mxu0 0.0
    %7828 = vmatpush1.msra.mxu0 0.0
    %7829 = vmatprep.subr.mxu0 0.0
    %7830 = vmatpush1.msra.mxu0 0.0
    %7831 = vmatprep.subr.mxu0 0.0
    %7832 = vmatpush1.msra.mxu0 0.0
    %7833 = vmatprep.subr.mxu0 0.0
    %7834 = vmatpush1.msra.mxu0 0.0
    %7835 = vmatprep.mubr.f32.mxu0 0.0
    %7836 = vmatmul.mubr.f32.gmra.mrb[0].mxu0 %v7744
    %v7837 = vpop.f32.mrb[0].mxu0
    %v7838 = vadd.f32 %v7769, %v7837
    %v7839 = vpop.f32.mrb[0].mxu0
    %7840 = vmatprep.mubr.f32.mxu0 0.0
    %7841 = vmatmul.mubr.f32.gmra.mrb[0].mxu0 %v7745
    %v7842 = vpop.f32.mrb[0].mxu0
    %v7843 = vadd.f32 %v7769, %v7842
    %v7844 = vpop.f32.mrb[0].mxu0
    %7845 = vdwg.mxu0
    %v7846 = vadd.f32 %v7588, %v7838
    %v7847 = vadd.f32 %v7589, %v7843
    %v7848 = vld [vmem:[%s71] sm:$0x1]
    %v7849 = vld [vmem:[%s73] sm:$0x1]
    %v7850 = vsel %vm285, %v7846, 0.0
    %7851 = vadd.xlane.f32.xlu0 %v7850
    %v7852 = vpop.xlane.xlu0 %7851
    %v7853 = vsel %vm285, %v7847, 0.0
    %7854 = vadd.xlane.f32.xlu0 %v7853
    %v7855 = vpop.xlane.xlu0 %7854
    %v7856 = vmul.f32 %v7852, %v292
    %v7857 = vmul.f32 %v7855, %v292
    %v7858 = vsub.f32 %v7846, %v7856
    %v7859 = vsub.f32 %v7847, %v7857
    %v7860 = vmul.f32 %v7858, %v7858
    %v7861 = vmul.f32 %v7859, %v7859
    %v7862 = vsel %vm285, %v7860, 0.0
    %7863 = vadd.xlane.f32.xlu0 %v7862
    %v7864 = vpop.xlane.xlu0 %7863
    %v7865 = vsel %vm285, %v7861, 0.0
    %7866 = vadd.xlane.f32.xlu0 %v7865
    %v7867 = vpop.xlane.xlu0 %7866
    %v7868 = vmul.f32 %v7864, %v292
    %v7869 = vmul.f32 %v7867, %v292
    %v7870 = vadd.f32 %v7868, 1e-05
    %v7871 = vadd.f32 %v7869, 1e-05
    %v7872 = vrsqrt.pop %v7870
    %v7873 = vrsqrt.pop %v7871
    %v7874 = vmul.f32 %v7858, %v7872
    %v7875 = vmul.f32 %v7859, %v7873
    %v7877 = vlaneseq
    %v7878 = vshrl.u32 %v7877, 7
    %v7879 = vsub.s32 0, %v7878
    %v7880 = vrot.slane %v7848, %v7879
    %v7882 = vmul.f32 %v7874, %v7880
    %v7883 = vmul.f32 %v7875, %v7880
    %v7885 = vlaneseq
    %v7886 = vshrl.u32 %v7885, 7
    %v7887 = vsub.s32 0, %v7886
    %v7888 = vrot.slane %v7849, %v7887
    %v7890 = vadd.f32 %v7882, %v7888
    %v7891 = vadd.f32 %v7883, %v7888
    %v7892 = vld [vmem:[%s77] sm:$0x3]
    %v7894 = vsel %vm1823, %v7892, 0
    %7896 = vmatprep.subr.mxu0 0.0
    %7897 = vmatpush1.msra.mxu0 %v7890
    %7898 = vmatprep.subr.mxu0 0.0
    %7899 = vmatpush1.msra.mxu0 %v7891
    %7900 = vmatprep.subr.mxu0 0.0
    %7901 = vmatpush1.msra.mxu0 0.0
    %7902 = vmatprep.subr.mxu0 0.0
    %7903 = vmatpush1.msra.mxu0 0.0
    %7904 = vmatprep.subr.mxu0 0.0
    %7905 = vmatpush1.msra.mxu0 0.0
    %7906 = vmatprep.subr.mxu0 0.0
    %7907 = vmatpush1.msra.mxu0 0.0
    %7908 = vmatprep.subr.mxu0 0.0
    %7909 = vmatpush1.msra.mxu0 0.0
    %7910 = vmatprep.subr.mxu0 0.0
    %7911 = vmatpush1.msra.mxu0 0.0
    %7912 = vmatprep.subr.mxu0 0.0
    %7913 = vmatpush1.msra.mxu0 0.0
    %7914 = vmatprep.subr.mxu0 0.0
    %7915 = vmatpush1.msra.mxu0 0.0
    %7916 = vmatprep.subr.mxu0 0.0
    %7917 = vmatpush1.msra.mxu0 0.0
    %7918 = vmatprep.subr.mxu0 0.0
    %7919 = vmatpush1.msra.mxu0 0.0
    %7920 = vmatprep.subr.mxu0 0.0
    %7921 = vmatpush1.msra.mxu0 0.0
    %7922 = vmatprep.subr.mxu0 0.0
    %7923 = vmatpush1.msra.mxu0 0.0
    %7924 = vmatprep.subr.mxu0 0.0
    %7925 = vmatpush1.msra.mxu0 0.0
    %7926 = vmatprep.subr.mxu0 0.0
    %7927 = vmatpush1.msra.mxu0 0.0
    %7928 = vmatprep.subr.mxu0 0.0
    %7929 = vmatpush1.msra.mxu0 0.0
    %7930 = vmatprep.subr.mxu0 0.0
    %7931 = vmatpush1.msra.mxu0 0.0
    %7932 = vmatprep.subr.mxu0 0.0
    %7933 = vmatpush1.msra.mxu0 0.0
    %7934 = vmatprep.subr.mxu0 0.0
    %7935 = vmatpush1.msra.mxu0 0.0
    %7936 = vmatprep.subr.mxu0 0.0
    %7937 = vmatpush1.msra.mxu0 0.0
    %7938 = vmatprep.subr.mxu0 0.0
    %7939 = vmatpush1.msra.mxu0 0.0
    %7940 = vmatprep.subr.mxu0 0.0
    %7941 = vmatpush1.msra.mxu0 0.0
    %7942 = vmatprep.subr.mxu0 0.0
    %7943 = vmatpush1.msra.mxu0 0.0
    %7944 = vmatprep.subr.mxu0 0.0
    %7945 = vmatpush1.msra.mxu0 0.0
    %7946 = vmatprep.subr.mxu0 0.0
    %7947 = vmatpush1.msra.mxu0 0.0
    %7948 = vmatprep.subr.mxu0 0.0
    %7949 = vmatpush1.msra.mxu0 0.0
    %7950 = vmatprep.subr.mxu0 0.0
    %7951 = vmatpush1.msra.mxu0 0.0
    %7952 = vmatprep.subr.mxu0 0.0
    %7953 = vmatpush1.msra.mxu0 0.0
    %7954 = vmatprep.subr.mxu0 0.0
    %7955 = vmatpush1.msra.mxu0 0.0
    %7956 = vmatprep.subr.mxu0 0.0
    %7957 = vmatpush1.msra.mxu0 0.0
    %7958 = vmatprep.subr.mxu0 0.0
    %7959 = vmatpush1.msra.mxu0 0.0
    %7960 = vmatprep.mubr.f32.mxu0 0.0
    %7961 = vmatmul.mubr.f32.gmra.mrb[0].mxu0 %v7894
    %v7962 = vpop.f32.mrb[0].mxu0
    %v7963 = vadd.f32 0.0, %v7962
    %v7964 = vpop.f32.mrb[0].mxu0
    %7965 = vdwg.mxu0
    %v7966 = vld [vmem:[%s75] sm:$0xff]
    %v7967 = vld [vmem:[%s75 + $0x8] sm:$0xff]
    %v7968 = vld [vmem:[%s75 + $0x10] sm:$0xff]
    %v7969 = vld [vmem:[%s75 + $0x18] sm:$0xff]
    %v7971 = vsel %vm285, %v7963, 0
    %7973 = vmatprep.subr.mxu0 0.0
    %7974 = vmatpush1.msra.mxu0 %v7966
    %7975 = vmatprep.subr.mxu0 0.0
    %7976 = vmatpush1.msra.mxu0 %v7967
    %7977 = vmatprep.subr.mxu0 0.0
    %7978 = vmatpush1.msra.mxu0 %v7968
    %7979 = vmatprep.subr.mxu0 0.0
    %7980 = vmatpush1.msra.mxu0 %v7969
    %7981 = vmatprep.subr.mxu0 0.0
    %7982 = vmatpush1.msra.mxu0 0.0
    %7983 = vmatprep.subr.mxu0 0.0
    %7984 = vmatpush1.msra.mxu0 0.0
    %7985 = vmatprep.subr.mxu0 0.0
    %7986 = vmatpush1.msra.mxu0 0.0
    %7987 = vmatprep.subr.mxu0 0.0
    %7988 = vmatpush1.msra.mxu0 0.0
    %7989 = vmatprep.subr.mxu0 0.0
    %7990 = vmatpush1.msra.mxu0 0.0
    %7991 = vmatprep.subr.mxu0 0.0
    %7992 = vmatpush1.msra.mxu0 0.0
    %7993 = vmatprep.subr.mxu0 0.0
    %7994 = vmatpush1.msra.mxu0 0.0
    %7995 = vmatprep.subr.mxu0 0.0
    %7996 = vmatpush1.msra.mxu0 0.0
    %7997 = vmatprep.subr.mxu0 0.0
    %7998 = vmatpush1.msra.mxu0 0.0
    %7999 = vmatprep.subr.mxu0 0.0
    %8000 = vmatpush1.msra.mxu0 0.0
    %8001 = vmatprep.subr.mxu0 0.0
    %8002 = vmatpush1.msra.mxu0 0.0
    %8003 = vmatprep.subr.mxu0 0.0
    %8004 = vmatpush1.msra.mxu0 0.0
    %8005 = vmatprep.subr.mxu0 0.0
    %8006 = vmatpush1.msra.mxu0 0.0
    %8007 = vmatprep.subr.mxu0 0.0
    %8008 = vmatpush1.msra.mxu0 0.0
    %8009 = vmatprep.subr.mxu0 0.0
    %8010 = vmatpush1.msra.mxu0 0.0
    %8011 = vmatprep.subr.mxu0 0.0
    %8012 = vmatpush1.msra.mxu0 0.0
    %8013 = vmatprep.subr.mxu0 0.0
    %8014 = vmatpush1.msra.mxu0 0.0
    %8015 = vmatprep.subr.mxu0 0.0
    %8016 = vmatpush1.msra.mxu0 0.0
    %8017 = vmatprep.subr.mxu0 0.0
    %8018 = vmatpush1.msra.mxu0 0.0
    %8019 = vmatprep.subr.mxu0 0.0
    %8020 = vmatpush1.msra.mxu0 0.0
    %8021 = vmatprep.subr.mxu0 0.0
    %8022 = vmatpush1.msra.mxu0 0.0
    %8023 = vmatprep.subr.mxu0 0.0
    %8024 = vmatpush1.msra.mxu0 0.0
    %8025 = vmatprep.subr.mxu0 0.0
    %8026 = vmatpush1.msra.mxu0 0.0
    %8027 = vmatprep.subr.mxu0 0.0
    %8028 = vmatpush1.msra.mxu0 0.0
    %8029 = vmatprep.subr.mxu0 0.0
    %8030 = vmatpush1.msra.mxu0 0.0
    %8031 = vmatprep.subr.mxu0 0.0
    %8032 = vmatpush1.msra.mxu0 0.0
    %8033 = vmatprep.subr.mxu0 0.0
    %8034 = vmatpush1.msra.mxu0 0.0
    %8035 = vmatprep.subr.mxu0 0.0
    %8036 = vmatpush1.msra.mxu0 0.0
    %8037 = vmatprep.mubr.f32.mxu0 0.0
    %8038 = vmatmul.mubr.f32.gmra.mrb[0].mxu0 %v7971
    %v8039 = vpop.f32.mrb[0].mxu0
    %v8040 = vadd.f32 0.0, %v8039
    %v8041 = vpop.f32.mrb[0].mxu0
    %8042 = vdwg.mxu0
    %v8043 = vmul.f32 %v8040, %v8040
    %v8044 = vsel %vm4151, %v8043, 0.0
    %8045 = vadd.xlane.f32.xlu0 %v8044
    %v8046 = vpop.xlane.xlu0 %8045
    %v8047 = vrsqrt.pop %v8046
    %v8048 = vmul.f32 %v8040, %v8047
    %v8049 = vsel %vm1823, %v8048, 0.0
    %8050 = vst [vmem:[#allocation4] sm:$0x3] %v8049
    // Predicated region
    $region158: #{custom_clip_forward.1} parent=1 // pred_check
      _
    $region159: #{custom_clip_forward.1} parent=1 // pred_check_branch
      %8052 = sbr.rel (0) target = $region161
    $region160: #{custom_clip_forward.1} parent=1 // pred_region
      %s8054 = ssub.s32 32, 32
      %8055 = vsyncadd [#allocation3], %s8054
      %s8057 = sshll.u32 [#allocation2], 4
      %s8058 = int_to_ptr.vmem [resolvable:$true] %s8057
      %8060 = dma.vmem_to_hbm [thread:$0]  %s8058, 32, %s79, [#allocation3]
    $region161: #{custom_clip_forward.1} parent=1 // pred_fallthru
      _
    // Predicated region
    $region162: #{custom_clip_forward.1} parent=1 // pred_check
      _
    $region163: #{custom_clip_forward.1} parent=1 // pred_check_branch
      %8062 = sbr.rel (0) target = $region165
    $region164: #{custom_clip_forward.1} parent=1 // pred_region
      %s8064 = ssub.s32 32, 32
      %8065 = vsyncadd [#allocation5], %s8064
      %s8067 = sshll.u32 [#allocation4], 4
      %s8068 = int_to_ptr.vmem [resolvable:$true] %s8067
      %8070 = dma.vmem_to_hbm [thread:$0]  %s8068, 32, %s81, [#allocation5]
    $region165: #{custom_clip_forward.1} parent=1 // pred_fallthru
      _
    // Predicated region
    $region166: #{custom_clip_forward.1} parent=1 // pred_check
      _
    $region167: #{custom_clip_forward.1} parent=1 // pred_check_branch
      %8072 = sbr.rel (0) target = $region169
    $region168: #{custom_clip_forward.1} parent=1 // pred_region
      %8073 = dma.done [#allocation3], 32
    $region169: #{custom_clip_forward.1} parent=1 // pred_fallthru
      _
    // Predicated region
    $region170: #{custom_clip_forward.1} parent=1 // pred_check
      _
    $region171: #{custom_clip_forward.1} parent=1 // pred_check_branch
      %8075 = sbr.rel (0) target = $region173
    $region172: #{custom_clip_forward.1} parent=1 // pred_region
      %8076 = dma.done [#allocation5], 32
    $region173: #{custom_clip_forward.1} parent=1 // pred_fallthru
      _
    %8077 = vsyncpa [#allocation3], 1
    %8078 = vsyncpa [#allocation5], 1

</llo_original>
